<compile_context>
chip_gen: v6e
topology: v6e:2x2x1
jax: 0.10.0
libtpu: 0.0.40
codegen_flags: <defaults>
</compile_context>

<pallas_src>
import functools

import jax
import jax.numpy as jnp
from jax.experimental import pallas as pl
from jax.experimental.pallas import tpu as pltpu

IN_SIZE = 4 * 2          # input_size = 8 (head 4 + tail 4)
HIDDEN = 512             # sizes = [512, 512, 512, 1]
OUT_SIZE = 1
LN_EPS = 1e-5            # torch.nn.LayerNorm default eps


def _layer_norm_noaffine(h):
    """LayerNorm over last dim (biased variance), one-pass statistics.

    gamma/beta are folded into the next layer's weights in the wrapper, so the
    kernel only normalizes.  One-pass stats are safe: h is post-tanh, |h|<=1.
    """
    inv_n = 1.0 / h.shape[-1]
    s = jnp.sum(h, axis=-1, keepdims=True)
    ss = jnp.sum(h * h, axis=-1, keepdims=True)
    mu = s * inv_n
    var = ss * inv_n - mu * mu
    return (h - mu) * jax.lax.rsqrt(var + LN_EPS)


def filter_mlp_kernel(x_ref,
                      w1_ref, b1_ref,
                      w2_ref, b2_ref,
                      w3_ref, b3_ref,
                      wh_ref, bh_ref,
                      o_ref):
    # --- Layer 1: one (tm,8)x(8,512) bf16 dot, f32 accumulate, tanh, LN ---
    x = x_ref[...].astype(jnp.bfloat16)
    h = jnp.dot(x, w1_ref[...], preferred_element_type=jnp.float32) + b1_ref[...]
    h = _layer_norm_noaffine(jnp.tanh(h))

    # --- Layer 2: Linear(512,512) (gamma1/beta1 pre-folded) + Tanh + LN ---
    h = jnp.dot(h.astype(jnp.bfloat16), w2_ref[...],
                preferred_element_type=jnp.float32) + b2_ref[...]
    h = _layer_norm_noaffine(jnp.tanh(h))

    # --- Layer 3: Linear(512,512) (gamma2/beta2 pre-folded) + Tanh + LN ---
    h = jnp.dot(h.astype(jnp.bfloat16), w3_ref[...],
                preferred_element_type=jnp.float32) + b3_ref[...]
    h = _layer_norm_noaffine(jnp.tanh(h))

    # --- Output head Linear(512,1) with gamma3/beta3 folded in: VPU multiply
    #     + lane reduction (no degenerate 1-column MXU matmul); written as a
    #     lane-dense (1, 1, tm) row -> unmasked vector stores. ---
    logits = jnp.sum(h * wh_ref[...], axis=-1, keepdims=True) + bh_ref[...]  # (tm, 1)
    o_ref[...] = logits.reshape(o_ref.shape).astype(o_ref.dtype)


def _round_up(x, m):
    return -(-x // m) * m


@functools.partial(jax.jit, static_argnames=("tm",))
def exatrkx_filter_forward(head, tail, params, *, tm=1024):
    """head, tail: (N, 4) float32.  Returns (N, 1) float32 logits."""
    n = head.shape[0]

    # v7x has 2 TensorCores: cap the tile so the "parallel" row axis keeps at
    # least 2 grid steps when N allows it; keep tiles a multiple of 128 so the
    # lane-dense output stores stay unmasked.
    tm_eff = max(128, min(tm, _round_up(_round_up(n, 2) // 2, 128)))
    n_tiles = -(-n // tm_eff)
    n_pad = n_tiles * tm_eff

    # Single (N, 8) input stream (torch.cat([head, tail], dim=-1)).
    x = jnp.concatenate([head, tail], axis=-1)
    if n_pad != n:                               # pad rows, crop after
        x = jnp.pad(x, ((0, n_pad - n), (0, 0)))

    (w1, b1, g1, bt1, w2, b2, g2, bt2, w3, b3, g3, bt3, w4, b4) = params

    # Fold each LayerNorm's affine into the NEXT linear layer:
    #   (LN(h)*g + bt) @ W + b  ==  LN(h) @ (g[:,None]*W) + (bt @ W + b)
    # so the in-kernel LayerNorm is affine-free.  MXU operands are bf16;
    # accumulation and all elementwise math stay f32.
    w1b = w1.astype(jnp.bfloat16)
    w2f = (g1.reshape(HIDDEN, 1) * w2).astype(jnp.bfloat16)
    b2f = bt1 @ w2 + b2
    w3f = (g2.reshape(HIDDEN, 1) * w3).astype(jnp.bfloat16)
    b3f = bt2 @ w3 + b3
    wh = (g3.reshape(1, HIDDEN) * w4.reshape(1, HIDDEN)).astype(jnp.float32)  # VPU row
    bh = (bt3 @ w4 + b4).reshape(1, OUT_SIZE)

    def full(a):
        nd = a.ndim
        return pl.BlockSpec(a.shape, lambda i, nd=nd: (0,) * nd)

    out = pl.pallas_call(
        filter_mlp_kernel,
        out_shape=jax.ShapeDtypeStruct((n_tiles, 1, tm_eff), jnp.float32),
        grid_spec=pltpu.PrefetchScalarGridSpec(
            num_scalar_prefetch=0,
            grid=(n_tiles,),
            in_specs=[
                pl.BlockSpec((tm_eff, IN_SIZE), lambda i: (i, 0)),
                full(w1b), full(b1),
                full(w2f), full(b2f),
                full(w3f), full(b3f),
                full(wh), full(bh),
            ],
            out_specs=pl.BlockSpec((1, 1, tm_eff), lambda i: (i, 0, 0)),
        ),
        compiler_params=pltpu.CompilerParams(
            dimension_semantics=("parallel",),       # row axis shards across TCs (v7x)
            vmem_limit_bytes=48 * 1024 * 1024,       # tm=1024 also fits v5e's scoped VMEM
        ),
    )(x, w1b, b1, w2f, b2f, w3f, b3f, wh, bh)

    # (n_tiles, 1, tm) lane-dense slab -> (N, 1) logits (crop padding).
    return out.reshape(n_pad, 1)[:n]


def init_params(key):
    """Deterministic synthetic init (PyTorch Linear-style uniform +-1/sqrt(fan_in))."""
    def linear(k, fan_in, fan_out):
        kw, kb = jax.random.split(k)
        bound = 1.0 / jnp.sqrt(fan_in)
        w = jax.random.uniform(kw, (fan_in, fan_out), jnp.float32, -bound, bound)
        b = jax.random.uniform(kb, (1, fan_out), jnp.float32, -bound, bound)
        return w, b

    k1, k2, k3, k4 = jax.random.split(key, 4)
    w1, b1 = linear(k1, IN_SIZE, HIDDEN)
    w2, b2 = linear(k2, HIDDEN, HIDDEN)
    w3, b3 = linear(k3, HIDDEN, HIDDEN)
    w4, b4 = linear(k4, HIDDEN, OUT_SIZE)
    ones = jnp.ones((1, HIDDEN), jnp.float32)
    zeros = jnp.zeros((1, HIDDEN), jnp.float32)
    # LayerNorm affine params: gamma=1, beta=0 (PyTorch default)
    return (w1, b1, ones, zeros,
            w2, b2, ones, zeros,
            w3, b3, ones, zeros,
            w4, b4)


def reference_forward(head, tail, params):
    """Pure-JAX reference mirroring the kernel's bf16-matmul / f32-elementwise policy."""
    (w1, b1, g1, bt1, w2, b2, g2, bt2, w3, b3, g3, bt3, w4, b4) = params
    x = jnp.concatenate([head, tail], axis=-1)
    for (w, b, g, bt) in ((w1, b1, g1, bt1), (w2, b2, g2, bt2), (w3, b3, g3, bt3)):
        x = jnp.dot(x.astype(jnp.bfloat16), w.astype(jnp.bfloat16),
                    preferred_element_type=jnp.float32) + b
        x = jnp.tanh(x)
        mu = jnp.mean(x, axis=-1, keepdims=True)
        var = jnp.mean((x - mu) ** 2, axis=-1, keepdims=True)
        x = (x - mu) / jnp.sqrt(var + LN_EPS) * g + bt
    return x @ w4 + b4


if __name__ == "__main__":
    key = jax.random.PRNGKey(0)
    kp, kh, kt = jax.random.split(key, 3)

    # Not a multiple of the tile: exercises padding AND the 2-tile grid path.
    N = 300
    head = jax.random.normal(kh, (N, 4), jnp.float32)
    tail = jax.random.normal(kt, (N, 4), jnp.float32)
    params = init_params(kp)

    out = exatrkx_filter_forward(head, tail, params)
    out = jax.block_until_ready(out)

    ref = reference_forward(head, tail, params)
    assert out.shape == (N, 1)
    assert jnp.allclose(out, ref, atol=2e-2, rtol=2e-2), "mismatch vs JAX reference"

    print("KERNEL_OK")
</pallas_src>

<mosaic_0001>
module attributes {stable_mosaic.version = 11 : i64} {
  func.func @filter_mlp_kernel(%arg0: i32, %arg1: memref<256x8xf32, #tpu.memory_space<vmem>>, %arg2: memref<8x512xbf16, #tpu.memory_space<vmem>>, %arg3: memref<1x512xf32, #tpu.memory_space<vmem>>, %arg4: memref<512x512xbf16, #tpu.memory_space<vmem>>, %arg5: memref<1x512xf32, #tpu.memory_space<vmem>>, %arg6: memref<512x512xbf16, #tpu.memory_space<vmem>>, %arg7: memref<1x512xf32, #tpu.memory_space<vmem>>, %arg8: memref<1x512xf32, #tpu.memory_space<vmem>>, %arg9: memref<1x1xf32, #tpu.memory_space<vmem>>, %arg10: memref<1x1x256xf32, #tpu.memory_space<vmem>>) attributes {dimension_semantics = [#tpu.dimension_semantics<parallel>], iteration_bounds = array<i64: 2>, scalar_prefetch = 0 : i64, scratch_operands = 0 : i64, tpu.core_type = #tpu.core_type<tc>, window_params = [{transform_indices = @transform_0, window_bounds = array<i64: 256, 8>}, {pipeline_mode = #tpu.pipeline_mode<synchronous>, transform_indices = @transform_1, window_bounds = array<i64: 8, 512>}, {pipeline_mode = #tpu.pipeline_mode<synchronous>, transform_indices = @transform_2, window_bounds = array<i64: 1, 512>}, {pipeline_mode = #tpu.pipeline_mode<synchronous>, transform_indices = @transform_3, window_bounds = array<i64: 512, 512>}, {pipeline_mode = #tpu.pipeline_mode<synchronous>, transform_indices = @transform_4, window_bounds = array<i64: 1, 512>}, {pipeline_mode = #tpu.pipeline_mode<synchronous>, transform_indices = @transform_5, window_bounds = array<i64: 512, 512>}, {pipeline_mode = #tpu.pipeline_mode<synchronous>, transform_indices = @transform_6, window_bounds = array<i64: 1, 512>}, {pipeline_mode = #tpu.pipeline_mode<synchronous>, transform_indices = @transform_7, window_bounds = array<i64: 1, 512>}, {pipeline_mode = #tpu.pipeline_mode<synchronous>, transform_indices = @transform_8, window_bounds = array<i64: 1, 1>}, {transform_indices = @transform_9, window_bounds = array<i64: 1, 1, 256>}]} {
    %c0 = arith.constant 0 : index
    %c0_0 = arith.constant 0 : index
    %0 = vector.load %arg1[%c0, %c0_0] : memref<256x8xf32, #tpu.memory_space<vmem>>, vector<256x8xf32>
    %1 = arith.truncf %0 : vector<256x8xf32> to vector<256x8xbf16>
    %c0_1 = arith.constant 0 : index
    %c0_2 = arith.constant 0 : index
    %2 = vector.load %arg2[%c0_1, %c0_2] : memref<8x512xbf16, #tpu.memory_space<vmem>>, vector<8x512xbf16>
    %cst = arith.constant dense<0.000000e+00> : vector<256x512xf32>
    %3 = tpu.matmul %1, %2, %cst {dimension_numbers = #tpu.dot_dimension_numbers<[1], [0], [0], [1], [0, 0, 1, 1], [], []>} : vector<256x8xbf16>, vector<8x512xbf16>, vector<256x512xf32> -> vector<256x512xf32>
    %c0_3 = arith.constant 0 : index
    %c0_4 = arith.constant 0 : index
    %4 = vector.load %arg3[%c0_3, %c0_4] : memref<1x512xf32, #tpu.memory_space<vmem>>, vector<1x512xf32>
    %5 = vector.broadcast %4 : vector<1x512xf32> to vector<256x512xf32>
    %6 = arith.addf %3, %5 : vector<256x512xf32>
    %7 = math.tanh %6 : vector<256x512xf32>
    %cst_5 = arith.constant dense<0.000000e+00> : vector<256xf32>
    %8 = vector.multi_reduction <add>, %7, %cst_5 [1] : vector<256x512xf32> to vector<256xf32>
    %9 = vector.shape_cast %8 : vector<256xf32> to vector<256x1xf32>
    %10 = arith.mulf %7, %7 : vector<256x512xf32>
    %cst_6 = arith.constant dense<0.000000e+00> : vector<256xf32>
    %11 = vector.multi_reduction <add>, %10, %cst_6 [1] : vector<256x512xf32> to vector<256xf32>
    %12 = vector.shape_cast %11 : vector<256xf32> to vector<256x1xf32>
    %cst_7 = arith.constant 0.001953125 : f32
    %13 = vector.broadcast %cst_7 : f32 to vector<256x1xf32>
    %14 = arith.mulf %9, %13 : vector<256x1xf32>
    %cst_8 = arith.constant 0.001953125 : f32
    %15 = vector.broadcast %cst_8 : f32 to vector<256x1xf32>
    %16 = arith.mulf %12, %15 : vector<256x1xf32>
    %17 = arith.mulf %14, %14 : vector<256x1xf32>
    %18 = arith.subf %16, %17 : vector<256x1xf32>
    %19 = vector.broadcast %14 : vector<256x1xf32> to vector<256x512xf32>
    %20 = arith.subf %7, %19 : vector<256x512xf32>
    %cst_9 = arith.constant 9.99999974E-6 : f32
    %21 = vector.broadcast %cst_9 : f32 to vector<256x1xf32>
    %22 = arith.addf %18, %21 : vector<256x1xf32>
    %23 = math.rsqrt %22 : vector<256x1xf32>
    %24 = vector.broadcast %23 : vector<256x1xf32> to vector<256x512xf32>
    %25 = arith.mulf %20, %24 : vector<256x512xf32>
    %26 = arith.truncf %25 : vector<256x512xf32> to vector<256x512xbf16>
    %c0_10 = arith.constant 0 : index
    %c0_11 = arith.constant 0 : index
    %27 = vector.load %arg4[%c0_10, %c0_11] : memref<512x512xbf16, #tpu.memory_space<vmem>>, vector<512x512xbf16>
    %cst_12 = arith.constant dense<0.000000e+00> : vector<256x512xf32>
    %28 = tpu.matmul %26, %27, %cst_12 {dimension_numbers = #tpu.dot_dimension_numbers<[1], [0], [0], [1], [0, 0, 1, 1], [], []>} : vector<256x512xbf16>, vector<512x512xbf16>, vector<256x512xf32> -> vector<256x512xf32>
    %c0_13 = arith.constant 0 : index
    %c0_14 = arith.constant 0 : index
    %29 = vector.load %arg5[%c0_13, %c0_14] : memref<1x512xf32, #tpu.memory_space<vmem>>, vector<1x512xf32>
    %30 = vector.broadcast %29 : vector<1x512xf32> to vector<256x512xf32>
    %31 = arith.addf %28, %30 : vector<256x512xf32>
    %32 = math.tanh %31 : vector<256x512xf32>
    %cst_15 = arith.constant dense<0.000000e+00> : vector<256xf32>
    %33 = vector.multi_reduction <add>, %32, %cst_15 [1] : vector<256x512xf32> to vector<256xf32>
    %34 = vector.shape_cast %33 : vector<256xf32> to vector<256x1xf32>
    %35 = arith.mulf %32, %32 : vector<256x512xf32>
    %cst_16 = arith.constant dense<0.000000e+00> : vector<256xf32>
    %36 = vector.multi_reduction <add>, %35, %cst_16 [1] : vector<256x512xf32> to vector<256xf32>
    %37 = vector.shape_cast %36 : vector<256xf32> to vector<256x1xf32>
    %cst_17 = arith.constant 0.001953125 : f32
    %38 = vector.broadcast %cst_17 : f32 to vector<256x1xf32>
    %39 = arith.mulf %34, %38 : vector<256x1xf32>
    %cst_18 = arith.constant 0.001953125 : f32
    %40 = vector.broadcast %cst_18 : f32 to vector<256x1xf32>
    %41 = arith.mulf %37, %40 : vector<256x1xf32>
    %42 = arith.mulf %39, %39 : vector<256x1xf32>
    %43 = arith.subf %41, %42 : vector<256x1xf32>
    %44 = vector.broadcast %39 : vector<256x1xf32> to vector<256x512xf32>
    %45 = arith.subf %32, %44 : vector<256x512xf32>
    %cst_19 = arith.constant 9.99999974E-6 : f32
    %46 = vector.broadcast %cst_19 : f32 to vector<256x1xf32>
    %47 = arith.addf %43, %46 : vector<256x1xf32>
    %48 = math.rsqrt %47 : vector<256x1xf32>
    %49 = vector.broadcast %48 : vector<256x1xf32> to vector<256x512xf32>
    %50 = arith.mulf %45, %49 : vector<256x512xf32>
    %51 = arith.truncf %50 : vector<256x512xf32> to vector<256x512xbf16>
    %c0_20 = arith.constant 0 : index
    %c0_21 = arith.constant 0 : index
    %52 = vector.load %arg6[%c0_20, %c0_21] : memref<512x512xbf16, #tpu.memory_space<vmem>>, vector<512x512xbf16>
    %cst_22 = arith.constant dense<0.000000e+00> : vector<256x512xf32>
    %53 = tpu.matmul %51, %52, %cst_22 {dimension_numbers = #tpu.dot_dimension_numbers<[1], [0], [0], [1], [0, 0, 1, 1], [], []>} : vector<256x512xbf16>, vector<512x512xbf16>, vector<256x512xf32> -> vector<256x512xf32>
    %c0_23 = arith.constant 0 : index
    %c0_24 = arith.constant 0 : index
    %54 = vector.load %arg7[%c0_23, %c0_24] : memref<1x512xf32, #tpu.memory_space<vmem>>, vector<1x512xf32>
    %55 = vector.broadcast %54 : vector<1x512xf32> to vector<256x512xf32>
    %56 = arith.addf %53, %55 : vector<256x512xf32>
    %57 = math.tanh %56 : vector<256x512xf32>
    %cst_25 = arith.constant dense<0.000000e+00> : vector<256xf32>
    %58 = vector.multi_reduction <add>, %57, %cst_25 [1] : vector<256x512xf32> to vector<256xf32>
    %59 = vector.shape_cast %58 : vector<256xf32> to vector<256x1xf32>
    %60 = arith.mulf %57, %57 : vector<256x512xf32>
    %cst_26 = arith.constant dense<0.000000e+00> : vector<256xf32>
    %61 = vector.multi_reduction <add>, %60, %cst_26 [1] : vector<256x512xf32> to vector<256xf32>
    %62 = vector.shape_cast %61 : vector<256xf32> to vector<256x1xf32>
    %cst_27 = arith.constant 0.001953125 : f32
    %63 = vector.broadcast %cst_27 : f32 to vector<256x1xf32>
    %64 = arith.mulf %59, %63 : vector<256x1xf32>
    %cst_28 = arith.constant 0.001953125 : f32
    %65 = vector.broadcast %cst_28 : f32 to vector<256x1xf32>
    %66 = arith.mulf %62, %65 : vector<256x1xf32>
    %67 = arith.mulf %64, %64 : vector<256x1xf32>
    %68 = arith.subf %66, %67 : vector<256x1xf32>
    %69 = vector.broadcast %64 : vector<256x1xf32> to vector<256x512xf32>
    %70 = arith.subf %57, %69 : vector<256x512xf32>
    %cst_29 = arith.constant 9.99999974E-6 : f32
    %71 = vector.broadcast %cst_29 : f32 to vector<256x1xf32>
    %72 = arith.addf %68, %71 : vector<256x1xf32>
    %73 = math.rsqrt %72 : vector<256x1xf32>
    %74 = vector.broadcast %73 : vector<256x1xf32> to vector<256x512xf32>
    %75 = arith.mulf %70, %74 : vector<256x512xf32>
    %c0_30 = arith.constant 0 : index
    %c0_31 = arith.constant 0 : index
    %76 = vector.load %arg8[%c0_30, %c0_31] : memref<1x512xf32, #tpu.memory_space<vmem>>, vector<1x512xf32>
    %77 = vector.broadcast %76 : vector<1x512xf32> to vector<256x512xf32>
    %78 = arith.mulf %75, %77 : vector<256x512xf32>
    %cst_32 = arith.constant dense<0.000000e+00> : vector<256xf32>
    %79 = vector.multi_reduction <add>, %78, %cst_32 [1] : vector<256x512xf32> to vector<256xf32>
    %80 = vector.shape_cast %79 : vector<256xf32> to vector<256x1xf32>
    %c0_33 = arith.constant 0 : index
    %c0_34 = arith.constant 0 : index
    %81 = vector.load %arg9[%c0_33, %c0_34] : memref<1x1xf32, #tpu.memory_space<vmem>>, vector<1x1xf32>
    %82 = vector.broadcast %81 : vector<1x1xf32> to vector<256x1xf32>
    %83 = arith.addf %80, %82 : vector<256x1xf32>
    %84 = vector.shape_cast %83 : vector<256x1xf32> to vector<1x1x256xf32>
    %c0_35 = arith.constant 0 : index
    %c0_36 = arith.constant 0 : index
    %c0_37 = arith.constant 0 : index
    %85 = vector.load %arg10[%c0_35, %c0_36, %c0_37] : memref<1x1x256xf32, #tpu.memory_space<vmem>>, vector<1x1x256xf32>
    tpu.vector_store %arg10[%c0_35, %c0_36, %c0_37], %84 {strides = array<i32>} : memref<1x1x256xf32, #tpu.memory_space<vmem>>, vector<1x1x256xf32>,
    return
  }
  func.func @transform_0(%arg0: i32) -> (i32, i32) {
    %c0_i32 = arith.constant 0 : i32
    %c0_i32_0 = arith.constant 0 : i32
    return %arg0, %c0_i32 : i32, i32
  }
  func.func @transform_1(%arg0: i32) -> (i32, i32) {
    %c0_i32 = arith.constant 0 : i32
    %c0_i32_0 = arith.constant 0 : i32
    %c0_i32_1 = arith.constant 0 : i32
    return %c0_i32, %c0_i32_0 : i32, i32
  }
  func.func @transform_2(%arg0: i32) -> (i32, i32) {
    %c0_i32 = arith.constant 0 : i32
    %c0_i32_0 = arith.constant 0 : i32
    %c0_i32_1 = arith.constant 0 : i32
    return %c0_i32, %c0_i32_0 : i32, i32
  }
  func.func @transform_3(%arg0: i32) -> (i32, i32) {
    %c0_i32 = arith.constant 0 : i32
    %c0_i32_0 = arith.constant 0 : i32
    %c0_i32_1 = arith.constant 0 : i32
    return %c0_i32, %c0_i32_0 : i32, i32
  }
  func.func @transform_4(%arg0: i32) -> (i32, i32) {
    %c0_i32 = arith.constant 0 : i32
    %c0_i32_0 = arith.constant 0 : i32
    %c0_i32_1 = arith.constant 0 : i32
    return %c0_i32, %c0_i32_0 : i32, i32
  }
  func.func @transform_5(%arg0: i32) -> (i32, i32) {
    %c0_i32 = arith.constant 0 : i32
    %c0_i32_0 = arith.constant 0 : i32
    %c0_i32_1 = arith.constant 0 : i32
    return %c0_i32, %c0_i32_0 : i32, i32
  }
  func.func @transform_6(%arg0: i32) -> (i32, i32) {
    %c0_i32 = arith.constant 0 : i32
    %c0_i32_0 = arith.constant 0 : i32
    %c0_i32_1 = arith.constant 0 : i32
    return %c0_i32, %c0_i32_0 : i32, i32
  }
  func.func @transform_7(%arg0: i32) -> (i32, i32) {
    %c0_i32 = arith.constant 0 : i32
    %c0_i32_0 = arith.constant 0 : i32
    %c0_i32_1 = arith.constant 0 : i32
    return %c0_i32, %c0_i32_0 : i32, i32
  }
  func.func @transform_8(%arg0: i32) -> (i32, i32) {
    %c0_i32 = arith.constant 0 : i32
    %c0_i32_0 = arith.constant 0 : i32
    %c0_i32_1 = arith.constant 0 : i32
    return %c0_i32, %c0_i32_0 : i32, i32
  }
  func.func @transform_9(%arg0: i32) -> (i32, i32, i32) {
    %c0_i32 = arith.constant 0 : i32
    %c0_i32_0 = arith.constant 0 : i32
    %c0_i32_1 = arith.constant 0 : i32
    return %arg0, %c0_i32, %c0_i32_0 : i32, i32, i32
  }
}

</mosaic_0001>

<llo_original>
// kernel: exatrkx_filter_forward.1
$region0: #{exatrkx_filter_forward.1}
  #allocation0 [shape = 'u32[]', space=smem, size = 0x4, offset = 0x4, fixed_abs, tag = 'smem constant byte address 0x4 - core index']
  #allocation1 [shape = 'u32[144,128]{1,0:T(1,128)}', space=vmem, size = 0x12000, scoped, tag = 'internal scratch']
  #allocation2 [shape = 'f32[1,1]{1,0:T(1,128)S(1)}', space=vmem, size = 0x200, scoped, tag = 'scoped memory for exatrkx_filter_forward.1']
  %s0 = inlined_call_operand.vmem [shape: f32[512,8], index: 0, kind: input, shape index: {}]
  %s1 = inlined_call_operand.vmem [shape: bf16[8,512], index: 1, kind: input, shape index: {}]
  %s2 = inlined_call_operand.vmem [shape: f32[1,512], index: 2, kind: input, shape index: {}]
  %s3 = inlined_call_operand.vmem [shape: bf16[512,512], index: 3, kind: input, shape index: {}]
  %s4 = inlined_call_operand.vmem [shape: f32[1,512], index: 4, kind: input, shape index: {}]
  %s5 = inlined_call_operand.vmem [shape: bf16[512,512], index: 5, kind: input, shape index: {}]
  %s6 = inlined_call_operand.vmem [shape: f32[1,512], index: 6, kind: input, shape index: {}]
  %s7 = inlined_call_operand.vmem [shape: f32[1,512], index: 7, kind: input, shape index: {}]
  %s8 = inlined_call_operand.<no memory space> [shape: f32[1,1], index: 8, kind: input, shape index: {}]
  %s9 = inlined_call_operand.vmem [shape: f32[2,1,256], index: 9, kind: output, shape index: {}]
  %s10 = sld [smem:[#allocation0]]
  $region69: #{exatrkx_filter_forward.1} parent=0
    _
  %s12 = ssub.s32 1, %s10
  %s13 = scalar_select 0, %s12, %s10
  %v14 = vstv %s8
  %15 = vst [vmem:[#allocation2] sm:$0x1] %v14
  loop: start=0, step=1, limit=4
  $region2: #{exatrkx_filter_forward.1} parent=0 // loop_pre_header
    _
  $region3: #{exatrkx_filter_forward.1} parent=0 // loop_header
    %s17 = sphi 0, %s21
    %p18 = scmp.ge.s32.totalorder %s17, 4
    %s27 = sphi 0, %s29
    %s30 = sphi 0, %s27
    %s31 = sphi 0, %s30
    %s47 = sphi 0, %s31
    %s51 = sphi 0, %s51
    %s53 = sphi 0, %s51
    %s54 = sphi 0, %s53
    %s68 = sphi 0, %s54
    %s72 = sphi 0, %s72
    %s74 = sphi 0, %s72
    %s75 = sphi 0, %s74
    %s89 = sphi 0, %s75
    %s93 = sphi 0, %s93
    %s95 = sphi 0, %s93
    %s96 = sphi 0, %s95
    %s110 = sphi 0, %s96
    %s114 = sphi 0, %s114
    %s116 = sphi 0, %s114
    %s117 = sphi 0, %s116
    %s131 = sphi 0, %s117
    %s135 = sphi 0, %s135
    %s137 = sphi 0, %s135
    %s138 = sphi 0, %s137
    %s152 = sphi 0, %s138
    %s156 = sphi 0, %s156
    %s158 = sphi 0, %s156
    %s159 = sphi 0, %s158
    %s173 = sphi 0, %s159
    %s177 = sphi 0, %s177
    %s179 = sphi 0, %s177
    %s180 = sphi 0, %s179
    %s194 = sphi 0, %s180
    %s198 = sphi 0, %s198
    %s200 = sphi 0, %s198
    %s201 = sphi 0, %s200
    %s215 = sphi 0, %s201
    %s221 = sphi 0, %s223
    %s224 = sphi 0, %s221
    %s225 = sphi 0, %s224
    %s241 = sphi 0, %s225
  $region4: #{exatrkx_filter_forward.1} parent=0 // loop_header_branch
    %20 = sbr.rel (%p18) target = $region8
  $region5: #{exatrkx_filter_forward.1} parent=0 // loop_body
    %s22 = ssub.s32 %s17, 1
    %s23 = ssub.s32 %s17, 2
    %s24 = sadd.s32 %s17, 1
    %s25 = ssub.s32 %s17, %s24
    %p26 = scmp.eq.s32.totalorder %s25, 0
    %s28 = sadd.s32 %s27, 1
    %s29 = scalar_select %p26, %s27, %s28
    %p32 = pneg %p26
    %p33 = scmp.eq.s32.totalorder %s17, 1
    %p34 = por %p32, %p33
    %p35 = scmp.ne.s32.totalorder %s27, %s30
    %p36 = scmp.eq.s32.totalorder %s17, 0
    %p37 = por %p35, %p36
    %p38 = scmp.ne.s32.totalorder %s27, %s30
    %p39 = scmp.eq.s32.totalorder %s22, 1
    %p40 = por %p38, %p39
    %p41 = scmp.ne.s32.totalorder %s30, %s31
    %p42 = scmp.eq.s32.totalorder %s22, 0
    %p43 = por %p41, %p42
    %p44 = scmp.ne.s32.totalorder %s30, %s31
    %p45 = scmp.eq.s32.totalorder %s23, 1
    %p46 = por %p44, %p45
    %p48 = scmp.ne.s32.totalorder %s31, %s47
    %p49 = scmp.eq.s32.totalorder %s23, 0
    %p50 = por %p48, %p49
    %s52 = sadd.s32 %s51, 1
    %p55 = scmp.eq.s32.totalorder %s17, 1
    %p56 = scmp.ne.s32.totalorder %s51, %s53
    %p57 = scmp.eq.s32.totalorder %s17, 0
    %p58 = por %p56, %p57
    %p59 = scmp.ne.s32.totalorder %s51, %s53
    %p60 = scmp.eq.s32.totalorder %s22, 1
    %p61 = por %p59, %p60
    %p62 = scmp.ne.s32.totalorder %s53, %s54
    %p63 = scmp.eq.s32.totalorder %s22, 0
    %p64 = por %p62, %p63
    %p65 = scmp.ne.s32.totalorder %s53, %s54
    %p66 = scmp.eq.s32.totalorder %s23, 1
    %p67 = por %p65, %p66
    %p69 = scmp.ne.s32.totalorder %s54, %s68
    %p70 = scmp.eq.s32.totalorder %s23, 0
    %p71 = por %p69, %p70
    %s73 = sadd.s32 %s72, 1
    %p76 = scmp.eq.s32.totalorder %s17, 1
    %p77 = scmp.ne.s32.totalorder %s72, %s74
    %p78 = scmp.eq.s32.totalorder %s17, 0
    %p79 = por %p77, %p78
    %p80 = scmp.ne.s32.totalorder %s72, %s74
    %p81 = scmp.eq.s32.totalorder %s22, 1
    %p82 = por %p80, %p81
    %p83 = scmp.ne.s32.totalorder %s74, %s75
    %p84 = scmp.eq.s32.totalorder %s22, 0
    %p85 = por %p83, %p84
    %p86 = scmp.ne.s32.totalorder %s74, %s75
    %p87 = scmp.eq.s32.totalorder %s23, 1
    %p88 = por %p86, %p87
    %p90 = scmp.ne.s32.totalorder %s75, %s89
    %p91 = scmp.eq.s32.totalorder %s23, 0
    %p92 = por %p90, %p91
    %s94 = sadd.s32 %s93, 1
    %p97 = scmp.eq.s32.totalorder %s17, 1
    %p98 = scmp.ne.s32.totalorder %s93, %s95
    %p99 = scmp.eq.s32.totalorder %s17, 0
    %p100 = por %p98, %p99
    %p101 = scmp.ne.s32.totalorder %s93, %s95
    %p102 = scmp.eq.s32.totalorder %s22, 1
    %p103 = por %p101, %p102
    %p104 = scmp.ne.s32.totalorder %s95, %s96
    %p105 = scmp.eq.s32.totalorder %s22, 0
    %p106 = por %p104, %p105
    %p107 = scmp.ne.s32.totalorder %s95, %s96
    %p108 = scmp.eq.s32.totalorder %s23, 1
    %p109 = por %p107, %p108
    %p111 = scmp.ne.s32.totalorder %s96, %s110
    %p112 = scmp.eq.s32.totalorder %s23, 0
    %p113 = por %p111, %p112
    %s115 = sadd.s32 %s114, 1
    %p118 = scmp.eq.s32.totalorder %s17, 1
    %p119 = scmp.ne.s32.totalorder %s114, %s116
    %p120 = scmp.eq.s32.totalorder %s17, 0
    %p121 = por %p119, %p120
    %p122 = scmp.ne.s32.totalorder %s114, %s116
    %p123 = scmp.eq.s32.totalorder %s22, 1
    %p124 = por %p122, %p123
    %p125 = scmp.ne.s32.totalorder %s116, %s117
    %p126 = scmp.eq.s32.totalorder %s22, 0
    %p127 = por %p125, %p126
    %p128 = scmp.ne.s32.totalorder %s116, %s117
    %p129 = scmp.eq.s32.totalorder %s23, 1
    %p130 = por %p128, %p129
    %p132 = scmp.ne.s32.totalorder %s117, %s131
    %p133 = scmp.eq.s32.totalorder %s23, 0
    %p134 = por %p132, %p133
    %s136 = sadd.s32 %s135, 1
    %p139 = scmp.eq.s32.totalorder %s17, 1
    %p140 = scmp.ne.s32.totalorder %s135, %s137
    %p141 = scmp.eq.s32.totalorder %s17, 0
    %p142 = por %p140, %p141
    %p143 = scmp.ne.s32.totalorder %s135, %s137
    %p144 = scmp.eq.s32.totalorder %s22, 1
    %p145 = por %p143, %p144
    %p146 = scmp.ne.s32.totalorder %s137, %s138
    %p147 = scmp.eq.s32.totalorder %s22, 0
    %p148 = por %p146, %p147
    %p149 = scmp.ne.s32.totalorder %s137, %s138
    %p150 = scmp.eq.s32.totalorder %s23, 1
    %p151 = por %p149, %p150
    %p153 = scmp.ne.s32.totalorder %s138, %s152
    %p154 = scmp.eq.s32.totalorder %s23, 0
    %p155 = por %p153, %p154
    %s157 = sadd.s32 %s156, 1
    %p160 = scmp.eq.s32.totalorder %s17, 1
    %p161 = scmp.ne.s32.totalorder %s156, %s158
    %p162 = scmp.eq.s32.totalorder %s17, 0
    %p163 = por %p161, %p162
    %p164 = scmp.ne.s32.totalorder %s156, %s158
    %p165 = scmp.eq.s32.totalorder %s22, 1
    %p166 = por %p164, %p165
    %p167 = scmp.ne.s32.totalorder %s158, %s159
    %p168 = scmp.eq.s32.totalorder %s22, 0
    %p169 = por %p167, %p168
    %p170 = scmp.ne.s32.totalorder %s158, %s159
    %p171 = scmp.eq.s32.totalorder %s23, 1
    %p172 = por %p170, %p171
    %p174 = scmp.ne.s32.totalorder %s159, %s173
    %p175 = scmp.eq.s32.totalorder %s23, 0
    %p176 = por %p174, %p175
    %s178 = sadd.s32 %s177, 1
    %p181 = scmp.eq.s32.totalorder %s17, 1
    %p182 = scmp.ne.s32.totalorder %s177, %s179
    %p183 = scmp.eq.s32.totalorder %s17, 0
    %p184 = por %p182, %p183
    %p185 = scmp.ne.s32.totalorder %s177, %s179
    %p186 = scmp.eq.s32.totalorder %s22, 1
    %p187 = por %p185, %p186
    %p188 = scmp.ne.s32.totalorder %s179, %s180
    %p189 = scmp.eq.s32.totalorder %s22, 0
    %p190 = por %p188, %p189
    %p191 = scmp.ne.s32.totalorder %s179, %s180
    %p192 = scmp.eq.s32.totalorder %s23, 1
    %p193 = por %p191, %p192
    %p195 = scmp.ne.s32.totalorder %s180, %s194
    %p196 = scmp.eq.s32.totalorder %s23, 0
    %p197 = por %p195, %p196
    %s199 = sadd.s32 %s198, 1
    %p202 = scmp.eq.s32.totalorder %s17, 1
    %p203 = scmp.ne.s32.totalorder %s198, %s200
    %p204 = scmp.eq.s32.totalorder %s17, 0
    %p205 = por %p203, %p204
    %p206 = scmp.ne.s32.totalorder %s198, %s200
    %p207 = scmp.eq.s32.totalorder %s22, 1
    %p208 = por %p206, %p207
    %p209 = scmp.ne.s32.totalorder %s200, %s201
    %p210 = scmp.eq.s32.totalorder %s22, 0
    %p211 = por %p209, %p210
    %p212 = scmp.ne.s32.totalorder %s200, %s201
    %p213 = scmp.eq.s32.totalorder %s23, 1
    %p214 = por %p212, %p213
    %p216 = scmp.ne.s32.totalorder %s201, %s215
    %p217 = scmp.eq.s32.totalorder %s23, 0
    %p218 = por %p216, %p217
    %s219 = ssub.s32 %s17, %s24
    %p220 = scmp.eq.s32.totalorder %s219, 0
    %s222 = sadd.s32 %s221, 1
    %s223 = scalar_select %p220, %s221, %s222
    %p226 = pneg %p220
    %p227 = scmp.eq.s32.totalorder %s17, 1
    %p228 = por %p226, %p227
    %p229 = scmp.ne.s32.totalorder %s221, %s224
    %p230 = scmp.eq.s32.totalorder %s17, 0
    %p231 = por %p229, %p230
    %p232 = scmp.ne.s32.totalorder %s221, %s224
    %p233 = scmp.eq.s32.totalorder %s22, 1
    %p234 = por %p232, %p233
    %p235 = scmp.ne.s32.totalorder %s224, %s225
    %p236 = scmp.eq.s32.totalorder %s22, 0
    %p237 = por %p235, %p236
    %p238 = scmp.ne.s32.totalorder %s224, %s225
    %p239 = scmp.eq.s32.totalorder %s23, 1
    %p240 = por %p238, %p239
    %p242 = scmp.ne.s32.totalorder %s225, %s241
    %p243 = scmp.eq.s32.totalorder %s23, 0
    %p244 = por %p242, %p243
    %p245 = scmp.le.s32.totalorder 1, %s17
    %p246 = scmp.lt.s32.totalorder %s17, 3
    %p247 = pnand %p245, %p246
    %p248 = pneg %p247
    // Predicated region
    $region9: #{exatrkx_filter_forward.1} parent=5 // pred_check
      _
    $region10: #{exatrkx_filter_forward.1} parent=5 // pred_check_branch
      %250 = sbr.rel (%p247) target = $region12
    $region11: #{exatrkx_filter_forward.1} parent=5 // pred_region
      %s251 = ssub.s32 %s17, 1
      // Predicated region
      $region13: #{exatrkx_filter_forward.1} parent=11 // pred_check
        %p252 = pneg %p64
      $region14: #{exatrkx_filter_forward.1} parent=11 // pred_check_branch
        %254 = sbr.rel (%p252) target = $region16
      $region15: #{exatrkx_filter_forward.1} parent=11 // pred_region
        _
      $region16: #{exatrkx_filter_forward.1} parent=11 // pred_fallthru
        _
      // Predicated region
      $region17: #{exatrkx_filter_forward.1} parent=11 // pred_check
        %p255 = pneg %p85
      $region18: #{exatrkx_filter_forward.1} parent=11 // pred_check_branch
        %257 = sbr.rel (%p255) target = $region20
      $region19: #{exatrkx_filter_forward.1} parent=11 // pred_region
        _
      $region20: #{exatrkx_filter_forward.1} parent=11 // pred_fallthru
        _
      // Predicated region
      $region21: #{exatrkx_filter_forward.1} parent=11 // pred_check
        %p258 = pneg %p106
      $region22: #{exatrkx_filter_forward.1} parent=11 // pred_check_branch
        %260 = sbr.rel (%p258) target = $region24
      $region23: #{exatrkx_filter_forward.1} parent=11 // pred_region
        _
      $region24: #{exatrkx_filter_forward.1} parent=11 // pred_fallthru
        _
      // Predicated region
      $region25: #{exatrkx_filter_forward.1} parent=11 // pred_check
        %p261 = pneg %p127
      $region26: #{exatrkx_filter_forward.1} parent=11 // pred_check_branch
        %263 = sbr.rel (%p261) target = $region28
      $region27: #{exatrkx_filter_forward.1} parent=11 // pred_region
        _
      $region28: #{exatrkx_filter_forward.1} parent=11 // pred_fallthru
        _
      // Predicated region
      $region29: #{exatrkx_filter_forward.1} parent=11 // pred_check
        %p264 = pneg %p148
      $region30: #{exatrkx_filter_forward.1} parent=11 // pred_check_branch
        %266 = sbr.rel (%p264) target = $region32
      $region31: #{exatrkx_filter_forward.1} parent=11 // pred_region
        _
      $region32: #{exatrkx_filter_forward.1} parent=11 // pred_fallthru
        _
      // Predicated region
      $region33: #{exatrkx_filter_forward.1} parent=11 // pred_check
        %p267 = pneg %p169
      $region34: #{exatrkx_filter_forward.1} parent=11 // pred_check_branch
        %269 = sbr.rel (%p267) target = $region36
      $region35: #{exatrkx_filter_forward.1} parent=11 // pred_region
        _
      $region36: #{exatrkx_filter_forward.1} parent=11 // pred_fallthru
        _
      // Predicated region
      $region37: #{exatrkx_filter_forward.1} parent=11 // pred_check
        %p270 = pneg %p190
      $region38: #{exatrkx_filter_forward.1} parent=11 // pred_check_branch
        %272 = sbr.rel (%p270) target = $region40
      $region39: #{exatrkx_filter_forward.1} parent=11 // pred_region
        _
      $region40: #{exatrkx_filter_forward.1} parent=11 // pred_fallthru
        _
      // Predicated region
      $region41: #{exatrkx_filter_forward.1} parent=11 // pred_check
        %p273 = pneg %p211
      $region42: #{exatrkx_filter_forward.1} parent=11 // pred_check_branch
        %275 = sbr.rel (%p273) target = $region44
      $region43: #{exatrkx_filter_forward.1} parent=11 // pred_region
        _
      $region44: #{exatrkx_filter_forward.1} parent=11 // pred_fallthru
        _
    $region12: #{exatrkx_filter_forward.1} parent=5 // pred_fallthru
      _
    %p276 = scmp.lt.s32.totalorder %s17, 2
    // Predicated region
    $region45: #{exatrkx_filter_forward.1} parent=5 // pred_check
      %p277 = pneg %p276
    $region46: #{exatrkx_filter_forward.1} parent=5 // pred_check_branch
      %279 = sbr.rel (%p277) target = $region48
    $region47: #{exatrkx_filter_forward.1} parent=5 // pred_region
      // Predicated region
      $region49: #{exatrkx_filter_forward.1} parent=47 // pred_check
        %p280 = pneg %p37
      $region50: #{exatrkx_filter_forward.1} parent=47 // pred_check_branch
        %282 = sbr.rel (%p280) target = $region52
      $region51: #{exatrkx_filter_forward.1} parent=47 // pred_region
        %s283 = smul.u32 32, %s17
        %p284 = scmp.lt.s32.totalorder %s283, 63
        %s285 = scalar_select %p284, %s283, 63
        %s286 = smul.addr %s285, 8
        %s287 = scalar_lea.vmem %s0, %s286
        %s288 = smul.u32 32, %s17
      $region52: #{exatrkx_filter_forward.1} parent=47 // pred_fallthru
        _
    $region48: #{exatrkx_filter_forward.1} parent=5 // pred_fallthru
      _
    %p289 = scmp.le.s32.totalorder 1, %s17
    %p290 = scmp.lt.s32.totalorder %s17, 3
    %p291 = pnand %p289, %p290
    %p292 = pneg %p291
    // Predicated region
    $region53: #{exatrkx_filter_forward.1} parent=5 // pred_check
      _
    $region54: #{exatrkx_filter_forward.1} parent=5 // pred_check_branch
      %294 = sbr.rel (%p291) target = $region56
    $region55: #{exatrkx_filter_forward.1} parent=5 // pred_region
      %s295 = ssub.s32 %s17, 1
      %s296 = smul.u32 32, %s22
      %p297 = scmp.lt.s32.totalorder %s296, 63
      %s298 = scalar_select %p297, %s296, 63
      %s299 = smul.addr %s298, 8
      %s300 = scalar_lea.vmem %s0, %s299
      %p301 = pneg %p43
      %p302 = pneg %p40
      %p303 = pneg %p64
      %p304 = pneg %p61
      %p305 = pneg %p85
      %p306 = pneg %p82
      %p307 = pneg %p106
      %p308 = pneg %p103
      %p309 = pneg %p127
      %p310 = pneg %p124
      %p311 = pneg %p148
      %p312 = pneg %p145
      %p313 = pneg %p169
      %p314 = pneg %p166
      %p315 = pneg %p190
      %p316 = pneg %p187
      %p317 = pneg %p211
      %p318 = pneg %p208
      %p319 = pneg %p237
      %p320 = pneg %p234
      %p321 = scmp.lt.s32.totalorder %s22, 1
      %s322 = scalar_select %p321, %s22, 1
      %s323 = smul.addr %s322, 2
      %s324 = scalar_lea.vmem %s9, %s323
      %s325 = smul.u32 32, %s22
      %p326 = scmp.lt.s32.totalorder %s325, 63
      %s327 = scalar_select %p326, %s325, 63
      %s328 = smul.addr %s327, 8
      %s329 = scalar_lea.vmem %s0, %s328
      %s330 = smul.u32 32, %s22
      %p331 = scmp.lt.s32.totalorder %s22, 1
      %s332 = scalar_select %p331, %s22, 1
      %s333 = smul.addr %s332, 2
      %s334 = scalar_lea.vmem %s9, %s333
      %v336 = vld [vmem:[%s329] sm:$0xff]
      %v337 = vld [vmem:[%s329 + $0x8] sm:$0xff]
      %v338 = vld [vmem:[%s329 + $0x10] sm:$0xff]
      %v339 = vld [vmem:[%s329 + $0x18] sm:$0xff]
      %v340 = vld [vmem:[%s329 + $0x20] sm:$0xff]
      %v341 = vld [vmem:[%s329 + $0x28] sm:$0xff]
      %v342 = vld [vmem:[%s329 + $0x30] sm:$0xff]
      %v343 = vld [vmem:[%s329 + $0x38] sm:$0xff]
      %v344 = vld [vmem:[%s329 + $0x40] sm:$0xff]
      %v345 = vld [vmem:[%s329 + $0x48] sm:$0xff]
      %v346 = vld [vmem:[%s329 + $0x50] sm:$0xff]
      %v347 = vld [vmem:[%s329 + $0x58] sm:$0xff]
      %v348 = vld [vmem:[%s329 + $0x60] sm:$0xff]
      %v349 = vld [vmem:[%s329 + $0x68] sm:$0xff]
      %v350 = vld [vmem:[%s329 + $0x70] sm:$0xff]
      %v351 = vld [vmem:[%s329 + $0x78] sm:$0xff]
      %v352 = vld [vmem:[%s329 + $0x80] sm:$0xff]
      %v353 = vld [vmem:[%s329 + $0x88] sm:$0xff]
      %v354 = vld [vmem:[%s329 + $0x90] sm:$0xff]
      %v355 = vld [vmem:[%s329 + $0x98] sm:$0xff]
      %v356 = vld [vmem:[%s329 + $0xa0] sm:$0xff]
      %v357 = vld [vmem:[%s329 + $0xa8] sm:$0xff]
      %v358 = vld [vmem:[%s329 + $0xb0] sm:$0xff]
      %v359 = vld [vmem:[%s329 + $0xb8] sm:$0xff]
      %v360 = vld [vmem:[%s329 + $0xc0] sm:$0xff]
      %v361 = vld [vmem:[%s329 + $0xc8] sm:$0xff]
      %v362 = vld [vmem:[%s329 + $0xd0] sm:$0xff]
      %v363 = vld [vmem:[%s329 + $0xd8] sm:$0xff]
      %v364 = vld [vmem:[%s329 + $0xe0] sm:$0xff]
      %v365 = vld [vmem:[%s329 + $0xe8] sm:$0xff]
      %v366 = vld [vmem:[%s329 + $0xf0] sm:$0xff]
      %v367 = vld [vmem:[%s329 + $0xf8] sm:$0xff]
      %v368 = vpack.c.bf16 %v337, %v336
      %v369 = vpack.c.bf16 %v339, %v338
      %v370 = vpack.c.bf16 %v341, %v340
      %v371 = vpack.c.bf16 %v343, %v342
      %v372 = vpack.c.bf16 %v345, %v344
      %v373 = vpack.c.bf16 %v347, %v346
      %v374 = vpack.c.bf16 %v349, %v348
      %v375 = vpack.c.bf16 %v351, %v350
      %v376 = vpack.c.bf16 %v353, %v352
      %v377 = vpack.c.bf16 %v355, %v354
      %v378 = vpack.c.bf16 %v357, %v356
      %v379 = vpack.c.bf16 %v359, %v358
      %v380 = vpack.c.bf16 %v361, %v360
      %v381 = vpack.c.bf16 %v363, %v362
      %v382 = vpack.c.bf16 %v365, %v364
      %v383 = vpack.c.bf16 %v367, %v366
      %v384 = vld [vmem:[%s1] sm:$0xff]
      %v385 = vld [vmem:[%s1 + $0x8] sm:$0xff]
      %v386 = vld [vmem:[%s2] sm:$0xf]
      %v388 = vlaneseq
      %v389 = vshrl.u32 %v388, 7
      %v390 = vsub.s32 0, %v389
      %v391 = vrot.slane %v386, %v390
      %v392 = vlaneseq
      %v393 = vshrl.u32 %v392, 7
      %v394 = vsub.s32 1, %v393
      %v395 = vrot.slane %v386, %v394
      %v396 = vlaneseq
      %v397 = vshrl.u32 %v396, 7
      %v398 = vsub.s32 2, %v397
      %v399 = vrot.slane %v386, %v398
      %v400 = vlaneseq
      %v401 = vshrl.u32 %v400, 7
      %v402 = vsub.s32 3, %v401
      %v403 = vrot.slane %v386, %v402
      %v410 = vunpack.c.l.b16 %v384
      %v411 = vunpack.c.h.b16 %v384
      %v412 = vunpack.c.l.b16 %v385
      %v413 = vunpack.c.h.b16 %v385
      %v414 = vpack.c.b16 %v410, %v410
      %v415 = vpack.c.b16 %v411, %v411
      %v416 = vpack.c.b16 %v412, %v412
      %v417 = vpack.c.b16 %v413, %v413
      %vm418 = vcmask 64512
      %v420 = vsel %vm418, %v368, 0
      %v423 = vsel %vm418, %v369, 0
      %v426 = vsel %vm418, %v370, 0
      %v429 = vsel %vm418, %v371, 0
      %v432 = vsel %vm418, %v372, 0
      %v435 = vsel %vm418, %v373, 0
      %v438 = vsel %vm418, %v374, 0
      %v441 = vsel %vm418, %v375, 0
      %v444 = vsel %vm418, %v376, 0
      %v447 = vsel %vm418, %v377, 0
      %v450 = vsel %vm418, %v378, 0
      %v453 = vsel %vm418, %v379, 0
      %v456 = vsel %vm418, %v380, 0
      %v459 = vsel %vm418, %v381, 0
      %v462 = vsel %vm418, %v382, 0
      %v465 = vsel %vm418, %v383, 0
      %vm467 = vcmask 1043456
      %v469 = vsel %vm467, %v414, 0
      %v472 = vsel %vm467, %v415, 0
      %v475 = vsel %vm467, %v416, 0
      %v478 = vsel %vm467, %v417, 0
      %480 = vmatprep.subr.bf16.mxu0 0
      %481 = vmatpush1.bf16.msra.mxu0 0
      %482 = vmatprep.subr.bf16.mxu0 0
      %483 = vmatpush1.bf16.msra.mxu0 0
      %484 = vmatprep.subr.bf16.mxu0 0
      %485 = vmatpush1.bf16.msra.mxu0 0
      %486 = vmatprep.subr.bf16.mxu0 0
      %487 = vmatpush1.bf16.msra.mxu0 0
      %488 = vmatprep.subr.bf16.mxu0 0
      %489 = vmatpush1.bf16.msra.mxu0 0
      %490 = vmatprep.subr.bf16.mxu0 0
      %491 = vmatpush1.bf16.msra.mxu0 0
      %492 = vmatprep.subr.bf16.mxu0 0
      %493 = vmatpush1.bf16.msra.mxu0 0
      %494 = vmatprep.subr.bf16.mxu0 %v472
      %495 = vmatpush1.bf16.msra.mxu0 %v469
      %496 = vmatprep.subr.bf16.mxu0 0
      %497 = vmatpush2.bf16.msra.mxu0 0
      %498 = vmatprep.subr.bf16.mxu0 0
      %499 = vmatpush2.bf16.msra.mxu0 0
      %500 = vmatprep.subr.bf16.mxu0 0
      %501 = vmatpush2.bf16.msra.mxu0 0
      %502 = vmatprep.subr.bf16.mxu0 0
      %503 = vmatpush2.bf16.msra.mxu0 0
      %504 = vmatprep.subr.bf16.mxu0 0
      %505 = vmatpush2.bf16.msra.mxu0 0
      %506 = vmatprep.subr.bf16.mxu0 0
      %507 = vmatpush2.bf16.msra.mxu0 0
      %508 = vmatprep.subr.bf16.mxu0 0
      %509 = vmatpush2.bf16.msra.mxu0 0
      %510 = vmatprep.subr.bf16.mxu0 0
      %511 = vmatpush2.bf16.msra.mxu0 0
      %512 = vmatprep.mubr.bf16.mxu0 0
      %513 = vmatmul.mubr.bf16.gmra.mxu0 %v420
      %v514 = vpop.f32.mrf.mxu0
      %v515 = vadd.f32 %v391, %v514
      %v516 = vpop.f32.mrf.mxu0
      %v517 = vadd.f32 %v395, %v516
      %v518 = vpop.f32.mrf.mxu0
      %v519 = vadd.f32 %v391, %v518
      %v520 = vpop.f32.mrf.mxu0
      %v521 = vadd.f32 %v395, %v520
      %522 = vmatprep.mubr.bf16.mxu0 0
      %523 = vmatmul.mubr.bf16.gmra.mxu0 %v423
      %v524 = vpop.f32.mrf.mxu0
      %v525 = vadd.f32 %v391, %v524
      %v526 = vpop.f32.mrf.mxu0
      %v527 = vadd.f32 %v395, %v526
      %v528 = vpop.f32.mrf.mxu0
      %v529 = vadd.f32 %v391, %v528
      %v530 = vpop.f32.mrf.mxu0
      %v531 = vadd.f32 %v395, %v530
      %532 = vmatprep.mubr.bf16.mxu0 0
      %533 = vmatmul.mubr.bf16.gmra.mxu0 %v426
      %v534 = vpop.f32.mrf.mxu0
      %v535 = vadd.f32 %v391, %v534
      %v536 = vpop.f32.mrf.mxu0
      %v537 = vadd.f32 %v395, %v536
      %v538 = vpop.f32.mrf.mxu0
      %v539 = vadd.f32 %v391, %v538
      %v540 = vpop.f32.mrf.mxu0
      %v541 = vadd.f32 %v395, %v540
      %542 = vmatprep.mubr.bf16.mxu0 0
      %543 = vmatmul.mubr.bf16.gmra.mxu0 %v429
      %v544 = vpop.f32.mrf.mxu0
      %v545 = vadd.f32 %v391, %v544
      %v546 = vpop.f32.mrf.mxu0
      %v547 = vadd.f32 %v395, %v546
      %v548 = vpop.f32.mrf.mxu0
      %v549 = vadd.f32 %v391, %v548
      %v550 = vpop.f32.mrf.mxu0
      %v551 = vadd.f32 %v395, %v550
      %552 = vmatprep.mubr.bf16.mxu0 0
      %553 = vmatmul.mubr.bf16.gmra.mxu0 %v432
      %v554 = vpop.f32.mrf.mxu0
      %v555 = vadd.f32 %v391, %v554
      %v556 = vpop.f32.mrf.mxu0
      %v557 = vadd.f32 %v395, %v556
      %v558 = vpop.f32.mrf.mxu0
      %v559 = vadd.f32 %v391, %v558
      %v560 = vpop.f32.mrf.mxu0
      %v561 = vadd.f32 %v395, %v560
      %562 = vmatprep.mubr.bf16.mxu0 0
      %563 = vmatmul.mubr.bf16.gmra.mxu0 %v435
      %v564 = vpop.f32.mrf.mxu0
      %v565 = vadd.f32 %v391, %v564
      %v566 = vpop.f32.mrf.mxu0
      %v567 = vadd.f32 %v395, %v566
      %v568 = vpop.f32.mrf.mxu0
      %v569 = vadd.f32 %v391, %v568
      %v570 = vpop.f32.mrf.mxu0
      %v571 = vadd.f32 %v395, %v570
      %572 = vmatprep.mubr.bf16.mxu0 0
      %573 = vmatmul.mubr.bf16.gmra.mxu0 %v438
      %v574 = vpop.f32.mrf.mxu0
      %v575 = vadd.f32 %v391, %v574
      %v576 = vpop.f32.mrf.mxu0
      %v577 = vadd.f32 %v395, %v576
      %v578 = vpop.f32.mrf.mxu0
      %v579 = vadd.f32 %v391, %v578
      %v580 = vpop.f32.mrf.mxu0
      %v581 = vadd.f32 %v395, %v580
      %582 = vmatprep.mubr.bf16.mxu0 0
      %583 = vmatmul.mubr.bf16.gmra.mxu0 %v441
      %v584 = vpop.f32.mrf.mxu0
      %v585 = vadd.f32 %v391, %v584
      %v586 = vpop.f32.mrf.mxu0
      %v587 = vadd.f32 %v395, %v586
      %v588 = vpop.f32.mrf.mxu0
      %v589 = vadd.f32 %v391, %v588
      %v590 = vpop.f32.mrf.mxu0
      %v591 = vadd.f32 %v395, %v590
      %592 = vmatprep.mubr.bf16.mxu0 0
      %593 = vmatmul.mubr.bf16.gmra.mxu0 %v444
      %v594 = vpop.f32.mrf.mxu0
      %v595 = vadd.f32 %v391, %v594
      %v596 = vpop.f32.mrf.mxu0
      %v597 = vadd.f32 %v395, %v596
      %v598 = vpop.f32.mrf.mxu0
      %v599 = vadd.f32 %v391, %v598
      %v600 = vpop.f32.mrf.mxu0
      %v601 = vadd.f32 %v395, %v600
      %602 = vmatprep.mubr.bf16.mxu0 0
      %603 = vmatmul.mubr.bf16.gmra.mxu0 %v447
      %v604 = vpop.f32.mrf.mxu0
      %v605 = vadd.f32 %v391, %v604
      %v606 = vpop.f32.mrf.mxu0
      %v607 = vadd.f32 %v395, %v606
      %v608 = vpop.f32.mrf.mxu0
      %v609 = vadd.f32 %v391, %v608
      %v610 = vpop.f32.mrf.mxu0
      %v611 = vadd.f32 %v395, %v610
      %612 = vmatprep.mubr.bf16.mxu0 0
      %613 = vmatmul.mubr.bf16.gmra.mxu0 %v450
      %v614 = vpop.f32.mrf.mxu0
      %v615 = vadd.f32 %v391, %v614
      %v616 = vpop.f32.mrf.mxu0
      %v617 = vadd.f32 %v395, %v616
      %v618 = vpop.f32.mrf.mxu0
      %v619 = vadd.f32 %v391, %v618
      %v620 = vpop.f32.mrf.mxu0
      %v621 = vadd.f32 %v395, %v620
      %622 = vmatprep.mubr.bf16.mxu0 0
      %623 = vmatmul.mubr.bf16.gmra.mxu0 %v453
      %v624 = vpop.f32.mrf.mxu0
      %v625 = vadd.f32 %v391, %v624
      %v626 = vpop.f32.mrf.mxu0
      %v627 = vadd.f32 %v395, %v626
      %v628 = vpop.f32.mrf.mxu0
      %v629 = vadd.f32 %v391, %v628
      %v630 = vpop.f32.mrf.mxu0
      %v631 = vadd.f32 %v395, %v630
      %632 = vmatprep.mubr.bf16.mxu0 0
      %633 = vmatmul.mubr.bf16.gmra.mxu0 %v456
      %v634 = vpop.f32.mrf.mxu0
      %v635 = vadd.f32 %v391, %v634
      %v636 = vpop.f32.mrf.mxu0
      %v637 = vadd.f32 %v395, %v636
      %v638 = vpop.f32.mrf.mxu0
      %v639 = vadd.f32 %v391, %v638
      %v640 = vpop.f32.mrf.mxu0
      %v641 = vadd.f32 %v395, %v640
      %642 = vmatprep.mubr.bf16.mxu0 0
      %643 = vmatmul.mubr.bf16.gmra.mxu0 %v459
      %v644 = vpop.f32.mrf.mxu0
      %v645 = vadd.f32 %v391, %v644
      %v646 = vpop.f32.mrf.mxu0
      %v647 = vadd.f32 %v395, %v646
      %v648 = vpop.f32.mrf.mxu0
      %v649 = vadd.f32 %v391, %v648
      %v650 = vpop.f32.mrf.mxu0
      %v651 = vadd.f32 %v395, %v650
      %652 = vmatprep.mubr.bf16.mxu0 0
      %653 = vmatmul.mubr.bf16.gmra.mxu0 %v462
      %v654 = vpop.f32.mrf.mxu0
      %v655 = vadd.f32 %v391, %v654
      %v656 = vpop.f32.mrf.mxu0
      %v657 = vadd.f32 %v395, %v656
      %v658 = vpop.f32.mrf.mxu0
      %v659 = vadd.f32 %v391, %v658
      %v660 = vpop.f32.mrf.mxu0
      %v661 = vadd.f32 %v395, %v660
      %662 = vmatprep.mubr.bf16.mxu0 0
      %663 = vmatmul.mubr.bf16.gmra.mxu0 %v465
      %v664 = vpop.f32.mrf.mxu0
      %v665 = vadd.f32 %v391, %v664
      %v666 = vpop.f32.mrf.mxu0
      %v667 = vadd.f32 %v395, %v666
      %v668 = vpop.f32.mrf.mxu0
      %v669 = vadd.f32 %v391, %v668
      %v670 = vpop.f32.mrf.mxu0
      %v671 = vadd.f32 %v395, %v670
      %672 = vdwg.mxu0
      %673 = vmatprep.subr.bf16.mxu0 0
      %674 = vmatpush1.bf16.msra.mxu0 0
      %675 = vmatprep.subr.bf16.mxu0 0
      %676 = vmatpush1.bf16.msra.mxu0 0
      %677 = vmatprep.subr.bf16.mxu0 0
      %678 = vmatpush1.bf16.msra.mxu0 0
      %679 = vmatprep.subr.bf16.mxu0 0
      %680 = vmatpush1.bf16.msra.mxu0 0
      %681 = vmatprep.subr.bf16.mxu0 0
      %682 = vmatpush1.bf16.msra.mxu0 0
      %683 = vmatprep.subr.bf16.mxu0 0
      %684 = vmatpush1.bf16.msra.mxu0 0
      %685 = vmatprep.subr.bf16.mxu0 0
      %686 = vmatpush1.bf16.msra.mxu0 0
      %687 = vmatprep.subr.bf16.mxu0 %v478
      %688 = vmatpush1.bf16.msra.mxu0 %v475
      %689 = vmatprep.subr.bf16.mxu0 0
      %690 = vmatpush2.bf16.msra.mxu0 0
      %691 = vmatprep.subr.bf16.mxu0 0
      %692 = vmatpush2.bf16.msra.mxu0 0
      %693 = vmatprep.subr.bf16.mxu0 0
      %694 = vmatpush2.bf16.msra.mxu0 0
      %695 = vmatprep.subr.bf16.mxu0 0
      %696 = vmatpush2.bf16.msra.mxu0 0
      %697 = vmatprep.subr.bf16.mxu0 0
      %698 = vmatpush2.bf16.msra.mxu0 0
      %699 = vmatprep.subr.bf16.mxu0 0
      %700 = vmatpush2.bf16.msra.mxu0 0
      %701 = vmatprep.subr.bf16.mxu0 0
      %702 = vmatpush2.bf16.msra.mxu0 0
      %703 = vmatprep.subr.bf16.mxu0 0
      %704 = vmatpush2.bf16.msra.mxu0 0
      %705 = vmatprep.mubr.bf16.mxu0 0
      %706 = vmatmul.mubr.bf16.gmra.mxu0 %v420
      %v707 = vpop.f32.mrf.mxu0
      %v708 = vadd.f32 %v399, %v707
      %v709 = vpop.f32.mrf.mxu0
      %v710 = vadd.f32 %v403, %v709
      %v711 = vpop.f32.mrf.mxu0
      %v712 = vadd.f32 %v399, %v711
      %v713 = vpop.f32.mrf.mxu0
      %v714 = vadd.f32 %v403, %v713
      %715 = vmatprep.mubr.bf16.mxu0 0
      %716 = vmatmul.mubr.bf16.gmra.mxu0 %v423
      %v717 = vpop.f32.mrf.mxu0
      %v718 = vadd.f32 %v399, %v717
      %v719 = vpop.f32.mrf.mxu0
      %v720 = vadd.f32 %v403, %v719
      %v721 = vpop.f32.mrf.mxu0
      %v722 = vadd.f32 %v399, %v721
      %v723 = vpop.f32.mrf.mxu0
      %v724 = vadd.f32 %v403, %v723
      %725 = vmatprep.mubr.bf16.mxu0 0
      %726 = vmatmul.mubr.bf16.gmra.mxu0 %v426
      %v727 = vpop.f32.mrf.mxu0
      %v728 = vadd.f32 %v399, %v727
      %v729 = vpop.f32.mrf.mxu0
      %v730 = vadd.f32 %v403, %v729
      %v731 = vpop.f32.mrf.mxu0
      %v732 = vadd.f32 %v399, %v731
      %v733 = vpop.f32.mrf.mxu0
      %v734 = vadd.f32 %v403, %v733
      %735 = vmatprep.mubr.bf16.mxu0 0
      %736 = vmatmul.mubr.bf16.gmra.mxu0 %v429
      %v737 = vpop.f32.mrf.mxu0
      %v738 = vadd.f32 %v399, %v737
      %v739 = vpop.f32.mrf.mxu0
      %v740 = vadd.f32 %v403, %v739
      %v741 = vpop.f32.mrf.mxu0
      %v742 = vadd.f32 %v399, %v741
      %v743 = vpop.f32.mrf.mxu0
      %v744 = vadd.f32 %v403, %v743
      %745 = vmatprep.mubr.bf16.mxu0 0
      %746 = vmatmul.mubr.bf16.gmra.mxu0 %v432
      %v747 = vpop.f32.mrf.mxu0
      %v748 = vadd.f32 %v399, %v747
      %v749 = vpop.f32.mrf.mxu0
      %v750 = vadd.f32 %v403, %v749
      %v751 = vpop.f32.mrf.mxu0
      %v752 = vadd.f32 %v399, %v751
      %v753 = vpop.f32.mrf.mxu0
      %v754 = vadd.f32 %v403, %v753
      %755 = vmatprep.mubr.bf16.mxu0 0
      %756 = vmatmul.mubr.bf16.gmra.mxu0 %v435
      %v757 = vpop.f32.mrf.mxu0
      %v758 = vadd.f32 %v399, %v757
      %v759 = vpop.f32.mrf.mxu0
      %v760 = vadd.f32 %v403, %v759
      %v761 = vpop.f32.mrf.mxu0
      %v762 = vadd.f32 %v399, %v761
      %v763 = vpop.f32.mrf.mxu0
      %v764 = vadd.f32 %v403, %v763
      %765 = vmatprep.mubr.bf16.mxu0 0
      %766 = vmatmul.mubr.bf16.gmra.mxu0 %v438
      %v767 = vpop.f32.mrf.mxu0
      %v768 = vadd.f32 %v399, %v767
      %v769 = vpop.f32.mrf.mxu0
      %v770 = vadd.f32 %v403, %v769
      %v771 = vpop.f32.mrf.mxu0
      %v772 = vadd.f32 %v399, %v771
      %v773 = vpop.f32.mrf.mxu0
      %v774 = vadd.f32 %v403, %v773
      %775 = vmatprep.mubr.bf16.mxu0 0
      %776 = vmatmul.mubr.bf16.gmra.mxu0 %v441
      %v777 = vpop.f32.mrf.mxu0
      %v778 = vadd.f32 %v399, %v777
      %v779 = vpop.f32.mrf.mxu0
      %v780 = vadd.f32 %v403, %v779
      %v781 = vpop.f32.mrf.mxu0
      %v782 = vadd.f32 %v399, %v781
      %v783 = vpop.f32.mrf.mxu0
      %v784 = vadd.f32 %v403, %v783
      %785 = vmatprep.mubr.bf16.mxu0 0
      %786 = vmatmul.mubr.bf16.gmra.mxu0 %v444
      %v787 = vpop.f32.mrf.mxu0
      %v788 = vadd.f32 %v399, %v787
      %v789 = vpop.f32.mrf.mxu0
      %v790 = vadd.f32 %v403, %v789
      %v791 = vpop.f32.mrf.mxu0
      %v792 = vadd.f32 %v399, %v791
      %v793 = vpop.f32.mrf.mxu0
      %v794 = vadd.f32 %v403, %v793
      %795 = vmatprep.mubr.bf16.mxu0 0
      %796 = vmatmul.mubr.bf16.gmra.mxu0 %v447
      %v797 = vpop.f32.mrf.mxu0
      %v798 = vadd.f32 %v399, %v797
      %v799 = vpop.f32.mrf.mxu0
      %v800 = vadd.f32 %v403, %v799
      %v801 = vpop.f32.mrf.mxu0
      %v802 = vadd.f32 %v399, %v801
      %v803 = vpop.f32.mrf.mxu0
      %v804 = vadd.f32 %v403, %v803
      %805 = vmatprep.mubr.bf16.mxu0 0
      %806 = vmatmul.mubr.bf16.gmra.mxu0 %v450
      %v807 = vpop.f32.mrf.mxu0
      %v808 = vadd.f32 %v399, %v807
      %v809 = vpop.f32.mrf.mxu0
      %v810 = vadd.f32 %v403, %v809
      %v811 = vpop.f32.mrf.mxu0
      %v812 = vadd.f32 %v399, %v811
      %v813 = vpop.f32.mrf.mxu0
      %v814 = vadd.f32 %v403, %v813
      %815 = vmatprep.mubr.bf16.mxu0 0
      %816 = vmatmul.mubr.bf16.gmra.mxu0 %v453
      %v817 = vpop.f32.mrf.mxu0
      %v818 = vadd.f32 %v399, %v817
      %v819 = vpop.f32.mrf.mxu0
      %v820 = vadd.f32 %v403, %v819
      %v821 = vpop.f32.mrf.mxu0
      %v822 = vadd.f32 %v399, %v821
      %v823 = vpop.f32.mrf.mxu0
      %v824 = vadd.f32 %v403, %v823
      %825 = vmatprep.mubr.bf16.mxu0 0
      %826 = vmatmul.mubr.bf16.gmra.mxu0 %v456
      %v827 = vpop.f32.mrf.mxu0
      %v828 = vadd.f32 %v399, %v827
      %v829 = vpop.f32.mrf.mxu0
      %v830 = vadd.f32 %v403, %v829
      %v831 = vpop.f32.mrf.mxu0
      %v832 = vadd.f32 %v399, %v831
      %v833 = vpop.f32.mrf.mxu0
      %v834 = vadd.f32 %v403, %v833
      %835 = vmatprep.mubr.bf16.mxu0 0
      %836 = vmatmul.mubr.bf16.gmra.mxu0 %v459
      %v837 = vpop.f32.mrf.mxu0
      %v838 = vadd.f32 %v399, %v837
      %v839 = vpop.f32.mrf.mxu0
      %v840 = vadd.f32 %v403, %v839
      %v841 = vpop.f32.mrf.mxu0
      %v842 = vadd.f32 %v399, %v841
      %v843 = vpop.f32.mrf.mxu0
      %v844 = vadd.f32 %v403, %v843
      %845 = vmatprep.mubr.bf16.mxu0 0
      %846 = vmatmul.mubr.bf16.gmra.mxu0 %v462
      %v847 = vpop.f32.mrf.mxu0
      %v848 = vadd.f32 %v399, %v847
      %v849 = vpop.f32.mrf.mxu0
      %v850 = vadd.f32 %v403, %v849
      %v851 = vpop.f32.mrf.mxu0
      %v852 = vadd.f32 %v399, %v851
      %v853 = vpop.f32.mrf.mxu0
      %v854 = vadd.f32 %v403, %v853
      %855 = vmatprep.mubr.bf16.mxu0 0
      %856 = vmatmul.mubr.bf16.gmra.mxu0 %v465
      %v857 = vpop.f32.mrf.mxu0
      %v858 = vadd.f32 %v399, %v857
      %v859 = vpop.f32.mrf.mxu0
      %v860 = vadd.f32 %v403, %v859
      %v861 = vpop.f32.mrf.mxu0
      %v862 = vadd.f32 %v399, %v861
      %v863 = vpop.f32.mrf.mxu0
      %v864 = vadd.f32 %v403, %v863
      %865 = vdwg.mxu0
      %v866 = vtanh.pop %v515
      %v867 = vtanh.pop %v517
      %v868 = vtanh.pop %v708
      %v869 = vtanh.pop %v710
      %v870 = vtanh.pop %v519
      %v871 = vtanh.pop %v521
      %v872 = vtanh.pop %v712
      %v873 = vtanh.pop %v714
      %v874 = vtanh.pop %v525
      %v875 = vtanh.pop %v527
      %v876 = vtanh.pop %v718
      %v877 = vtanh.pop %v720
      %v878 = vtanh.pop %v529
      %v879 = vtanh.pop %v531
      %v880 = vtanh.pop %v722
      %v881 = vtanh.pop %v724
      %v882 = vtanh.pop %v535
      %v883 = vtanh.pop %v537
      %v884 = vtanh.pop %v728
      %v885 = vtanh.pop %v730
      %v886 = vtanh.pop %v539
      %v887 = vtanh.pop %v541
      %v888 = vtanh.pop %v732
      %v889 = vtanh.pop %v734
      %v890 = vtanh.pop %v545
      %v891 = vtanh.pop %v547
      %v892 = vtanh.pop %v738
      %v893 = vtanh.pop %v740
      %v894 = vtanh.pop %v549
      %v895 = vtanh.pop %v551
      %v896 = vtanh.pop %v742
      %v897 = vtanh.pop %v744
      %v898 = vtanh.pop %v555
      %v899 = vtanh.pop %v557
      %v900 = vtanh.pop %v748
      %v901 = vtanh.pop %v750
      %v902 = vtanh.pop %v559
      %v903 = vtanh.pop %v561
      %v904 = vtanh.pop %v752
      %v905 = vtanh.pop %v754
      %v906 = vtanh.pop %v565
      %v907 = vtanh.pop %v567
      %v908 = vtanh.pop %v758
      %v909 = vtanh.pop %v760
      %v910 = vtanh.pop %v569
      %v911 = vtanh.pop %v571
      %v912 = vtanh.pop %v762
      %v913 = vtanh.pop %v764
      %v914 = vtanh.pop %v575
      %v915 = vtanh.pop %v577
      %v916 = vtanh.pop %v768
      %v917 = vtanh.pop %v770
      %v918 = vtanh.pop %v579
      %v919 = vtanh.pop %v581
      %v920 = vtanh.pop %v772
      %v921 = vtanh.pop %v774
      %v922 = vtanh.pop %v585
      %v923 = vtanh.pop %v587
      %v924 = vtanh.pop %v778
      %v925 = vtanh.pop %v780
      %v926 = vtanh.pop %v589
      %v927 = vtanh.pop %v591
      %v928 = vtanh.pop %v782
      %v929 = vtanh.pop %v784
      %v930 = vtanh.pop %v595
      %v931 = vtanh.pop %v597
      %v932 = vtanh.pop %v788
      %v933 = vtanh.pop %v790
      %v934 = vtanh.pop %v599
      %v935 = vtanh.pop %v601
      %v936 = vtanh.pop %v792
      %v937 = vtanh.pop %v794
      %v938 = vtanh.pop %v605
      %v939 = vtanh.pop %v607
      %v940 = vtanh.pop %v798
      %v941 = vtanh.pop %v800
      %v942 = vtanh.pop %v609
      %v943 = vtanh.pop %v611
      %v944 = vtanh.pop %v802
      %v945 = vtanh.pop %v804
      %v946 = vtanh.pop %v615
      %v947 = vtanh.pop %v617
      %v948 = vtanh.pop %v808
      %v949 = vtanh.pop %v810
      %v950 = vtanh.pop %v619
      %v951 = vtanh.pop %v621
      %v952 = vtanh.pop %v812
      %v953 = vtanh.pop %v814
      %v954 = vtanh.pop %v625
      %v955 = vtanh.pop %v627
      %v956 = vtanh.pop %v818
      %v957 = vtanh.pop %v820
      %v958 = vtanh.pop %v629
      %v959 = vtanh.pop %v631
      %v960 = vtanh.pop %v822
      %v961 = vtanh.pop %v824
      %v962 = vtanh.pop %v635
      %v963 = vtanh.pop %v637
      %v964 = vtanh.pop %v828
      %v965 = vtanh.pop %v830
      %v966 = vtanh.pop %v639
      %v967 = vtanh.pop %v641
      %v968 = vtanh.pop %v832
      %v969 = vtanh.pop %v834
      %v970 = vtanh.pop %v645
      %v971 = vtanh.pop %v647
      %v972 = vtanh.pop %v838
      %v973 = vtanh.pop %v840
      %v974 = vtanh.pop %v649
      %v975 = vtanh.pop %v651
      %v976 = vtanh.pop %v842
      %v977 = vtanh.pop %v844
      %v978 = vtanh.pop %v655
      %v979 = vtanh.pop %v657
      %v980 = vtanh.pop %v848
      %v981 = vtanh.pop %v850
      %v982 = vtanh.pop %v659
      %v983 = vtanh.pop %v661
      %v984 = vtanh.pop %v852
      %v985 = vtanh.pop %v854
      %v986 = vtanh.pop %v665
      %v987 = vtanh.pop %v667
      %v988 = vtanh.pop %v858
      %v989 = vtanh.pop %v860
      %v990 = vtanh.pop %v669
      %v991 = vtanh.pop %v671
      %v992 = vtanh.pop %v862
      %v993 = vtanh.pop %v864
      %v994 = vadd.f32 %v866, %v867
      %v995 = vadd.f32 %v994, %v868
      %v996 = vadd.f32 %v995, %v869
      %997 = vadd.xlane.f32.xlu0 %v996
      %v998 = vpop.xlane.xlu0 %997
      %v999 = vadd.f32 %v870, %v871
      %v1000 = vadd.f32 %v999, %v872
      %v1001 = vadd.f32 %v1000, %v873
      %1002 = vadd.xlane.f32.xlu0 %v1001
      %v1003 = vpop.xlane.xlu0 %1002
      %v1004 = vadd.f32 %v874, %v875
      %v1005 = vadd.f32 %v1004, %v876
      %v1006 = vadd.f32 %v1005, %v877
      %1007 = vadd.xlane.f32.xlu0 %v1006
      %v1008 = vpop.xlane.xlu0 %1007
      %v1009 = vadd.f32 %v878, %v879
      %v1010 = vadd.f32 %v1009, %v880
      %v1011 = vadd.f32 %v1010, %v881
      %1012 = vadd.xlane.f32.xlu0 %v1011
      %v1013 = vpop.xlane.xlu0 %1012
      %v1014 = vadd.f32 %v882, %v883
      %v1015 = vadd.f32 %v1014, %v884
      %v1016 = vadd.f32 %v1015, %v885
      %1017 = vadd.xlane.f32.xlu0 %v1016
      %v1018 = vpop.xlane.xlu0 %1017
      %v1019 = vadd.f32 %v886, %v887
      %v1020 = vadd.f32 %v1019, %v888
      %v1021 = vadd.f32 %v1020, %v889
      %1022 = vadd.xlane.f32.xlu0 %v1021
      %v1023 = vpop.xlane.xlu0 %1022
      %v1024 = vadd.f32 %v890, %v891
      %v1025 = vadd.f32 %v1024, %v892
      %v1026 = vadd.f32 %v1025, %v893
      %1027 = vadd.xlane.f32.xlu0 %v1026
      %v1028 = vpop.xlane.xlu0 %1027
      %v1029 = vadd.f32 %v894, %v895
      %v1030 = vadd.f32 %v1029, %v896
      %v1031 = vadd.f32 %v1030, %v897
      %1032 = vadd.xlane.f32.xlu0 %v1031
      %v1033 = vpop.xlane.xlu0 %1032
      %v1034 = vadd.f32 %v898, %v899
      %v1035 = vadd.f32 %v1034, %v900
      %v1036 = vadd.f32 %v1035, %v901
      %1037 = vadd.xlane.f32.xlu0 %v1036
      %v1038 = vpop.xlane.xlu0 %1037
      %v1039 = vadd.f32 %v902, %v903
      %v1040 = vadd.f32 %v1039, %v904
      %v1041 = vadd.f32 %v1040, %v905
      %1042 = vadd.xlane.f32.xlu0 %v1041
      %v1043 = vpop.xlane.xlu0 %1042
      %v1044 = vadd.f32 %v906, %v907
      %v1045 = vadd.f32 %v1044, %v908
      %v1046 = vadd.f32 %v1045, %v909
      %1047 = vadd.xlane.f32.xlu0 %v1046
      %v1048 = vpop.xlane.xlu0 %1047
      %v1049 = vadd.f32 %v910, %v911
      %v1050 = vadd.f32 %v1049, %v912
      %v1051 = vadd.f32 %v1050, %v913
      %1052 = vadd.xlane.f32.xlu0 %v1051
      %v1053 = vpop.xlane.xlu0 %1052
      %v1054 = vadd.f32 %v914, %v915
      %v1055 = vadd.f32 %v1054, %v916
      %v1056 = vadd.f32 %v1055, %v917
      %1057 = vadd.xlane.f32.xlu0 %v1056
      %v1058 = vpop.xlane.xlu0 %1057
      %v1059 = vadd.f32 %v918, %v919
      %v1060 = vadd.f32 %v1059, %v920
      %v1061 = vadd.f32 %v1060, %v921
      %1062 = vadd.xlane.f32.xlu0 %v1061
      %v1063 = vpop.xlane.xlu0 %1062
      %v1064 = vadd.f32 %v922, %v923
      %v1065 = vadd.f32 %v1064, %v924
      %v1066 = vadd.f32 %v1065, %v925
      %1067 = vadd.xlane.f32.xlu0 %v1066
      %v1068 = vpop.xlane.xlu0 %1067
      %v1069 = vadd.f32 %v926, %v927
      %v1070 = vadd.f32 %v1069, %v928
      %v1071 = vadd.f32 %v1070, %v929
      %1072 = vadd.xlane.f32.xlu0 %v1071
      %v1073 = vpop.xlane.xlu0 %1072
      %v1074 = vadd.f32 %v930, %v931
      %v1075 = vadd.f32 %v1074, %v932
      %v1076 = vadd.f32 %v1075, %v933
      %1077 = vadd.xlane.f32.xlu0 %v1076
      %v1078 = vpop.xlane.xlu0 %1077
      %v1079 = vadd.f32 %v934, %v935
      %v1080 = vadd.f32 %v1079, %v936
      %v1081 = vadd.f32 %v1080, %v937
      %1082 = vadd.xlane.f32.xlu0 %v1081
      %v1083 = vpop.xlane.xlu0 %1082
      %v1084 = vadd.f32 %v938, %v939
      %v1085 = vadd.f32 %v1084, %v940
      %v1086 = vadd.f32 %v1085, %v941
      %1087 = vadd.xlane.f32.xlu0 %v1086
      %v1088 = vpop.xlane.xlu0 %1087
      %v1089 = vadd.f32 %v942, %v943
      %v1090 = vadd.f32 %v1089, %v944
      %v1091 = vadd.f32 %v1090, %v945
      %1092 = vadd.xlane.f32.xlu0 %v1091
      %v1093 = vpop.xlane.xlu0 %1092
      %v1094 = vadd.f32 %v946, %v947
      %v1095 = vadd.f32 %v1094, %v948
      %v1096 = vadd.f32 %v1095, %v949
      %1097 = vadd.xlane.f32.xlu0 %v1096
      %v1098 = vpop.xlane.xlu0 %1097
      %v1099 = vadd.f32 %v950, %v951
      %v1100 = vadd.f32 %v1099, %v952
      %v1101 = vadd.f32 %v1100, %v953
      %1102 = vadd.xlane.f32.xlu0 %v1101
      %v1103 = vpop.xlane.xlu0 %1102
      %v1104 = vadd.f32 %v954, %v955
      %v1105 = vadd.f32 %v1104, %v956
      %v1106 = vadd.f32 %v1105, %v957
      %1107 = vadd.xlane.f32.xlu0 %v1106
      %v1108 = vpop.xlane.xlu0 %1107
      %v1109 = vadd.f32 %v958, %v959
      %v1110 = vadd.f32 %v1109, %v960
      %v1111 = vadd.f32 %v1110, %v961
      %1112 = vadd.xlane.f32.xlu0 %v1111
      %v1113 = vpop.xlane.xlu0 %1112
      %v1114 = vadd.f32 %v962, %v963
      %v1115 = vadd.f32 %v1114, %v964
      %v1116 = vadd.f32 %v1115, %v965
      %1117 = vadd.xlane.f32.xlu0 %v1116
      %v1118 = vpop.xlane.xlu0 %1117
      %v1119 = vadd.f32 %v966, %v967
      %v1120 = vadd.f32 %v1119, %v968
      %v1121 = vadd.f32 %v1120, %v969
      %1122 = vadd.xlane.f32.xlu0 %v1121
      %v1123 = vpop.xlane.xlu0 %1122
      %v1124 = vadd.f32 %v970, %v971
      %v1125 = vadd.f32 %v1124, %v972
      %v1126 = vadd.f32 %v1125, %v973
      %1127 = vadd.xlane.f32.xlu0 %v1126
      %v1128 = vpop.xlane.xlu0 %1127
      %v1129 = vadd.f32 %v974, %v975
      %v1130 = vadd.f32 %v1129, %v976
      %v1131 = vadd.f32 %v1130, %v977
      %1132 = vadd.xlane.f32.xlu0 %v1131
      %v1133 = vpop.xlane.xlu0 %1132
      %v1134 = vadd.f32 %v978, %v979
      %v1135 = vadd.f32 %v1134, %v980
      %v1136 = vadd.f32 %v1135, %v981
      %1137 = vadd.xlane.f32.xlu0 %v1136
      %v1138 = vpop.xlane.xlu0 %1137
      %v1139 = vadd.f32 %v982, %v983
      %v1140 = vadd.f32 %v1139, %v984
      %v1141 = vadd.f32 %v1140, %v985
      %1142 = vadd.xlane.f32.xlu0 %v1141
      %v1143 = vpop.xlane.xlu0 %1142
      %v1144 = vadd.f32 %v986, %v987
      %v1145 = vadd.f32 %v1144, %v988
      %v1146 = vadd.f32 %v1145, %v989
      %1147 = vadd.xlane.f32.xlu0 %v1146
      %v1148 = vpop.xlane.xlu0 %1147
      %v1149 = vadd.f32 %v990, %v991
      %v1150 = vadd.f32 %v1149, %v992
      %v1151 = vadd.f32 %v1150, %v993
      %1152 = vadd.xlane.f32.xlu0 %v1151
      %v1153 = vpop.xlane.xlu0 %1152
      %v1154 = vmul.f32 %v866, %v866
      %v1155 = vmul.f32 %v867, %v867
      %v1156 = vmul.f32 %v868, %v868
      %v1157 = vmul.f32 %v869, %v869
      %v1158 = vmul.f32 %v870, %v870
      %v1159 = vmul.f32 %v871, %v871
      %v1160 = vmul.f32 %v872, %v872
      %v1161 = vmul.f32 %v873, %v873
      %v1162 = vmul.f32 %v874, %v874
      %v1163 = vmul.f32 %v875, %v875
      %v1164 = vmul.f32 %v876, %v876
      %v1165 = vmul.f32 %v877, %v877
      %v1166 = vmul.f32 %v878, %v878
      %v1167 = vmul.f32 %v879, %v879
      %v1168 = vmul.f32 %v880, %v880
      %v1169 = vmul.f32 %v881, %v881
      %v1170 = vmul.f32 %v882, %v882
      %v1171 = vmul.f32 %v883, %v883
      %v1172 = vmul.f32 %v884, %v884
      %v1173 = vmul.f32 %v885, %v885
      %v1174 = vmul.f32 %v886, %v886
      %v1175 = vmul.f32 %v887, %v887
      %v1176 = vmul.f32 %v888, %v888
      %v1177 = vmul.f32 %v889, %v889
      %v1178 = vmul.f32 %v890, %v890
      %v1179 = vmul.f32 %v891, %v891
      %v1180 = vmul.f32 %v892, %v892
      %v1181 = vmul.f32 %v893, %v893
      %v1182 = vmul.f32 %v894, %v894
      %v1183 = vmul.f32 %v895, %v895
      %v1184 = vmul.f32 %v896, %v896
      %v1185 = vmul.f32 %v897, %v897
      %v1186 = vmul.f32 %v898, %v898
      %v1187 = vmul.f32 %v899, %v899
      %v1188 = vmul.f32 %v900, %v900
      %v1189 = vmul.f32 %v901, %v901
      %v1190 = vmul.f32 %v902, %v902
      %v1191 = vmul.f32 %v903, %v903
      %v1192 = vmul.f32 %v904, %v904
      %v1193 = vmul.f32 %v905, %v905
      %v1194 = vmul.f32 %v906, %v906
      %v1195 = vmul.f32 %v907, %v907
      %v1196 = vmul.f32 %v908, %v908
      %v1197 = vmul.f32 %v909, %v909
      %v1198 = vmul.f32 %v910, %v910
      %v1199 = vmul.f32 %v911, %v911
      %v1200 = vmul.f32 %v912, %v912
      %v1201 = vmul.f32 %v913, %v913
      %v1202 = vmul.f32 %v914, %v914
      %v1203 = vmul.f32 %v915, %v915
      %v1204 = vmul.f32 %v916, %v916
      %v1205 = vmul.f32 %v917, %v917
      %v1206 = vmul.f32 %v918, %v918
      %v1207 = vmul.f32 %v919, %v919
      %v1208 = vmul.f32 %v920, %v920
      %v1209 = vmul.f32 %v921, %v921
      %v1210 = vmul.f32 %v922, %v922
      %v1211 = vmul.f32 %v923, %v923
      %v1212 = vmul.f32 %v924, %v924
      %v1213 = vmul.f32 %v925, %v925
      %v1214 = vmul.f32 %v926, %v926
      %v1215 = vmul.f32 %v927, %v927
      %v1216 = vmul.f32 %v928, %v928
      %v1217 = vmul.f32 %v929, %v929
      %v1218 = vmul.f32 %v930, %v930
      %v1219 = vmul.f32 %v931, %v931
      %v1220 = vmul.f32 %v932, %v932
      %v1221 = vmul.f32 %v933, %v933
      %v1222 = vmul.f32 %v934, %v934
      %v1223 = vmul.f32 %v935, %v935
      %v1224 = vmul.f32 %v936, %v936
      %v1225 = vmul.f32 %v937, %v937
      %v1226 = vmul.f32 %v938, %v938
      %v1227 = vmul.f32 %v939, %v939
      %v1228 = vmul.f32 %v940, %v940
      %v1229 = vmul.f32 %v941, %v941
      %v1230 = vmul.f32 %v942, %v942
      %v1231 = vmul.f32 %v943, %v943
      %v1232 = vmul.f32 %v944, %v944
      %v1233 = vmul.f32 %v945, %v945
      %v1234 = vmul.f32 %v946, %v946
      %v1235 = vmul.f32 %v947, %v947
      %v1236 = vmul.f32 %v948, %v948
      %v1237 = vmul.f32 %v949, %v949
      %v1238 = vmul.f32 %v950, %v950
      %v1239 = vmul.f32 %v951, %v951
      %v1240 = vmul.f32 %v952, %v952
      %v1241 = vmul.f32 %v953, %v953
      %v1242 = vmul.f32 %v954, %v954
      %v1243 = vmul.f32 %v955, %v955
      %v1244 = vmul.f32 %v956, %v956
      %v1245 = vmul.f32 %v957, %v957
      %v1246 = vmul.f32 %v958, %v958
      %v1247 = vmul.f32 %v959, %v959
      %v1248 = vmul.f32 %v960, %v960
      %v1249 = vmul.f32 %v961, %v961
      %v1250 = vmul.f32 %v962, %v962
      %v1251 = vmul.f32 %v963, %v963
      %v1252 = vmul.f32 %v964, %v964
      %v1253 = vmul.f32 %v965, %v965
      %v1254 = vmul.f32 %v966, %v966
      %v1255 = vmul.f32 %v967, %v967
      %v1256 = vmul.f32 %v968, %v968
      %v1257 = vmul.f32 %v969, %v969
      %v1258 = vmul.f32 %v970, %v970
      %v1259 = vmul.f32 %v971, %v971
      %v1260 = vmul.f32 %v972, %v972
      %v1261 = vmul.f32 %v973, %v973
      %v1262 = vmul.f32 %v974, %v974
      %v1263 = vmul.f32 %v975, %v975
      %v1264 = vmul.f32 %v976, %v976
      %v1265 = vmul.f32 %v977, %v977
      %v1266 = vmul.f32 %v978, %v978
      %v1267 = vmul.f32 %v979, %v979
      %v1268 = vmul.f32 %v980, %v980
      %v1269 = vmul.f32 %v981, %v981
      %v1270 = vmul.f32 %v982, %v982
      %v1271 = vmul.f32 %v983, %v983
      %v1272 = vmul.f32 %v984, %v984
      %v1273 = vmul.f32 %v985, %v985
      %v1274 = vmul.f32 %v986, %v986
      %v1275 = vmul.f32 %v987, %v987
      %v1276 = vmul.f32 %v988, %v988
      %v1277 = vmul.f32 %v989, %v989
      %v1278 = vmul.f32 %v990, %v990
      %v1279 = vmul.f32 %v991, %v991
      %v1280 = vmul.f32 %v992, %v992
      %v1281 = vmul.f32 %v993, %v993
      %v1282 = vadd.f32 %v1154, %v1155
      %v1283 = vadd.f32 %v1282, %v1156
      %v1284 = vadd.f32 %v1283, %v1157
      %1285 = vadd.xlane.f32.xlu0 %v1284
      %v1286 = vpop.xlane.xlu0 %1285
      %v1287 = vadd.f32 %v1158, %v1159
      %v1288 = vadd.f32 %v1287, %v1160
      %v1289 = vadd.f32 %v1288, %v1161
      %1290 = vadd.xlane.f32.xlu0 %v1289
      %v1291 = vpop.xlane.xlu0 %1290
      %v1292 = vadd.f32 %v1162, %v1163
      %v1293 = vadd.f32 %v1292, %v1164
      %v1294 = vadd.f32 %v1293, %v1165
      %1295 = vadd.xlane.f32.xlu0 %v1294
      %v1296 = vpop.xlane.xlu0 %1295
      %v1297 = vadd.f32 %v1166, %v1167
      %v1298 = vadd.f32 %v1297, %v1168
      %v1299 = vadd.f32 %v1298, %v1169
      %1300 = vadd.xlane.f32.xlu0 %v1299
      %v1301 = vpop.xlane.xlu0 %1300
      %v1302 = vadd.f32 %v1170, %v1171
      %v1303 = vadd.f32 %v1302, %v1172
      %v1304 = vadd.f32 %v1303, %v1173
      %1305 = vadd.xlane.f32.xlu0 %v1304
      %v1306 = vpop.xlane.xlu0 %1305
      %v1307 = vadd.f32 %v1174, %v1175
      %v1308 = vadd.f32 %v1307, %v1176
      %v1309 = vadd.f32 %v1308, %v1177
      %1310 = vadd.xlane.f32.xlu0 %v1309
      %v1311 = vpop.xlane.xlu0 %1310
      %v1312 = vadd.f32 %v1178, %v1179
      %v1313 = vadd.f32 %v1312, %v1180
      %v1314 = vadd.f32 %v1313, %v1181
      %1315 = vadd.xlane.f32.xlu0 %v1314
      %v1316 = vpop.xlane.xlu0 %1315
      %v1317 = vadd.f32 %v1182, %v1183
      %v1318 = vadd.f32 %v1317, %v1184
      %v1319 = vadd.f32 %v1318, %v1185
      %1320 = vadd.xlane.f32.xlu0 %v1319
      %v1321 = vpop.xlane.xlu0 %1320
      %v1322 = vadd.f32 %v1186, %v1187
      %v1323 = vadd.f32 %v1322, %v1188
      %v1324 = vadd.f32 %v1323, %v1189
      %1325 = vadd.xlane.f32.xlu0 %v1324
      %v1326 = vpop.xlane.xlu0 %1325
      %v1327 = vadd.f32 %v1190, %v1191
      %v1328 = vadd.f32 %v1327, %v1192
      %v1329 = vadd.f32 %v1328, %v1193
      %1330 = vadd.xlane.f32.xlu0 %v1329
      %v1331 = vpop.xlane.xlu0 %1330
      %v1332 = vadd.f32 %v1194, %v1195
      %v1333 = vadd.f32 %v1332, %v1196
      %v1334 = vadd.f32 %v1333, %v1197
      %1335 = vadd.xlane.f32.xlu0 %v1334
      %v1336 = vpop.xlane.xlu0 %1335
      %v1337 = vadd.f32 %v1198, %v1199
      %v1338 = vadd.f32 %v1337, %v1200
      %v1339 = vadd.f32 %v1338, %v1201
      %1340 = vadd.xlane.f32.xlu0 %v1339
      %v1341 = vpop.xlane.xlu0 %1340
      %v1342 = vadd.f32 %v1202, %v1203
      %v1343 = vadd.f32 %v1342, %v1204
      %v1344 = vadd.f32 %v1343, %v1205
      %1345 = vadd.xlane.f32.xlu0 %v1344
      %v1346 = vpop.xlane.xlu0 %1345
      %v1347 = vadd.f32 %v1206, %v1207
      %v1348 = vadd.f32 %v1347, %v1208
      %v1349 = vadd.f32 %v1348, %v1209
      %1350 = vadd.xlane.f32.xlu0 %v1349
      %v1351 = vpop.xlane.xlu0 %1350
      %v1352 = vadd.f32 %v1210, %v1211
      %v1353 = vadd.f32 %v1352, %v1212
      %v1354 = vadd.f32 %v1353, %v1213
      %1355 = vadd.xlane.f32.xlu0 %v1354
      %v1356 = vpop.xlane.xlu0 %1355
      %v1357 = vadd.f32 %v1214, %v1215
      %v1358 = vadd.f32 %v1357, %v1216
      %v1359 = vadd.f32 %v1358, %v1217
      %1360 = vadd.xlane.f32.xlu0 %v1359
      %v1361 = vpop.xlane.xlu0 %1360
      %v1362 = vadd.f32 %v1218, %v1219
      %v1363 = vadd.f32 %v1362, %v1220
      %v1364 = vadd.f32 %v1363, %v1221
      %1365 = vadd.xlane.f32.xlu0 %v1364
      %v1366 = vpop.xlane.xlu0 %1365
      %v1367 = vadd.f32 %v1222, %v1223
      %v1368 = vadd.f32 %v1367, %v1224
      %v1369 = vadd.f32 %v1368, %v1225
      %1370 = vadd.xlane.f32.xlu0 %v1369
      %v1371 = vpop.xlane.xlu0 %1370
      %v1372 = vadd.f32 %v1226, %v1227
      %v1373 = vadd.f32 %v1372, %v1228
      %v1374 = vadd.f32 %v1373, %v1229
      %1375 = vadd.xlane.f32.xlu0 %v1374
      %v1376 = vpop.xlane.xlu0 %1375
      %v1377 = vadd.f32 %v1230, %v1231
      %v1378 = vadd.f32 %v1377, %v1232
      %v1379 = vadd.f32 %v1378, %v1233
      %1380 = vadd.xlane.f32.xlu0 %v1379
      %v1381 = vpop.xlane.xlu0 %1380
      %v1382 = vadd.f32 %v1234, %v1235
      %v1383 = vadd.f32 %v1382, %v1236
      %v1384 = vadd.f32 %v1383, %v1237
      %1385 = vadd.xlane.f32.xlu0 %v1384
      %v1386 = vpop.xlane.xlu0 %1385
      %v1387 = vadd.f32 %v1238, %v1239
      %v1388 = vadd.f32 %v1387, %v1240
      %v1389 = vadd.f32 %v1388, %v1241
      %1390 = vadd.xlane.f32.xlu0 %v1389
      %v1391 = vpop.xlane.xlu0 %1390
      %v1392 = vadd.f32 %v1242, %v1243
      %v1393 = vadd.f32 %v1392, %v1244
      %v1394 = vadd.f32 %v1393, %v1245
      %1395 = vadd.xlane.f32.xlu0 %v1394
      %v1396 = vpop.xlane.xlu0 %1395
      %v1397 = vadd.f32 %v1246, %v1247
      %v1398 = vadd.f32 %v1397, %v1248
      %v1399 = vadd.f32 %v1398, %v1249
      %1400 = vadd.xlane.f32.xlu0 %v1399
      %v1401 = vpop.xlane.xlu0 %1400
      %v1402 = vadd.f32 %v1250, %v1251
      %v1403 = vadd.f32 %v1402, %v1252
      %v1404 = vadd.f32 %v1403, %v1253
      %1405 = vadd.xlane.f32.xlu0 %v1404
      %v1406 = vpop.xlane.xlu0 %1405
      %v1407 = vadd.f32 %v1254, %v1255
      %v1408 = vadd.f32 %v1407, %v1256
      %v1409 = vadd.f32 %v1408, %v1257
      %1410 = vadd.xlane.f32.xlu0 %v1409
      %v1411 = vpop.xlane.xlu0 %1410
      %v1412 = vadd.f32 %v1258, %v1259
      %v1413 = vadd.f32 %v1412, %v1260
      %v1414 = vadd.f32 %v1413, %v1261
      %1415 = vadd.xlane.f32.xlu0 %v1414
      %v1416 = vpop.xlane.xlu0 %1415
      %v1417 = vadd.f32 %v1262, %v1263
      %v1418 = vadd.f32 %v1417, %v1264
      %v1419 = vadd.f32 %v1418, %v1265
      %1420 = vadd.xlane.f32.xlu0 %v1419
      %v1421 = vpop.xlane.xlu0 %1420
      %v1422 = vadd.f32 %v1266, %v1267
      %v1423 = vadd.f32 %v1422, %v1268
      %v1424 = vadd.f32 %v1423, %v1269
      %1425 = vadd.xlane.f32.xlu0 %v1424
      %v1426 = vpop.xlane.xlu0 %1425
      %v1427 = vadd.f32 %v1270, %v1271
      %v1428 = vadd.f32 %v1427, %v1272
      %v1429 = vadd.f32 %v1428, %v1273
      %1430 = vadd.xlane.f32.xlu0 %v1429
      %v1431 = vpop.xlane.xlu0 %1430
      %v1432 = vadd.f32 %v1274, %v1275
      %v1433 = vadd.f32 %v1432, %v1276
      %v1434 = vadd.f32 %v1433, %v1277
      %1435 = vadd.xlane.f32.xlu0 %v1434
      %v1436 = vpop.xlane.xlu0 %1435
      %v1437 = vadd.f32 %v1278, %v1279
      %v1438 = vadd.f32 %v1437, %v1280
      %v1439 = vadd.f32 %v1438, %v1281
      %1440 = vadd.xlane.f32.xlu0 %v1439
      %v1441 = vpop.xlane.xlu0 %1440
      %v1442 = vmul.f32 %v998, 0.001953125
      %v1443 = vmul.f32 %v1003, 0.001953125
      %v1444 = vmul.f32 %v1008, 0.001953125
      %v1445 = vmul.f32 %v1013, 0.001953125
      %v1446 = vmul.f32 %v1018, 0.001953125
      %v1447 = vmul.f32 %v1023, 0.001953125
      %v1448 = vmul.f32 %v1028, 0.001953125
      %v1449 = vmul.f32 %v1033, 0.001953125
      %v1450 = vmul.f32 %v1038, 0.001953125
      %v1451 = vmul.f32 %v1043, 0.001953125
      %v1452 = vmul.f32 %v1048, 0.001953125
      %v1453 = vmul.f32 %v1053, 0.001953125
      %v1454 = vmul.f32 %v1058, 0.001953125
      %v1455 = vmul.f32 %v1063, 0.001953125
      %v1456 = vmul.f32 %v1068, 0.001953125
      %v1457 = vmul.f32 %v1073, 0.001953125
      %v1458 = vmul.f32 %v1078, 0.001953125
      %v1459 = vmul.f32 %v1083, 0.001953125
      %v1460 = vmul.f32 %v1088, 0.001953125
      %v1461 = vmul.f32 %v1093, 0.001953125
      %v1462 = vmul.f32 %v1098, 0.001953125
      %v1463 = vmul.f32 %v1103, 0.001953125
      %v1464 = vmul.f32 %v1108, 0.001953125
      %v1465 = vmul.f32 %v1113, 0.001953125
      %v1466 = vmul.f32 %v1118, 0.001953125
      %v1467 = vmul.f32 %v1123, 0.001953125
      %v1468 = vmul.f32 %v1128, 0.001953125
      %v1469 = vmul.f32 %v1133, 0.001953125
      %v1470 = vmul.f32 %v1138, 0.001953125
      %v1471 = vmul.f32 %v1143, 0.001953125
      %v1472 = vmul.f32 %v1148, 0.001953125
      %v1473 = vmul.f32 %v1153, 0.001953125
      %v1474 = vmul.f32 %v1286, 0.001953125
      %v1475 = vmul.f32 %v1291, 0.001953125
      %v1476 = vmul.f32 %v1296, 0.001953125
      %v1477 = vmul.f32 %v1301, 0.001953125
      %v1478 = vmul.f32 %v1306, 0.001953125
      %v1479 = vmul.f32 %v1311, 0.001953125
      %v1480 = vmul.f32 %v1316, 0.001953125
      %v1481 = vmul.f32 %v1321, 0.001953125
      %v1482 = vmul.f32 %v1326, 0.001953125
      %v1483 = vmul.f32 %v1331, 0.001953125
      %v1484 = vmul.f32 %v1336, 0.001953125
      %v1485 = vmul.f32 %v1341, 0.001953125
      %v1486 = vmul.f32 %v1346, 0.001953125
      %v1487 = vmul.f32 %v1351, 0.001953125
      %v1488 = vmul.f32 %v1356, 0.001953125
      %v1489 = vmul.f32 %v1361, 0.001953125
      %v1490 = vmul.f32 %v1366, 0.001953125
      %v1491 = vmul.f32 %v1371, 0.001953125
      %v1492 = vmul.f32 %v1376, 0.001953125
      %v1493 = vmul.f32 %v1381, 0.001953125
      %v1494 = vmul.f32 %v1386, 0.001953125
      %v1495 = vmul.f32 %v1391, 0.001953125
      %v1496 = vmul.f32 %v1396, 0.001953125
      %v1497 = vmul.f32 %v1401, 0.001953125
      %v1498 = vmul.f32 %v1406, 0.001953125
      %v1499 = vmul.f32 %v1411, 0.001953125
      %v1500 = vmul.f32 %v1416, 0.001953125
      %v1501 = vmul.f32 %v1421, 0.001953125
      %v1502 = vmul.f32 %v1426, 0.001953125
      %v1503 = vmul.f32 %v1431, 0.001953125
      %v1504 = vmul.f32 %v1436, 0.001953125
      %v1505 = vmul.f32 %v1441, 0.001953125
      %v1506 = vmul.f32 %v1442, %v1442
      %v1507 = vmul.f32 %v1443, %v1443
      %v1508 = vmul.f32 %v1444, %v1444
      %v1509 = vmul.f32 %v1445, %v1445
      %v1510 = vmul.f32 %v1446, %v1446
      %v1511 = vmul.f32 %v1447, %v1447
      %v1512 = vmul.f32 %v1448, %v1448
      %v1513 = vmul.f32 %v1449, %v1449
      %v1514 = vmul.f32 %v1450, %v1450
      %v1515 = vmul.f32 %v1451, %v1451
      %v1516 = vmul.f32 %v1452, %v1452
      %v1517 = vmul.f32 %v1453, %v1453
      %v1518 = vmul.f32 %v1454, %v1454
      %v1519 = vmul.f32 %v1455, %v1455
      %v1520 = vmul.f32 %v1456, %v1456
      %v1521 = vmul.f32 %v1457, %v1457
      %v1522 = vmul.f32 %v1458, %v1458
      %v1523 = vmul.f32 %v1459, %v1459
      %v1524 = vmul.f32 %v1460, %v1460
      %v1525 = vmul.f32 %v1461, %v1461
      %v1526 = vmul.f32 %v1462, %v1462
      %v1527 = vmul.f32 %v1463, %v1463
      %v1528 = vmul.f32 %v1464, %v1464
      %v1529 = vmul.f32 %v1465, %v1465
      %v1530 = vmul.f32 %v1466, %v1466
      %v1531 = vmul.f32 %v1467, %v1467
      %v1532 = vmul.f32 %v1468, %v1468
      %v1533 = vmul.f32 %v1469, %v1469
      %v1534 = vmul.f32 %v1470, %v1470
      %v1535 = vmul.f32 %v1471, %v1471
      %v1536 = vmul.f32 %v1472, %v1472
      %v1537 = vmul.f32 %v1473, %v1473
      %v1538 = vsub.f32 %v1474, %v1506
      %v1539 = vsub.f32 %v1475, %v1507
      %v1540 = vsub.f32 %v1476, %v1508
      %v1541 = vsub.f32 %v1477, %v1509
      %v1542 = vsub.f32 %v1478, %v1510
      %v1543 = vsub.f32 %v1479, %v1511
      %v1544 = vsub.f32 %v1480, %v1512
      %v1545 = vsub.f32 %v1481, %v1513
      %v1546 = vsub.f32 %v1482, %v1514
      %v1547 = vsub.f32 %v1483, %v1515
      %v1548 = vsub.f32 %v1484, %v1516
      %v1549 = vsub.f32 %v1485, %v1517
      %v1550 = vsub.f32 %v1486, %v1518
      %v1551 = vsub.f32 %v1487, %v1519
      %v1552 = vsub.f32 %v1488, %v1520
      %v1553 = vsub.f32 %v1489, %v1521
      %v1554 = vsub.f32 %v1490, %v1522
      %v1555 = vsub.f32 %v1491, %v1523
      %v1556 = vsub.f32 %v1492, %v1524
      %v1557 = vsub.f32 %v1493, %v1525
      %v1558 = vsub.f32 %v1494, %v1526
      %v1559 = vsub.f32 %v1495, %v1527
      %v1560 = vsub.f32 %v1496, %v1528
      %v1561 = vsub.f32 %v1497, %v1529
      %v1562 = vsub.f32 %v1498, %v1530
      %v1563 = vsub.f32 %v1499, %v1531
      %v1564 = vsub.f32 %v1500, %v1532
      %v1565 = vsub.f32 %v1501, %v1533
      %v1566 = vsub.f32 %v1502, %v1534
      %v1567 = vsub.f32 %v1503, %v1535
      %v1568 = vsub.f32 %v1504, %v1536
      %v1569 = vsub.f32 %v1505, %v1537
      %v1570 = vsub.f32 %v866, %v1442
      %v1571 = vsub.f32 %v867, %v1442
      %v1572 = vsub.f32 %v868, %v1442
      %v1573 = vsub.f32 %v869, %v1442
      %v1574 = vsub.f32 %v870, %v1443
      %v1575 = vsub.f32 %v871, %v1443
      %v1576 = vsub.f32 %v872, %v1443
      %v1577 = vsub.f32 %v873, %v1443
      %v1578 = vsub.f32 %v874, %v1444
      %v1579 = vsub.f32 %v875, %v1444
      %v1580 = vsub.f32 %v876, %v1444
      %v1581 = vsub.f32 %v877, %v1444
      %v1582 = vsub.f32 %v878, %v1445
      %v1583 = vsub.f32 %v879, %v1445
      %v1584 = vsub.f32 %v880, %v1445
      %v1585 = vsub.f32 %v881, %v1445
      %v1586 = vsub.f32 %v882, %v1446
      %v1587 = vsub.f32 %v883, %v1446
      %v1588 = vsub.f32 %v884, %v1446
      %v1589 = vsub.f32 %v885, %v1446
      %v1590 = vsub.f32 %v886, %v1447
      %v1591 = vsub.f32 %v887, %v1447
      %v1592 = vsub.f32 %v888, %v1447
      %v1593 = vsub.f32 %v889, %v1447
      %v1594 = vsub.f32 %v890, %v1448
      %v1595 = vsub.f32 %v891, %v1448
      %v1596 = vsub.f32 %v892, %v1448
      %v1597 = vsub.f32 %v893, %v1448
      %v1598 = vsub.f32 %v894, %v1449
      %v1599 = vsub.f32 %v895, %v1449
      %v1600 = vsub.f32 %v896, %v1449
      %v1601 = vsub.f32 %v897, %v1449
      %v1602 = vsub.f32 %v898, %v1450
      %v1603 = vsub.f32 %v899, %v1450
      %v1604 = vsub.f32 %v900, %v1450
      %v1605 = vsub.f32 %v901, %v1450
      %v1606 = vsub.f32 %v902, %v1451
      %v1607 = vsub.f32 %v903, %v1451
      %v1608 = vsub.f32 %v904, %v1451
      %v1609 = vsub.f32 %v905, %v1451
      %v1610 = vsub.f32 %v906, %v1452
      %v1611 = vsub.f32 %v907, %v1452
      %v1612 = vsub.f32 %v908, %v1452
      %v1613 = vsub.f32 %v909, %v1452
      %v1614 = vsub.f32 %v910, %v1453
      %v1615 = vsub.f32 %v911, %v1453
      %v1616 = vsub.f32 %v912, %v1453
      %v1617 = vsub.f32 %v913, %v1453
      %v1618 = vsub.f32 %v914, %v1454
      %v1619 = vsub.f32 %v915, %v1454
      %v1620 = vsub.f32 %v916, %v1454
      %v1621 = vsub.f32 %v917, %v1454
      %v1622 = vsub.f32 %v918, %v1455
      %v1623 = vsub.f32 %v919, %v1455
      %v1624 = vsub.f32 %v920, %v1455
      %v1625 = vsub.f32 %v921, %v1455
      %v1626 = vsub.f32 %v922, %v1456
      %v1627 = vsub.f32 %v923, %v1456
      %v1628 = vsub.f32 %v924, %v1456
      %v1629 = vsub.f32 %v925, %v1456
      %v1630 = vsub.f32 %v926, %v1457
      %v1631 = vsub.f32 %v927, %v1457
      %v1632 = vsub.f32 %v928, %v1457
      %v1633 = vsub.f32 %v929, %v1457
      %v1634 = vsub.f32 %v930, %v1458
      %v1635 = vsub.f32 %v931, %v1458
      %v1636 = vsub.f32 %v932, %v1458
      %v1637 = vsub.f32 %v933, %v1458
      %v1638 = vsub.f32 %v934, %v1459
      %v1639 = vsub.f32 %v935, %v1459
      %v1640 = vsub.f32 %v936, %v1459
      %v1641 = vsub.f32 %v937, %v1459
      %v1642 = vsub.f32 %v938, %v1460
      %v1643 = vsub.f32 %v939, %v1460
      %v1644 = vsub.f32 %v940, %v1460
      %v1645 = vsub.f32 %v941, %v1460
      %v1646 = vsub.f32 %v942, %v1461
      %v1647 = vsub.f32 %v943, %v1461
      %v1648 = vsub.f32 %v944, %v1461
      %v1649 = vsub.f32 %v945, %v1461
      %v1650 = vsub.f32 %v946, %v1462
      %v1651 = vsub.f32 %v947, %v1462
      %v1652 = vsub.f32 %v948, %v1462
      %v1653 = vsub.f32 %v949, %v1462
      %v1654 = vsub.f32 %v950, %v1463
      %v1655 = vsub.f32 %v951, %v1463
      %v1656 = vsub.f32 %v952, %v1463
      %v1657 = vsub.f32 %v953, %v1463
      %v1658 = vsub.f32 %v954, %v1464
      %v1659 = vsub.f32 %v955, %v1464
      %v1660 = vsub.f32 %v956, %v1464
      %v1661 = vsub.f32 %v957, %v1464
      %v1662 = vsub.f32 %v958, %v1465
      %v1663 = vsub.f32 %v959, %v1465
      %v1664 = vsub.f32 %v960, %v1465
      %v1665 = vsub.f32 %v961, %v1465
      %v1666 = vsub.f32 %v962, %v1466
      %v1667 = vsub.f32 %v963, %v1466
      %v1668 = vsub.f32 %v964, %v1466
      %v1669 = vsub.f32 %v965, %v1466
      %v1670 = vsub.f32 %v966, %v1467
      %v1671 = vsub.f32 %v967, %v1467
      %v1672 = vsub.f32 %v968, %v1467
      %v1673 = vsub.f32 %v969, %v1467
      %v1674 = vsub.f32 %v970, %v1468
      %v1675 = vsub.f32 %v971, %v1468
      %v1676 = vsub.f32 %v972, %v1468
      %v1677 = vsub.f32 %v973, %v1468
      %v1678 = vsub.f32 %v974, %v1469
      %v1679 = vsub.f32 %v975, %v1469
      %v1680 = vsub.f32 %v976, %v1469
      %v1681 = vsub.f32 %v977, %v1469
      %v1682 = vsub.f32 %v978, %v1470
      %v1683 = vsub.f32 %v979, %v1470
      %v1684 = vsub.f32 %v980, %v1470
      %v1685 = vsub.f32 %v981, %v1470
      %v1686 = vsub.f32 %v982, %v1471
      %v1687 = vsub.f32 %v983, %v1471
      %v1688 = vsub.f32 %v984, %v1471
      %v1689 = vsub.f32 %v985, %v1471
      %v1690 = vsub.f32 %v986, %v1472
      %v1691 = vsub.f32 %v987, %v1472
      %v1692 = vsub.f32 %v988, %v1472
      %v1693 = vsub.f32 %v989, %v1472
      %v1694 = vsub.f32 %v990, %v1473
      %v1695 = vsub.f32 %v991, %v1473
      %v1696 = vsub.f32 %v992, %v1473
      %v1697 = vsub.f32 %v993, %v1473
      %v1698 = vadd.f32 %v1538, 1e-05
      %v1699 = vadd.f32 %v1539, 1e-05
      %v1700 = vadd.f32 %v1540, 1e-05
      %v1701 = vadd.f32 %v1541, 1e-05
      %v1702 = vadd.f32 %v1542, 1e-05
      %v1703 = vadd.f32 %v1543, 1e-05
      %v1704 = vadd.f32 %v1544, 1e-05
      %v1705 = vadd.f32 %v1545, 1e-05
      %v1706 = vadd.f32 %v1546, 1e-05
      %v1707 = vadd.f32 %v1547, 1e-05
      %v1708 = vadd.f32 %v1548, 1e-05
      %v1709 = vadd.f32 %v1549, 1e-05
      %v1710 = vadd.f32 %v1550, 1e-05
      %v1711 = vadd.f32 %v1551, 1e-05
      %v1712 = vadd.f32 %v1552, 1e-05
      %v1713 = vadd.f32 %v1553, 1e-05
      %v1714 = vadd.f32 %v1554, 1e-05
      %v1715 = vadd.f32 %v1555, 1e-05
      %v1716 = vadd.f32 %v1556, 1e-05
      %v1717 = vadd.f32 %v1557, 1e-05
      %v1718 = vadd.f32 %v1558, 1e-05
      %v1719 = vadd.f32 %v1559, 1e-05
      %v1720 = vadd.f32 %v1560, 1e-05
      %v1721 = vadd.f32 %v1561, 1e-05
      %v1722 = vadd.f32 %v1562, 1e-05
      %v1723 = vadd.f32 %v1563, 1e-05
      %v1724 = vadd.f32 %v1564, 1e-05
      %v1725 = vadd.f32 %v1565, 1e-05
      %v1726 = vadd.f32 %v1566, 1e-05
      %v1727 = vadd.f32 %v1567, 1e-05
      %v1728 = vadd.f32 %v1568, 1e-05
      %v1729 = vadd.f32 %v1569, 1e-05
      %v1730 = vrsqrt.pop %v1698
      %v1731 = vrsqrt.pop %v1699
      %v1732 = vrsqrt.pop %v1700
      %v1733 = vrsqrt.pop %v1701
      %v1734 = vrsqrt.pop %v1702
      %v1735 = vrsqrt.pop %v1703
      %v1736 = vrsqrt.pop %v1704
      %v1737 = vrsqrt.pop %v1705
      %v1738 = vrsqrt.pop %v1706
      %v1739 = vrsqrt.pop %v1707
      %v1740 = vrsqrt.pop %v1708
      %v1741 = vrsqrt.pop %v1709
      %v1742 = vrsqrt.pop %v1710
      %v1743 = vrsqrt.pop %v1711
      %v1744 = vrsqrt.pop %v1712
      %v1745 = vrsqrt.pop %v1713
      %v1746 = vrsqrt.pop %v1714
      %v1747 = vrsqrt.pop %v1715
      %v1748 = vrsqrt.pop %v1716
      %v1749 = vrsqrt.pop %v1717
      %v1750 = vrsqrt.pop %v1718
      %v1751 = vrsqrt.pop %v1719
      %v1752 = vrsqrt.pop %v1720
      %v1753 = vrsqrt.pop %v1721
      %v1754 = vrsqrt.pop %v1722
      %v1755 = vrsqrt.pop %v1723
      %v1756 = vrsqrt.pop %v1724
      %v1757 = vrsqrt.pop %v1725
      %v1758 = vrsqrt.pop %v1726
      %v1759 = vrsqrt.pop %v1727
      %v1760 = vrsqrt.pop %v1728
      %v1761 = vrsqrt.pop %v1729
      %v1762 = vmul.f32 %v1570, %v1730
      %v1763 = vmul.f32 %v1571, %v1730
      %v1764 = vmul.f32 %v1572, %v1730
      %v1765 = vmul.f32 %v1573, %v1730
      %v1766 = vmul.f32 %v1574, %v1731
      %v1767 = vmul.f32 %v1575, %v1731
      %v1768 = vmul.f32 %v1576, %v1731
      %v1769 = vmul.f32 %v1577, %v1731
      %v1770 = vmul.f32 %v1578, %v1732
      %v1771 = vmul.f32 %v1579, %v1732
      %v1772 = vmul.f32 %v1580, %v1732
      %v1773 = vmul.f32 %v1581, %v1732
      %v1774 = vmul.f32 %v1582, %v1733
      %v1775 = vmul.f32 %v1583, %v1733
      %v1776 = vmul.f32 %v1584, %v1733
      %v1777 = vmul.f32 %v1585, %v1733
      %v1778 = vmul.f32 %v1586, %v1734
      %v1779 = vmul.f32 %v1587, %v1734
      %v1780 = vmul.f32 %v1588, %v1734
      %v1781 = vmul.f32 %v1589, %v1734
      %v1782 = vmul.f32 %v1590, %v1735
      %v1783 = vmul.f32 %v1591, %v1735
      %v1784 = vmul.f32 %v1592, %v1735
      %v1785 = vmul.f32 %v1593, %v1735
      %v1786 = vmul.f32 %v1594, %v1736
      %v1787 = vmul.f32 %v1595, %v1736
      %v1788 = vmul.f32 %v1596, %v1736
      %v1789 = vmul.f32 %v1597, %v1736
      %v1790 = vmul.f32 %v1598, %v1737
      %v1791 = vmul.f32 %v1599, %v1737
      %v1792 = vmul.f32 %v1600, %v1737
      %v1793 = vmul.f32 %v1601, %v1737
      %v1794 = vmul.f32 %v1602, %v1738
      %v1795 = vmul.f32 %v1603, %v1738
      %v1796 = vmul.f32 %v1604, %v1738
      %v1797 = vmul.f32 %v1605, %v1738
      %v1798 = vmul.f32 %v1606, %v1739
      %v1799 = vmul.f32 %v1607, %v1739
      %v1800 = vmul.f32 %v1608, %v1739
      %v1801 = vmul.f32 %v1609, %v1739
      %v1802 = vmul.f32 %v1610, %v1740
      %v1803 = vmul.f32 %v1611, %v1740
      %v1804 = vmul.f32 %v1612, %v1740
      %v1805 = vmul.f32 %v1613, %v1740
      %v1806 = vmul.f32 %v1614, %v1741
      %v1807 = vmul.f32 %v1615, %v1741
      %v1808 = vmul.f32 %v1616, %v1741
      %v1809 = vmul.f32 %v1617, %v1741
      %v1810 = vmul.f32 %v1618, %v1742
      %v1811 = vmul.f32 %v1619, %v1742
      %v1812 = vmul.f32 %v1620, %v1742
      %v1813 = vmul.f32 %v1621, %v1742
      %v1814 = vmul.f32 %v1622, %v1743
      %v1815 = vmul.f32 %v1623, %v1743
      %v1816 = vmul.f32 %v1624, %v1743
      %v1817 = vmul.f32 %v1625, %v1743
      %v1818 = vmul.f32 %v1626, %v1744
      %v1819 = vmul.f32 %v1627, %v1744
      %v1820 = vmul.f32 %v1628, %v1744
      %v1821 = vmul.f32 %v1629, %v1744
      %v1822 = vmul.f32 %v1630, %v1745
      %v1823 = vmul.f32 %v1631, %v1745
      %v1824 = vmul.f32 %v1632, %v1745
      %v1825 = vmul.f32 %v1633, %v1745
      %v1826 = vmul.f32 %v1634, %v1746
      %v1827 = vmul.f32 %v1635, %v1746
      %v1828 = vmul.f32 %v1636, %v1746
      %v1829 = vmul.f32 %v1637, %v1746
      %v1830 = vmul.f32 %v1638, %v1747
      %v1831 = vmul.f32 %v1639, %v1747
      %v1832 = vmul.f32 %v1640, %v1747
      %v1833 = vmul.f32 %v1641, %v1747
      %v1834 = vmul.f32 %v1642, %v1748
      %v1835 = vmul.f32 %v1643, %v1748
      %v1836 = vmul.f32 %v1644, %v1748
      %v1837 = vmul.f32 %v1645, %v1748
      %v1838 = vmul.f32 %v1646, %v1749
      %v1839 = vmul.f32 %v1647, %v1749
      %v1840 = vmul.f32 %v1648, %v1749
      %v1841 = vmul.f32 %v1649, %v1749
      %v1842 = vmul.f32 %v1650, %v1750
      %v1843 = vmul.f32 %v1651, %v1750
      %v1844 = vmul.f32 %v1652, %v1750
      %v1845 = vmul.f32 %v1653, %v1750
      %v1846 = vmul.f32 %v1654, %v1751
      %v1847 = vmul.f32 %v1655, %v1751
      %v1848 = vmul.f32 %v1656, %v1751
      %v1849 = vmul.f32 %v1657, %v1751
      %v1850 = vmul.f32 %v1658, %v1752
      %v1851 = vmul.f32 %v1659, %v1752
      %v1852 = vmul.f32 %v1660, %v1752
      %v1853 = vmul.f32 %v1661, %v1752
      %v1854 = vmul.f32 %v1662, %v1753
      %v1855 = vmul.f32 %v1663, %v1753
      %v1856 = vmul.f32 %v1664, %v1753
      %v1857 = vmul.f32 %v1665, %v1753
      %v1858 = vmul.f32 %v1666, %v1754
      %v1859 = vmul.f32 %v1667, %v1754
      %v1860 = vmul.f32 %v1668, %v1754
      %v1861 = vmul.f32 %v1669, %v1754
      %v1862 = vmul.f32 %v1670, %v1755
      %v1863 = vmul.f32 %v1671, %v1755
      %v1864 = vmul.f32 %v1672, %v1755
      %v1865 = vmul.f32 %v1673, %v1755
      %v1866 = vmul.f32 %v1674, %v1756
      %v1867 = vmul.f32 %v1675, %v1756
      %v1868 = vmul.f32 %v1676, %v1756
      %v1869 = vmul.f32 %v1677, %v1756
      %v1870 = vmul.f32 %v1678, %v1757
      %v1871 = vmul.f32 %v1679, %v1757
      %v1872 = vmul.f32 %v1680, %v1757
      %v1873 = vmul.f32 %v1681, %v1757
      %v1874 = vmul.f32 %v1682, %v1758
      %v1875 = vmul.f32 %v1683, %v1758
      %v1876 = vmul.f32 %v1684, %v1758
      %v1877 = vmul.f32 %v1685, %v1758
      %v1878 = vmul.f32 %v1686, %v1759
      %v1879 = vmul.f32 %v1687, %v1759
      %v1880 = vmul.f32 %v1688, %v1759
      %v1881 = vmul.f32 %v1689, %v1759
      %v1882 = vmul.f32 %v1690, %v1760
      %v1883 = vmul.f32 %v1691, %v1760
      %v1884 = vmul.f32 %v1692, %v1760
      %v1885 = vmul.f32 %v1693, %v1760
      %v1886 = vmul.f32 %v1694, %v1761
      %v1887 = vmul.f32 %v1695, %v1761
      %v1888 = vmul.f32 %v1696, %v1761
      %v1889 = vmul.f32 %v1697, %v1761
      %v1890 = vpack.c.bf16 %v1766, %v1762
      %v1891 = vpack.c.bf16 %v1767, %v1763
      %v1892 = vpack.c.bf16 %v1768, %v1764
      %v1893 = vpack.c.bf16 %v1769, %v1765
      %v1894 = vpack.c.bf16 %v1774, %v1770
      %v1895 = vpack.c.bf16 %v1775, %v1771
      %v1896 = vpack.c.bf16 %v1776, %v1772
      %v1897 = vpack.c.bf16 %v1777, %v1773
      %v1898 = vpack.c.bf16 %v1782, %v1778
      %v1899 = vpack.c.bf16 %v1783, %v1779
      %v1900 = vpack.c.bf16 %v1784, %v1780
      %v1901 = vpack.c.bf16 %v1785, %v1781
      %v1902 = vpack.c.bf16 %v1790, %v1786
      %v1903 = vpack.c.bf16 %v1791, %v1787
      %v1904 = vpack.c.bf16 %v1792, %v1788
      %v1905 = vpack.c.bf16 %v1793, %v1789
      %v1906 = vpack.c.bf16 %v1798, %v1794
      %v1907 = vpack.c.bf16 %v1799, %v1795
      %v1908 = vpack.c.bf16 %v1800, %v1796
      %v1909 = vpack.c.bf16 %v1801, %v1797
      %v1910 = vpack.c.bf16 %v1806, %v1802
      %v1911 = vpack.c.bf16 %v1807, %v1803
      %v1912 = vpack.c.bf16 %v1808, %v1804
      %v1913 = vpack.c.bf16 %v1809, %v1805
      %v1914 = vpack.c.bf16 %v1814, %v1810
      %v1915 = vpack.c.bf16 %v1815, %v1811
      %v1916 = vpack.c.bf16 %v1816, %v1812
      %v1917 = vpack.c.bf16 %v1817, %v1813
      %v1918 = vpack.c.bf16 %v1822, %v1818
      %v1919 = vpack.c.bf16 %v1823, %v1819
      %v1920 = vpack.c.bf16 %v1824, %v1820
      %v1921 = vpack.c.bf16 %v1825, %v1821
      %v1922 = vpack.c.bf16 %v1830, %v1826
      %v1923 = vpack.c.bf16 %v1831, %v1827
      %v1924 = vpack.c.bf16 %v1832, %v1828
      %v1925 = vpack.c.bf16 %v1833, %v1829
      %v1926 = vpack.c.bf16 %v1838, %v1834
      %v1927 = vpack.c.bf16 %v1839, %v1835
      %v1928 = vpack.c.bf16 %v1840, %v1836
      %v1929 = vpack.c.bf16 %v1841, %v1837
      %v1930 = vpack.c.bf16 %v1846, %v1842
      %v1931 = vpack.c.bf16 %v1847, %v1843
      %v1932 = vpack.c.bf16 %v1848, %v1844
      %v1933 = vpack.c.bf16 %v1849, %v1845
      %v1934 = vpack.c.bf16 %v1854, %v1850
      %v1935 = vpack.c.bf16 %v1855, %v1851
      %v1936 = vpack.c.bf16 %v1856, %v1852
      %v1937 = vpack.c.bf16 %v1857, %v1853
      %v1938 = vpack.c.bf16 %v1862, %v1858
      %v1939 = vpack.c.bf16 %v1863, %v1859
      %v1940 = vpack.c.bf16 %v1864, %v1860
      %v1941 = vpack.c.bf16 %v1865, %v1861
      %v1942 = vpack.c.bf16 %v1870, %v1866
      %v1943 = vpack.c.bf16 %v1871, %v1867
      %v1944 = vpack.c.bf16 %v1872, %v1868
      %v1945 = vpack.c.bf16 %v1873, %v1869
      %v1946 = vpack.c.bf16 %v1878, %v1874
      %v1947 = vpack.c.bf16 %v1879, %v1875
      %v1948 = vpack.c.bf16 %v1880, %v1876
      %v1949 = vpack.c.bf16 %v1881, %v1877
      %v1950 = vpack.c.bf16 %v1886, %v1882
      %v1951 = vpack.c.bf16 %v1887, %v1883
      %v1952 = vpack.c.bf16 %v1888, %v1884
      %v1953 = vpack.c.bf16 %v1889, %v1885
      %v1954 = vld [vmem:[%s3] sm:$0xff]
      %v1955 = vld [vmem:[%s3 + $0x8] sm:$0xff]
      %v1956 = vld [vmem:[%s3 + $0x10] sm:$0xff]
      %v1957 = vld [vmem:[%s3 + $0x18] sm:$0xff]
      %v1958 = vld [vmem:[%s3 + $0x20] sm:$0xff]
      %v1959 = vld [vmem:[%s3 + $0x28] sm:$0xff]
      %v1960 = vld [vmem:[%s3 + $0x30] sm:$0xff]
      %v1961 = vld [vmem:[%s3 + $0x38] sm:$0xff]
      %v1962 = vld [vmem:[%s3 + $0x40] sm:$0xff]
      %v1963 = vld [vmem:[%s3 + $0x48] sm:$0xff]
      %v1964 = vld [vmem:[%s3 + $0x50] sm:$0xff]
      %v1965 = vld [vmem:[%s3 + $0x58] sm:$0xff]
      %v1966 = vld [vmem:[%s3 + $0x60] sm:$0xff]
      %v1967 = vld [vmem:[%s3 + $0x68] sm:$0xff]
      %v1968 = vld [vmem:[%s3 + $0x70] sm:$0xff]
      %v1969 = vld [vmem:[%s3 + $0x78] sm:$0xff]
      %v1970 = vld [vmem:[%s3 + $0x80] sm:$0xff]
      %v1971 = vld [vmem:[%s3 + $0x88] sm:$0xff]
      %v1972 = vld [vmem:[%s3 + $0x90] sm:$0xff]
      %v1973 = vld [vmem:[%s3 + $0x98] sm:$0xff]
      %v1974 = vld [vmem:[%s3 + $0xa0] sm:$0xff]
      %v1975 = vld [vmem:[%s3 + $0xa8] sm:$0xff]
      %v1976 = vld [vmem:[%s3 + $0xb0] sm:$0xff]
      %v1977 = vld [vmem:[%s3 + $0xb8] sm:$0xff]
      %v1978 = vld [vmem:[%s3 + $0xc0] sm:$0xff]
      %v1979 = vld [vmem:[%s3 + $0xc8] sm:$0xff]
      %v1980 = vld [vmem:[%s3 + $0xd0] sm:$0xff]
      %v1981 = vld [vmem:[%s3 + $0xd8] sm:$0xff]
      %v1982 = vld [vmem:[%s3 + $0xe0] sm:$0xff]
      %v1983 = vld [vmem:[%s3 + $0xe8] sm:$0xff]
      %v1984 = vld [vmem:[%s3 + $0xf0] sm:$0xff]
      %v1985 = vld [vmem:[%s3 + $0xf8] sm:$0xff]
      %v1986 = vld [vmem:[%s3 + $0x100] sm:$0xff]
      %v1987 = vld [vmem:[%s3 + $0x108] sm:$0xff]
      %v1988 = vld [vmem:[%s3 + $0x110] sm:$0xff]
      %v1989 = vld [vmem:[%s3 + $0x118] sm:$0xff]
      %v1990 = vld [vmem:[%s3 + $0x120] sm:$0xff]
      %v1991 = vld [vmem:[%s3 + $0x128] sm:$0xff]
      %v1992 = vld [vmem:[%s3 + $0x130] sm:$0xff]
      %v1993 = vld [vmem:[%s3 + $0x138] sm:$0xff]
      %v1994 = vld [vmem:[%s3 + $0x140] sm:$0xff]
      %v1995 = vld [vmem:[%s3 + $0x148] sm:$0xff]
      %v1996 = vld [vmem:[%s3 + $0x150] sm:$0xff]
      %v1997 = vld [vmem:[%s3 + $0x158] sm:$0xff]
      %v1998 = vld [vmem:[%s3 + $0x160] sm:$0xff]
      %v1999 = vld [vmem:[%s3 + $0x168] sm:$0xff]
      %v2000 = vld [vmem:[%s3 + $0x170] sm:$0xff]
      %v2001 = vld [vmem:[%s3 + $0x178] sm:$0xff]
      %v2002 = vld [vmem:[%s3 + $0x180] sm:$0xff]
      %v2003 = vld [vmem:[%s3 + $0x188] sm:$0xff]
      %v2004 = vld [vmem:[%s3 + $0x190] sm:$0xff]
      %v2005 = vld [vmem:[%s3 + $0x198] sm:$0xff]
      %v2006 = vld [vmem:[%s3 + $0x1a0] sm:$0xff]
      %v2007 = vld [vmem:[%s3 + $0x1a8] sm:$0xff]
      %v2008 = vld [vmem:[%s3 + $0x1b0] sm:$0xff]
      %v2009 = vld [vmem:[%s3 + $0x1b8] sm:$0xff]
      %v2010 = vld [vmem:[%s3 + $0x1c0] sm:$0xff]
      %v2011 = vld [vmem:[%s3 + $0x1c8] sm:$0xff]
      %v2012 = vld [vmem:[%s3 + $0x1d0] sm:$0xff]
      %v2013 = vld [vmem:[%s3 + $0x1d8] sm:$0xff]
      %v2014 = vld [vmem:[%s3 + $0x1e0] sm:$0xff]
      %v2015 = vld [vmem:[%s3 + $0x1e8] sm:$0xff]
      %v2016 = vld [vmem:[%s3 + $0x1f0] sm:$0xff]
      %v2017 = vld [vmem:[%s3 + $0x1f8] sm:$0xff]
      %v2018 = vld [vmem:[%s3 + $0x200] sm:$0xff]
      %v2019 = vld [vmem:[%s3 + $0x208] sm:$0xff]
      %v2020 = vld [vmem:[%s3 + $0x210] sm:$0xff]
      %v2021 = vld [vmem:[%s3 + $0x218] sm:$0xff]
      %v2022 = vld [vmem:[%s3 + $0x220] sm:$0xff]
      %v2023 = vld [vmem:[%s3 + $0x228] sm:$0xff]
      %v2024 = vld [vmem:[%s3 + $0x230] sm:$0xff]
      %v2025 = vld [vmem:[%s3 + $0x238] sm:$0xff]
      %v2026 = vld [vmem:[%s3 + $0x240] sm:$0xff]
      %v2027 = vld [vmem:[%s3 + $0x248] sm:$0xff]
      %v2028 = vld [vmem:[%s3 + $0x250] sm:$0xff]
      %v2029 = vld [vmem:[%s3 + $0x258] sm:$0xff]
      %v2030 = vld [vmem:[%s3 + $0x260] sm:$0xff]
      %v2031 = vld [vmem:[%s3 + $0x268] sm:$0xff]
      %v2032 = vld [vmem:[%s3 + $0x270] sm:$0xff]
      %v2033 = vld [vmem:[%s3 + $0x278] sm:$0xff]
      %v2034 = vld [vmem:[%s3 + $0x280] sm:$0xff]
      %v2035 = vld [vmem:[%s3 + $0x288] sm:$0xff]
      %v2036 = vld [vmem:[%s3 + $0x290] sm:$0xff]
      %v2037 = vld [vmem:[%s3 + $0x298] sm:$0xff]
      %v2038 = vld [vmem:[%s3 + $0x2a0] sm:$0xff]
      %v2039 = vld [vmem:[%s3 + $0x2a8] sm:$0xff]
      %v2040 = vld [vmem:[%s3 + $0x2b0] sm:$0xff]
      %v2041 = vld [vmem:[%s3 + $0x2b8] sm:$0xff]
      %v2042 = vld [vmem:[%s3 + $0x2c0] sm:$0xff]
      %v2043 = vld [vmem:[%s3 + $0x2c8] sm:$0xff]
      %v2044 = vld [vmem:[%s3 + $0x2d0] sm:$0xff]
      %v2045 = vld [vmem:[%s3 + $0x2d8] sm:$0xff]
      %v2046 = vld [vmem:[%s3 + $0x2e0] sm:$0xff]
      %v2047 = vld [vmem:[%s3 + $0x2e8] sm:$0xff]
      %v2048 = vld [vmem:[%s3 + $0x2f0] sm:$0xff]
      %v2049 = vld [vmem:[%s3 + $0x2f8] sm:$0xff]
      %v2050 = vld [vmem:[%s3 + $0x300] sm:$0xff]
      %v2051 = vld [vmem:[%s3 + $0x308] sm:$0xff]
      %v2052 = vld [vmem:[%s3 + $0x310] sm:$0xff]
      %v2053 = vld [vmem:[%s3 + $0x318] sm:$0xff]
      %v2054 = vld [vmem:[%s3 + $0x320] sm:$0xff]
      %v2055 = vld [vmem:[%s3 + $0x328] sm:$0xff]
      %v2056 = vld [vmem:[%s3 + $0x330] sm:$0xff]
      %v2057 = vld [vmem:[%s3 + $0x338] sm:$0xff]
      %v2058 = vld [vmem:[%s3 + $0x340] sm:$0xff]
      %v2059 = vld [vmem:[%s3 + $0x348] sm:$0xff]
      %v2060 = vld [vmem:[%s3 + $0x350] sm:$0xff]
      %v2061 = vld [vmem:[%s3 + $0x358] sm:$0xff]
      %v2062 = vld [vmem:[%s3 + $0x360] sm:$0xff]
      %v2063 = vld [vmem:[%s3 + $0x368] sm:$0xff]
      %v2064 = vld [vmem:[%s3 + $0x370] sm:$0xff]
      %v2065 = vld [vmem:[%s3 + $0x378] sm:$0xff]
      %v2066 = vld [vmem:[%s3 + $0x380] sm:$0xff]
      %v2067 = vld [vmem:[%s3 + $0x388] sm:$0xff]
      %v2068 = vld [vmem:[%s3 + $0x390] sm:$0xff]
      %v2069 = vld [vmem:[%s3 + $0x398] sm:$0xff]
      %v2070 = vld [vmem:[%s3 + $0x3a0] sm:$0xff]
      %v2071 = vld [vmem:[%s3 + $0x3a8] sm:$0xff]
      %v2072 = vld [vmem:[%s3 + $0x3b0] sm:$0xff]
      %v2073 = vld [vmem:[%s3 + $0x3b8] sm:$0xff]
      %v2074 = vld [vmem:[%s3 + $0x3c0] sm:$0xff]
      %v2075 = vld [vmem:[%s3 + $0x3c8] sm:$0xff]
      %v2076 = vld [vmem:[%s3 + $0x3d0] sm:$0xff]
      %v2077 = vld [vmem:[%s3 + $0x3d8] sm:$0xff]
      %v2078 = vld [vmem:[%s3 + $0x3e0] sm:$0xff]
      %v2079 = vld [vmem:[%s3 + $0x3e8] sm:$0xff]
      %v2080 = vld [vmem:[%s3 + $0x3f0] sm:$0xff]
      %v2081 = vld [vmem:[%s3 + $0x3f8] sm:$0xff]
      %v2082 = vld [vmem:[%s4] sm:$0xf]
      %v2084 = vlaneseq
      %v2085 = vshrl.u32 %v2084, 7
      %v2086 = vsub.s32 0, %v2085
      %v2087 = vrot.slane %v2082, %v2086
      %v2088 = vlaneseq
      %v2089 = vshrl.u32 %v2088, 7
      %v2090 = vsub.s32 1, %v2089
      %v2091 = vrot.slane %v2082, %v2090
      %v2092 = vlaneseq
      %v2093 = vshrl.u32 %v2092, 7
      %v2094 = vsub.s32 2, %v2093
      %v2095 = vrot.slane %v2082, %v2094
      %v2096 = vlaneseq
      %v2097 = vshrl.u32 %v2096, 7
      %v2098 = vsub.s32 3, %v2097
      %v2099 = vrot.slane %v2082, %v2098
      %v2232 = vunpack.c.l.b16 %v1954
      %v2233 = vunpack.c.h.b16 %v1954
      %v2234 = vunpack.c.l.b16 %v1955
      %v2235 = vunpack.c.h.b16 %v1955
      %v2236 = vunpack.c.l.b16 %v1956
      %v2237 = vunpack.c.h.b16 %v1956
      %v2238 = vunpack.c.l.b16 %v1957
      %v2239 = vunpack.c.h.b16 %v1957
      %v2240 = vunpack.c.l.b16 %v1958
      %v2241 = vunpack.c.h.b16 %v1958
      %v2242 = vunpack.c.l.b16 %v1959
      %v2243 = vunpack.c.h.b16 %v1959
      %v2244 = vunpack.c.l.b16 %v1960
      %v2245 = vunpack.c.h.b16 %v1960
      %v2246 = vunpack.c.l.b16 %v1961
      %v2247 = vunpack.c.h.b16 %v1961
      %v2248 = vunpack.c.l.b16 %v1962
      %v2249 = vunpack.c.h.b16 %v1962
      %v2250 = vunpack.c.l.b16 %v1963
      %v2251 = vunpack.c.h.b16 %v1963
      %v2252 = vunpack.c.l.b16 %v1964
      %v2253 = vunpack.c.h.b16 %v1964
      %v2254 = vunpack.c.l.b16 %v1965
      %v2255 = vunpack.c.h.b16 %v1965
      %v2256 = vunpack.c.l.b16 %v1966
      %v2257 = vunpack.c.h.b16 %v1966
      %v2258 = vunpack.c.l.b16 %v1967
      %v2259 = vunpack.c.h.b16 %v1967
      %v2260 = vunpack.c.l.b16 %v1968
      %v2261 = vunpack.c.h.b16 %v1968
      %v2262 = vunpack.c.l.b16 %v1969
      %v2263 = vunpack.c.h.b16 %v1969
      %v2264 = vunpack.c.l.b16 %v1970
      %v2265 = vunpack.c.h.b16 %v1970
      %v2266 = vunpack.c.l.b16 %v1971
      %v2267 = vunpack.c.h.b16 %v1971
      %v2268 = vunpack.c.l.b16 %v1972
      %v2269 = vunpack.c.h.b16 %v1972
      %v2270 = vunpack.c.l.b16 %v1973
      %v2271 = vunpack.c.h.b16 %v1973
      %v2272 = vunpack.c.l.b16 %v1974
      %v2273 = vunpack.c.h.b16 %v1974
      %v2274 = vunpack.c.l.b16 %v1975
      %v2275 = vunpack.c.h.b16 %v1975
      %v2276 = vunpack.c.l.b16 %v1976
      %v2277 = vunpack.c.h.b16 %v1976
      %v2278 = vunpack.c.l.b16 %v1977
      %v2279 = vunpack.c.h.b16 %v1977
      %v2280 = vunpack.c.l.b16 %v1978
      %v2281 = vunpack.c.h.b16 %v1978
      %v2282 = vunpack.c.l.b16 %v1979
      %v2283 = vunpack.c.h.b16 %v1979
      %v2284 = vunpack.c.l.b16 %v1980
      %v2285 = vunpack.c.h.b16 %v1980
      %v2286 = vunpack.c.l.b16 %v1981
      %v2287 = vunpack.c.h.b16 %v1981
      %v2288 = vunpack.c.l.b16 %v1982
      %v2289 = vunpack.c.h.b16 %v1982
      %v2290 = vunpack.c.l.b16 %v1983
      %v2291 = vunpack.c.h.b16 %v1983
      %v2292 = vunpack.c.l.b16 %v1984
      %v2293 = vunpack.c.h.b16 %v1984
      %v2294 = vunpack.c.l.b16 %v1985
      %v2295 = vunpack.c.h.b16 %v1985
      %v2296 = vunpack.c.l.b16 %v1986
      %v2297 = vunpack.c.h.b16 %v1986
      %v2298 = vunpack.c.l.b16 %v1987
      %v2299 = vunpack.c.h.b16 %v1987
      %v2300 = vunpack.c.l.b16 %v1988
      %v2301 = vunpack.c.h.b16 %v1988
      %v2302 = vunpack.c.l.b16 %v1989
      %v2303 = vunpack.c.h.b16 %v1989
      %v2304 = vunpack.c.l.b16 %v1990
      %v2305 = vunpack.c.h.b16 %v1990
      %v2306 = vunpack.c.l.b16 %v1991
      %v2307 = vunpack.c.h.b16 %v1991
      %v2308 = vunpack.c.l.b16 %v1992
      %v2309 = vunpack.c.h.b16 %v1992
      %v2310 = vunpack.c.l.b16 %v1993
      %v2311 = vunpack.c.h.b16 %v1993
      %v2312 = vunpack.c.l.b16 %v1994
      %v2313 = vunpack.c.h.b16 %v1994
      %v2314 = vunpack.c.l.b16 %v1995
      %v2315 = vunpack.c.h.b16 %v1995
      %v2316 = vunpack.c.l.b16 %v1996
      %v2317 = vunpack.c.h.b16 %v1996
      %v2318 = vunpack.c.l.b16 %v1997
      %v2319 = vunpack.c.h.b16 %v1997
      %v2320 = vunpack.c.l.b16 %v1998
      %v2321 = vunpack.c.h.b16 %v1998
      %v2322 = vunpack.c.l.b16 %v1999
      %v2323 = vunpack.c.h.b16 %v1999
      %v2324 = vunpack.c.l.b16 %v2000
      %v2325 = vunpack.c.h.b16 %v2000
      %v2326 = vunpack.c.l.b16 %v2001
      %v2327 = vunpack.c.h.b16 %v2001
      %v2328 = vunpack.c.l.b16 %v2002
      %v2329 = vunpack.c.h.b16 %v2002
      %v2330 = vunpack.c.l.b16 %v2003
      %v2331 = vunpack.c.h.b16 %v2003
      %v2332 = vunpack.c.l.b16 %v2004
      %v2333 = vunpack.c.h.b16 %v2004
      %v2334 = vunpack.c.l.b16 %v2005
      %v2335 = vunpack.c.h.b16 %v2005
      %v2336 = vunpack.c.l.b16 %v2006
      %v2337 = vunpack.c.h.b16 %v2006
      %v2338 = vunpack.c.l.b16 %v2007
      %v2339 = vunpack.c.h.b16 %v2007
      %v2340 = vunpack.c.l.b16 %v2008
      %v2341 = vunpack.c.h.b16 %v2008
      %v2342 = vunpack.c.l.b16 %v2009
      %v2343 = vunpack.c.h.b16 %v2009
      %v2344 = vunpack.c.l.b16 %v2010
      %v2345 = vunpack.c.h.b16 %v2010
      %v2346 = vunpack.c.l.b16 %v2011
      %v2347 = vunpack.c.h.b16 %v2011
      %v2348 = vunpack.c.l.b16 %v2012
      %v2349 = vunpack.c.h.b16 %v2012
      %v2350 = vunpack.c.l.b16 %v2013
      %v2351 = vunpack.c.h.b16 %v2013
      %v2352 = vunpack.c.l.b16 %v2014
      %v2353 = vunpack.c.h.b16 %v2014
      %v2354 = vunpack.c.l.b16 %v2015
      %v2355 = vunpack.c.h.b16 %v2015
      %v2356 = vunpack.c.l.b16 %v2016
      %v2357 = vunpack.c.h.b16 %v2016
      %v2358 = vunpack.c.l.b16 %v2017
      %v2359 = vunpack.c.h.b16 %v2017
      %v2360 = vunpack.c.l.b16 %v2018
      %v2361 = vunpack.c.h.b16 %v2018
      %v2362 = vunpack.c.l.b16 %v2019
      %v2363 = vunpack.c.h.b16 %v2019
      %v2364 = vunpack.c.l.b16 %v2020
      %v2365 = vunpack.c.h.b16 %v2020
      %v2366 = vunpack.c.l.b16 %v2021
      %v2367 = vunpack.c.h.b16 %v2021
      %v2368 = vunpack.c.l.b16 %v2022
      %v2369 = vunpack.c.h.b16 %v2022
      %v2370 = vunpack.c.l.b16 %v2023
      %v2371 = vunpack.c.h.b16 %v2023
      %v2372 = vunpack.c.l.b16 %v2024
      %v2373 = vunpack.c.h.b16 %v2024
      %v2374 = vunpack.c.l.b16 %v2025
      %v2375 = vunpack.c.h.b16 %v2025
      %v2376 = vunpack.c.l.b16 %v2026
      %v2377 = vunpack.c.h.b16 %v2026
      %v2378 = vunpack.c.l.b16 %v2027
      %v2379 = vunpack.c.h.b16 %v2027
      %v2380 = vunpack.c.l.b16 %v2028
      %v2381 = vunpack.c.h.b16 %v2028
      %v2382 = vunpack.c.l.b16 %v2029
      %v2383 = vunpack.c.h.b16 %v2029
      %v2384 = vunpack.c.l.b16 %v2030
      %v2385 = vunpack.c.h.b16 %v2030
      %v2386 = vunpack.c.l.b16 %v2031
      %v2387 = vunpack.c.h.b16 %v2031
      %v2388 = vunpack.c.l.b16 %v2032
      %v2389 = vunpack.c.h.b16 %v2032
      %v2390 = vunpack.c.l.b16 %v2033
      %v2391 = vunpack.c.h.b16 %v2033
      %v2392 = vunpack.c.l.b16 %v2034
      %v2393 = vunpack.c.h.b16 %v2034
      %v2394 = vunpack.c.l.b16 %v2035
      %v2395 = vunpack.c.h.b16 %v2035
      %v2396 = vunpack.c.l.b16 %v2036
      %v2397 = vunpack.c.h.b16 %v2036
      %v2398 = vunpack.c.l.b16 %v2037
      %v2399 = vunpack.c.h.b16 %v2037
      %v2400 = vunpack.c.l.b16 %v2038
      %v2401 = vunpack.c.h.b16 %v2038
      %v2402 = vunpack.c.l.b16 %v2039
      %v2403 = vunpack.c.h.b16 %v2039
      %v2404 = vunpack.c.l.b16 %v2040
      %v2405 = vunpack.c.h.b16 %v2040
      %v2406 = vunpack.c.l.b16 %v2041
      %v2407 = vunpack.c.h.b16 %v2041
      %v2408 = vunpack.c.l.b16 %v2042
      %v2409 = vunpack.c.h.b16 %v2042
      %v2410 = vunpack.c.l.b16 %v2043
      %v2411 = vunpack.c.h.b16 %v2043
      %v2412 = vunpack.c.l.b16 %v2044
      %v2413 = vunpack.c.h.b16 %v2044
      %v2414 = vunpack.c.l.b16 %v2045
      %v2415 = vunpack.c.h.b16 %v2045
      %v2416 = vunpack.c.l.b16 %v2046
      %v2417 = vunpack.c.h.b16 %v2046
      %v2418 = vunpack.c.l.b16 %v2047
      %v2419 = vunpack.c.h.b16 %v2047
      %v2420 = vunpack.c.l.b16 %v2048
      %v2421 = vunpack.c.h.b16 %v2048
      %v2422 = vunpack.c.l.b16 %v2049
      %v2423 = vunpack.c.h.b16 %v2049
      %v2424 = vunpack.c.l.b16 %v2050
      %v2425 = vunpack.c.h.b16 %v2050
      %v2426 = vunpack.c.l.b16 %v2051
      %v2427 = vunpack.c.h.b16 %v2051
      %v2428 = vunpack.c.l.b16 %v2052
      %v2429 = vunpack.c.h.b16 %v2052
      %v2430 = vunpack.c.l.b16 %v2053
      %v2431 = vunpack.c.h.b16 %v2053
      %v2432 = vunpack.c.l.b16 %v2054
      %v2433 = vunpack.c.h.b16 %v2054
      %v2434 = vunpack.c.l.b16 %v2055
      %v2435 = vunpack.c.h.b16 %v2055
      %v2436 = vunpack.c.l.b16 %v2056
      %v2437 = vunpack.c.h.b16 %v2056
      %v2438 = vunpack.c.l.b16 %v2057
      %v2439 = vunpack.c.h.b16 %v2057
      %v2440 = vunpack.c.l.b16 %v2058
      %v2441 = vunpack.c.h.b16 %v2058
      %v2442 = vunpack.c.l.b16 %v2059
      %v2443 = vunpack.c.h.b16 %v2059
      %v2444 = vunpack.c.l.b16 %v2060
      %v2445 = vunpack.c.h.b16 %v2060
      %v2446 = vunpack.c.l.b16 %v2061
      %v2447 = vunpack.c.h.b16 %v2061
      %v2448 = vunpack.c.l.b16 %v2062
      %v2449 = vunpack.c.h.b16 %v2062
      %v2450 = vunpack.c.l.b16 %v2063
      %v2451 = vunpack.c.h.b16 %v2063
      %v2452 = vunpack.c.l.b16 %v2064
      %v2453 = vunpack.c.h.b16 %v2064
      %v2454 = vunpack.c.l.b16 %v2065
      %v2455 = vunpack.c.h.b16 %v2065
      %v2456 = vunpack.c.l.b16 %v2066
      %v2457 = vunpack.c.h.b16 %v2066
      %v2458 = vunpack.c.l.b16 %v2067
      %v2459 = vunpack.c.h.b16 %v2067
      %v2460 = vunpack.c.l.b16 %v2068
      %v2461 = vunpack.c.h.b16 %v2068
      %v2462 = vunpack.c.l.b16 %v2069
      %v2463 = vunpack.c.h.b16 %v2069
      %v2464 = vunpack.c.l.b16 %v2070
      %v2465 = vunpack.c.h.b16 %v2070
      %v2466 = vunpack.c.l.b16 %v2071
      %v2467 = vunpack.c.h.b16 %v2071
      %v2468 = vunpack.c.l.b16 %v2072
      %v2469 = vunpack.c.h.b16 %v2072
      %v2470 = vunpack.c.l.b16 %v2073
      %v2471 = vunpack.c.h.b16 %v2073
      %v2472 = vunpack.c.l.b16 %v2074
      %v2473 = vunpack.c.h.b16 %v2074
      %v2474 = vunpack.c.l.b16 %v2075
      %v2475 = vunpack.c.h.b16 %v2075
      %v2476 = vunpack.c.l.b16 %v2076
      %v2477 = vunpack.c.h.b16 %v2076
      %v2478 = vunpack.c.l.b16 %v2077
      %v2479 = vunpack.c.h.b16 %v2077
      %v2480 = vunpack.c.l.b16 %v2078
      %v2481 = vunpack.c.h.b16 %v2078
      %v2482 = vunpack.c.l.b16 %v2079
      %v2483 = vunpack.c.h.b16 %v2079
      %v2484 = vunpack.c.l.b16 %v2080
      %v2485 = vunpack.c.h.b16 %v2080
      %v2486 = vunpack.c.l.b16 %v2081
      %v2487 = vunpack.c.h.b16 %v2081
      %v2488 = vpack.c.b16 %v2236, %v2232
      %v2489 = vpack.c.b16 %v2237, %v2233
      %v2490 = vpack.c.b16 %v2238, %v2234
      %v2491 = vpack.c.b16 %v2239, %v2235
      %v2492 = vpack.c.b16 %v2244, %v2240
      %v2493 = vpack.c.b16 %v2245, %v2241
      %v2494 = vpack.c.b16 %v2246, %v2242
      %v2495 = vpack.c.b16 %v2247, %v2243
      %v2496 = vpack.c.b16 %v2252, %v2248
      %v2497 = vpack.c.b16 %v2253, %v2249
      %v2498 = vpack.c.b16 %v2254, %v2250
      %v2499 = vpack.c.b16 %v2255, %v2251
      %v2500 = vpack.c.b16 %v2260, %v2256
      %v2501 = vpack.c.b16 %v2261, %v2257
      %v2502 = vpack.c.b16 %v2262, %v2258
      %v2503 = vpack.c.b16 %v2263, %v2259
      %v2504 = vpack.c.b16 %v2268, %v2264
      %v2505 = vpack.c.b16 %v2269, %v2265
      %v2506 = vpack.c.b16 %v2270, %v2266
      %v2507 = vpack.c.b16 %v2271, %v2267
      %v2508 = vpack.c.b16 %v2276, %v2272
      %v2509 = vpack.c.b16 %v2277, %v2273
      %v2510 = vpack.c.b16 %v2278, %v2274
      %v2511 = vpack.c.b16 %v2279, %v2275
      %v2512 = vpack.c.b16 %v2284, %v2280
      %v2513 = vpack.c.b16 %v2285, %v2281
      %v2514 = vpack.c.b16 %v2286, %v2282
      %v2515 = vpack.c.b16 %v2287, %v2283
      %v2516 = vpack.c.b16 %v2292, %v2288
      %v2517 = vpack.c.b16 %v2293, %v2289
      %v2518 = vpack.c.b16 %v2294, %v2290
      %v2519 = vpack.c.b16 %v2295, %v2291
      %v2520 = vpack.c.b16 %v2300, %v2296
      %v2521 = vpack.c.b16 %v2301, %v2297
      %v2522 = vpack.c.b16 %v2302, %v2298
      %v2523 = vpack.c.b16 %v2303, %v2299
      %v2524 = vpack.c.b16 %v2308, %v2304
      %v2525 = vpack.c.b16 %v2309, %v2305
      %v2526 = vpack.c.b16 %v2310, %v2306
      %v2527 = vpack.c.b16 %v2311, %v2307
      %v2528 = vpack.c.b16 %v2316, %v2312
      %v2529 = vpack.c.b16 %v2317, %v2313
      %v2530 = vpack.c.b16 %v2318, %v2314
      %v2531 = vpack.c.b16 %v2319, %v2315
      %v2532 = vpack.c.b16 %v2324, %v2320
      %v2533 = vpack.c.b16 %v2325, %v2321
      %v2534 = vpack.c.b16 %v2326, %v2322
      %v2535 = vpack.c.b16 %v2327, %v2323
      %v2536 = vpack.c.b16 %v2332, %v2328
      %v2537 = vpack.c.b16 %v2333, %v2329
      %v2538 = vpack.c.b16 %v2334, %v2330
      %v2539 = vpack.c.b16 %v2335, %v2331
      %v2540 = vpack.c.b16 %v2340, %v2336
      %v2541 = vpack.c.b16 %v2341, %v2337
      %v2542 = vpack.c.b16 %v2342, %v2338
      %v2543 = vpack.c.b16 %v2343, %v2339
      %v2544 = vpack.c.b16 %v2348, %v2344
      %v2545 = vpack.c.b16 %v2349, %v2345
      %v2546 = vpack.c.b16 %v2350, %v2346
      %v2547 = vpack.c.b16 %v2351, %v2347
      %v2548 = vpack.c.b16 %v2356, %v2352
      %v2549 = vpack.c.b16 %v2357, %v2353
      %v2550 = vpack.c.b16 %v2358, %v2354
      %v2551 = vpack.c.b16 %v2359, %v2355
      %v2552 = vpack.c.b16 %v2364, %v2360
      %v2553 = vpack.c.b16 %v2365, %v2361
      %v2554 = vpack.c.b16 %v2366, %v2362
      %v2555 = vpack.c.b16 %v2367, %v2363
      %v2556 = vpack.c.b16 %v2372, %v2368
      %v2557 = vpack.c.b16 %v2373, %v2369
      %v2558 = vpack.c.b16 %v2374, %v2370
      %v2559 = vpack.c.b16 %v2375, %v2371
      %v2560 = vpack.c.b16 %v2380, %v2376
      %v2561 = vpack.c.b16 %v2381, %v2377
      %v2562 = vpack.c.b16 %v2382, %v2378
      %v2563 = vpack.c.b16 %v2383, %v2379
      %v2564 = vpack.c.b16 %v2388, %v2384
      %v2565 = vpack.c.b16 %v2389, %v2385
      %v2566 = vpack.c.b16 %v2390, %v2386
      %v2567 = vpack.c.b16 %v2391, %v2387
      %v2568 = vpack.c.b16 %v2396, %v2392
      %v2569 = vpack.c.b16 %v2397, %v2393
      %v2570 = vpack.c.b16 %v2398, %v2394
      %v2571 = vpack.c.b16 %v2399, %v2395
      %v2572 = vpack.c.b16 %v2404, %v2400
      %v2573 = vpack.c.b16 %v2405, %v2401
      %v2574 = vpack.c.b16 %v2406, %v2402
      %v2575 = vpack.c.b16 %v2407, %v2403
      %v2576 = vpack.c.b16 %v2412, %v2408
      %v2577 = vpack.c.b16 %v2413, %v2409
      %v2578 = vpack.c.b16 %v2414, %v2410
      %v2579 = vpack.c.b16 %v2415, %v2411
      %v2580 = vpack.c.b16 %v2420, %v2416
      %v2581 = vpack.c.b16 %v2421, %v2417
      %v2582 = vpack.c.b16 %v2422, %v2418
      %v2583 = vpack.c.b16 %v2423, %v2419
      %v2584 = vpack.c.b16 %v2428, %v2424
      %v2585 = vpack.c.b16 %v2429, %v2425
      %v2586 = vpack.c.b16 %v2430, %v2426
      %v2587 = vpack.c.b16 %v2431, %v2427
      %v2588 = vpack.c.b16 %v2436, %v2432
      %v2589 = vpack.c.b16 %v2437, %v2433
      %v2590 = vpack.c.b16 %v2438, %v2434
      %v2591 = vpack.c.b16 %v2439, %v2435
      %v2592 = vpack.c.b16 %v2444, %v2440
      %v2593 = vpack.c.b16 %v2445, %v2441
      %v2594 = vpack.c.b16 %v2446, %v2442
      %v2595 = vpack.c.b16 %v2447, %v2443
      %v2596 = vpack.c.b16 %v2452, %v2448
      %v2597 = vpack.c.b16 %v2453, %v2449
      %v2598 = vpack.c.b16 %v2454, %v2450
      %v2599 = vpack.c.b16 %v2455, %v2451
      %v2600 = vpack.c.b16 %v2460, %v2456
      %v2601 = vpack.c.b16 %v2461, %v2457
      %v2602 = vpack.c.b16 %v2462, %v2458
      %v2603 = vpack.c.b16 %v2463, %v2459
      %v2604 = vpack.c.b16 %v2468, %v2464
      %v2605 = vpack.c.b16 %v2469, %v2465
      %v2606 = vpack.c.b16 %v2470, %v2466
      %v2607 = vpack.c.b16 %v2471, %v2467
      %v2608 = vpack.c.b16 %v2476, %v2472
      %v2609 = vpack.c.b16 %v2477, %v2473
      %v2610 = vpack.c.b16 %v2478, %v2474
      %v2611 = vpack.c.b16 %v2479, %v2475
      %v2612 = vpack.c.b16 %v2484, %v2480
      %v2613 = vpack.c.b16 %v2485, %v2481
      %v2614 = vpack.c.b16 %v2486, %v2482
      %v2615 = vpack.c.b16 %v2487, %v2483
      %2744 = vmatprep.subr.bf16.mxu0 %v2517
      %2745 = vmatpush1.bf16.msra.mxu0 %v2516
      %2746 = vmatprep.subr.bf16.mxu0 %v2513
      %2747 = vmatpush1.bf16.msra.mxu0 %v2512
      %2748 = vmatprep.subr.bf16.mxu0 %v2509
      %2749 = vmatpush1.bf16.msra.mxu0 %v2508
      %2750 = vmatprep.subr.bf16.mxu0 %v2505
      %2751 = vmatpush1.bf16.msra.mxu0 %v2504
      %2752 = vmatprep.subr.bf16.mxu0 %v2501
      %2753 = vmatpush1.bf16.msra.mxu0 %v2500
      %2754 = vmatprep.subr.bf16.mxu0 %v2497
      %2755 = vmatpush1.bf16.msra.mxu0 %v2496
      %2756 = vmatprep.subr.bf16.mxu0 %v2493
      %2757 = vmatpush1.bf16.msra.mxu0 %v2492
      %2758 = vmatprep.subr.bf16.mxu0 %v2489
      %2759 = vmatpush1.bf16.msra.mxu0 %v2488
      %2760 = vmatprep.subr.bf16.mxu0 %v2549
      %2761 = vmatpush2.bf16.msra.mxu0 %v2548
      %2762 = vmatprep.subr.bf16.mxu0 %v2545
      %2763 = vmatpush2.bf16.msra.mxu0 %v2544
      %2764 = vmatprep.subr.bf16.mxu0 %v2541
      %2765 = vmatpush2.bf16.msra.mxu0 %v2540
      %2766 = vmatprep.subr.bf16.mxu0 %v2537
      %2767 = vmatpush2.bf16.msra.mxu0 %v2536
      %2768 = vmatprep.subr.bf16.mxu0 %v2533
      %2769 = vmatpush2.bf16.msra.mxu0 %v2532
      %2770 = vmatprep.subr.bf16.mxu0 %v2529
      %2771 = vmatpush2.bf16.msra.mxu0 %v2528
      %2772 = vmatprep.subr.bf16.mxu0 %v2525
      %2773 = vmatpush2.bf16.msra.mxu0 %v2524
      %2774 = vmatprep.subr.bf16.mxu0 %v2521
      %2775 = vmatpush2.bf16.msra.mxu0 %v2520
      %2776 = vmatprep.mubr.bf16.mxu0 %v1891
      %2777 = vmatmul.mubr.bf16.gmra.mxu0 %v1890
      %v2778 = vpop.f32.mrf.mxu0
      %v2779 = vadd.f32 %v2087, %v2778
      %v2780 = vpop.f32.mrf.mxu0
      %v2781 = vadd.f32 %v2091, %v2780
      %v2782 = vpop.f32.mrf.mxu0
      %v2783 = vadd.f32 %v2087, %v2782
      %v2784 = vpop.f32.mrf.mxu0
      %v2785 = vadd.f32 %v2091, %v2784
      %2786 = vmatprep.mubr.bf16.mxu0 %v1895
      %2787 = vmatmul.mubr.bf16.gmra.mxu0 %v1894
      %v2788 = vpop.f32.mrf.mxu0
      %v2789 = vadd.f32 %v2087, %v2788
      %v2790 = vpop.f32.mrf.mxu0
      %v2791 = vadd.f32 %v2091, %v2790
      %v2792 = vpop.f32.mrf.mxu0
      %v2793 = vadd.f32 %v2087, %v2792
      %v2794 = vpop.f32.mrf.mxu0
      %v2795 = vadd.f32 %v2091, %v2794
      %2796 = vmatprep.mubr.bf16.mxu0 %v1899
      %2797 = vmatmul.mubr.bf16.gmra.mxu0 %v1898
      %v2798 = vpop.f32.mrf.mxu0
      %v2799 = vadd.f32 %v2087, %v2798
      %v2800 = vpop.f32.mrf.mxu0
      %v2801 = vadd.f32 %v2091, %v2800
      %v2802 = vpop.f32.mrf.mxu0
      %v2803 = vadd.f32 %v2087, %v2802
      %v2804 = vpop.f32.mrf.mxu0
      %v2805 = vadd.f32 %v2091, %v2804
      %2806 = vmatprep.mubr.bf16.mxu0 %v1903
      %2807 = vmatmul.mubr.bf16.gmra.mxu0 %v1902
      %v2808 = vpop.f32.mrf.mxu0
      %v2809 = vadd.f32 %v2087, %v2808
      %v2810 = vpop.f32.mrf.mxu0
      %v2811 = vadd.f32 %v2091, %v2810
      %v2812 = vpop.f32.mrf.mxu0
      %v2813 = vadd.f32 %v2087, %v2812
      %v2814 = vpop.f32.mrf.mxu0
      %v2815 = vadd.f32 %v2091, %v2814
      %2816 = vmatprep.mubr.bf16.mxu0 %v1907
      %2817 = vmatmul.mubr.bf16.gmra.mxu0 %v1906
      %v2818 = vpop.f32.mrf.mxu0
      %v2819 = vadd.f32 %v2087, %v2818
      %v2820 = vpop.f32.mrf.mxu0
      %v2821 = vadd.f32 %v2091, %v2820
      %v2822 = vpop.f32.mrf.mxu0
      %v2823 = vadd.f32 %v2087, %v2822
      %v2824 = vpop.f32.mrf.mxu0
      %v2825 = vadd.f32 %v2091, %v2824
      %2826 = vmatprep.mubr.bf16.mxu0 %v1911
      %2827 = vmatmul.mubr.bf16.gmra.mxu0 %v1910
      %v2828 = vpop.f32.mrf.mxu0
      %v2829 = vadd.f32 %v2087, %v2828
      %v2830 = vpop.f32.mrf.mxu0
      %v2831 = vadd.f32 %v2091, %v2830
      %v2832 = vpop.f32.mrf.mxu0
      %v2833 = vadd.f32 %v2087, %v2832
      %v2834 = vpop.f32.mrf.mxu0
      %v2835 = vadd.f32 %v2091, %v2834
      %2836 = vmatprep.mubr.bf16.mxu0 %v1915
      %2837 = vmatmul.mubr.bf16.gmra.mxu0 %v1914
      %v2838 = vpop.f32.mrf.mxu0
      %v2839 = vadd.f32 %v2087, %v2838
      %v2840 = vpop.f32.mrf.mxu0
      %v2841 = vadd.f32 %v2091, %v2840
      %v2842 = vpop.f32.mrf.mxu0
      %v2843 = vadd.f32 %v2087, %v2842
      %v2844 = vpop.f32.mrf.mxu0
      %v2845 = vadd.f32 %v2091, %v2844
      %2846 = vmatprep.mubr.bf16.mxu0 %v1919
      %2847 = vmatmul.mubr.bf16.gmra.mxu0 %v1918
      %v2848 = vpop.f32.mrf.mxu0
      %v2849 = vadd.f32 %v2087, %v2848
      %v2850 = vpop.f32.mrf.mxu0
      %v2851 = vadd.f32 %v2091, %v2850
      %v2852 = vpop.f32.mrf.mxu0
      %v2853 = vadd.f32 %v2087, %v2852
      %v2854 = vpop.f32.mrf.mxu0
      %v2855 = vadd.f32 %v2091, %v2854
      %2856 = vmatprep.mubr.bf16.mxu0 %v1923
      %2857 = vmatmul.mubr.bf16.gmra.mxu0 %v1922
      %v2858 = vpop.f32.mrf.mxu0
      %v2859 = vadd.f32 %v2087, %v2858
      %v2860 = vpop.f32.mrf.mxu0
      %v2861 = vadd.f32 %v2091, %v2860
      %v2862 = vpop.f32.mrf.mxu0
      %v2863 = vadd.f32 %v2087, %v2862
      %v2864 = vpop.f32.mrf.mxu0
      %v2865 = vadd.f32 %v2091, %v2864
      %2866 = vmatprep.mubr.bf16.mxu0 %v1927
      %2867 = vmatmul.mubr.bf16.gmra.mxu0 %v1926
      %v2868 = vpop.f32.mrf.mxu0
      %v2869 = vadd.f32 %v2087, %v2868
      %v2870 = vpop.f32.mrf.mxu0
      %v2871 = vadd.f32 %v2091, %v2870
      %v2872 = vpop.f32.mrf.mxu0
      %v2873 = vadd.f32 %v2087, %v2872
      %v2874 = vpop.f32.mrf.mxu0
      %v2875 = vadd.f32 %v2091, %v2874
      %2876 = vmatprep.mubr.bf16.mxu0 %v1931
      %2877 = vmatmul.mubr.bf16.gmra.mxu0 %v1930
      %v2878 = vpop.f32.mrf.mxu0
      %v2879 = vadd.f32 %v2087, %v2878
      %v2880 = vpop.f32.mrf.mxu0
      %v2881 = vadd.f32 %v2091, %v2880
      %v2882 = vpop.f32.mrf.mxu0
      %v2883 = vadd.f32 %v2087, %v2882
      %v2884 = vpop.f32.mrf.mxu0
      %v2885 = vadd.f32 %v2091, %v2884
      %2886 = vmatprep.mubr.bf16.mxu0 %v1935
      %2887 = vmatmul.mubr.bf16.gmra.mxu0 %v1934
      %v2888 = vpop.f32.mrf.mxu0
      %v2889 = vadd.f32 %v2087, %v2888
      %v2890 = vpop.f32.mrf.mxu0
      %v2891 = vadd.f32 %v2091, %v2890
      %v2892 = vpop.f32.mrf.mxu0
      %v2893 = vadd.f32 %v2087, %v2892
      %v2894 = vpop.f32.mrf.mxu0
      %v2895 = vadd.f32 %v2091, %v2894
      %2896 = vmatprep.mubr.bf16.mxu0 %v1939
      %2897 = vmatmul.mubr.bf16.gmra.mxu0 %v1938
      %v2898 = vpop.f32.mrf.mxu0
      %v2899 = vadd.f32 %v2087, %v2898
      %v2900 = vpop.f32.mrf.mxu0
      %v2901 = vadd.f32 %v2091, %v2900
      %v2902 = vpop.f32.mrf.mxu0
      %v2903 = vadd.f32 %v2087, %v2902
      %v2904 = vpop.f32.mrf.mxu0
      %v2905 = vadd.f32 %v2091, %v2904
      %2906 = vmatprep.mubr.bf16.mxu0 %v1943
      %2907 = vmatmul.mubr.bf16.gmra.mxu0 %v1942
      %v2908 = vpop.f32.mrf.mxu0
      %v2909 = vadd.f32 %v2087, %v2908
      %v2910 = vpop.f32.mrf.mxu0
      %v2911 = vadd.f32 %v2091, %v2910
      %v2912 = vpop.f32.mrf.mxu0
      %v2913 = vadd.f32 %v2087, %v2912
      %v2914 = vpop.f32.mrf.mxu0
      %v2915 = vadd.f32 %v2091, %v2914
      %2916 = vmatprep.mubr.bf16.mxu0 %v1947
      %2917 = vmatmul.mubr.bf16.gmra.mxu0 %v1946
      %v2918 = vpop.f32.mrf.mxu0
      %v2919 = vadd.f32 %v2087, %v2918
      %v2920 = vpop.f32.mrf.mxu0
      %v2921 = vadd.f32 %v2091, %v2920
      %v2922 = vpop.f32.mrf.mxu0
      %v2923 = vadd.f32 %v2087, %v2922
      %v2924 = vpop.f32.mrf.mxu0
      %v2925 = vadd.f32 %v2091, %v2924
      %2926 = vmatprep.mubr.bf16.mxu0 %v1951
      %2927 = vmatmul.mubr.bf16.gmra.mxu0 %v1950
      %v2928 = vpop.f32.mrf.mxu0
      %v2929 = vadd.f32 %v2087, %v2928
      %v2930 = vpop.f32.mrf.mxu0
      %v2931 = vadd.f32 %v2091, %v2930
      %v2932 = vpop.f32.mrf.mxu0
      %v2933 = vadd.f32 %v2087, %v2932
      %v2934 = vpop.f32.mrf.mxu0
      %v2935 = vadd.f32 %v2091, %v2934
      %2936 = vdwg.mxu0
      %2937 = vmatprep.subr.bf16.mxu0 %v2581
      %2938 = vmatpush1.bf16.msra.mxu0 %v2580
      %2939 = vmatprep.subr.bf16.mxu0 %v2577
      %2940 = vmatpush1.bf16.msra.mxu0 %v2576
      %2941 = vmatprep.subr.bf16.mxu0 %v2573
      %2942 = vmatpush1.bf16.msra.mxu0 %v2572
      %2943 = vmatprep.subr.bf16.mxu0 %v2569
      %2944 = vmatpush1.bf16.msra.mxu0 %v2568
      %2945 = vmatprep.subr.bf16.mxu0 %v2565
      %2946 = vmatpush1.bf16.msra.mxu0 %v2564
      %2947 = vmatprep.subr.bf16.mxu0 %v2561
      %2948 = vmatpush1.bf16.msra.mxu0 %v2560
      %2949 = vmatprep.subr.bf16.mxu0 %v2557
      %2950 = vmatpush1.bf16.msra.mxu0 %v2556
      %2951 = vmatprep.subr.bf16.mxu0 %v2553
      %2952 = vmatpush1.bf16.msra.mxu0 %v2552
      %2953 = vmatprep.subr.bf16.mxu0 %v2613
      %2954 = vmatpush2.bf16.msra.mxu0 %v2612
      %2955 = vmatprep.subr.bf16.mxu0 %v2609
      %2956 = vmatpush2.bf16.msra.mxu0 %v2608
      %2957 = vmatprep.subr.bf16.mxu0 %v2605
      %2958 = vmatpush2.bf16.msra.mxu0 %v2604
      %2959 = vmatprep.subr.bf16.mxu0 %v2601
      %2960 = vmatpush2.bf16.msra.mxu0 %v2600
      %2961 = vmatprep.subr.bf16.mxu0 %v2597
      %2962 = vmatpush2.bf16.msra.mxu0 %v2596
      %2963 = vmatprep.subr.bf16.mxu0 %v2593
      %2964 = vmatpush2.bf16.msra.mxu0 %v2592
      %2965 = vmatprep.subr.bf16.mxu0 %v2589
      %2966 = vmatpush2.bf16.msra.mxu0 %v2588
      %2967 = vmatprep.subr.bf16.mxu0 %v2585
      %2968 = vmatpush2.bf16.msra.mxu0 %v2584
      %2969 = vmatprep.mubr.bf16.mxu0 %v1893
      %2970 = vmatmul.mubr.bf16.gmra.mxu0 %v1892
      %v2971 = vpop.f32.mrf.mxu0
      %v2972 = vadd.f32 %v2779, %v2971
      %v2973 = vpop.f32.mrf.mxu0
      %v2974 = vadd.f32 %v2781, %v2973
      %v2975 = vpop.f32.mrf.mxu0
      %v2976 = vadd.f32 %v2783, %v2975
      %v2977 = vpop.f32.mrf.mxu0
      %v2978 = vadd.f32 %v2785, %v2977
      %2979 = vmatprep.mubr.bf16.mxu0 %v1897
      %2980 = vmatmul.mubr.bf16.gmra.mxu0 %v1896
      %v2981 = vpop.f32.mrf.mxu0
      %v2982 = vadd.f32 %v2789, %v2981
      %v2983 = vpop.f32.mrf.mxu0
      %v2984 = vadd.f32 %v2791, %v2983
      %v2985 = vpop.f32.mrf.mxu0
      %v2986 = vadd.f32 %v2793, %v2985
      %v2987 = vpop.f32.mrf.mxu0
      %v2988 = vadd.f32 %v2795, %v2987
      %2989 = vmatprep.mubr.bf16.mxu0 %v1901
      %2990 = vmatmul.mubr.bf16.gmra.mxu0 %v1900
      %v2991 = vpop.f32.mrf.mxu0
      %v2992 = vadd.f32 %v2799, %v2991
      %v2993 = vpop.f32.mrf.mxu0
      %v2994 = vadd.f32 %v2801, %v2993
      %v2995 = vpop.f32.mrf.mxu0
      %v2996 = vadd.f32 %v2803, %v2995
      %v2997 = vpop.f32.mrf.mxu0
      %v2998 = vadd.f32 %v2805, %v2997
      %2999 = vmatprep.mubr.bf16.mxu0 %v1905
      %3000 = vmatmul.mubr.bf16.gmra.mxu0 %v1904
      %v3001 = vpop.f32.mrf.mxu0
      %v3002 = vadd.f32 %v2809, %v3001
      %v3003 = vpop.f32.mrf.mxu0
      %v3004 = vadd.f32 %v2811, %v3003
      %v3005 = vpop.f32.mrf.mxu0
      %v3006 = vadd.f32 %v2813, %v3005
      %v3007 = vpop.f32.mrf.mxu0
      %v3008 = vadd.f32 %v2815, %v3007
      %3009 = vmatprep.mubr.bf16.mxu0 %v1909
      %3010 = vmatmul.mubr.bf16.gmra.mxu0 %v1908
      %v3011 = vpop.f32.mrf.mxu0
      %v3012 = vadd.f32 %v2819, %v3011
      %v3013 = vpop.f32.mrf.mxu0
      %v3014 = vadd.f32 %v2821, %v3013
      %v3015 = vpop.f32.mrf.mxu0
      %v3016 = vadd.f32 %v2823, %v3015
      %v3017 = vpop.f32.mrf.mxu0
      %v3018 = vadd.f32 %v2825, %v3017
      %3019 = vmatprep.mubr.bf16.mxu0 %v1913
      %3020 = vmatmul.mubr.bf16.gmra.mxu0 %v1912
      %v3021 = vpop.f32.mrf.mxu0
      %v3022 = vadd.f32 %v2829, %v3021
      %v3023 = vpop.f32.mrf.mxu0
      %v3024 = vadd.f32 %v2831, %v3023
      %v3025 = vpop.f32.mrf.mxu0
      %v3026 = vadd.f32 %v2833, %v3025
      %v3027 = vpop.f32.mrf.mxu0
      %v3028 = vadd.f32 %v2835, %v3027
      %3029 = vmatprep.mubr.bf16.mxu0 %v1917
      %3030 = vmatmul.mubr.bf16.gmra.mxu0 %v1916
      %v3031 = vpop.f32.mrf.mxu0
      %v3032 = vadd.f32 %v2839, %v3031
      %v3033 = vpop.f32.mrf.mxu0
      %v3034 = vadd.f32 %v2841, %v3033
      %v3035 = vpop.f32.mrf.mxu0
      %v3036 = vadd.f32 %v2843, %v3035
      %v3037 = vpop.f32.mrf.mxu0
      %v3038 = vadd.f32 %v2845, %v3037
      %3039 = vmatprep.mubr.bf16.mxu0 %v1921
      %3040 = vmatmul.mubr.bf16.gmra.mxu0 %v1920
      %v3041 = vpop.f32.mrf.mxu0
      %v3042 = vadd.f32 %v2849, %v3041
      %v3043 = vpop.f32.mrf.mxu0
      %v3044 = vadd.f32 %v2851, %v3043
      %v3045 = vpop.f32.mrf.mxu0
      %v3046 = vadd.f32 %v2853, %v3045
      %v3047 = vpop.f32.mrf.mxu0
      %v3048 = vadd.f32 %v2855, %v3047
      %3049 = vmatprep.mubr.bf16.mxu0 %v1925
      %3050 = vmatmul.mubr.bf16.gmra.mxu0 %v1924
      %v3051 = vpop.f32.mrf.mxu0
      %v3052 = vadd.f32 %v2859, %v3051
      %v3053 = vpop.f32.mrf.mxu0
      %v3054 = vadd.f32 %v2861, %v3053
      %v3055 = vpop.f32.mrf.mxu0
      %v3056 = vadd.f32 %v2863, %v3055
      %v3057 = vpop.f32.mrf.mxu0
      %v3058 = vadd.f32 %v2865, %v3057
      %3059 = vmatprep.mubr.bf16.mxu0 %v1929
      %3060 = vmatmul.mubr.bf16.gmra.mxu0 %v1928
      %v3061 = vpop.f32.mrf.mxu0
      %v3062 = vadd.f32 %v2869, %v3061
      %v3063 = vpop.f32.mrf.mxu0
      %v3064 = vadd.f32 %v2871, %v3063
      %v3065 = vpop.f32.mrf.mxu0
      %v3066 = vadd.f32 %v2873, %v3065
      %v3067 = vpop.f32.mrf.mxu0
      %v3068 = vadd.f32 %v2875, %v3067
      %3069 = vmatprep.mubr.bf16.mxu0 %v1933
      %3070 = vmatmul.mubr.bf16.gmra.mxu0 %v1932
      %v3071 = vpop.f32.mrf.mxu0
      %v3072 = vadd.f32 %v2879, %v3071
      %v3073 = vpop.f32.mrf.mxu0
      %v3074 = vadd.f32 %v2881, %v3073
      %v3075 = vpop.f32.mrf.mxu0
      %v3076 = vadd.f32 %v2883, %v3075
      %v3077 = vpop.f32.mrf.mxu0
      %v3078 = vadd.f32 %v2885, %v3077
      %3079 = vmatprep.mubr.bf16.mxu0 %v1937
      %3080 = vmatmul.mubr.bf16.gmra.mxu0 %v1936
      %v3081 = vpop.f32.mrf.mxu0
      %v3082 = vadd.f32 %v2889, %v3081
      %v3083 = vpop.f32.mrf.mxu0
      %v3084 = vadd.f32 %v2891, %v3083
      %v3085 = vpop.f32.mrf.mxu0
      %v3086 = vadd.f32 %v2893, %v3085
      %v3087 = vpop.f32.mrf.mxu0
      %v3088 = vadd.f32 %v2895, %v3087
      %3089 = vmatprep.mubr.bf16.mxu0 %v1941
      %3090 = vmatmul.mubr.bf16.gmra.mxu0 %v1940
      %v3091 = vpop.f32.mrf.mxu0
      %v3092 = vadd.f32 %v2899, %v3091
      %v3093 = vpop.f32.mrf.mxu0
      %v3094 = vadd.f32 %v2901, %v3093
      %v3095 = vpop.f32.mrf.mxu0
      %v3096 = vadd.f32 %v2903, %v3095
      %v3097 = vpop.f32.mrf.mxu0
      %v3098 = vadd.f32 %v2905, %v3097
      %3099 = vmatprep.mubr.bf16.mxu0 %v1945
      %3100 = vmatmul.mubr.bf16.gmra.mxu0 %v1944
      %v3101 = vpop.f32.mrf.mxu0
      %v3102 = vadd.f32 %v2909, %v3101
      %v3103 = vpop.f32.mrf.mxu0
      %v3104 = vadd.f32 %v2911, %v3103
      %v3105 = vpop.f32.mrf.mxu0
      %v3106 = vadd.f32 %v2913, %v3105
      %v3107 = vpop.f32.mrf.mxu0
      %v3108 = vadd.f32 %v2915, %v3107
      %3109 = vmatprep.mubr.bf16.mxu0 %v1949
      %3110 = vmatmul.mubr.bf16.gmra.mxu0 %v1948
      %v3111 = vpop.f32.mrf.mxu0
      %v3112 = vadd.f32 %v2919, %v3111
      %v3113 = vpop.f32.mrf.mxu0
      %v3114 = vadd.f32 %v2921, %v3113
      %v3115 = vpop.f32.mrf.mxu0
      %v3116 = vadd.f32 %v2923, %v3115
      %v3117 = vpop.f32.mrf.mxu0
      %v3118 = vadd.f32 %v2925, %v3117
      %3119 = vmatprep.mubr.bf16.mxu0 %v1953
      %3120 = vmatmul.mubr.bf16.gmra.mxu0 %v1952
      %v3121 = vpop.f32.mrf.mxu0
      %v3122 = vadd.f32 %v2929, %v3121
      %v3123 = vpop.f32.mrf.mxu0
      %v3124 = vadd.f32 %v2931, %v3123
      %v3125 = vpop.f32.mrf.mxu0
      %v3126 = vadd.f32 %v2933, %v3125
      %v3127 = vpop.f32.mrf.mxu0
      %v3128 = vadd.f32 %v2935, %v3127
      %3129 = vdwg.mxu0
      %3130 = vmatprep.subr.bf16.mxu0 %v2519
      %3131 = vmatpush1.bf16.msra.mxu0 %v2518
      %3132 = vmatprep.subr.bf16.mxu0 %v2515
      %3133 = vmatpush1.bf16.msra.mxu0 %v2514
      %3134 = vmatprep.subr.bf16.mxu0 %v2511
      %3135 = vmatpush1.bf16.msra.mxu0 %v2510
      %3136 = vmatprep.subr.bf16.mxu0 %v2507
      %3137 = vmatpush1.bf16.msra.mxu0 %v2506
      %3138 = vmatprep.subr.bf16.mxu0 %v2503
      %3139 = vmatpush1.bf16.msra.mxu0 %v2502
      %3140 = vmatprep.subr.bf16.mxu0 %v2499
      %3141 = vmatpush1.bf16.msra.mxu0 %v2498
      %3142 = vmatprep.subr.bf16.mxu0 %v2495
      %3143 = vmatpush1.bf16.msra.mxu0 %v2494
      %3144 = vmatprep.subr.bf16.mxu0 %v2491
      %3145 = vmatpush1.bf16.msra.mxu0 %v2490
      %3146 = vmatprep.subr.bf16.mxu0 %v2551
      %3147 = vmatpush2.bf16.msra.mxu0 %v2550
      %3148 = vmatprep.subr.bf16.mxu0 %v2547
      %3149 = vmatpush2.bf16.msra.mxu0 %v2546
      %3150 = vmatprep.subr.bf16.mxu0 %v2543
      %3151 = vmatpush2.bf16.msra.mxu0 %v2542
      %3152 = vmatprep.subr.bf16.mxu0 %v2539
      %3153 = vmatpush2.bf16.msra.mxu0 %v2538
      %3154 = vmatprep.subr.bf16.mxu0 %v2535
      %3155 = vmatpush2.bf16.msra.mxu0 %v2534
      %3156 = vmatprep.subr.bf16.mxu0 %v2531
      %3157 = vmatpush2.bf16.msra.mxu0 %v2530
      %3158 = vmatprep.subr.bf16.mxu0 %v2527
      %3159 = vmatpush2.bf16.msra.mxu0 %v2526
      %3160 = vmatprep.subr.bf16.mxu0 %v2523
      %3161 = vmatpush2.bf16.msra.mxu0 %v2522
      %3162 = vmatprep.mubr.bf16.mxu0 %v1891
      %3163 = vmatmul.mubr.bf16.gmra.mxu0 %v1890
      %v3164 = vpop.f32.mrf.mxu0
      %v3165 = vadd.f32 %v2095, %v3164
      %v3166 = vpop.f32.mrf.mxu0
      %v3167 = vadd.f32 %v2099, %v3166
      %v3168 = vpop.f32.mrf.mxu0
      %v3169 = vadd.f32 %v2095, %v3168
      %v3170 = vpop.f32.mrf.mxu0
      %v3171 = vadd.f32 %v2099, %v3170
      %3172 = vmatprep.mubr.bf16.mxu0 %v1895
      %3173 = vmatmul.mubr.bf16.gmra.mxu0 %v1894
      %v3174 = vpop.f32.mrf.mxu0
      %v3175 = vadd.f32 %v2095, %v3174
      %v3176 = vpop.f32.mrf.mxu0
      %v3177 = vadd.f32 %v2099, %v3176
      %v3178 = vpop.f32.mrf.mxu0
      %v3179 = vadd.f32 %v2095, %v3178
      %v3180 = vpop.f32.mrf.mxu0
      %v3181 = vadd.f32 %v2099, %v3180
      %3182 = vmatprep.mubr.bf16.mxu0 %v1899
      %3183 = vmatmul.mubr.bf16.gmra.mxu0 %v1898
      %v3184 = vpop.f32.mrf.mxu0
      %v3185 = vadd.f32 %v2095, %v3184
      %v3186 = vpop.f32.mrf.mxu0
      %v3187 = vadd.f32 %v2099, %v3186
      %v3188 = vpop.f32.mrf.mxu0
      %v3189 = vadd.f32 %v2095, %v3188
      %v3190 = vpop.f32.mrf.mxu0
      %v3191 = vadd.f32 %v2099, %v3190
      %3192 = vmatprep.mubr.bf16.mxu0 %v1903
      %3193 = vmatmul.mubr.bf16.gmra.mxu0 %v1902
      %v3194 = vpop.f32.mrf.mxu0
      %v3195 = vadd.f32 %v2095, %v3194
      %v3196 = vpop.f32.mrf.mxu0
      %v3197 = vadd.f32 %v2099, %v3196
      %v3198 = vpop.f32.mrf.mxu0
      %v3199 = vadd.f32 %v2095, %v3198
      %v3200 = vpop.f32.mrf.mxu0
      %v3201 = vadd.f32 %v2099, %v3200
      %3202 = vmatprep.mubr.bf16.mxu0 %v1907
      %3203 = vmatmul.mubr.bf16.gmra.mxu0 %v1906
      %v3204 = vpop.f32.mrf.mxu0
      %v3205 = vadd.f32 %v2095, %v3204
      %v3206 = vpop.f32.mrf.mxu0
      %v3207 = vadd.f32 %v2099, %v3206
      %v3208 = vpop.f32.mrf.mxu0
      %v3209 = vadd.f32 %v2095, %v3208
      %v3210 = vpop.f32.mrf.mxu0
      %v3211 = vadd.f32 %v2099, %v3210
      %3212 = vmatprep.mubr.bf16.mxu0 %v1911
      %3213 = vmatmul.mubr.bf16.gmra.mxu0 %v1910
      %v3214 = vpop.f32.mrf.mxu0
      %v3215 = vadd.f32 %v2095, %v3214
      %v3216 = vpop.f32.mrf.mxu0
      %v3217 = vadd.f32 %v2099, %v3216
      %v3218 = vpop.f32.mrf.mxu0
      %v3219 = vadd.f32 %v2095, %v3218
      %v3220 = vpop.f32.mrf.mxu0
      %v3221 = vadd.f32 %v2099, %v3220
      %3222 = vmatprep.mubr.bf16.mxu0 %v1915
      %3223 = vmatmul.mubr.bf16.gmra.mxu0 %v1914
      %v3224 = vpop.f32.mrf.mxu0
      %v3225 = vadd.f32 %v2095, %v3224
      %v3226 = vpop.f32.mrf.mxu0
      %v3227 = vadd.f32 %v2099, %v3226
      %v3228 = vpop.f32.mrf.mxu0
      %v3229 = vadd.f32 %v2095, %v3228
      %v3230 = vpop.f32.mrf.mxu0
      %v3231 = vadd.f32 %v2099, %v3230
      %3232 = vmatprep.mubr.bf16.mxu0 %v1919
      %3233 = vmatmul.mubr.bf16.gmra.mxu0 %v1918
      %v3234 = vpop.f32.mrf.mxu0
      %v3235 = vadd.f32 %v2095, %v3234
      %v3236 = vpop.f32.mrf.mxu0
      %v3237 = vadd.f32 %v2099, %v3236
      %v3238 = vpop.f32.mrf.mxu0
      %v3239 = vadd.f32 %v2095, %v3238
      %v3240 = vpop.f32.mrf.mxu0
      %v3241 = vadd.f32 %v2099, %v3240
      %3242 = vmatprep.mubr.bf16.mxu0 %v1923
      %3243 = vmatmul.mubr.bf16.gmra.mxu0 %v1922
      %v3244 = vpop.f32.mrf.mxu0
      %v3245 = vadd.f32 %v2095, %v3244
      %v3246 = vpop.f32.mrf.mxu0
      %v3247 = vadd.f32 %v2099, %v3246
      %v3248 = vpop.f32.mrf.mxu0
      %v3249 = vadd.f32 %v2095, %v3248
      %v3250 = vpop.f32.mrf.mxu0
      %v3251 = vadd.f32 %v2099, %v3250
      %3252 = vmatprep.mubr.bf16.mxu0 %v1927
      %3253 = vmatmul.mubr.bf16.gmra.mxu0 %v1926
      %v3254 = vpop.f32.mrf.mxu0
      %v3255 = vadd.f32 %v2095, %v3254
      %v3256 = vpop.f32.mrf.mxu0
      %v3257 = vadd.f32 %v2099, %v3256
      %v3258 = vpop.f32.mrf.mxu0
      %v3259 = vadd.f32 %v2095, %v3258
      %v3260 = vpop.f32.mrf.mxu0
      %v3261 = vadd.f32 %v2099, %v3260
      %3262 = vmatprep.mubr.bf16.mxu0 %v1931
      %3263 = vmatmul.mubr.bf16.gmra.mxu0 %v1930
      %v3264 = vpop.f32.mrf.mxu0
      %v3265 = vadd.f32 %v2095, %v3264
      %v3266 = vpop.f32.mrf.mxu0
      %v3267 = vadd.f32 %v2099, %v3266
      %v3268 = vpop.f32.mrf.mxu0
      %v3269 = vadd.f32 %v2095, %v3268
      %v3270 = vpop.f32.mrf.mxu0
      %v3271 = vadd.f32 %v2099, %v3270
      %3272 = vmatprep.mubr.bf16.mxu0 %v1935
      %3273 = vmatmul.mubr.bf16.gmra.mxu0 %v1934
      %v3274 = vpop.f32.mrf.mxu0
      %v3275 = vadd.f32 %v2095, %v3274
      %v3276 = vpop.f32.mrf.mxu0
      %v3277 = vadd.f32 %v2099, %v3276
      %v3278 = vpop.f32.mrf.mxu0
      %v3279 = vadd.f32 %v2095, %v3278
      %v3280 = vpop.f32.mrf.mxu0
      %v3281 = vadd.f32 %v2099, %v3280
      %3282 = vmatprep.mubr.bf16.mxu0 %v1939
      %3283 = vmatmul.mubr.bf16.gmra.mxu0 %v1938
      %v3284 = vpop.f32.mrf.mxu0
      %v3285 = vadd.f32 %v2095, %v3284
      %v3286 = vpop.f32.mrf.mxu0
      %v3287 = vadd.f32 %v2099, %v3286
      %v3288 = vpop.f32.mrf.mxu0
      %v3289 = vadd.f32 %v2095, %v3288
      %v3290 = vpop.f32.mrf.mxu0
      %v3291 = vadd.f32 %v2099, %v3290
      %3292 = vmatprep.mubr.bf16.mxu0 %v1943
      %3293 = vmatmul.mubr.bf16.gmra.mxu0 %v1942
      %v3294 = vpop.f32.mrf.mxu0
      %v3295 = vadd.f32 %v2095, %v3294
      %v3296 = vpop.f32.mrf.mxu0
      %v3297 = vadd.f32 %v2099, %v3296
      %v3298 = vpop.f32.mrf.mxu0
      %v3299 = vadd.f32 %v2095, %v3298
      %v3300 = vpop.f32.mrf.mxu0
      %v3301 = vadd.f32 %v2099, %v3300
      %3302 = vmatprep.mubr.bf16.mxu0 %v1947
      %3303 = vmatmul.mubr.bf16.gmra.mxu0 %v1946
      %v3304 = vpop.f32.mrf.mxu0
      %v3305 = vadd.f32 %v2095, %v3304
      %v3306 = vpop.f32.mrf.mxu0
      %v3307 = vadd.f32 %v2099, %v3306
      %v3308 = vpop.f32.mrf.mxu0
      %v3309 = vadd.f32 %v2095, %v3308
      %v3310 = vpop.f32.mrf.mxu0
      %v3311 = vadd.f32 %v2099, %v3310
      %3312 = vmatprep.mubr.bf16.mxu0 %v1951
      %3313 = vmatmul.mubr.bf16.gmra.mxu0 %v1950
      %v3314 = vpop.f32.mrf.mxu0
      %v3315 = vadd.f32 %v2095, %v3314
      %v3316 = vpop.f32.mrf.mxu0
      %v3317 = vadd.f32 %v2099, %v3316
      %v3318 = vpop.f32.mrf.mxu0
      %v3319 = vadd.f32 %v2095, %v3318
      %v3320 = vpop.f32.mrf.mxu0
      %v3321 = vadd.f32 %v2099, %v3320
      %3322 = vdwg.mxu0
      %3323 = vmatprep.subr.bf16.mxu0 %v2583
      %3324 = vmatpush1.bf16.msra.mxu0 %v2582
      %3325 = vmatprep.subr.bf16.mxu0 %v2579
      %3326 = vmatpush1.bf16.msra.mxu0 %v2578
      %3327 = vmatprep.subr.bf16.mxu0 %v2575
      %3328 = vmatpush1.bf16.msra.mxu0 %v2574
      %3329 = vmatprep.subr.bf16.mxu0 %v2571
      %3330 = vmatpush1.bf16.msra.mxu0 %v2570
      %3331 = vmatprep.subr.bf16.mxu0 %v2567
      %3332 = vmatpush1.bf16.msra.mxu0 %v2566
      %3333 = vmatprep.subr.bf16.mxu0 %v2563
      %3334 = vmatpush1.bf16.msra.mxu0 %v2562
      %3335 = vmatprep.subr.bf16.mxu0 %v2559
      %3336 = vmatpush1.bf16.msra.mxu0 %v2558
      %3337 = vmatprep.subr.bf16.mxu0 %v2555
      %3338 = vmatpush1.bf16.msra.mxu0 %v2554
      %3339 = vmatprep.subr.bf16.mxu0 %v2615
      %3340 = vmatpush2.bf16.msra.mxu0 %v2614
      %3341 = vmatprep.subr.bf16.mxu0 %v2611
      %3342 = vmatpush2.bf16.msra.mxu0 %v2610
      %3343 = vmatprep.subr.bf16.mxu0 %v2607
      %3344 = vmatpush2.bf16.msra.mxu0 %v2606
      %3345 = vmatprep.subr.bf16.mxu0 %v2603
      %3346 = vmatpush2.bf16.msra.mxu0 %v2602
      %3347 = vmatprep.subr.bf16.mxu0 %v2599
      %3348 = vmatpush2.bf16.msra.mxu0 %v2598
      %3349 = vmatprep.subr.bf16.mxu0 %v2595
      %3350 = vmatpush2.bf16.msra.mxu0 %v2594
      %3351 = vmatprep.subr.bf16.mxu0 %v2591
      %3352 = vmatpush2.bf16.msra.mxu0 %v2590
      %3353 = vmatprep.subr.bf16.mxu0 %v2587
      %3354 = vmatpush2.bf16.msra.mxu0 %v2586
      %3355 = vmatprep.mubr.bf16.mxu0 %v1893
      %3356 = vmatmul.mubr.bf16.gmra.mxu0 %v1892
      %v3357 = vpop.f32.mrf.mxu0
      %v3358 = vadd.f32 %v3165, %v3357
      %v3359 = vpop.f32.mrf.mxu0
      %v3360 = vadd.f32 %v3167, %v3359
      %v3361 = vpop.f32.mrf.mxu0
      %v3362 = vadd.f32 %v3169, %v3361
      %v3363 = vpop.f32.mrf.mxu0
      %v3364 = vadd.f32 %v3171, %v3363
      %3365 = vmatprep.mubr.bf16.mxu0 %v1897
      %3366 = vmatmul.mubr.bf16.gmra.mxu0 %v1896
      %v3367 = vpop.f32.mrf.mxu0
      %v3368 = vadd.f32 %v3175, %v3367
      %v3369 = vpop.f32.mrf.mxu0
      %v3370 = vadd.f32 %v3177, %v3369
      %v3371 = vpop.f32.mrf.mxu0
      %v3372 = vadd.f32 %v3179, %v3371
      %v3373 = vpop.f32.mrf.mxu0
      %v3374 = vadd.f32 %v3181, %v3373
      %3375 = vmatprep.mubr.bf16.mxu0 %v1901
      %3376 = vmatmul.mubr.bf16.gmra.mxu0 %v1900
      %v3377 = vpop.f32.mrf.mxu0
      %v3378 = vadd.f32 %v3185, %v3377
      %v3379 = vpop.f32.mrf.mxu0
      %v3380 = vadd.f32 %v3187, %v3379
      %v3381 = vpop.f32.mrf.mxu0
      %v3382 = vadd.f32 %v3189, %v3381
      %v3383 = vpop.f32.mrf.mxu0
      %v3384 = vadd.f32 %v3191, %v3383
      %3385 = vmatprep.mubr.bf16.mxu0 %v1905
      %3386 = vmatmul.mubr.bf16.gmra.mxu0 %v1904
      %v3387 = vpop.f32.mrf.mxu0
      %v3388 = vadd.f32 %v3195, %v3387
      %v3389 = vpop.f32.mrf.mxu0
      %v3390 = vadd.f32 %v3197, %v3389
      %v3391 = vpop.f32.mrf.mxu0
      %v3392 = vadd.f32 %v3199, %v3391
      %v3393 = vpop.f32.mrf.mxu0
      %v3394 = vadd.f32 %v3201, %v3393
      %3395 = vmatprep.mubr.bf16.mxu0 %v1909
      %3396 = vmatmul.mubr.bf16.gmra.mxu0 %v1908
      %v3397 = vpop.f32.mrf.mxu0
      %v3398 = vadd.f32 %v3205, %v3397
      %v3399 = vpop.f32.mrf.mxu0
      %v3400 = vadd.f32 %v3207, %v3399
      %v3401 = vpop.f32.mrf.mxu0
      %v3402 = vadd.f32 %v3209, %v3401
      %v3403 = vpop.f32.mrf.mxu0
      %v3404 = vadd.f32 %v3211, %v3403
      %3405 = vmatprep.mubr.bf16.mxu0 %v1913
      %3406 = vmatmul.mubr.bf16.gmra.mxu0 %v1912
      %v3407 = vpop.f32.mrf.mxu0
      %v3408 = vadd.f32 %v3215, %v3407
      %v3409 = vpop.f32.mrf.mxu0
      %v3410 = vadd.f32 %v3217, %v3409
      %v3411 = vpop.f32.mrf.mxu0
      %v3412 = vadd.f32 %v3219, %v3411
      %v3413 = vpop.f32.mrf.mxu0
      %v3414 = vadd.f32 %v3221, %v3413
      %3415 = vmatprep.mubr.bf16.mxu0 %v1917
      %3416 = vmatmul.mubr.bf16.gmra.mxu0 %v1916
      %v3417 = vpop.f32.mrf.mxu0
      %v3418 = vadd.f32 %v3225, %v3417
      %v3419 = vpop.f32.mrf.mxu0
      %v3420 = vadd.f32 %v3227, %v3419
      %v3421 = vpop.f32.mrf.mxu0
      %v3422 = vadd.f32 %v3229, %v3421
      %v3423 = vpop.f32.mrf.mxu0
      %v3424 = vadd.f32 %v3231, %v3423
      %3425 = vmatprep.mubr.bf16.mxu0 %v1921
      %3426 = vmatmul.mubr.bf16.gmra.mxu0 %v1920
      %v3427 = vpop.f32.mrf.mxu0
      %v3428 = vadd.f32 %v3235, %v3427
      %v3429 = vpop.f32.mrf.mxu0
      %v3430 = vadd.f32 %v3237, %v3429
      %v3431 = vpop.f32.mrf.mxu0
      %v3432 = vadd.f32 %v3239, %v3431
      %v3433 = vpop.f32.mrf.mxu0
      %v3434 = vadd.f32 %v3241, %v3433
      %3435 = vmatprep.mubr.bf16.mxu0 %v1925
      %3436 = vmatmul.mubr.bf16.gmra.mxu0 %v1924
      %v3437 = vpop.f32.mrf.mxu0
      %v3438 = vadd.f32 %v3245, %v3437
      %v3439 = vpop.f32.mrf.mxu0
      %v3440 = vadd.f32 %v3247, %v3439
      %v3441 = vpop.f32.mrf.mxu0
      %v3442 = vadd.f32 %v3249, %v3441
      %v3443 = vpop.f32.mrf.mxu0
      %v3444 = vadd.f32 %v3251, %v3443
      %3445 = vmatprep.mubr.bf16.mxu0 %v1929
      %3446 = vmatmul.mubr.bf16.gmra.mxu0 %v1928
      %v3447 = vpop.f32.mrf.mxu0
      %v3448 = vadd.f32 %v3255, %v3447
      %v3449 = vpop.f32.mrf.mxu0
      %v3450 = vadd.f32 %v3257, %v3449
      %v3451 = vpop.f32.mrf.mxu0
      %v3452 = vadd.f32 %v3259, %v3451
      %v3453 = vpop.f32.mrf.mxu0
      %v3454 = vadd.f32 %v3261, %v3453
      %3455 = vmatprep.mubr.bf16.mxu0 %v1933
      %3456 = vmatmul.mubr.bf16.gmra.mxu0 %v1932
      %v3457 = vpop.f32.mrf.mxu0
      %v3458 = vadd.f32 %v3265, %v3457
      %v3459 = vpop.f32.mrf.mxu0
      %v3460 = vadd.f32 %v3267, %v3459
      %v3461 = vpop.f32.mrf.mxu0
      %v3462 = vadd.f32 %v3269, %v3461
      %v3463 = vpop.f32.mrf.mxu0
      %v3464 = vadd.f32 %v3271, %v3463
      %3465 = vmatprep.mubr.bf16.mxu0 %v1937
      %3466 = vmatmul.mubr.bf16.gmra.mxu0 %v1936
      %v3467 = vpop.f32.mrf.mxu0
      %v3468 = vadd.f32 %v3275, %v3467
      %v3469 = vpop.f32.mrf.mxu0
      %v3470 = vadd.f32 %v3277, %v3469
      %v3471 = vpop.f32.mrf.mxu0
      %v3472 = vadd.f32 %v3279, %v3471
      %v3473 = vpop.f32.mrf.mxu0
      %v3474 = vadd.f32 %v3281, %v3473
      %3475 = vmatprep.mubr.bf16.mxu0 %v1941
      %3476 = vmatmul.mubr.bf16.gmra.mxu0 %v1940
      %v3477 = vpop.f32.mrf.mxu0
      %v3478 = vadd.f32 %v3285, %v3477
      %v3479 = vpop.f32.mrf.mxu0
      %v3480 = vadd.f32 %v3287, %v3479
      %v3481 = vpop.f32.mrf.mxu0
      %v3482 = vadd.f32 %v3289, %v3481
      %v3483 = vpop.f32.mrf.mxu0
      %v3484 = vadd.f32 %v3291, %v3483
      %3485 = vmatprep.mubr.bf16.mxu0 %v1945
      %3486 = vmatmul.mubr.bf16.gmra.mxu0 %v1944
      %v3487 = vpop.f32.mrf.mxu0
      %v3488 = vadd.f32 %v3295, %v3487
      %v3489 = vpop.f32.mrf.mxu0
      %v3490 = vadd.f32 %v3297, %v3489
      %v3491 = vpop.f32.mrf.mxu0
      %v3492 = vadd.f32 %v3299, %v3491
      %v3493 = vpop.f32.mrf.mxu0
      %v3494 = vadd.f32 %v3301, %v3493
      %3495 = vmatprep.mubr.bf16.mxu0 %v1949
      %3496 = vmatmul.mubr.bf16.gmra.mxu0 %v1948
      %v3497 = vpop.f32.mrf.mxu0
      %v3498 = vadd.f32 %v3305, %v3497
      %v3499 = vpop.f32.mrf.mxu0
      %v3500 = vadd.f32 %v3307, %v3499
      %v3501 = vpop.f32.mrf.mxu0
      %v3502 = vadd.f32 %v3309, %v3501
      %v3503 = vpop.f32.mrf.mxu0
      %v3504 = vadd.f32 %v3311, %v3503
      %3505 = vmatprep.mubr.bf16.mxu0 %v1953
      %3506 = vmatmul.mubr.bf16.gmra.mxu0 %v1952
      %v3507 = vpop.f32.mrf.mxu0
      %v3508 = vadd.f32 %v3315, %v3507
      %v3509 = vpop.f32.mrf.mxu0
      %v3510 = vadd.f32 %v3317, %v3509
      %v3511 = vpop.f32.mrf.mxu0
      %v3512 = vadd.f32 %v3319, %v3511
      %v3513 = vpop.f32.mrf.mxu0
      %v3514 = vadd.f32 %v3321, %v3513
      %3515 = vdwg.mxu0
      %v3516 = vtanh.pop %v2972
      %v3517 = vtanh.pop %v2974
      %v3518 = vtanh.pop %v3358
      %v3519 = vtanh.pop %v3360
      %v3520 = vtanh.pop %v2976
      %v3521 = vtanh.pop %v2978
      %v3522 = vtanh.pop %v3362
      %v3523 = vtanh.pop %v3364
      %v3524 = vtanh.pop %v2982
      %v3525 = vtanh.pop %v2984
      %v3526 = vtanh.pop %v3368
      %v3527 = vtanh.pop %v3370
      %v3528 = vtanh.pop %v2986
      %v3529 = vtanh.pop %v2988
      %v3530 = vtanh.pop %v3372
      %v3531 = vtanh.pop %v3374
      %v3532 = vtanh.pop %v2992
      %v3533 = vtanh.pop %v2994
      %v3534 = vtanh.pop %v3378
      %v3535 = vtanh.pop %v3380
      %v3536 = vtanh.pop %v2996
      %v3537 = vtanh.pop %v2998
      %v3538 = vtanh.pop %v3382
      %v3539 = vtanh.pop %v3384
      %v3540 = vtanh.pop %v3002
      %v3541 = vtanh.pop %v3004
      %v3542 = vtanh.pop %v3388
      %v3543 = vtanh.pop %v3390
      %v3544 = vtanh.pop %v3006
      %v3545 = vtanh.pop %v3008
      %v3546 = vtanh.pop %v3392
      %v3547 = vtanh.pop %v3394
      %v3548 = vtanh.pop %v3012
      %v3549 = vtanh.pop %v3014
      %v3550 = vtanh.pop %v3398
      %v3551 = vtanh.pop %v3400
      %v3552 = vtanh.pop %v3016
      %v3553 = vtanh.pop %v3018
      %v3554 = vtanh.pop %v3402
      %v3555 = vtanh.pop %v3404
      %v3556 = vtanh.pop %v3022
      %v3557 = vtanh.pop %v3024
      %v3558 = vtanh.pop %v3408
      %v3559 = vtanh.pop %v3410
      %v3560 = vtanh.pop %v3026
      %v3561 = vtanh.pop %v3028
      %v3562 = vtanh.pop %v3412
      %v3563 = vtanh.pop %v3414
      %v3564 = vtanh.pop %v3032
      %v3565 = vtanh.pop %v3034
      %v3566 = vtanh.pop %v3418
      %v3567 = vtanh.pop %v3420
      %v3568 = vtanh.pop %v3036
      %v3569 = vtanh.pop %v3038
      %v3570 = vtanh.pop %v3422
      %v3571 = vtanh.pop %v3424
      %v3572 = vtanh.pop %v3042
      %v3573 = vtanh.pop %v3044
      %v3574 = vtanh.pop %v3428
      %v3575 = vtanh.pop %v3430
      %v3576 = vtanh.pop %v3046
      %v3577 = vtanh.pop %v3048
      %v3578 = vtanh.pop %v3432
      %v3579 = vtanh.pop %v3434
      %v3580 = vtanh.pop %v3052
      %v3581 = vtanh.pop %v3054
      %v3582 = vtanh.pop %v3438
      %v3583 = vtanh.pop %v3440
      %v3584 = vtanh.pop %v3056
      %v3585 = vtanh.pop %v3058
      %v3586 = vtanh.pop %v3442
      %v3587 = vtanh.pop %v3444
      %v3588 = vtanh.pop %v3062
      %v3589 = vtanh.pop %v3064
      %v3590 = vtanh.pop %v3448
      %v3591 = vtanh.pop %v3450
      %v3592 = vtanh.pop %v3066
      %v3593 = vtanh.pop %v3068
      %v3594 = vtanh.pop %v3452
      %v3595 = vtanh.pop %v3454
      %v3596 = vtanh.pop %v3072
      %v3597 = vtanh.pop %v3074
      %v3598 = vtanh.pop %v3458
      %v3599 = vtanh.pop %v3460
      %v3600 = vtanh.pop %v3076
      %v3601 = vtanh.pop %v3078
      %v3602 = vtanh.pop %v3462
      %v3603 = vtanh.pop %v3464
      %v3604 = vtanh.pop %v3082
      %v3605 = vtanh.pop %v3084
      %v3606 = vtanh.pop %v3468
      %v3607 = vtanh.pop %v3470
      %v3608 = vtanh.pop %v3086
      %v3609 = vtanh.pop %v3088
      %v3610 = vtanh.pop %v3472
      %v3611 = vtanh.pop %v3474
      %v3612 = vtanh.pop %v3092
      %v3613 = vtanh.pop %v3094
      %v3614 = vtanh.pop %v3478
      %v3615 = vtanh.pop %v3480
      %v3616 = vtanh.pop %v3096
      %v3617 = vtanh.pop %v3098
      %v3618 = vtanh.pop %v3482
      %v3619 = vtanh.pop %v3484
      %v3620 = vtanh.pop %v3102
      %v3621 = vtanh.pop %v3104
      %v3622 = vtanh.pop %v3488
      %v3623 = vtanh.pop %v3490
      %v3624 = vtanh.pop %v3106
      %v3625 = vtanh.pop %v3108
      %v3626 = vtanh.pop %v3492
      %v3627 = vtanh.pop %v3494
      %v3628 = vtanh.pop %v3112
      %v3629 = vtanh.pop %v3114
      %v3630 = vtanh.pop %v3498
      %v3631 = vtanh.pop %v3500
      %v3632 = vtanh.pop %v3116
      %v3633 = vtanh.pop %v3118
      %v3634 = vtanh.pop %v3502
      %v3635 = vtanh.pop %v3504
      %v3636 = vtanh.pop %v3122
      %v3637 = vtanh.pop %v3124
      %v3638 = vtanh.pop %v3508
      %v3639 = vtanh.pop %v3510
      %v3640 = vtanh.pop %v3126
      %v3641 = vtanh.pop %v3128
      %v3642 = vtanh.pop %v3512
      %v3643 = vtanh.pop %v3514
      %v3644 = vadd.f32 %v3516, %v3517
      %v3645 = vadd.f32 %v3644, %v3518
      %v3646 = vadd.f32 %v3645, %v3519
      %3647 = vadd.xlane.f32.xlu0 %v3646
      %v3648 = vpop.xlane.xlu0 %3647
      %v3649 = vadd.f32 %v3520, %v3521
      %v3650 = vadd.f32 %v3649, %v3522
      %v3651 = vadd.f32 %v3650, %v3523
      %3652 = vadd.xlane.f32.xlu0 %v3651
      %v3653 = vpop.xlane.xlu0 %3652
      %v3654 = vadd.f32 %v3524, %v3525
      %v3655 = vadd.f32 %v3654, %v3526
      %v3656 = vadd.f32 %v3655, %v3527
      %3657 = vadd.xlane.f32.xlu0 %v3656
      %v3658 = vpop.xlane.xlu0 %3657
      %v3659 = vadd.f32 %v3528, %v3529
      %v3660 = vadd.f32 %v3659, %v3530
      %v3661 = vadd.f32 %v3660, %v3531
      %3662 = vadd.xlane.f32.xlu0 %v3661
      %v3663 = vpop.xlane.xlu0 %3662
      %v3664 = vadd.f32 %v3532, %v3533
      %v3665 = vadd.f32 %v3664, %v3534
      %v3666 = vadd.f32 %v3665, %v3535
      %3667 = vadd.xlane.f32.xlu0 %v3666
      %v3668 = vpop.xlane.xlu0 %3667
      %v3669 = vadd.f32 %v3536, %v3537
      %v3670 = vadd.f32 %v3669, %v3538
      %v3671 = vadd.f32 %v3670, %v3539
      %3672 = vadd.xlane.f32.xlu0 %v3671
      %v3673 = vpop.xlane.xlu0 %3672
      %v3674 = vadd.f32 %v3540, %v3541
      %v3675 = vadd.f32 %v3674, %v3542
      %v3676 = vadd.f32 %v3675, %v3543
      %3677 = vadd.xlane.f32.xlu0 %v3676
      %v3678 = vpop.xlane.xlu0 %3677
      %v3679 = vadd.f32 %v3544, %v3545
      %v3680 = vadd.f32 %v3679, %v3546
      %v3681 = vadd.f32 %v3680, %v3547
      %3682 = vadd.xlane.f32.xlu0 %v3681
      %v3683 = vpop.xlane.xlu0 %3682
      %v3684 = vadd.f32 %v3548, %v3549
      %v3685 = vadd.f32 %v3684, %v3550
      %v3686 = vadd.f32 %v3685, %v3551
      %3687 = vadd.xlane.f32.xlu0 %v3686
      %v3688 = vpop.xlane.xlu0 %3687
      %v3689 = vadd.f32 %v3552, %v3553
      %v3690 = vadd.f32 %v3689, %v3554
      %v3691 = vadd.f32 %v3690, %v3555
      %3692 = vadd.xlane.f32.xlu0 %v3691
      %v3693 = vpop.xlane.xlu0 %3692
      %v3694 = vadd.f32 %v3556, %v3557
      %v3695 = vadd.f32 %v3694, %v3558
      %v3696 = vadd.f32 %v3695, %v3559
      %3697 = vadd.xlane.f32.xlu0 %v3696
      %v3698 = vpop.xlane.xlu0 %3697
      %v3699 = vadd.f32 %v3560, %v3561
      %v3700 = vadd.f32 %v3699, %v3562
      %v3701 = vadd.f32 %v3700, %v3563
      %3702 = vadd.xlane.f32.xlu0 %v3701
      %v3703 = vpop.xlane.xlu0 %3702
      %v3704 = vadd.f32 %v3564, %v3565
      %v3705 = vadd.f32 %v3704, %v3566
      %v3706 = vadd.f32 %v3705, %v3567
      %3707 = vadd.xlane.f32.xlu0 %v3706
      %v3708 = vpop.xlane.xlu0 %3707
      %v3709 = vadd.f32 %v3568, %v3569
      %v3710 = vadd.f32 %v3709, %v3570
      %v3711 = vadd.f32 %v3710, %v3571
      %3712 = vadd.xlane.f32.xlu0 %v3711
      %v3713 = vpop.xlane.xlu0 %3712
      %v3714 = vadd.f32 %v3572, %v3573
      %v3715 = vadd.f32 %v3714, %v3574
      %v3716 = vadd.f32 %v3715, %v3575
      %3717 = vadd.xlane.f32.xlu0 %v3716
      %v3718 = vpop.xlane.xlu0 %3717
      %v3719 = vadd.f32 %v3576, %v3577
      %v3720 = vadd.f32 %v3719, %v3578
      %v3721 = vadd.f32 %v3720, %v3579
      %3722 = vadd.xlane.f32.xlu0 %v3721
      %v3723 = vpop.xlane.xlu0 %3722
      %v3724 = vadd.f32 %v3580, %v3581
      %v3725 = vadd.f32 %v3724, %v3582
      %v3726 = vadd.f32 %v3725, %v3583
      %3727 = vadd.xlane.f32.xlu0 %v3726
      %v3728 = vpop.xlane.xlu0 %3727
      %v3729 = vadd.f32 %v3584, %v3585
      %v3730 = vadd.f32 %v3729, %v3586
      %v3731 = vadd.f32 %v3730, %v3587
      %3732 = vadd.xlane.f32.xlu0 %v3731
      %v3733 = vpop.xlane.xlu0 %3732
      %v3734 = vadd.f32 %v3588, %v3589
      %v3735 = vadd.f32 %v3734, %v3590
      %v3736 = vadd.f32 %v3735, %v3591
      %3737 = vadd.xlane.f32.xlu0 %v3736
      %v3738 = vpop.xlane.xlu0 %3737
      %v3739 = vadd.f32 %v3592, %v3593
      %v3740 = vadd.f32 %v3739, %v3594
      %v3741 = vadd.f32 %v3740, %v3595
      %3742 = vadd.xlane.f32.xlu0 %v3741
      %v3743 = vpop.xlane.xlu0 %3742
      %v3744 = vadd.f32 %v3596, %v3597
      %v3745 = vadd.f32 %v3744, %v3598
      %v3746 = vadd.f32 %v3745, %v3599
      %3747 = vadd.xlane.f32.xlu0 %v3746
      %v3748 = vpop.xlane.xlu0 %3747
      %v3749 = vadd.f32 %v3600, %v3601
      %v3750 = vadd.f32 %v3749, %v3602
      %v3751 = vadd.f32 %v3750, %v3603
      %3752 = vadd.xlane.f32.xlu0 %v3751
      %v3753 = vpop.xlane.xlu0 %3752
      %v3754 = vadd.f32 %v3604, %v3605
      %v3755 = vadd.f32 %v3754, %v3606
      %v3756 = vadd.f32 %v3755, %v3607
      %3757 = vadd.xlane.f32.xlu0 %v3756
      %v3758 = vpop.xlane.xlu0 %3757
      %v3759 = vadd.f32 %v3608, %v3609
      %v3760 = vadd.f32 %v3759, %v3610
      %v3761 = vadd.f32 %v3760, %v3611
      %3762 = vadd.xlane.f32.xlu0 %v3761
      %v3763 = vpop.xlane.xlu0 %3762
      %v3764 = vadd.f32 %v3612, %v3613
      %v3765 = vadd.f32 %v3764, %v3614
      %v3766 = vadd.f32 %v3765, %v3615
      %3767 = vadd.xlane.f32.xlu0 %v3766
      %v3768 = vpop.xlane.xlu0 %3767
      %v3769 = vadd.f32 %v3616, %v3617
      %v3770 = vadd.f32 %v3769, %v3618
      %v3771 = vadd.f32 %v3770, %v3619
      %3772 = vadd.xlane.f32.xlu0 %v3771
      %v3773 = vpop.xlane.xlu0 %3772
      %v3774 = vadd.f32 %v3620, %v3621
      %v3775 = vadd.f32 %v3774, %v3622
      %v3776 = vadd.f32 %v3775, %v3623
      %3777 = vadd.xlane.f32.xlu0 %v3776
      %v3778 = vpop.xlane.xlu0 %3777
      %v3779 = vadd.f32 %v3624, %v3625
      %v3780 = vadd.f32 %v3779, %v3626
      %v3781 = vadd.f32 %v3780, %v3627
      %3782 = vadd.xlane.f32.xlu0 %v3781
      %v3783 = vpop.xlane.xlu0 %3782
      %v3784 = vadd.f32 %v3628, %v3629
      %v3785 = vadd.f32 %v3784, %v3630
      %v3786 = vadd.f32 %v3785, %v3631
      %3787 = vadd.xlane.f32.xlu0 %v3786
      %v3788 = vpop.xlane.xlu0 %3787
      %v3789 = vadd.f32 %v3632, %v3633
      %v3790 = vadd.f32 %v3789, %v3634
      %v3791 = vadd.f32 %v3790, %v3635
      %3792 = vadd.xlane.f32.xlu0 %v3791
      %v3793 = vpop.xlane.xlu0 %3792
      %v3794 = vadd.f32 %v3636, %v3637
      %v3795 = vadd.f32 %v3794, %v3638
      %v3796 = vadd.f32 %v3795, %v3639
      %3797 = vadd.xlane.f32.xlu0 %v3796
      %v3798 = vpop.xlane.xlu0 %3797
      %v3799 = vadd.f32 %v3640, %v3641
      %v3800 = vadd.f32 %v3799, %v3642
      %v3801 = vadd.f32 %v3800, %v3643
      %3802 = vadd.xlane.f32.xlu0 %v3801
      %v3803 = vpop.xlane.xlu0 %3802
      %v3804 = vmul.f32 %v3516, %v3516
      %v3805 = vmul.f32 %v3517, %v3517
      %v3806 = vmul.f32 %v3518, %v3518
      %v3807 = vmul.f32 %v3519, %v3519
      %v3808 = vmul.f32 %v3520, %v3520
      %v3809 = vmul.f32 %v3521, %v3521
      %v3810 = vmul.f32 %v3522, %v3522
      %v3811 = vmul.f32 %v3523, %v3523
      %v3812 = vmul.f32 %v3524, %v3524
      %v3813 = vmul.f32 %v3525, %v3525
      %v3814 = vmul.f32 %v3526, %v3526
      %v3815 = vmul.f32 %v3527, %v3527
      %v3816 = vmul.f32 %v3528, %v3528
      %v3817 = vmul.f32 %v3529, %v3529
      %v3818 = vmul.f32 %v3530, %v3530
      %v3819 = vmul.f32 %v3531, %v3531
      %v3820 = vmul.f32 %v3532, %v3532
      %v3821 = vmul.f32 %v3533, %v3533
      %v3822 = vmul.f32 %v3534, %v3534
      %v3823 = vmul.f32 %v3535, %v3535
      %v3824 = vmul.f32 %v3536, %v3536
      %v3825 = vmul.f32 %v3537, %v3537
      %v3826 = vmul.f32 %v3538, %v3538
      %v3827 = vmul.f32 %v3539, %v3539
      %v3828 = vmul.f32 %v3540, %v3540
      %v3829 = vmul.f32 %v3541, %v3541
      %v3830 = vmul.f32 %v3542, %v3542
      %v3831 = vmul.f32 %v3543, %v3543
      %v3832 = vmul.f32 %v3544, %v3544
      %v3833 = vmul.f32 %v3545, %v3545
      %v3834 = vmul.f32 %v3546, %v3546
      %v3835 = vmul.f32 %v3547, %v3547
      %v3836 = vmul.f32 %v3548, %v3548
      %v3837 = vmul.f32 %v3549, %v3549
      %v3838 = vmul.f32 %v3550, %v3550
      %v3839 = vmul.f32 %v3551, %v3551
      %v3840 = vmul.f32 %v3552, %v3552
      %v3841 = vmul.f32 %v3553, %v3553
      %v3842 = vmul.f32 %v3554, %v3554
      %v3843 = vmul.f32 %v3555, %v3555
      %v3844 = vmul.f32 %v3556, %v3556
      %v3845 = vmul.f32 %v3557, %v3557
      %v3846 = vmul.f32 %v3558, %v3558
      %v3847 = vmul.f32 %v3559, %v3559
      %v3848 = vmul.f32 %v3560, %v3560
      %v3849 = vmul.f32 %v3561, %v3561
      %v3850 = vmul.f32 %v3562, %v3562
      %v3851 = vmul.f32 %v3563, %v3563
      %v3852 = vmul.f32 %v3564, %v3564
      %v3853 = vmul.f32 %v3565, %v3565
      %v3854 = vmul.f32 %v3566, %v3566
      %v3855 = vmul.f32 %v3567, %v3567
      %v3856 = vmul.f32 %v3568, %v3568
      %v3857 = vmul.f32 %v3569, %v3569
      %v3858 = vmul.f32 %v3570, %v3570
      %v3859 = vmul.f32 %v3571, %v3571
      %v3860 = vmul.f32 %v3572, %v3572
      %v3861 = vmul.f32 %v3573, %v3573
      %v3862 = vmul.f32 %v3574, %v3574
      %v3863 = vmul.f32 %v3575, %v3575
      %v3864 = vmul.f32 %v3576, %v3576
      %v3865 = vmul.f32 %v3577, %v3577
      %v3866 = vmul.f32 %v3578, %v3578
      %v3867 = vmul.f32 %v3579, %v3579
      %v3868 = vmul.f32 %v3580, %v3580
      %v3869 = vmul.f32 %v3581, %v3581
      %v3870 = vmul.f32 %v3582, %v3582
      %v3871 = vmul.f32 %v3583, %v3583
      %v3872 = vmul.f32 %v3584, %v3584
      %v3873 = vmul.f32 %v3585, %v3585
      %v3874 = vmul.f32 %v3586, %v3586
      %v3875 = vmul.f32 %v3587, %v3587
      %v3876 = vmul.f32 %v3588, %v3588
      %v3877 = vmul.f32 %v3589, %v3589
      %v3878 = vmul.f32 %v3590, %v3590
      %v3879 = vmul.f32 %v3591, %v3591
      %v3880 = vmul.f32 %v3592, %v3592
      %v3881 = vmul.f32 %v3593, %v3593
      %v3882 = vmul.f32 %v3594, %v3594
      %v3883 = vmul.f32 %v3595, %v3595
      %v3884 = vmul.f32 %v3596, %v3596
      %v3885 = vmul.f32 %v3597, %v3597
      %v3886 = vmul.f32 %v3598, %v3598
      %v3887 = vmul.f32 %v3599, %v3599
      %v3888 = vmul.f32 %v3600, %v3600
      %v3889 = vmul.f32 %v3601, %v3601
      %v3890 = vmul.f32 %v3602, %v3602
      %v3891 = vmul.f32 %v3603, %v3603
      %v3892 = vmul.f32 %v3604, %v3604
      %v3893 = vmul.f32 %v3605, %v3605
      %v3894 = vmul.f32 %v3606, %v3606
      %v3895 = vmul.f32 %v3607, %v3607
      %v3896 = vmul.f32 %v3608, %v3608
      %v3897 = vmul.f32 %v3609, %v3609
      %v3898 = vmul.f32 %v3610, %v3610
      %v3899 = vmul.f32 %v3611, %v3611
      %v3900 = vmul.f32 %v3612, %v3612
      %v3901 = vmul.f32 %v3613, %v3613
      %v3902 = vmul.f32 %v3614, %v3614
      %v3903 = vmul.f32 %v3615, %v3615
      %v3904 = vmul.f32 %v3616, %v3616
      %v3905 = vmul.f32 %v3617, %v3617
      %v3906 = vmul.f32 %v3618, %v3618
      %v3907 = vmul.f32 %v3619, %v3619
      %v3908 = vmul.f32 %v3620, %v3620
      %v3909 = vmul.f32 %v3621, %v3621
      %v3910 = vmul.f32 %v3622, %v3622
      %v3911 = vmul.f32 %v3623, %v3623
      %v3912 = vmul.f32 %v3624, %v3624
      %v3913 = vmul.f32 %v3625, %v3625
      %v3914 = vmul.f32 %v3626, %v3626
      %v3915 = vmul.f32 %v3627, %v3627
      %v3916 = vmul.f32 %v3628, %v3628
      %v3917 = vmul.f32 %v3629, %v3629
      %v3918 = vmul.f32 %v3630, %v3630
      %v3919 = vmul.f32 %v3631, %v3631
      %v3920 = vmul.f32 %v3632, %v3632
      %v3921 = vmul.f32 %v3633, %v3633
      %v3922 = vmul.f32 %v3634, %v3634
      %v3923 = vmul.f32 %v3635, %v3635
      %v3924 = vmul.f32 %v3636, %v3636
      %v3925 = vmul.f32 %v3637, %v3637
      %v3926 = vmul.f32 %v3638, %v3638
      %v3927 = vmul.f32 %v3639, %v3639
      %v3928 = vmul.f32 %v3640, %v3640
      %v3929 = vmul.f32 %v3641, %v3641
      %v3930 = vmul.f32 %v3642, %v3642
      %v3931 = vmul.f32 %v3643, %v3643
      %v3932 = vadd.f32 %v3804, %v3805
      %v3933 = vadd.f32 %v3932, %v3806
      %v3934 = vadd.f32 %v3933, %v3807
      %3935 = vadd.xlane.f32.xlu0 %v3934
      %v3936 = vpop.xlane.xlu0 %3935
      %v3937 = vadd.f32 %v3808, %v3809
      %v3938 = vadd.f32 %v3937, %v3810
      %v3939 = vadd.f32 %v3938, %v3811
      %3940 = vadd.xlane.f32.xlu0 %v3939
      %v3941 = vpop.xlane.xlu0 %3940
      %v3942 = vadd.f32 %v3812, %v3813
      %v3943 = vadd.f32 %v3942, %v3814
      %v3944 = vadd.f32 %v3943, %v3815
      %3945 = vadd.xlane.f32.xlu0 %v3944
      %v3946 = vpop.xlane.xlu0 %3945
      %v3947 = vadd.f32 %v3816, %v3817
      %v3948 = vadd.f32 %v3947, %v3818
      %v3949 = vadd.f32 %v3948, %v3819
      %3950 = vadd.xlane.f32.xlu0 %v3949
      %v3951 = vpop.xlane.xlu0 %3950
      %v3952 = vadd.f32 %v3820, %v3821
      %v3953 = vadd.f32 %v3952, %v3822
      %v3954 = vadd.f32 %v3953, %v3823
      %3955 = vadd.xlane.f32.xlu0 %v3954
      %v3956 = vpop.xlane.xlu0 %3955
      %v3957 = vadd.f32 %v3824, %v3825
      %v3958 = vadd.f32 %v3957, %v3826
      %v3959 = vadd.f32 %v3958, %v3827
      %3960 = vadd.xlane.f32.xlu0 %v3959
      %v3961 = vpop.xlane.xlu0 %3960
      %v3962 = vadd.f32 %v3828, %v3829
      %v3963 = vadd.f32 %v3962, %v3830
      %v3964 = vadd.f32 %v3963, %v3831
      %3965 = vadd.xlane.f32.xlu0 %v3964
      %v3966 = vpop.xlane.xlu0 %3965
      %v3967 = vadd.f32 %v3832, %v3833
      %v3968 = vadd.f32 %v3967, %v3834
      %v3969 = vadd.f32 %v3968, %v3835
      %3970 = vadd.xlane.f32.xlu0 %v3969
      %v3971 = vpop.xlane.xlu0 %3970
      %v3972 = vadd.f32 %v3836, %v3837
      %v3973 = vadd.f32 %v3972, %v3838
      %v3974 = vadd.f32 %v3973, %v3839
      %3975 = vadd.xlane.f32.xlu0 %v3974
      %v3976 = vpop.xlane.xlu0 %3975
      %v3977 = vadd.f32 %v3840, %v3841
      %v3978 = vadd.f32 %v3977, %v3842
      %v3979 = vadd.f32 %v3978, %v3843
      %3980 = vadd.xlane.f32.xlu0 %v3979
      %v3981 = vpop.xlane.xlu0 %3980
      %v3982 = vadd.f32 %v3844, %v3845
      %v3983 = vadd.f32 %v3982, %v3846
      %v3984 = vadd.f32 %v3983, %v3847
      %3985 = vadd.xlane.f32.xlu0 %v3984
      %v3986 = vpop.xlane.xlu0 %3985
      %v3987 = vadd.f32 %v3848, %v3849
      %v3988 = vadd.f32 %v3987, %v3850
      %v3989 = vadd.f32 %v3988, %v3851
      %3990 = vadd.xlane.f32.xlu0 %v3989
      %v3991 = vpop.xlane.xlu0 %3990
      %v3992 = vadd.f32 %v3852, %v3853
      %v3993 = vadd.f32 %v3992, %v3854
      %v3994 = vadd.f32 %v3993, %v3855
      %3995 = vadd.xlane.f32.xlu0 %v3994
      %v3996 = vpop.xlane.xlu0 %3995
      %v3997 = vadd.f32 %v3856, %v3857
      %v3998 = vadd.f32 %v3997, %v3858
      %v3999 = vadd.f32 %v3998, %v3859
      %4000 = vadd.xlane.f32.xlu0 %v3999
      %v4001 = vpop.xlane.xlu0 %4000
      %v4002 = vadd.f32 %v3860, %v3861
      %v4003 = vadd.f32 %v4002, %v3862
      %v4004 = vadd.f32 %v4003, %v3863
      %4005 = vadd.xlane.f32.xlu0 %v4004
      %v4006 = vpop.xlane.xlu0 %4005
      %v4007 = vadd.f32 %v3864, %v3865
      %v4008 = vadd.f32 %v4007, %v3866
      %v4009 = vadd.f32 %v4008, %v3867
      %4010 = vadd.xlane.f32.xlu0 %v4009
      %v4011 = vpop.xlane.xlu0 %4010
      %v4012 = vadd.f32 %v3868, %v3869
      %v4013 = vadd.f32 %v4012, %v3870
      %v4014 = vadd.f32 %v4013, %v3871
      %4015 = vadd.xlane.f32.xlu0 %v4014
      %v4016 = vpop.xlane.xlu0 %4015
      %v4017 = vadd.f32 %v3872, %v3873
      %v4018 = vadd.f32 %v4017, %v3874
      %v4019 = vadd.f32 %v4018, %v3875
      %4020 = vadd.xlane.f32.xlu0 %v4019
      %v4021 = vpop.xlane.xlu0 %4020
      %v4022 = vadd.f32 %v3876, %v3877
      %v4023 = vadd.f32 %v4022, %v3878
      %v4024 = vadd.f32 %v4023, %v3879
      %4025 = vadd.xlane.f32.xlu0 %v4024
      %v4026 = vpop.xlane.xlu0 %4025
      %v4027 = vadd.f32 %v3880, %v3881
      %v4028 = vadd.f32 %v4027, %v3882
      %v4029 = vadd.f32 %v4028, %v3883
      %4030 = vadd.xlane.f32.xlu0 %v4029
      %v4031 = vpop.xlane.xlu0 %4030
      %v4032 = vadd.f32 %v3884, %v3885
      %v4033 = vadd.f32 %v4032, %v3886
      %v4034 = vadd.f32 %v4033, %v3887
      %4035 = vadd.xlane.f32.xlu0 %v4034
      %v4036 = vpop.xlane.xlu0 %4035
      %v4037 = vadd.f32 %v3888, %v3889
      %v4038 = vadd.f32 %v4037, %v3890
      %v4039 = vadd.f32 %v4038, %v3891
      %4040 = vadd.xlane.f32.xlu0 %v4039
      %v4041 = vpop.xlane.xlu0 %4040
      %v4042 = vadd.f32 %v3892, %v3893
      %v4043 = vadd.f32 %v4042, %v3894
      %v4044 = vadd.f32 %v4043, %v3895
      %4045 = vadd.xlane.f32.xlu0 %v4044
      %v4046 = vpop.xlane.xlu0 %4045
      %v4047 = vadd.f32 %v3896, %v3897
      %v4048 = vadd.f32 %v4047, %v3898
      %v4049 = vadd.f32 %v4048, %v3899
      %4050 = vadd.xlane.f32.xlu0 %v4049
      %v4051 = vpop.xlane.xlu0 %4050
      %v4052 = vadd.f32 %v3900, %v3901
      %v4053 = vadd.f32 %v4052, %v3902
      %v4054 = vadd.f32 %v4053, %v3903
      %4055 = vadd.xlane.f32.xlu0 %v4054
      %v4056 = vpop.xlane.xlu0 %4055
      %v4057 = vadd.f32 %v3904, %v3905
      %v4058 = vadd.f32 %v4057, %v3906
      %v4059 = vadd.f32 %v4058, %v3907
      %4060 = vadd.xlane.f32.xlu0 %v4059
      %v4061 = vpop.xlane.xlu0 %4060
      %v4062 = vadd.f32 %v3908, %v3909
      %v4063 = vadd.f32 %v4062, %v3910
      %v4064 = vadd.f32 %v4063, %v3911
      %4065 = vadd.xlane.f32.xlu0 %v4064
      %v4066 = vpop.xlane.xlu0 %4065
      %v4067 = vadd.f32 %v3912, %v3913
      %v4068 = vadd.f32 %v4067, %v3914
      %v4069 = vadd.f32 %v4068, %v3915
      %4070 = vadd.xlane.f32.xlu0 %v4069
      %v4071 = vpop.xlane.xlu0 %4070
      %v4072 = vadd.f32 %v3916, %v3917
      %v4073 = vadd.f32 %v4072, %v3918
      %v4074 = vadd.f32 %v4073, %v3919
      %4075 = vadd.xlane.f32.xlu0 %v4074
      %v4076 = vpop.xlane.xlu0 %4075
      %v4077 = vadd.f32 %v3920, %v3921
      %v4078 = vadd.f32 %v4077, %v3922
      %v4079 = vadd.f32 %v4078, %v3923
      %4080 = vadd.xlane.f32.xlu0 %v4079
      %v4081 = vpop.xlane.xlu0 %4080
      %v4082 = vadd.f32 %v3924, %v3925
      %v4083 = vadd.f32 %v4082, %v3926
      %v4084 = vadd.f32 %v4083, %v3927
      %4085 = vadd.xlane.f32.xlu0 %v4084
      %v4086 = vpop.xlane.xlu0 %4085
      %v4087 = vadd.f32 %v3928, %v3929
      %v4088 = vadd.f32 %v4087, %v3930
      %v4089 = vadd.f32 %v4088, %v3931
      %4090 = vadd.xlane.f32.xlu0 %v4089
      %v4091 = vpop.xlane.xlu0 %4090
      %v4092 = vmul.f32 %v3648, 0.001953125
      %v4093 = vmul.f32 %v3653, 0.001953125
      %v4094 = vmul.f32 %v3658, 0.001953125
      %v4095 = vmul.f32 %v3663, 0.001953125
      %v4096 = vmul.f32 %v3668, 0.001953125
      %v4097 = vmul.f32 %v3673, 0.001953125
      %v4098 = vmul.f32 %v3678, 0.001953125
      %v4099 = vmul.f32 %v3683, 0.001953125
      %v4100 = vmul.f32 %v3688, 0.001953125
      %v4101 = vmul.f32 %v3693, 0.001953125
      %v4102 = vmul.f32 %v3698, 0.001953125
      %v4103 = vmul.f32 %v3703, 0.001953125
      %v4104 = vmul.f32 %v3708, 0.001953125
      %v4105 = vmul.f32 %v3713, 0.001953125
      %v4106 = vmul.f32 %v3718, 0.001953125
      %v4107 = vmul.f32 %v3723, 0.001953125
      %v4108 = vmul.f32 %v3728, 0.001953125
      %v4109 = vmul.f32 %v3733, 0.001953125
      %v4110 = vmul.f32 %v3738, 0.001953125
      %v4111 = vmul.f32 %v3743, 0.001953125
      %v4112 = vmul.f32 %v3748, 0.001953125
      %v4113 = vmul.f32 %v3753, 0.001953125
      %v4114 = vmul.f32 %v3758, 0.001953125
      %v4115 = vmul.f32 %v3763, 0.001953125
      %v4116 = vmul.f32 %v3768, 0.001953125
      %v4117 = vmul.f32 %v3773, 0.001953125
      %v4118 = vmul.f32 %v3778, 0.001953125
      %v4119 = vmul.f32 %v3783, 0.001953125
      %v4120 = vmul.f32 %v3788, 0.001953125
      %v4121 = vmul.f32 %v3793, 0.001953125
      %v4122 = vmul.f32 %v3798, 0.001953125
      %v4123 = vmul.f32 %v3803, 0.001953125
      %v4124 = vmul.f32 %v3936, 0.001953125
      %v4125 = vmul.f32 %v3941, 0.001953125
      %v4126 = vmul.f32 %v3946, 0.001953125
      %v4127 = vmul.f32 %v3951, 0.001953125
      %v4128 = vmul.f32 %v3956, 0.001953125
      %v4129 = vmul.f32 %v3961, 0.001953125
      %v4130 = vmul.f32 %v3966, 0.001953125
      %v4131 = vmul.f32 %v3971, 0.001953125
      %v4132 = vmul.f32 %v3976, 0.001953125
      %v4133 = vmul.f32 %v3981, 0.001953125
      %v4134 = vmul.f32 %v3986, 0.001953125
      %v4135 = vmul.f32 %v3991, 0.001953125
      %v4136 = vmul.f32 %v3996, 0.001953125
      %v4137 = vmul.f32 %v4001, 0.001953125
      %v4138 = vmul.f32 %v4006, 0.001953125
      %v4139 = vmul.f32 %v4011, 0.001953125
      %v4140 = vmul.f32 %v4016, 0.001953125
      %v4141 = vmul.f32 %v4021, 0.001953125
      %v4142 = vmul.f32 %v4026, 0.001953125
      %v4143 = vmul.f32 %v4031, 0.001953125
      %v4144 = vmul.f32 %v4036, 0.001953125
      %v4145 = vmul.f32 %v4041, 0.001953125
      %v4146 = vmul.f32 %v4046, 0.001953125
      %v4147 = vmul.f32 %v4051, 0.001953125
      %v4148 = vmul.f32 %v4056, 0.001953125
      %v4149 = vmul.f32 %v4061, 0.001953125
      %v4150 = vmul.f32 %v4066, 0.001953125
      %v4151 = vmul.f32 %v4071, 0.001953125
      %v4152 = vmul.f32 %v4076, 0.001953125
      %v4153 = vmul.f32 %v4081, 0.001953125
      %v4154 = vmul.f32 %v4086, 0.001953125
      %v4155 = vmul.f32 %v4091, 0.001953125
      %v4156 = vmul.f32 %v4092, %v4092
      %v4157 = vmul.f32 %v4093, %v4093
      %v4158 = vmul.f32 %v4094, %v4094
      %v4159 = vmul.f32 %v4095, %v4095
      %v4160 = vmul.f32 %v4096, %v4096
      %v4161 = vmul.f32 %v4097, %v4097
      %v4162 = vmul.f32 %v4098, %v4098
      %v4163 = vmul.f32 %v4099, %v4099
      %v4164 = vmul.f32 %v4100, %v4100
      %v4165 = vmul.f32 %v4101, %v4101
      %v4166 = vmul.f32 %v4102, %v4102
      %v4167 = vmul.f32 %v4103, %v4103
      %v4168 = vmul.f32 %v4104, %v4104
      %v4169 = vmul.f32 %v4105, %v4105
      %v4170 = vmul.f32 %v4106, %v4106
      %v4171 = vmul.f32 %v4107, %v4107
      %v4172 = vmul.f32 %v4108, %v4108
      %v4173 = vmul.f32 %v4109, %v4109
      %v4174 = vmul.f32 %v4110, %v4110
      %v4175 = vmul.f32 %v4111, %v4111
      %v4176 = vmul.f32 %v4112, %v4112
      %v4177 = vmul.f32 %v4113, %v4113
      %v4178 = vmul.f32 %v4114, %v4114
      %v4179 = vmul.f32 %v4115, %v4115
      %v4180 = vmul.f32 %v4116, %v4116
      %v4181 = vmul.f32 %v4117, %v4117
      %v4182 = vmul.f32 %v4118, %v4118
      %v4183 = vmul.f32 %v4119, %v4119
      %v4184 = vmul.f32 %v4120, %v4120
      %v4185 = vmul.f32 %v4121, %v4121
      %v4186 = vmul.f32 %v4122, %v4122
      %v4187 = vmul.f32 %v4123, %v4123
      %v4188 = vsub.f32 %v4124, %v4156
      %v4189 = vsub.f32 %v4125, %v4157
      %v4190 = vsub.f32 %v4126, %v4158
      %v4191 = vsub.f32 %v4127, %v4159
      %v4192 = vsub.f32 %v4128, %v4160
      %v4193 = vsub.f32 %v4129, %v4161
      %v4194 = vsub.f32 %v4130, %v4162
      %v4195 = vsub.f32 %v4131, %v4163
      %v4196 = vsub.f32 %v4132, %v4164
      %v4197 = vsub.f32 %v4133, %v4165
      %v4198 = vsub.f32 %v4134, %v4166
      %v4199 = vsub.f32 %v4135, %v4167
      %v4200 = vsub.f32 %v4136, %v4168
      %v4201 = vsub.f32 %v4137, %v4169
      %v4202 = vsub.f32 %v4138, %v4170
      %v4203 = vsub.f32 %v4139, %v4171
      %v4204 = vsub.f32 %v4140, %v4172
      %v4205 = vsub.f32 %v4141, %v4173
      %v4206 = vsub.f32 %v4142, %v4174
      %v4207 = vsub.f32 %v4143, %v4175
      %v4208 = vsub.f32 %v4144, %v4176
      %v4209 = vsub.f32 %v4145, %v4177
      %v4210 = vsub.f32 %v4146, %v4178
      %v4211 = vsub.f32 %v4147, %v4179
      %v4212 = vsub.f32 %v4148, %v4180
      %v4213 = vsub.f32 %v4149, %v4181
      %v4214 = vsub.f32 %v4150, %v4182
      %v4215 = vsub.f32 %v4151, %v4183
      %v4216 = vsub.f32 %v4152, %v4184
      %v4217 = vsub.f32 %v4153, %v4185
      %v4218 = vsub.f32 %v4154, %v4186
      %v4219 = vsub.f32 %v4155, %v4187
      %v4220 = vsub.f32 %v3516, %v4092
      %v4221 = vsub.f32 %v3517, %v4092
      %v4222 = vsub.f32 %v3518, %v4092
      %v4223 = vsub.f32 %v3519, %v4092
      %v4224 = vsub.f32 %v3520, %v4093
      %v4225 = vsub.f32 %v3521, %v4093
      %v4226 = vsub.f32 %v3522, %v4093
      %v4227 = vsub.f32 %v3523, %v4093
      %v4228 = vsub.f32 %v3524, %v4094
      %v4229 = vsub.f32 %v3525, %v4094
      %v4230 = vsub.f32 %v3526, %v4094
      %v4231 = vsub.f32 %v3527, %v4094
      %v4232 = vsub.f32 %v3528, %v4095
      %v4233 = vsub.f32 %v3529, %v4095
      %v4234 = vsub.f32 %v3530, %v4095
      %v4235 = vsub.f32 %v3531, %v4095
      %v4236 = vsub.f32 %v3532, %v4096
      %v4237 = vsub.f32 %v3533, %v4096
      %v4238 = vsub.f32 %v3534, %v4096
      %v4239 = vsub.f32 %v3535, %v4096
      %v4240 = vsub.f32 %v3536, %v4097
      %v4241 = vsub.f32 %v3537, %v4097
      %v4242 = vsub.f32 %v3538, %v4097
      %v4243 = vsub.f32 %v3539, %v4097
      %v4244 = vsub.f32 %v3540, %v4098
      %v4245 = vsub.f32 %v3541, %v4098
      %v4246 = vsub.f32 %v3542, %v4098
      %v4247 = vsub.f32 %v3543, %v4098
      %v4248 = vsub.f32 %v3544, %v4099
      %v4249 = vsub.f32 %v3545, %v4099
      %v4250 = vsub.f32 %v3546, %v4099
      %v4251 = vsub.f32 %v3547, %v4099
      %v4252 = vsub.f32 %v3548, %v4100
      %v4253 = vsub.f32 %v3549, %v4100
      %v4254 = vsub.f32 %v3550, %v4100
      %v4255 = vsub.f32 %v3551, %v4100
      %v4256 = vsub.f32 %v3552, %v4101
      %v4257 = vsub.f32 %v3553, %v4101
      %v4258 = vsub.f32 %v3554, %v4101
      %v4259 = vsub.f32 %v3555, %v4101
      %v4260 = vsub.f32 %v3556, %v4102
      %v4261 = vsub.f32 %v3557, %v4102
      %v4262 = vsub.f32 %v3558, %v4102
      %v4263 = vsub.f32 %v3559, %v4102
      %v4264 = vsub.f32 %v3560, %v4103
      %v4265 = vsub.f32 %v3561, %v4103
      %v4266 = vsub.f32 %v3562, %v4103
      %v4267 = vsub.f32 %v3563, %v4103
      %v4268 = vsub.f32 %v3564, %v4104
      %v4269 = vsub.f32 %v3565, %v4104
      %v4270 = vsub.f32 %v3566, %v4104
      %v4271 = vsub.f32 %v3567, %v4104
      %v4272 = vsub.f32 %v3568, %v4105
      %v4273 = vsub.f32 %v3569, %v4105
      %v4274 = vsub.f32 %v3570, %v4105
      %v4275 = vsub.f32 %v3571, %v4105
      %v4276 = vsub.f32 %v3572, %v4106
      %v4277 = vsub.f32 %v3573, %v4106
      %v4278 = vsub.f32 %v3574, %v4106
      %v4279 = vsub.f32 %v3575, %v4106
      %v4280 = vsub.f32 %v3576, %v4107
      %v4281 = vsub.f32 %v3577, %v4107
      %v4282 = vsub.f32 %v3578, %v4107
      %v4283 = vsub.f32 %v3579, %v4107
      %v4284 = vsub.f32 %v3580, %v4108
      %v4285 = vsub.f32 %v3581, %v4108
      %v4286 = vsub.f32 %v3582, %v4108
      %v4287 = vsub.f32 %v3583, %v4108
      %v4288 = vsub.f32 %v3584, %v4109
      %v4289 = vsub.f32 %v3585, %v4109
      %v4290 = vsub.f32 %v3586, %v4109
      %v4291 = vsub.f32 %v3587, %v4109
      %v4292 = vsub.f32 %v3588, %v4110
      %v4293 = vsub.f32 %v3589, %v4110
      %v4294 = vsub.f32 %v3590, %v4110
      %v4295 = vsub.f32 %v3591, %v4110
      %v4296 = vsub.f32 %v3592, %v4111
      %v4297 = vsub.f32 %v3593, %v4111
      %v4298 = vsub.f32 %v3594, %v4111
      %v4299 = vsub.f32 %v3595, %v4111
      %v4300 = vsub.f32 %v3596, %v4112
      %v4301 = vsub.f32 %v3597, %v4112
      %v4302 = vsub.f32 %v3598, %v4112
      %v4303 = vsub.f32 %v3599, %v4112
      %v4304 = vsub.f32 %v3600, %v4113
      %v4305 = vsub.f32 %v3601, %v4113
      %v4306 = vsub.f32 %v3602, %v4113
      %v4307 = vsub.f32 %v3603, %v4113
      %v4308 = vsub.f32 %v3604, %v4114
      %v4309 = vsub.f32 %v3605, %v4114
      %v4310 = vsub.f32 %v3606, %v4114
      %v4311 = vsub.f32 %v3607, %v4114
      %v4312 = vsub.f32 %v3608, %v4115
      %v4313 = vsub.f32 %v3609, %v4115
      %v4314 = vsub.f32 %v3610, %v4115
      %v4315 = vsub.f32 %v3611, %v4115
      %v4316 = vsub.f32 %v3612, %v4116
      %v4317 = vsub.f32 %v3613, %v4116
      %v4318 = vsub.f32 %v3614, %v4116
      %v4319 = vsub.f32 %v3615, %v4116
      %v4320 = vsub.f32 %v3616, %v4117
      %v4321 = vsub.f32 %v3617, %v4117
      %v4322 = vsub.f32 %v3618, %v4117
      %v4323 = vsub.f32 %v3619, %v4117
      %v4324 = vsub.f32 %v3620, %v4118
      %v4325 = vsub.f32 %v3621, %v4118
      %v4326 = vsub.f32 %v3622, %v4118
      %v4327 = vsub.f32 %v3623, %v4118
      %v4328 = vsub.f32 %v3624, %v4119
      %v4329 = vsub.f32 %v3625, %v4119
      %v4330 = vsub.f32 %v3626, %v4119
      %v4331 = vsub.f32 %v3627, %v4119
      %v4332 = vsub.f32 %v3628, %v4120
      %v4333 = vsub.f32 %v3629, %v4120
      %v4334 = vsub.f32 %v3630, %v4120
      %v4335 = vsub.f32 %v3631, %v4120
      %v4336 = vsub.f32 %v3632, %v4121
      %v4337 = vsub.f32 %v3633, %v4121
      %v4338 = vsub.f32 %v3634, %v4121
      %v4339 = vsub.f32 %v3635, %v4121
      %v4340 = vsub.f32 %v3636, %v4122
      %v4341 = vsub.f32 %v3637, %v4122
      %v4342 = vsub.f32 %v3638, %v4122
      %v4343 = vsub.f32 %v3639, %v4122
      %v4344 = vsub.f32 %v3640, %v4123
      %v4345 = vsub.f32 %v3641, %v4123
      %v4346 = vsub.f32 %v3642, %v4123
      %v4347 = vsub.f32 %v3643, %v4123
      %v4348 = vadd.f32 %v4188, 1e-05
      %v4349 = vadd.f32 %v4189, 1e-05
      %v4350 = vadd.f32 %v4190, 1e-05
      %v4351 = vadd.f32 %v4191, 1e-05
      %v4352 = vadd.f32 %v4192, 1e-05
      %v4353 = vadd.f32 %v4193, 1e-05
      %v4354 = vadd.f32 %v4194, 1e-05
      %v4355 = vadd.f32 %v4195, 1e-05
      %v4356 = vadd.f32 %v4196, 1e-05
      %v4357 = vadd.f32 %v4197, 1e-05
      %v4358 = vadd.f32 %v4198, 1e-05
      %v4359 = vadd.f32 %v4199, 1e-05
      %v4360 = vadd.f32 %v4200, 1e-05
      %v4361 = vadd.f32 %v4201, 1e-05
      %v4362 = vadd.f32 %v4202, 1e-05
      %v4363 = vadd.f32 %v4203, 1e-05
      %v4364 = vadd.f32 %v4204, 1e-05
      %v4365 = vadd.f32 %v4205, 1e-05
      %v4366 = vadd.f32 %v4206, 1e-05
      %v4367 = vadd.f32 %v4207, 1e-05
      %v4368 = vadd.f32 %v4208, 1e-05
      %v4369 = vadd.f32 %v4209, 1e-05
      %v4370 = vadd.f32 %v4210, 1e-05
      %v4371 = vadd.f32 %v4211, 1e-05
      %v4372 = vadd.f32 %v4212, 1e-05
      %v4373 = vadd.f32 %v4213, 1e-05
      %v4374 = vadd.f32 %v4214, 1e-05
      %v4375 = vadd.f32 %v4215, 1e-05
      %v4376 = vadd.f32 %v4216, 1e-05
      %v4377 = vadd.f32 %v4217, 1e-05
      %v4378 = vadd.f32 %v4218, 1e-05
      %v4379 = vadd.f32 %v4219, 1e-05
      %v4380 = vrsqrt.pop %v4348
      %v4381 = vrsqrt.pop %v4349
      %v4382 = vrsqrt.pop %v4350
      %v4383 = vrsqrt.pop %v4351
      %v4384 = vrsqrt.pop %v4352
      %v4385 = vrsqrt.pop %v4353
      %v4386 = vrsqrt.pop %v4354
      %v4387 = vrsqrt.pop %v4355
      %v4388 = vrsqrt.pop %v4356
      %v4389 = vrsqrt.pop %v4357
      %v4390 = vrsqrt.pop %v4358
      %v4391 = vrsqrt.pop %v4359
      %v4392 = vrsqrt.pop %v4360
      %v4393 = vrsqrt.pop %v4361
      %v4394 = vrsqrt.pop %v4362
      %v4395 = vrsqrt.pop %v4363
      %v4396 = vrsqrt.pop %v4364
      %v4397 = vrsqrt.pop %v4365
      %v4398 = vrsqrt.pop %v4366
      %v4399 = vrsqrt.pop %v4367
      %v4400 = vrsqrt.pop %v4368
      %v4401 = vrsqrt.pop %v4369
      %v4402 = vrsqrt.pop %v4370
      %v4403 = vrsqrt.pop %v4371
      %v4404 = vrsqrt.pop %v4372
      %v4405 = vrsqrt.pop %v4373
      %v4406 = vrsqrt.pop %v4374
      %v4407 = vrsqrt.pop %v4375
      %v4408 = vrsqrt.pop %v4376
      %v4409 = vrsqrt.pop %v4377
      %v4410 = vrsqrt.pop %v4378
      %v4411 = vrsqrt.pop %v4379
      %v4412 = vmul.f32 %v4220, %v4380
      %v4413 = vmul.f32 %v4221, %v4380
      %v4414 = vmul.f32 %v4222, %v4380
      %v4415 = vmul.f32 %v4223, %v4380
      %v4416 = vmul.f32 %v4224, %v4381
      %v4417 = vmul.f32 %v4225, %v4381
      %v4418 = vmul.f32 %v4226, %v4381
      %v4419 = vmul.f32 %v4227, %v4381
      %v4420 = vmul.f32 %v4228, %v4382
      %v4421 = vmul.f32 %v4229, %v4382
      %v4422 = vmul.f32 %v4230, %v4382
      %v4423 = vmul.f32 %v4231, %v4382
      %v4424 = vmul.f32 %v4232, %v4383
      %v4425 = vmul.f32 %v4233, %v4383
      %v4426 = vmul.f32 %v4234, %v4383
      %v4427 = vmul.f32 %v4235, %v4383
      %v4428 = vmul.f32 %v4236, %v4384
      %v4429 = vmul.f32 %v4237, %v4384
      %v4430 = vmul.f32 %v4238, %v4384
      %v4431 = vmul.f32 %v4239, %v4384
      %v4432 = vmul.f32 %v4240, %v4385
      %v4433 = vmul.f32 %v4241, %v4385
      %v4434 = vmul.f32 %v4242, %v4385
      %v4435 = vmul.f32 %v4243, %v4385
      %v4436 = vmul.f32 %v4244, %v4386
      %v4437 = vmul.f32 %v4245, %v4386
      %v4438 = vmul.f32 %v4246, %v4386
      %v4439 = vmul.f32 %v4247, %v4386
      %v4440 = vmul.f32 %v4248, %v4387
      %v4441 = vmul.f32 %v4249, %v4387
      %v4442 = vmul.f32 %v4250, %v4387
      %v4443 = vmul.f32 %v4251, %v4387
      %v4444 = vmul.f32 %v4252, %v4388
      %v4445 = vmul.f32 %v4253, %v4388
      %v4446 = vmul.f32 %v4254, %v4388
      %v4447 = vmul.f32 %v4255, %v4388
      %v4448 = vmul.f32 %v4256, %v4389
      %v4449 = vmul.f32 %v4257, %v4389
      %v4450 = vmul.f32 %v4258, %v4389
      %v4451 = vmul.f32 %v4259, %v4389
      %v4452 = vmul.f32 %v4260, %v4390
      %v4453 = vmul.f32 %v4261, %v4390
      %v4454 = vmul.f32 %v4262, %v4390
      %v4455 = vmul.f32 %v4263, %v4390
      %v4456 = vmul.f32 %v4264, %v4391
      %v4457 = vmul.f32 %v4265, %v4391
      %v4458 = vmul.f32 %v4266, %v4391
      %v4459 = vmul.f32 %v4267, %v4391
      %v4460 = vmul.f32 %v4268, %v4392
      %v4461 = vmul.f32 %v4269, %v4392
      %v4462 = vmul.f32 %v4270, %v4392
      %v4463 = vmul.f32 %v4271, %v4392
      %v4464 = vmul.f32 %v4272, %v4393
      %v4465 = vmul.f32 %v4273, %v4393
      %v4466 = vmul.f32 %v4274, %v4393
      %v4467 = vmul.f32 %v4275, %v4393
      %v4468 = vmul.f32 %v4276, %v4394
      %v4469 = vmul.f32 %v4277, %v4394
      %v4470 = vmul.f32 %v4278, %v4394
      %v4471 = vmul.f32 %v4279, %v4394
      %v4472 = vmul.f32 %v4280, %v4395
      %v4473 = vmul.f32 %v4281, %v4395
      %v4474 = vmul.f32 %v4282, %v4395
      %v4475 = vmul.f32 %v4283, %v4395
      %v4476 = vmul.f32 %v4284, %v4396
      %v4477 = vmul.f32 %v4285, %v4396
      %v4478 = vmul.f32 %v4286, %v4396
      %v4479 = vmul.f32 %v4287, %v4396
      %v4480 = vmul.f32 %v4288, %v4397
      %v4481 = vmul.f32 %v4289, %v4397
      %v4482 = vmul.f32 %v4290, %v4397
      %v4483 = vmul.f32 %v4291, %v4397
      %v4484 = vmul.f32 %v4292, %v4398
      %v4485 = vmul.f32 %v4293, %v4398
      %v4486 = vmul.f32 %v4294, %v4398
      %v4487 = vmul.f32 %v4295, %v4398
      %v4488 = vmul.f32 %v4296, %v4399
      %v4489 = vmul.f32 %v4297, %v4399
      %v4490 = vmul.f32 %v4298, %v4399
      %v4491 = vmul.f32 %v4299, %v4399
      %v4492 = vmul.f32 %v4300, %v4400
      %v4493 = vmul.f32 %v4301, %v4400
      %v4494 = vmul.f32 %v4302, %v4400
      %v4495 = vmul.f32 %v4303, %v4400
      %v4496 = vmul.f32 %v4304, %v4401
      %v4497 = vmul.f32 %v4305, %v4401
      %v4498 = vmul.f32 %v4306, %v4401
      %v4499 = vmul.f32 %v4307, %v4401
      %v4500 = vmul.f32 %v4308, %v4402
      %v4501 = vmul.f32 %v4309, %v4402
      %v4502 = vmul.f32 %v4310, %v4402
      %v4503 = vmul.f32 %v4311, %v4402
      %v4504 = vmul.f32 %v4312, %v4403
      %v4505 = vmul.f32 %v4313, %v4403
      %v4506 = vmul.f32 %v4314, %v4403
      %v4507 = vmul.f32 %v4315, %v4403
      %v4508 = vmul.f32 %v4316, %v4404
      %v4509 = vmul.f32 %v4317, %v4404
      %v4510 = vmul.f32 %v4318, %v4404
      %v4511 = vmul.f32 %v4319, %v4404
      %v4512 = vmul.f32 %v4320, %v4405
      %v4513 = vmul.f32 %v4321, %v4405
      %v4514 = vmul.f32 %v4322, %v4405
      %v4515 = vmul.f32 %v4323, %v4405
      %v4516 = vmul.f32 %v4324, %v4406
      %v4517 = vmul.f32 %v4325, %v4406
      %v4518 = vmul.f32 %v4326, %v4406
      %v4519 = vmul.f32 %v4327, %v4406
      %v4520 = vmul.f32 %v4328, %v4407
      %v4521 = vmul.f32 %v4329, %v4407
      %v4522 = vmul.f32 %v4330, %v4407
      %v4523 = vmul.f32 %v4331, %v4407
      %v4524 = vmul.f32 %v4332, %v4408
      %v4525 = vmul.f32 %v4333, %v4408
      %v4526 = vmul.f32 %v4334, %v4408
      %v4527 = vmul.f32 %v4335, %v4408
      %v4528 = vmul.f32 %v4336, %v4409
      %v4529 = vmul.f32 %v4337, %v4409
      %v4530 = vmul.f32 %v4338, %v4409
      %v4531 = vmul.f32 %v4339, %v4409
      %v4532 = vmul.f32 %v4340, %v4410
      %v4533 = vmul.f32 %v4341, %v4410
      %v4534 = vmul.f32 %v4342, %v4410
      %v4535 = vmul.f32 %v4343, %v4410
      %v4536 = vmul.f32 %v4344, %v4411
      %v4537 = vmul.f32 %v4345, %v4411
      %v4538 = vmul.f32 %v4346, %v4411
      %v4539 = vmul.f32 %v4347, %v4411
      %v4540 = vpack.c.bf16 %v4416, %v4412
      %v4541 = vpack.c.bf16 %v4417, %v4413
      %v4542 = vpack.c.bf16 %v4418, %v4414
      %v4543 = vpack.c.bf16 %v4419, %v4415
      %v4544 = vpack.c.bf16 %v4424, %v4420
      %v4545 = vpack.c.bf16 %v4425, %v4421
      %v4546 = vpack.c.bf16 %v4426, %v4422
      %v4547 = vpack.c.bf16 %v4427, %v4423
      %v4548 = vpack.c.bf16 %v4432, %v4428
      %v4549 = vpack.c.bf16 %v4433, %v4429
      %v4550 = vpack.c.bf16 %v4434, %v4430
      %v4551 = vpack.c.bf16 %v4435, %v4431
      %v4552 = vpack.c.bf16 %v4440, %v4436
      %v4553 = vpack.c.bf16 %v4441, %v4437
      %v4554 = vpack.c.bf16 %v4442, %v4438
      %v4555 = vpack.c.bf16 %v4443, %v4439
      %v4556 = vpack.c.bf16 %v4448, %v4444
      %v4557 = vpack.c.bf16 %v4449, %v4445
      %v4558 = vpack.c.bf16 %v4450, %v4446
      %v4559 = vpack.c.bf16 %v4451, %v4447
      %v4560 = vpack.c.bf16 %v4456, %v4452
      %v4561 = vpack.c.bf16 %v4457, %v4453
      %v4562 = vpack.c.bf16 %v4458, %v4454
      %v4563 = vpack.c.bf16 %v4459, %v4455
      %v4564 = vpack.c.bf16 %v4464, %v4460
      %v4565 = vpack.c.bf16 %v4465, %v4461
      %v4566 = vpack.c.bf16 %v4466, %v4462
      %v4567 = vpack.c.bf16 %v4467, %v4463
      %v4568 = vpack.c.bf16 %v4472, %v4468
      %v4569 = vpack.c.bf16 %v4473, %v4469
      %v4570 = vpack.c.bf16 %v4474, %v4470
      %v4571 = vpack.c.bf16 %v4475, %v4471
      %v4572 = vpack.c.bf16 %v4480, %v4476
      %v4573 = vpack.c.bf16 %v4481, %v4477
      %v4574 = vpack.c.bf16 %v4482, %v4478
      %v4575 = vpack.c.bf16 %v4483, %v4479
      %v4576 = vpack.c.bf16 %v4488, %v4484
      %v4577 = vpack.c.bf16 %v4489, %v4485
      %v4578 = vpack.c.bf16 %v4490, %v4486
      %v4579 = vpack.c.bf16 %v4491, %v4487
      %v4580 = vpack.c.bf16 %v4496, %v4492
      %v4581 = vpack.c.bf16 %v4497, %v4493
      %v4582 = vpack.c.bf16 %v4498, %v4494
      %v4583 = vpack.c.bf16 %v4499, %v4495
      %v4584 = vpack.c.bf16 %v4504, %v4500
      %v4585 = vpack.c.bf16 %v4505, %v4501
      %v4586 = vpack.c.bf16 %v4506, %v4502
      %v4587 = vpack.c.bf16 %v4507, %v4503
      %v4588 = vpack.c.bf16 %v4512, %v4508
      %v4589 = vpack.c.bf16 %v4513, %v4509
      %v4590 = vpack.c.bf16 %v4514, %v4510
      %v4591 = vpack.c.bf16 %v4515, %v4511
      %v4592 = vpack.c.bf16 %v4520, %v4516
      %v4593 = vpack.c.bf16 %v4521, %v4517
      %v4594 = vpack.c.bf16 %v4522, %v4518
      %v4595 = vpack.c.bf16 %v4523, %v4519
      %v4596 = vpack.c.bf16 %v4528, %v4524
      %v4597 = vpack.c.bf16 %v4529, %v4525
      %v4598 = vpack.c.bf16 %v4530, %v4526
      %v4599 = vpack.c.bf16 %v4531, %v4527
      %v4600 = vpack.c.bf16 %v4536, %v4532
      %v4601 = vpack.c.bf16 %v4537, %v4533
      %v4602 = vpack.c.bf16 %v4538, %v4534
      %v4603 = vpack.c.bf16 %v4539, %v4535
      %v4604 = vld [vmem:[%s5] sm:$0xff]
      %v4605 = vld [vmem:[%s5 + $0x8] sm:$0xff]
      %v4606 = vld [vmem:[%s5 + $0x10] sm:$0xff]
      %v4607 = vld [vmem:[%s5 + $0x18] sm:$0xff]
      %v4608 = vld [vmem:[%s5 + $0x20] sm:$0xff]
      %v4609 = vld [vmem:[%s5 + $0x28] sm:$0xff]
      %v4610 = vld [vmem:[%s5 + $0x30] sm:$0xff]
      %v4611 = vld [vmem:[%s5 + $0x38] sm:$0xff]
      %v4612 = vld [vmem:[%s5 + $0x40] sm:$0xff]
      %v4613 = vld [vmem:[%s5 + $0x48] sm:$0xff]
      %v4614 = vld [vmem:[%s5 + $0x50] sm:$0xff]
      %v4615 = vld [vmem:[%s5 + $0x58] sm:$0xff]
      %v4616 = vld [vmem:[%s5 + $0x60] sm:$0xff]
      %v4617 = vld [vmem:[%s5 + $0x68] sm:$0xff]
      %v4618 = vld [vmem:[%s5 + $0x70] sm:$0xff]
      %v4619 = vld [vmem:[%s5 + $0x78] sm:$0xff]
      %v4620 = vld [vmem:[%s5 + $0x80] sm:$0xff]
      %v4621 = vld [vmem:[%s5 + $0x88] sm:$0xff]
      %v4622 = vld [vmem:[%s5 + $0x90] sm:$0xff]
      %v4623 = vld [vmem:[%s5 + $0x98] sm:$0xff]
      %v4624 = vld [vmem:[%s5 + $0xa0] sm:$0xff]
      %v4625 = vld [vmem:[%s5 + $0xa8] sm:$0xff]
      %v4626 = vld [vmem:[%s5 + $0xb0] sm:$0xff]
      %v4627 = vld [vmem:[%s5 + $0xb8] sm:$0xff]
      %v4628 = vld [vmem:[%s5 + $0xc0] sm:$0xff]
      %v4629 = vld [vmem:[%s5 + $0xc8] sm:$0xff]
      %v4630 = vld [vmem:[%s5 + $0xd0] sm:$0xff]
      %v4631 = vld [vmem:[%s5 + $0xd8] sm:$0xff]
      %v4632 = vld [vmem:[%s5 + $0xe0] sm:$0xff]
      %v4633 = vld [vmem:[%s5 + $0xe8] sm:$0xff]
      %v4634 = vld [vmem:[%s5 + $0xf0] sm:$0xff]
      %v4635 = vld [vmem:[%s5 + $0xf8] sm:$0xff]
      %v4636 = vld [vmem:[%s5 + $0x100] sm:$0xff]
      %v4637 = vld [vmem:[%s5 + $0x108] sm:$0xff]
      %v4638 = vld [vmem:[%s5 + $0x110] sm:$0xff]
      %v4639 = vld [vmem:[%s5 + $0x118] sm:$0xff]
      %v4640 = vld [vmem:[%s5 + $0x120] sm:$0xff]
      %v4641 = vld [vmem:[%s5 + $0x128] sm:$0xff]
      %v4642 = vld [vmem:[%s5 + $0x130] sm:$0xff]
      %v4643 = vld [vmem:[%s5 + $0x138] sm:$0xff]
      %v4644 = vld [vmem:[%s5 + $0x140] sm:$0xff]
      %v4645 = vld [vmem:[%s5 + $0x148] sm:$0xff]
      %v4646 = vld [vmem:[%s5 + $0x150] sm:$0xff]
      %v4647 = vld [vmem:[%s5 + $0x158] sm:$0xff]
      %v4648 = vld [vmem:[%s5 + $0x160] sm:$0xff]
      %v4649 = vld [vmem:[%s5 + $0x168] sm:$0xff]
      %v4650 = vld [vmem:[%s5 + $0x170] sm:$0xff]
      %v4651 = vld [vmem:[%s5 + $0x178] sm:$0xff]
      %v4652 = vld [vmem:[%s5 + $0x180] sm:$0xff]
      %v4653 = vld [vmem:[%s5 + $0x188] sm:$0xff]
      %v4654 = vld [vmem:[%s5 + $0x190] sm:$0xff]
      %v4655 = vld [vmem:[%s5 + $0x198] sm:$0xff]
      %v4656 = vld [vmem:[%s5 + $0x1a0] sm:$0xff]
      %v4657 = vld [vmem:[%s5 + $0x1a8] sm:$0xff]
      %v4658 = vld [vmem:[%s5 + $0x1b0] sm:$0xff]
      %v4659 = vld [vmem:[%s5 + $0x1b8] sm:$0xff]
      %v4660 = vld [vmem:[%s5 + $0x1c0] sm:$0xff]
      %v4661 = vld [vmem:[%s5 + $0x1c8] sm:$0xff]
      %v4662 = vld [vmem:[%s5 + $0x1d0] sm:$0xff]
      %v4663 = vld [vmem:[%s5 + $0x1d8] sm:$0xff]
      %v4664 = vld [vmem:[%s5 + $0x1e0] sm:$0xff]
      %v4665 = vld [vmem:[%s5 + $0x1e8] sm:$0xff]
      %v4666 = vld [vmem:[%s5 + $0x1f0] sm:$0xff]
      %v4667 = vld [vmem:[%s5 + $0x1f8] sm:$0xff]
      %v4668 = vld [vmem:[%s5 + $0x200] sm:$0xff]
      %v4669 = vld [vmem:[%s5 + $0x208] sm:$0xff]
      %v4670 = vld [vmem:[%s5 + $0x210] sm:$0xff]
      %v4671 = vld [vmem:[%s5 + $0x218] sm:$0xff]
      %v4672 = vld [vmem:[%s5 + $0x220] sm:$0xff]
      %v4673 = vld [vmem:[%s5 + $0x228] sm:$0xff]
      %v4674 = vld [vmem:[%s5 + $0x230] sm:$0xff]
      %v4675 = vld [vmem:[%s5 + $0x238] sm:$0xff]
      %v4676 = vld [vmem:[%s5 + $0x240] sm:$0xff]
      %v4677 = vld [vmem:[%s5 + $0x248] sm:$0xff]
      %v4678 = vld [vmem:[%s5 + $0x250] sm:$0xff]
      %v4679 = vld [vmem:[%s5 + $0x258] sm:$0xff]
      %v4680 = vld [vmem:[%s5 + $0x260] sm:$0xff]
      %v4681 = vld [vmem:[%s5 + $0x268] sm:$0xff]
      %v4682 = vld [vmem:[%s5 + $0x270] sm:$0xff]
      %v4683 = vld [vmem:[%s5 + $0x278] sm:$0xff]
      %v4684 = vld [vmem:[%s5 + $0x280] sm:$0xff]
      %v4685 = vld [vmem:[%s5 + $0x288] sm:$0xff]
      %v4686 = vld [vmem:[%s5 + $0x290] sm:$0xff]
      %v4687 = vld [vmem:[%s5 + $0x298] sm:$0xff]
      %v4688 = vld [vmem:[%s5 + $0x2a0] sm:$0xff]
      %v4689 = vld [vmem:[%s5 + $0x2a8] sm:$0xff]
      %v4690 = vld [vmem:[%s5 + $0x2b0] sm:$0xff]
      %v4691 = vld [vmem:[%s5 + $0x2b8] sm:$0xff]
      %v4692 = vld [vmem:[%s5 + $0x2c0] sm:$0xff]
      %v4693 = vld [vmem:[%s5 + $0x2c8] sm:$0xff]
      %v4694 = vld [vmem:[%s5 + $0x2d0] sm:$0xff]
      %v4695 = vld [vmem:[%s5 + $0x2d8] sm:$0xff]
      %v4696 = vld [vmem:[%s5 + $0x2e0] sm:$0xff]
      %v4697 = vld [vmem:[%s5 + $0x2e8] sm:$0xff]
      %v4698 = vld [vmem:[%s5 + $0x2f0] sm:$0xff]
      %v4699 = vld [vmem:[%s5 + $0x2f8] sm:$0xff]
      %v4700 = vld [vmem:[%s5 + $0x300] sm:$0xff]
      %v4701 = vld [vmem:[%s5 + $0x308] sm:$0xff]
      %v4702 = vld [vmem:[%s5 + $0x310] sm:$0xff]
      %v4703 = vld [vmem:[%s5 + $0x318] sm:$0xff]
      %v4704 = vld [vmem:[%s5 + $0x320] sm:$0xff]
      %v4705 = vld [vmem:[%s5 + $0x328] sm:$0xff]
      %v4706 = vld [vmem:[%s5 + $0x330] sm:$0xff]
      %v4707 = vld [vmem:[%s5 + $0x338] sm:$0xff]
      %v4708 = vld [vmem:[%s5 + $0x340] sm:$0xff]
      %v4709 = vld [vmem:[%s5 + $0x348] sm:$0xff]
      %v4710 = vld [vmem:[%s5 + $0x350] sm:$0xff]
      %v4711 = vld [vmem:[%s5 + $0x358] sm:$0xff]
      %v4712 = vld [vmem:[%s5 + $0x360] sm:$0xff]
      %v4713 = vld [vmem:[%s5 + $0x368] sm:$0xff]
      %v4714 = vld [vmem:[%s5 + $0x370] sm:$0xff]
      %v4715 = vld [vmem:[%s5 + $0x378] sm:$0xff]
      %v4716 = vld [vmem:[%s5 + $0x380] sm:$0xff]
      %v4717 = vld [vmem:[%s5 + $0x388] sm:$0xff]
      %v4718 = vld [vmem:[%s5 + $0x390] sm:$0xff]
      %v4719 = vld [vmem:[%s5 + $0x398] sm:$0xff]
      %v4720 = vld [vmem:[%s5 + $0x3a0] sm:$0xff]
      %v4721 = vld [vmem:[%s5 + $0x3a8] sm:$0xff]
      %v4722 = vld [vmem:[%s5 + $0x3b0] sm:$0xff]
      %v4723 = vld [vmem:[%s5 + $0x3b8] sm:$0xff]
      %v4724 = vld [vmem:[%s5 + $0x3c0] sm:$0xff]
      %v4725 = vld [vmem:[%s5 + $0x3c8] sm:$0xff]
      %v4726 = vld [vmem:[%s5 + $0x3d0] sm:$0xff]
      %v4727 = vld [vmem:[%s5 + $0x3d8] sm:$0xff]
      %v4728 = vld [vmem:[%s5 + $0x3e0] sm:$0xff]
      %v4729 = vld [vmem:[%s5 + $0x3e8] sm:$0xff]
      %v4730 = vld [vmem:[%s5 + $0x3f0] sm:$0xff]
      %v4731 = vld [vmem:[%s5 + $0x3f8] sm:$0xff]
      %v4732 = vld [vmem:[%s6] sm:$0xf]
      %v4734 = vlaneseq
      %v4735 = vshrl.u32 %v4734, 7
      %v4736 = vsub.s32 0, %v4735
      %v4737 = vrot.slane %v4732, %v4736
      %v4738 = vlaneseq
      %v4739 = vshrl.u32 %v4738, 7
      %v4740 = vsub.s32 1, %v4739
      %v4741 = vrot.slane %v4732, %v4740
      %v4742 = vlaneseq
      %v4743 = vshrl.u32 %v4742, 7
      %v4744 = vsub.s32 2, %v4743
      %v4745 = vrot.slane %v4732, %v4744
      %v4746 = vlaneseq
      %v4747 = vshrl.u32 %v4746, 7
      %v4748 = vsub.s32 3, %v4747
      %v4749 = vrot.slane %v4732, %v4748
      %v4882 = vunpack.c.l.b16 %v4604
      %v4883 = vunpack.c.h.b16 %v4604
      %v4884 = vunpack.c.l.b16 %v4605
      %v4885 = vunpack.c.h.b16 %v4605
      %v4886 = vunpack.c.l.b16 %v4606
      %v4887 = vunpack.c.h.b16 %v4606
      %v4888 = vunpack.c.l.b16 %v4607
      %v4889 = vunpack.c.h.b16 %v4607
      %v4890 = vunpack.c.l.b16 %v4608
      %v4891 = vunpack.c.h.b16 %v4608
      %v4892 = vunpack.c.l.b16 %v4609
      %v4893 = vunpack.c.h.b16 %v4609
      %v4894 = vunpack.c.l.b16 %v4610
      %v4895 = vunpack.c.h.b16 %v4610
      %v4896 = vunpack.c.l.b16 %v4611
      %v4897 = vunpack.c.h.b16 %v4611
      %v4898 = vunpack.c.l.b16 %v4612
      %v4899 = vunpack.c.h.b16 %v4612
      %v4900 = vunpack.c.l.b16 %v4613
      %v4901 = vunpack.c.h.b16 %v4613
      %v4902 = vunpack.c.l.b16 %v4614
      %v4903 = vunpack.c.h.b16 %v4614
      %v4904 = vunpack.c.l.b16 %v4615
      %v4905 = vunpack.c.h.b16 %v4615
      %v4906 = vunpack.c.l.b16 %v4616
      %v4907 = vunpack.c.h.b16 %v4616
      %v4908 = vunpack.c.l.b16 %v4617
      %v4909 = vunpack.c.h.b16 %v4617
      %v4910 = vunpack.c.l.b16 %v4618
      %v4911 = vunpack.c.h.b16 %v4618
      %v4912 = vunpack.c.l.b16 %v4619
      %v4913 = vunpack.c.h.b16 %v4619
      %v4914 = vunpack.c.l.b16 %v4620
      %v4915 = vunpack.c.h.b16 %v4620
      %v4916 = vunpack.c.l.b16 %v4621
      %v4917 = vunpack.c.h.b16 %v4621
      %v4918 = vunpack.c.l.b16 %v4622
      %v4919 = vunpack.c.h.b16 %v4622
      %v4920 = vunpack.c.l.b16 %v4623
      %v4921 = vunpack.c.h.b16 %v4623
      %v4922 = vunpack.c.l.b16 %v4624
      %v4923 = vunpack.c.h.b16 %v4624
      %v4924 = vunpack.c.l.b16 %v4625
      %v4925 = vunpack.c.h.b16 %v4625
      %v4926 = vunpack.c.l.b16 %v4626
      %v4927 = vunpack.c.h.b16 %v4626
      %v4928 = vunpack.c.l.b16 %v4627
      %v4929 = vunpack.c.h.b16 %v4627
      %v4930 = vunpack.c.l.b16 %v4628
      %v4931 = vunpack.c.h.b16 %v4628
      %v4932 = vunpack.c.l.b16 %v4629
      %v4933 = vunpack.c.h.b16 %v4629
      %v4934 = vunpack.c.l.b16 %v4630
      %v4935 = vunpack.c.h.b16 %v4630
      %v4936 = vunpack.c.l.b16 %v4631
      %v4937 = vunpack.c.h.b16 %v4631
      %v4938 = vunpack.c.l.b16 %v4632
      %v4939 = vunpack.c.h.b16 %v4632
      %v4940 = vunpack.c.l.b16 %v4633
      %v4941 = vunpack.c.h.b16 %v4633
      %v4942 = vunpack.c.l.b16 %v4634
      %v4943 = vunpack.c.h.b16 %v4634
      %v4944 = vunpack.c.l.b16 %v4635
      %v4945 = vunpack.c.h.b16 %v4635
      %v4946 = vunpack.c.l.b16 %v4636
      %v4947 = vunpack.c.h.b16 %v4636
      %v4948 = vunpack.c.l.b16 %v4637
      %v4949 = vunpack.c.h.b16 %v4637
      %v4950 = vunpack.c.l.b16 %v4638
      %v4951 = vunpack.c.h.b16 %v4638
      %v4952 = vunpack.c.l.b16 %v4639
      %v4953 = vunpack.c.h.b16 %v4639
      %v4954 = vunpack.c.l.b16 %v4640
      %v4955 = vunpack.c.h.b16 %v4640
      %v4956 = vunpack.c.l.b16 %v4641
      %v4957 = vunpack.c.h.b16 %v4641
      %v4958 = vunpack.c.l.b16 %v4642
      %v4959 = vunpack.c.h.b16 %v4642
      %v4960 = vunpack.c.l.b16 %v4643
      %v4961 = vunpack.c.h.b16 %v4643
      %v4962 = vunpack.c.l.b16 %v4644
      %v4963 = vunpack.c.h.b16 %v4644
      %v4964 = vunpack.c.l.b16 %v4645
      %v4965 = vunpack.c.h.b16 %v4645
      %v4966 = vunpack.c.l.b16 %v4646
      %v4967 = vunpack.c.h.b16 %v4646
      %v4968 = vunpack.c.l.b16 %v4647
      %v4969 = vunpack.c.h.b16 %v4647
      %v4970 = vunpack.c.l.b16 %v4648
      %v4971 = vunpack.c.h.b16 %v4648
      %v4972 = vunpack.c.l.b16 %v4649
      %v4973 = vunpack.c.h.b16 %v4649
      %v4974 = vunpack.c.l.b16 %v4650
      %v4975 = vunpack.c.h.b16 %v4650
      %v4976 = vunpack.c.l.b16 %v4651
      %v4977 = vunpack.c.h.b16 %v4651
      %v4978 = vunpack.c.l.b16 %v4652
      %v4979 = vunpack.c.h.b16 %v4652
      %v4980 = vunpack.c.l.b16 %v4653
      %v4981 = vunpack.c.h.b16 %v4653
      %v4982 = vunpack.c.l.b16 %v4654
      %v4983 = vunpack.c.h.b16 %v4654
      %v4984 = vunpack.c.l.b16 %v4655
      %v4985 = vunpack.c.h.b16 %v4655
      %v4986 = vunpack.c.l.b16 %v4656
      %v4987 = vunpack.c.h.b16 %v4656
      %v4988 = vunpack.c.l.b16 %v4657
      %v4989 = vunpack.c.h.b16 %v4657
      %v4990 = vunpack.c.l.b16 %v4658
      %v4991 = vunpack.c.h.b16 %v4658
      %v4992 = vunpack.c.l.b16 %v4659
      %v4993 = vunpack.c.h.b16 %v4659
      %v4994 = vunpack.c.l.b16 %v4660
      %v4995 = vunpack.c.h.b16 %v4660
      %v4996 = vunpack.c.l.b16 %v4661
      %v4997 = vunpack.c.h.b16 %v4661
      %v4998 = vunpack.c.l.b16 %v4662
      %v4999 = vunpack.c.h.b16 %v4662
      %v5000 = vunpack.c.l.b16 %v4663
      %v5001 = vunpack.c.h.b16 %v4663
      %v5002 = vunpack.c.l.b16 %v4664
      %v5003 = vunpack.c.h.b16 %v4664
      %v5004 = vunpack.c.l.b16 %v4665
      %v5005 = vunpack.c.h.b16 %v4665
      %v5006 = vunpack.c.l.b16 %v4666
      %v5007 = vunpack.c.h.b16 %v4666
      %v5008 = vunpack.c.l.b16 %v4667
      %v5009 = vunpack.c.h.b16 %v4667
      %v5010 = vunpack.c.l.b16 %v4668
      %v5011 = vunpack.c.h.b16 %v4668
      %v5012 = vunpack.c.l.b16 %v4669
      %v5013 = vunpack.c.h.b16 %v4669
      %v5014 = vunpack.c.l.b16 %v4670
      %v5015 = vunpack.c.h.b16 %v4670
      %v5016 = vunpack.c.l.b16 %v4671
      %v5017 = vunpack.c.h.b16 %v4671
      %v5018 = vunpack.c.l.b16 %v4672
      %v5019 = vunpack.c.h.b16 %v4672
      %v5020 = vunpack.c.l.b16 %v4673
      %v5021 = vunpack.c.h.b16 %v4673
      %v5022 = vunpack.c.l.b16 %v4674
      %v5023 = vunpack.c.h.b16 %v4674
      %v5024 = vunpack.c.l.b16 %v4675
      %v5025 = vunpack.c.h.b16 %v4675
      %v5026 = vunpack.c.l.b16 %v4676
      %v5027 = vunpack.c.h.b16 %v4676
      %v5028 = vunpack.c.l.b16 %v4677
      %v5029 = vunpack.c.h.b16 %v4677
      %v5030 = vunpack.c.l.b16 %v4678
      %v5031 = vunpack.c.h.b16 %v4678
      %v5032 = vunpack.c.l.b16 %v4679
      %v5033 = vunpack.c.h.b16 %v4679
      %v5034 = vunpack.c.l.b16 %v4680
      %v5035 = vunpack.c.h.b16 %v4680
      %v5036 = vunpack.c.l.b16 %v4681
      %v5037 = vunpack.c.h.b16 %v4681
      %v5038 = vunpack.c.l.b16 %v4682
      %v5039 = vunpack.c.h.b16 %v4682
      %v5040 = vunpack.c.l.b16 %v4683
      %v5041 = vunpack.c.h.b16 %v4683
      %v5042 = vunpack.c.l.b16 %v4684
      %v5043 = vunpack.c.h.b16 %v4684
      %v5044 = vunpack.c.l.b16 %v4685
      %v5045 = vunpack.c.h.b16 %v4685
      %v5046 = vunpack.c.l.b16 %v4686
      %v5047 = vunpack.c.h.b16 %v4686
      %v5048 = vunpack.c.l.b16 %v4687
      %v5049 = vunpack.c.h.b16 %v4687
      %v5050 = vunpack.c.l.b16 %v4688
      %v5051 = vunpack.c.h.b16 %v4688
      %v5052 = vunpack.c.l.b16 %v4689
      %v5053 = vunpack.c.h.b16 %v4689
      %v5054 = vunpack.c.l.b16 %v4690
      %v5055 = vunpack.c.h.b16 %v4690
      %v5056 = vunpack.c.l.b16 %v4691
      %v5057 = vunpack.c.h.b16 %v4691
      %v5058 = vunpack.c.l.b16 %v4692
      %v5059 = vunpack.c.h.b16 %v4692
      %v5060 = vunpack.c.l.b16 %v4693
      %v5061 = vunpack.c.h.b16 %v4693
      %v5062 = vunpack.c.l.b16 %v4694
      %v5063 = vunpack.c.h.b16 %v4694
      %v5064 = vunpack.c.l.b16 %v4695
      %v5065 = vunpack.c.h.b16 %v4695
      %v5066 = vunpack.c.l.b16 %v4696
      %v5067 = vunpack.c.h.b16 %v4696
      %v5068 = vunpack.c.l.b16 %v4697
      %v5069 = vunpack.c.h.b16 %v4697
      %v5070 = vunpack.c.l.b16 %v4698
      %v5071 = vunpack.c.h.b16 %v4698
      %v5072 = vunpack.c.l.b16 %v4699
      %v5073 = vunpack.c.h.b16 %v4699
      %v5074 = vunpack.c.l.b16 %v4700
      %v5075 = vunpack.c.h.b16 %v4700
      %v5076 = vunpack.c.l.b16 %v4701
      %v5077 = vunpack.c.h.b16 %v4701
      %v5078 = vunpack.c.l.b16 %v4702
      %v5079 = vunpack.c.h.b16 %v4702
      %v5080 = vunpack.c.l.b16 %v4703
      %v5081 = vunpack.c.h.b16 %v4703
      %v5082 = vunpack.c.l.b16 %v4704
      %v5083 = vunpack.c.h.b16 %v4704
      %v5084 = vunpack.c.l.b16 %v4705
      %v5085 = vunpack.c.h.b16 %v4705
      %v5086 = vunpack.c.l.b16 %v4706
      %v5087 = vunpack.c.h.b16 %v4706
      %v5088 = vunpack.c.l.b16 %v4707
      %v5089 = vunpack.c.h.b16 %v4707
      %v5090 = vunpack.c.l.b16 %v4708
      %v5091 = vunpack.c.h.b16 %v4708
      %v5092 = vunpack.c.l.b16 %v4709
      %v5093 = vunpack.c.h.b16 %v4709
      %v5094 = vunpack.c.l.b16 %v4710
      %v5095 = vunpack.c.h.b16 %v4710
      %v5096 = vunpack.c.l.b16 %v4711
      %v5097 = vunpack.c.h.b16 %v4711
      %v5098 = vunpack.c.l.b16 %v4712
      %v5099 = vunpack.c.h.b16 %v4712
      %v5100 = vunpack.c.l.b16 %v4713
      %v5101 = vunpack.c.h.b16 %v4713
      %v5102 = vunpack.c.l.b16 %v4714
      %v5103 = vunpack.c.h.b16 %v4714
      %v5104 = vunpack.c.l.b16 %v4715
      %v5105 = vunpack.c.h.b16 %v4715
      %v5106 = vunpack.c.l.b16 %v4716
      %v5107 = vunpack.c.h.b16 %v4716
      %v5108 = vunpack.c.l.b16 %v4717
      %v5109 = vunpack.c.h.b16 %v4717
      %v5110 = vunpack.c.l.b16 %v4718
      %v5111 = vunpack.c.h.b16 %v4718
      %v5112 = vunpack.c.l.b16 %v4719
      %v5113 = vunpack.c.h.b16 %v4719
      %v5114 = vunpack.c.l.b16 %v4720
      %v5115 = vunpack.c.h.b16 %v4720
      %v5116 = vunpack.c.l.b16 %v4721
      %v5117 = vunpack.c.h.b16 %v4721
      %v5118 = vunpack.c.l.b16 %v4722
      %v5119 = vunpack.c.h.b16 %v4722
      %v5120 = vunpack.c.l.b16 %v4723
      %v5121 = vunpack.c.h.b16 %v4723
      %v5122 = vunpack.c.l.b16 %v4724
      %v5123 = vunpack.c.h.b16 %v4724
      %v5124 = vunpack.c.l.b16 %v4725
      %v5125 = vunpack.c.h.b16 %v4725
      %v5126 = vunpack.c.l.b16 %v4726
      %v5127 = vunpack.c.h.b16 %v4726
      %v5128 = vunpack.c.l.b16 %v4727
      %v5129 = vunpack.c.h.b16 %v4727
      %v5130 = vunpack.c.l.b16 %v4728
      %v5131 = vunpack.c.h.b16 %v4728
      %v5132 = vunpack.c.l.b16 %v4729
      %v5133 = vunpack.c.h.b16 %v4729
      %v5134 = vunpack.c.l.b16 %v4730
      %v5135 = vunpack.c.h.b16 %v4730
      %v5136 = vunpack.c.l.b16 %v4731
      %v5137 = vunpack.c.h.b16 %v4731
      %v5138 = vpack.c.b16 %v4886, %v4882
      %v5139 = vpack.c.b16 %v4887, %v4883
      %v5140 = vpack.c.b16 %v4888, %v4884
      %v5141 = vpack.c.b16 %v4889, %v4885
      %v5142 = vpack.c.b16 %v4894, %v4890
      %v5143 = vpack.c.b16 %v4895, %v4891
      %v5144 = vpack.c.b16 %v4896, %v4892
      %v5145 = vpack.c.b16 %v4897, %v4893
      %v5146 = vpack.c.b16 %v4902, %v4898
      %v5147 = vpack.c.b16 %v4903, %v4899
      %v5148 = vpack.c.b16 %v4904, %v4900
      %v5149 = vpack.c.b16 %v4905, %v4901
      %v5150 = vpack.c.b16 %v4910, %v4906
      %v5151 = vpack.c.b16 %v4911, %v4907
      %v5152 = vpack.c.b16 %v4912, %v4908
      %v5153 = vpack.c.b16 %v4913, %v4909
      %v5154 = vpack.c.b16 %v4918, %v4914
      %v5155 = vpack.c.b16 %v4919, %v4915
      %v5156 = vpack.c.b16 %v4920, %v4916
      %v5157 = vpack.c.b16 %v4921, %v4917
      %v5158 = vpack.c.b16 %v4926, %v4922
      %v5159 = vpack.c.b16 %v4927, %v4923
      %v5160 = vpack.c.b16 %v4928, %v4924
      %v5161 = vpack.c.b16 %v4929, %v4925
      %v5162 = vpack.c.b16 %v4934, %v4930
      %v5163 = vpack.c.b16 %v4935, %v4931
      %v5164 = vpack.c.b16 %v4936, %v4932
      %v5165 = vpack.c.b16 %v4937, %v4933
      %v5166 = vpack.c.b16 %v4942, %v4938
      %v5167 = vpack.c.b16 %v4943, %v4939
      %v5168 = vpack.c.b16 %v4944, %v4940
      %v5169 = vpack.c.b16 %v4945, %v4941
      %v5170 = vpack.c.b16 %v4950, %v4946
      %v5171 = vpack.c.b16 %v4951, %v4947
      %v5172 = vpack.c.b16 %v4952, %v4948
      %v5173 = vpack.c.b16 %v4953, %v4949
      %v5174 = vpack.c.b16 %v4958, %v4954
      %v5175 = vpack.c.b16 %v4959, %v4955
      %v5176 = vpack.c.b16 %v4960, %v4956
      %v5177 = vpack.c.b16 %v4961, %v4957
      %v5178 = vpack.c.b16 %v4966, %v4962
      %v5179 = vpack.c.b16 %v4967, %v4963
      %v5180 = vpack.c.b16 %v4968, %v4964
      %v5181 = vpack.c.b16 %v4969, %v4965
      %v5182 = vpack.c.b16 %v4974, %v4970
      %v5183 = vpack.c.b16 %v4975, %v4971
      %v5184 = vpack.c.b16 %v4976, %v4972
      %v5185 = vpack.c.b16 %v4977, %v4973
      %v5186 = vpack.c.b16 %v4982, %v4978
      %v5187 = vpack.c.b16 %v4983, %v4979
      %v5188 = vpack.c.b16 %v4984, %v4980
      %v5189 = vpack.c.b16 %v4985, %v4981
      %v5190 = vpack.c.b16 %v4990, %v4986
      %v5191 = vpack.c.b16 %v4991, %v4987
      %v5192 = vpack.c.b16 %v4992, %v4988
      %v5193 = vpack.c.b16 %v4993, %v4989
      %v5194 = vpack.c.b16 %v4998, %v4994
      %v5195 = vpack.c.b16 %v4999, %v4995
      %v5196 = vpack.c.b16 %v5000, %v4996
      %v5197 = vpack.c.b16 %v5001, %v4997
      %v5198 = vpack.c.b16 %v5006, %v5002
      %v5199 = vpack.c.b16 %v5007, %v5003
      %v5200 = vpack.c.b16 %v5008, %v5004
      %v5201 = vpack.c.b16 %v5009, %v5005
      %v5202 = vpack.c.b16 %v5014, %v5010
      %v5203 = vpack.c.b16 %v5015, %v5011
      %v5204 = vpack.c.b16 %v5016, %v5012
      %v5205 = vpack.c.b16 %v5017, %v5013
      %v5206 = vpack.c.b16 %v5022, %v5018
      %v5207 = vpack.c.b16 %v5023, %v5019
      %v5208 = vpack.c.b16 %v5024, %v5020
      %v5209 = vpack.c.b16 %v5025, %v5021
      %v5210 = vpack.c.b16 %v5030, %v5026
      %v5211 = vpack.c.b16 %v5031, %v5027
      %v5212 = vpack.c.b16 %v5032, %v5028
      %v5213 = vpack.c.b16 %v5033, %v5029
      %v5214 = vpack.c.b16 %v5038, %v5034
      %v5215 = vpack.c.b16 %v5039, %v5035
      %v5216 = vpack.c.b16 %v5040, %v5036
      %v5217 = vpack.c.b16 %v5041, %v5037
      %v5218 = vpack.c.b16 %v5046, %v5042
      %v5219 = vpack.c.b16 %v5047, %v5043
      %v5220 = vpack.c.b16 %v5048, %v5044
      %v5221 = vpack.c.b16 %v5049, %v5045
      %v5222 = vpack.c.b16 %v5054, %v5050
      %v5223 = vpack.c.b16 %v5055, %v5051
      %v5224 = vpack.c.b16 %v5056, %v5052
      %v5225 = vpack.c.b16 %v5057, %v5053
      %v5226 = vpack.c.b16 %v5062, %v5058
      %v5227 = vpack.c.b16 %v5063, %v5059
      %v5228 = vpack.c.b16 %v5064, %v5060
      %v5229 = vpack.c.b16 %v5065, %v5061
      %v5230 = vpack.c.b16 %v5070, %v5066
      %v5231 = vpack.c.b16 %v5071, %v5067
      %v5232 = vpack.c.b16 %v5072, %v5068
      %v5233 = vpack.c.b16 %v5073, %v5069
      %v5234 = vpack.c.b16 %v5078, %v5074
      %v5235 = vpack.c.b16 %v5079, %v5075
      %v5236 = vpack.c.b16 %v5080, %v5076
      %v5237 = vpack.c.b16 %v5081, %v5077
      %v5238 = vpack.c.b16 %v5086, %v5082
      %v5239 = vpack.c.b16 %v5087, %v5083
      %v5240 = vpack.c.b16 %v5088, %v5084
      %v5241 = vpack.c.b16 %v5089, %v5085
      %v5242 = vpack.c.b16 %v5094, %v5090
      %v5243 = vpack.c.b16 %v5095, %v5091
      %v5244 = vpack.c.b16 %v5096, %v5092
      %v5245 = vpack.c.b16 %v5097, %v5093
      %v5246 = vpack.c.b16 %v5102, %v5098
      %v5247 = vpack.c.b16 %v5103, %v5099
      %v5248 = vpack.c.b16 %v5104, %v5100
      %v5249 = vpack.c.b16 %v5105, %v5101
      %v5250 = vpack.c.b16 %v5110, %v5106
      %v5251 = vpack.c.b16 %v5111, %v5107
      %v5252 = vpack.c.b16 %v5112, %v5108
      %v5253 = vpack.c.b16 %v5113, %v5109
      %v5254 = vpack.c.b16 %v5118, %v5114
      %v5255 = vpack.c.b16 %v5119, %v5115
      %v5256 = vpack.c.b16 %v5120, %v5116
      %v5257 = vpack.c.b16 %v5121, %v5117
      %v5258 = vpack.c.b16 %v5126, %v5122
      %v5259 = vpack.c.b16 %v5127, %v5123
      %v5260 = vpack.c.b16 %v5128, %v5124
      %v5261 = vpack.c.b16 %v5129, %v5125
      %v5262 = vpack.c.b16 %v5134, %v5130
      %v5263 = vpack.c.b16 %v5135, %v5131
      %v5264 = vpack.c.b16 %v5136, %v5132
      %v5265 = vpack.c.b16 %v5137, %v5133
      %5394 = vmatprep.subr.bf16.mxu0 %v5167
      %5395 = vmatpush1.bf16.msra.mxu0 %v5166
      %5396 = vmatprep.subr.bf16.mxu0 %v5163
      %5397 = vmatpush1.bf16.msra.mxu0 %v5162
      %5398 = vmatprep.subr.bf16.mxu0 %v5159
      %5399 = vmatpush1.bf16.msra.mxu0 %v5158
      %5400 = vmatprep.subr.bf16.mxu0 %v5155
      %5401 = vmatpush1.bf16.msra.mxu0 %v5154
      %5402 = vmatprep.subr.bf16.mxu0 %v5151
      %5403 = vmatpush1.bf16.msra.mxu0 %v5150
      %5404 = vmatprep.subr.bf16.mxu0 %v5147
      %5405 = vmatpush1.bf16.msra.mxu0 %v5146
      %5406 = vmatprep.subr.bf16.mxu0 %v5143
      %5407 = vmatpush1.bf16.msra.mxu0 %v5142
      %5408 = vmatprep.subr.bf16.mxu0 %v5139
      %5409 = vmatpush1.bf16.msra.mxu0 %v5138
      %5410 = vmatprep.subr.bf16.mxu0 %v5199
      %5411 = vmatpush2.bf16.msra.mxu0 %v5198
      %5412 = vmatprep.subr.bf16.mxu0 %v5195
      %5413 = vmatpush2.bf16.msra.mxu0 %v5194
      %5414 = vmatprep.subr.bf16.mxu0 %v5191
      %5415 = vmatpush2.bf16.msra.mxu0 %v5190
      %5416 = vmatprep.subr.bf16.mxu0 %v5187
      %5417 = vmatpush2.bf16.msra.mxu0 %v5186
      %5418 = vmatprep.subr.bf16.mxu0 %v5183
      %5419 = vmatpush2.bf16.msra.mxu0 %v5182
      %5420 = vmatprep.subr.bf16.mxu0 %v5179
      %5421 = vmatpush2.bf16.msra.mxu0 %v5178
      %5422 = vmatprep.subr.bf16.mxu0 %v5175
      %5423 = vmatpush2.bf16.msra.mxu0 %v5174
      %5424 = vmatprep.subr.bf16.mxu0 %v5171
      %5425 = vmatpush2.bf16.msra.mxu0 %v5170
      %5426 = vmatprep.mubr.bf16.mxu0 %v4541
      %5427 = vmatmul.mubr.bf16.gmra.mxu0 %v4540
      %v5428 = vpop.f32.mrf.mxu0
      %v5429 = vadd.f32 %v4737, %v5428
      %v5430 = vpop.f32.mrf.mxu0
      %v5431 = vadd.f32 %v4741, %v5430
      %v5432 = vpop.f32.mrf.mxu0
      %v5433 = vadd.f32 %v4737, %v5432
      %v5434 = vpop.f32.mrf.mxu0
      %v5435 = vadd.f32 %v4741, %v5434
      %5436 = vmatprep.mubr.bf16.mxu0 %v4545
      %5437 = vmatmul.mubr.bf16.gmra.mxu0 %v4544
      %v5438 = vpop.f32.mrf.mxu0
      %v5439 = vadd.f32 %v4737, %v5438
      %v5440 = vpop.f32.mrf.mxu0
      %v5441 = vadd.f32 %v4741, %v5440
      %v5442 = vpop.f32.mrf.mxu0
      %v5443 = vadd.f32 %v4737, %v5442
      %v5444 = vpop.f32.mrf.mxu0
      %v5445 = vadd.f32 %v4741, %v5444
      %5446 = vmatprep.mubr.bf16.mxu0 %v4549
      %5447 = vmatmul.mubr.bf16.gmra.mxu0 %v4548
      %v5448 = vpop.f32.mrf.mxu0
      %v5449 = vadd.f32 %v4737, %v5448
      %v5450 = vpop.f32.mrf.mxu0
      %v5451 = vadd.f32 %v4741, %v5450
      %v5452 = vpop.f32.mrf.mxu0
      %v5453 = vadd.f32 %v4737, %v5452
      %v5454 = vpop.f32.mrf.mxu0
      %v5455 = vadd.f32 %v4741, %v5454
      %5456 = vmatprep.mubr.bf16.mxu0 %v4553
      %5457 = vmatmul.mubr.bf16.gmra.mxu0 %v4552
      %v5458 = vpop.f32.mrf.mxu0
      %v5459 = vadd.f32 %v4737, %v5458
      %v5460 = vpop.f32.mrf.mxu0
      %v5461 = vadd.f32 %v4741, %v5460
      %v5462 = vpop.f32.mrf.mxu0
      %v5463 = vadd.f32 %v4737, %v5462
      %v5464 = vpop.f32.mrf.mxu0
      %v5465 = vadd.f32 %v4741, %v5464
      %5466 = vmatprep.mubr.bf16.mxu0 %v4557
      %5467 = vmatmul.mubr.bf16.gmra.mxu0 %v4556
      %v5468 = vpop.f32.mrf.mxu0
      %v5469 = vadd.f32 %v4737, %v5468
      %v5470 = vpop.f32.mrf.mxu0
      %v5471 = vadd.f32 %v4741, %v5470
      %v5472 = vpop.f32.mrf.mxu0
      %v5473 = vadd.f32 %v4737, %v5472
      %v5474 = vpop.f32.mrf.mxu0
      %v5475 = vadd.f32 %v4741, %v5474
      %5476 = vmatprep.mubr.bf16.mxu0 %v4561
      %5477 = vmatmul.mubr.bf16.gmra.mxu0 %v4560
      %v5478 = vpop.f32.mrf.mxu0
      %v5479 = vadd.f32 %v4737, %v5478
      %v5480 = vpop.f32.mrf.mxu0
      %v5481 = vadd.f32 %v4741, %v5480
      %v5482 = vpop.f32.mrf.mxu0
      %v5483 = vadd.f32 %v4737, %v5482
      %v5484 = vpop.f32.mrf.mxu0
      %v5485 = vadd.f32 %v4741, %v5484
      %5486 = vmatprep.mubr.bf16.mxu0 %v4565
      %5487 = vmatmul.mubr.bf16.gmra.mxu0 %v4564
      %v5488 = vpop.f32.mrf.mxu0
      %v5489 = vadd.f32 %v4737, %v5488
      %v5490 = vpop.f32.mrf.mxu0
      %v5491 = vadd.f32 %v4741, %v5490
      %v5492 = vpop.f32.mrf.mxu0
      %v5493 = vadd.f32 %v4737, %v5492
      %v5494 = vpop.f32.mrf.mxu0
      %v5495 = vadd.f32 %v4741, %v5494
      %5496 = vmatprep.mubr.bf16.mxu0 %v4569
      %5497 = vmatmul.mubr.bf16.gmra.mxu0 %v4568
      %v5498 = vpop.f32.mrf.mxu0
      %v5499 = vadd.f32 %v4737, %v5498
      %v5500 = vpop.f32.mrf.mxu0
      %v5501 = vadd.f32 %v4741, %v5500
      %v5502 = vpop.f32.mrf.mxu0
      %v5503 = vadd.f32 %v4737, %v5502
      %v5504 = vpop.f32.mrf.mxu0
      %v5505 = vadd.f32 %v4741, %v5504
      %5506 = vmatprep.mubr.bf16.mxu0 %v4573
      %5507 = vmatmul.mubr.bf16.gmra.mxu0 %v4572
      %v5508 = vpop.f32.mrf.mxu0
      %v5509 = vadd.f32 %v4737, %v5508
      %v5510 = vpop.f32.mrf.mxu0
      %v5511 = vadd.f32 %v4741, %v5510
      %v5512 = vpop.f32.mrf.mxu0
      %v5513 = vadd.f32 %v4737, %v5512
      %v5514 = vpop.f32.mrf.mxu0
      %v5515 = vadd.f32 %v4741, %v5514
      %5516 = vmatprep.mubr.bf16.mxu0 %v4577
      %5517 = vmatmul.mubr.bf16.gmra.mxu0 %v4576
      %v5518 = vpop.f32.mrf.mxu0
      %v5519 = vadd.f32 %v4737, %v5518
      %v5520 = vpop.f32.mrf.mxu0
      %v5521 = vadd.f32 %v4741, %v5520
      %v5522 = vpop.f32.mrf.mxu0
      %v5523 = vadd.f32 %v4737, %v5522
      %v5524 = vpop.f32.mrf.mxu0
      %v5525 = vadd.f32 %v4741, %v5524
      %5526 = vmatprep.mubr.bf16.mxu0 %v4581
      %5527 = vmatmul.mubr.bf16.gmra.mxu0 %v4580
      %v5528 = vpop.f32.mrf.mxu0
      %v5529 = vadd.f32 %v4737, %v5528
      %v5530 = vpop.f32.mrf.mxu0
      %v5531 = vadd.f32 %v4741, %v5530
      %v5532 = vpop.f32.mrf.mxu0
      %v5533 = vadd.f32 %v4737, %v5532
      %v5534 = vpop.f32.mrf.mxu0
      %v5535 = vadd.f32 %v4741, %v5534
      %5536 = vmatprep.mubr.bf16.mxu0 %v4585
      %5537 = vmatmul.mubr.bf16.gmra.mxu0 %v4584
      %v5538 = vpop.f32.mrf.mxu0
      %v5539 = vadd.f32 %v4737, %v5538
      %v5540 = vpop.f32.mrf.mxu0
      %v5541 = vadd.f32 %v4741, %v5540
      %v5542 = vpop.f32.mrf.mxu0
      %v5543 = vadd.f32 %v4737, %v5542
      %v5544 = vpop.f32.mrf.mxu0
      %v5545 = vadd.f32 %v4741, %v5544
      %5546 = vmatprep.mubr.bf16.mxu0 %v4589
      %5547 = vmatmul.mubr.bf16.gmra.mxu0 %v4588
      %v5548 = vpop.f32.mrf.mxu0
      %v5549 = vadd.f32 %v4737, %v5548
      %v5550 = vpop.f32.mrf.mxu0
      %v5551 = vadd.f32 %v4741, %v5550
      %v5552 = vpop.f32.mrf.mxu0
      %v5553 = vadd.f32 %v4737, %v5552
      %v5554 = vpop.f32.mrf.mxu0
      %v5555 = vadd.f32 %v4741, %v5554
      %5556 = vmatprep.mubr.bf16.mxu0 %v4593
      %5557 = vmatmul.mubr.bf16.gmra.mxu0 %v4592
      %v5558 = vpop.f32.mrf.mxu0
      %v5559 = vadd.f32 %v4737, %v5558
      %v5560 = vpop.f32.mrf.mxu0
      %v5561 = vadd.f32 %v4741, %v5560
      %v5562 = vpop.f32.mrf.mxu0
      %v5563 = vadd.f32 %v4737, %v5562
      %v5564 = vpop.f32.mrf.mxu0
      %v5565 = vadd.f32 %v4741, %v5564
      %5566 = vmatprep.mubr.bf16.mxu0 %v4597
      %5567 = vmatmul.mubr.bf16.gmra.mxu0 %v4596
      %v5568 = vpop.f32.mrf.mxu0
      %v5569 = vadd.f32 %v4737, %v5568
      %v5570 = vpop.f32.mrf.mxu0
      %v5571 = vadd.f32 %v4741, %v5570
      %v5572 = vpop.f32.mrf.mxu0
      %v5573 = vadd.f32 %v4737, %v5572
      %v5574 = vpop.f32.mrf.mxu0
      %v5575 = vadd.f32 %v4741, %v5574
      %5576 = vmatprep.mubr.bf16.mxu0 %v4601
      %5577 = vmatmul.mubr.bf16.gmra.mxu0 %v4600
      %v5578 = vpop.f32.mrf.mxu0
      %v5579 = vadd.f32 %v4737, %v5578
      %v5580 = vpop.f32.mrf.mxu0
      %v5581 = vadd.f32 %v4741, %v5580
      %v5582 = vpop.f32.mrf.mxu0
      %v5583 = vadd.f32 %v4737, %v5582
      %v5584 = vpop.f32.mrf.mxu0
      %v5585 = vadd.f32 %v4741, %v5584
      %5586 = vdwg.mxu0
      %5587 = vmatprep.subr.bf16.mxu0 %v5231
      %5588 = vmatpush1.bf16.msra.mxu0 %v5230
      %5589 = vmatprep.subr.bf16.mxu0 %v5227
      %5590 = vmatpush1.bf16.msra.mxu0 %v5226
      %5591 = vmatprep.subr.bf16.mxu0 %v5223
      %5592 = vmatpush1.bf16.msra.mxu0 %v5222
      %5593 = vmatprep.subr.bf16.mxu0 %v5219
      %5594 = vmatpush1.bf16.msra.mxu0 %v5218
      %5595 = vmatprep.subr.bf16.mxu0 %v5215
      %5596 = vmatpush1.bf16.msra.mxu0 %v5214
      %5597 = vmatprep.subr.bf16.mxu0 %v5211
      %5598 = vmatpush1.bf16.msra.mxu0 %v5210
      %5599 = vmatprep.subr.bf16.mxu0 %v5207
      %5600 = vmatpush1.bf16.msra.mxu0 %v5206
      %5601 = vmatprep.subr.bf16.mxu0 %v5203
      %5602 = vmatpush1.bf16.msra.mxu0 %v5202
      %5603 = vmatprep.subr.bf16.mxu0 %v5263
      %5604 = vmatpush2.bf16.msra.mxu0 %v5262
      %5605 = vmatprep.subr.bf16.mxu0 %v5259
      %5606 = vmatpush2.bf16.msra.mxu0 %v5258
      %5607 = vmatprep.subr.bf16.mxu0 %v5255
      %5608 = vmatpush2.bf16.msra.mxu0 %v5254
      %5609 = vmatprep.subr.bf16.mxu0 %v5251
      %5610 = vmatpush2.bf16.msra.mxu0 %v5250
      %5611 = vmatprep.subr.bf16.mxu0 %v5247
      %5612 = vmatpush2.bf16.msra.mxu0 %v5246
      %5613 = vmatprep.subr.bf16.mxu0 %v5243
      %5614 = vmatpush2.bf16.msra.mxu0 %v5242
      %5615 = vmatprep.subr.bf16.mxu0 %v5239
      %5616 = vmatpush2.bf16.msra.mxu0 %v5238
      %5617 = vmatprep.subr.bf16.mxu0 %v5235
      %5618 = vmatpush2.bf16.msra.mxu0 %v5234
      %5619 = vmatprep.mubr.bf16.mxu0 %v4543
      %5620 = vmatmul.mubr.bf16.gmra.mxu0 %v4542
      %v5621 = vpop.f32.mrf.mxu0
      %v5622 = vadd.f32 %v5429, %v5621
      %v5623 = vpop.f32.mrf.mxu0
      %v5624 = vadd.f32 %v5431, %v5623
      %v5625 = vpop.f32.mrf.mxu0
      %v5626 = vadd.f32 %v5433, %v5625
      %v5627 = vpop.f32.mrf.mxu0
      %v5628 = vadd.f32 %v5435, %v5627
      %5629 = vmatprep.mubr.bf16.mxu0 %v4547
      %5630 = vmatmul.mubr.bf16.gmra.mxu0 %v4546
      %v5631 = vpop.f32.mrf.mxu0
      %v5632 = vadd.f32 %v5439, %v5631
      %v5633 = vpop.f32.mrf.mxu0
      %v5634 = vadd.f32 %v5441, %v5633
      %v5635 = vpop.f32.mrf.mxu0
      %v5636 = vadd.f32 %v5443, %v5635
      %v5637 = vpop.f32.mrf.mxu0
      %v5638 = vadd.f32 %v5445, %v5637
      %5639 = vmatprep.mubr.bf16.mxu0 %v4551
      %5640 = vmatmul.mubr.bf16.gmra.mxu0 %v4550
      %v5641 = vpop.f32.mrf.mxu0
      %v5642 = vadd.f32 %v5449, %v5641
      %v5643 = vpop.f32.mrf.mxu0
      %v5644 = vadd.f32 %v5451, %v5643
      %v5645 = vpop.f32.mrf.mxu0
      %v5646 = vadd.f32 %v5453, %v5645
      %v5647 = vpop.f32.mrf.mxu0
      %v5648 = vadd.f32 %v5455, %v5647
      %5649 = vmatprep.mubr.bf16.mxu0 %v4555
      %5650 = vmatmul.mubr.bf16.gmra.mxu0 %v4554
      %v5651 = vpop.f32.mrf.mxu0
      %v5652 = vadd.f32 %v5459, %v5651
      %v5653 = vpop.f32.mrf.mxu0
      %v5654 = vadd.f32 %v5461, %v5653
      %v5655 = vpop.f32.mrf.mxu0
      %v5656 = vadd.f32 %v5463, %v5655
      %v5657 = vpop.f32.mrf.mxu0
      %v5658 = vadd.f32 %v5465, %v5657
      %5659 = vmatprep.mubr.bf16.mxu0 %v4559
      %5660 = vmatmul.mubr.bf16.gmra.mxu0 %v4558
      %v5661 = vpop.f32.mrf.mxu0
      %v5662 = vadd.f32 %v5469, %v5661
      %v5663 = vpop.f32.mrf.mxu0
      %v5664 = vadd.f32 %v5471, %v5663
      %v5665 = vpop.f32.mrf.mxu0
      %v5666 = vadd.f32 %v5473, %v5665
      %v5667 = vpop.f32.mrf.mxu0
      %v5668 = vadd.f32 %v5475, %v5667
      %5669 = vmatprep.mubr.bf16.mxu0 %v4563
      %5670 = vmatmul.mubr.bf16.gmra.mxu0 %v4562
      %v5671 = vpop.f32.mrf.mxu0
      %v5672 = vadd.f32 %v5479, %v5671
      %v5673 = vpop.f32.mrf.mxu0
      %v5674 = vadd.f32 %v5481, %v5673
      %v5675 = vpop.f32.mrf.mxu0
      %v5676 = vadd.f32 %v5483, %v5675
      %v5677 = vpop.f32.mrf.mxu0
      %v5678 = vadd.f32 %v5485, %v5677
      %5679 = vmatprep.mubr.bf16.mxu0 %v4567
      %5680 = vmatmul.mubr.bf16.gmra.mxu0 %v4566
      %v5681 = vpop.f32.mrf.mxu0
      %v5682 = vadd.f32 %v5489, %v5681
      %v5683 = vpop.f32.mrf.mxu0
      %v5684 = vadd.f32 %v5491, %v5683
      %v5685 = vpop.f32.mrf.mxu0
      %v5686 = vadd.f32 %v5493, %v5685
      %v5687 = vpop.f32.mrf.mxu0
      %v5688 = vadd.f32 %v5495, %v5687
      %5689 = vmatprep.mubr.bf16.mxu0 %v4571
      %5690 = vmatmul.mubr.bf16.gmra.mxu0 %v4570
      %v5691 = vpop.f32.mrf.mxu0
      %v5692 = vadd.f32 %v5499, %v5691
      %v5693 = vpop.f32.mrf.mxu0
      %v5694 = vadd.f32 %v5501, %v5693
      %v5695 = vpop.f32.mrf.mxu0
      %v5696 = vadd.f32 %v5503, %v5695
      %v5697 = vpop.f32.mrf.mxu0
      %v5698 = vadd.f32 %v5505, %v5697
      %5699 = vmatprep.mubr.bf16.mxu0 %v4575
      %5700 = vmatmul.mubr.bf16.gmra.mxu0 %v4574
      %v5701 = vpop.f32.mrf.mxu0
      %v5702 = vadd.f32 %v5509, %v5701
      %v5703 = vpop.f32.mrf.mxu0
      %v5704 = vadd.f32 %v5511, %v5703
      %v5705 = vpop.f32.mrf.mxu0
      %v5706 = vadd.f32 %v5513, %v5705
      %v5707 = vpop.f32.mrf.mxu0
      %v5708 = vadd.f32 %v5515, %v5707
      %5709 = vmatprep.mubr.bf16.mxu0 %v4579
      %5710 = vmatmul.mubr.bf16.gmra.mxu0 %v4578
      %v5711 = vpop.f32.mrf.mxu0
      %v5712 = vadd.f32 %v5519, %v5711
      %v5713 = vpop.f32.mrf.mxu0
      %v5714 = vadd.f32 %v5521, %v5713
      %v5715 = vpop.f32.mrf.mxu0
      %v5716 = vadd.f32 %v5523, %v5715
      %v5717 = vpop.f32.mrf.mxu0
      %v5718 = vadd.f32 %v5525, %v5717
      %5719 = vmatprep.mubr.bf16.mxu0 %v4583
      %5720 = vmatmul.mubr.bf16.gmra.mxu0 %v4582
      %v5721 = vpop.f32.mrf.mxu0
      %v5722 = vadd.f32 %v5529, %v5721
      %v5723 = vpop.f32.mrf.mxu0
      %v5724 = vadd.f32 %v5531, %v5723
      %v5725 = vpop.f32.mrf.mxu0
      %v5726 = vadd.f32 %v5533, %v5725
      %v5727 = vpop.f32.mrf.mxu0
      %v5728 = vadd.f32 %v5535, %v5727
      %5729 = vmatprep.mubr.bf16.mxu0 %v4587
      %5730 = vmatmul.mubr.bf16.gmra.mxu0 %v4586
      %v5731 = vpop.f32.mrf.mxu0
      %v5732 = vadd.f32 %v5539, %v5731
      %v5733 = vpop.f32.mrf.mxu0
      %v5734 = vadd.f32 %v5541, %v5733
      %v5735 = vpop.f32.mrf.mxu0
      %v5736 = vadd.f32 %v5543, %v5735
      %v5737 = vpop.f32.mrf.mxu0
      %v5738 = vadd.f32 %v5545, %v5737
      %5739 = vmatprep.mubr.bf16.mxu0 %v4591
      %5740 = vmatmul.mubr.bf16.gmra.mxu0 %v4590
      %v5741 = vpop.f32.mrf.mxu0
      %v5742 = vadd.f32 %v5549, %v5741
      %v5743 = vpop.f32.mrf.mxu0
      %v5744 = vadd.f32 %v5551, %v5743
      %v5745 = vpop.f32.mrf.mxu0
      %v5746 = vadd.f32 %v5553, %v5745
      %v5747 = vpop.f32.mrf.mxu0
      %v5748 = vadd.f32 %v5555, %v5747
      %5749 = vmatprep.mubr.bf16.mxu0 %v4595
      %5750 = vmatmul.mubr.bf16.gmra.mxu0 %v4594
      %v5751 = vpop.f32.mrf.mxu0
      %v5752 = vadd.f32 %v5559, %v5751
      %v5753 = vpop.f32.mrf.mxu0
      %v5754 = vadd.f32 %v5561, %v5753
      %v5755 = vpop.f32.mrf.mxu0
      %v5756 = vadd.f32 %v5563, %v5755
      %v5757 = vpop.f32.mrf.mxu0
      %v5758 = vadd.f32 %v5565, %v5757
      %5759 = vmatprep.mubr.bf16.mxu0 %v4599
      %5760 = vmatmul.mubr.bf16.gmra.mxu0 %v4598
      %v5761 = vpop.f32.mrf.mxu0
      %v5762 = vadd.f32 %v5569, %v5761
      %v5763 = vpop.f32.mrf.mxu0
      %v5764 = vadd.f32 %v5571, %v5763
      %v5765 = vpop.f32.mrf.mxu0
      %v5766 = vadd.f32 %v5573, %v5765
      %v5767 = vpop.f32.mrf.mxu0
      %v5768 = vadd.f32 %v5575, %v5767
      %5769 = vmatprep.mubr.bf16.mxu0 %v4603
      %5770 = vmatmul.mubr.bf16.gmra.mxu0 %v4602
      %v5771 = vpop.f32.mrf.mxu0
      %v5772 = vadd.f32 %v5579, %v5771
      %v5773 = vpop.f32.mrf.mxu0
      %v5774 = vadd.f32 %v5581, %v5773
      %v5775 = vpop.f32.mrf.mxu0
      %v5776 = vadd.f32 %v5583, %v5775
      %v5777 = vpop.f32.mrf.mxu0
      %v5778 = vadd.f32 %v5585, %v5777
      %5779 = vdwg.mxu0
      %5780 = vmatprep.subr.bf16.mxu0 %v5169
      %5781 = vmatpush1.bf16.msra.mxu0 %v5168
      %5782 = vmatprep.subr.bf16.mxu0 %v5165
      %5783 = vmatpush1.bf16.msra.mxu0 %v5164
      %5784 = vmatprep.subr.bf16.mxu0 %v5161
      %5785 = vmatpush1.bf16.msra.mxu0 %v5160
      %5786 = vmatprep.subr.bf16.mxu0 %v5157
      %5787 = vmatpush1.bf16.msra.mxu0 %v5156
      %5788 = vmatprep.subr.bf16.mxu0 %v5153
      %5789 = vmatpush1.bf16.msra.mxu0 %v5152
      %5790 = vmatprep.subr.bf16.mxu0 %v5149
      %5791 = vmatpush1.bf16.msra.mxu0 %v5148
      %5792 = vmatprep.subr.bf16.mxu0 %v5145
      %5793 = vmatpush1.bf16.msra.mxu0 %v5144
      %5794 = vmatprep.subr.bf16.mxu0 %v5141
      %5795 = vmatpush1.bf16.msra.mxu0 %v5140
      %5796 = vmatprep.subr.bf16.mxu0 %v5201
      %5797 = vmatpush2.bf16.msra.mxu0 %v5200
      %5798 = vmatprep.subr.bf16.mxu0 %v5197
      %5799 = vmatpush2.bf16.msra.mxu0 %v5196
      %5800 = vmatprep.subr.bf16.mxu0 %v5193
      %5801 = vmatpush2.bf16.msra.mxu0 %v5192
      %5802 = vmatprep.subr.bf16.mxu0 %v5189
      %5803 = vmatpush2.bf16.msra.mxu0 %v5188
      %5804 = vmatprep.subr.bf16.mxu0 %v5185
      %5805 = vmatpush2.bf16.msra.mxu0 %v5184
      %5806 = vmatprep.subr.bf16.mxu0 %v5181
      %5807 = vmatpush2.bf16.msra.mxu0 %v5180
      %5808 = vmatprep.subr.bf16.mxu0 %v5177
      %5809 = vmatpush2.bf16.msra.mxu0 %v5176
      %5810 = vmatprep.subr.bf16.mxu0 %v5173
      %5811 = vmatpush2.bf16.msra.mxu0 %v5172
      %5812 = vmatprep.mubr.bf16.mxu0 %v4541
      %5813 = vmatmul.mubr.bf16.gmra.mxu0 %v4540
      %v5814 = vpop.f32.mrf.mxu0
      %v5815 = vadd.f32 %v4745, %v5814
      %v5816 = vpop.f32.mrf.mxu0
      %v5817 = vadd.f32 %v4749, %v5816
      %v5818 = vpop.f32.mrf.mxu0
      %v5819 = vadd.f32 %v4745, %v5818
      %v5820 = vpop.f32.mrf.mxu0
      %v5821 = vadd.f32 %v4749, %v5820
      %5822 = vmatprep.mubr.bf16.mxu0 %v4545
      %5823 = vmatmul.mubr.bf16.gmra.mxu0 %v4544
      %v5824 = vpop.f32.mrf.mxu0
      %v5825 = vadd.f32 %v4745, %v5824
      %v5826 = vpop.f32.mrf.mxu0
      %v5827 = vadd.f32 %v4749, %v5826
      %v5828 = vpop.f32.mrf.mxu0
      %v5829 = vadd.f32 %v4745, %v5828
      %v5830 = vpop.f32.mrf.mxu0
      %v5831 = vadd.f32 %v4749, %v5830
      %5832 = vmatprep.mubr.bf16.mxu0 %v4549
      %5833 = vmatmul.mubr.bf16.gmra.mxu0 %v4548
      %v5834 = vpop.f32.mrf.mxu0
      %v5835 = vadd.f32 %v4745, %v5834
      %v5836 = vpop.f32.mrf.mxu0
      %v5837 = vadd.f32 %v4749, %v5836
      %v5838 = vpop.f32.mrf.mxu0
      %v5839 = vadd.f32 %v4745, %v5838
      %v5840 = vpop.f32.mrf.mxu0
      %v5841 = vadd.f32 %v4749, %v5840
      %5842 = vmatprep.mubr.bf16.mxu0 %v4553
      %5843 = vmatmul.mubr.bf16.gmra.mxu0 %v4552
      %v5844 = vpop.f32.mrf.mxu0
      %v5845 = vadd.f32 %v4745, %v5844
      %v5846 = vpop.f32.mrf.mxu0
      %v5847 = vadd.f32 %v4749, %v5846
      %v5848 = vpop.f32.mrf.mxu0
      %v5849 = vadd.f32 %v4745, %v5848
      %v5850 = vpop.f32.mrf.mxu0
      %v5851 = vadd.f32 %v4749, %v5850
      %5852 = vmatprep.mubr.bf16.mxu0 %v4557
      %5853 = vmatmul.mubr.bf16.gmra.mxu0 %v4556
      %v5854 = vpop.f32.mrf.mxu0
      %v5855 = vadd.f32 %v4745, %v5854
      %v5856 = vpop.f32.mrf.mxu0
      %v5857 = vadd.f32 %v4749, %v5856
      %v5858 = vpop.f32.mrf.mxu0
      %v5859 = vadd.f32 %v4745, %v5858
      %v5860 = vpop.f32.mrf.mxu0
      %v5861 = vadd.f32 %v4749, %v5860
      %5862 = vmatprep.mubr.bf16.mxu0 %v4561
      %5863 = vmatmul.mubr.bf16.gmra.mxu0 %v4560
      %v5864 = vpop.f32.mrf.mxu0
      %v5865 = vadd.f32 %v4745, %v5864
      %v5866 = vpop.f32.mrf.mxu0
      %v5867 = vadd.f32 %v4749, %v5866
      %v5868 = vpop.f32.mrf.mxu0
      %v5869 = vadd.f32 %v4745, %v5868
      %v5870 = vpop.f32.mrf.mxu0
      %v5871 = vadd.f32 %v4749, %v5870
      %5872 = vmatprep.mubr.bf16.mxu0 %v4565
      %5873 = vmatmul.mubr.bf16.gmra.mxu0 %v4564
      %v5874 = vpop.f32.mrf.mxu0
      %v5875 = vadd.f32 %v4745, %v5874
      %v5876 = vpop.f32.mrf.mxu0
      %v5877 = vadd.f32 %v4749, %v5876
      %v5878 = vpop.f32.mrf.mxu0
      %v5879 = vadd.f32 %v4745, %v5878
      %v5880 = vpop.f32.mrf.mxu0
      %v5881 = vadd.f32 %v4749, %v5880
      %5882 = vmatprep.mubr.bf16.mxu0 %v4569
      %5883 = vmatmul.mubr.bf16.gmra.mxu0 %v4568
      %v5884 = vpop.f32.mrf.mxu0
      %v5885 = vadd.f32 %v4745, %v5884
      %v5886 = vpop.f32.mrf.mxu0
      %v5887 = vadd.f32 %v4749, %v5886
      %v5888 = vpop.f32.mrf.mxu0
      %v5889 = vadd.f32 %v4745, %v5888
      %v5890 = vpop.f32.mrf.mxu0
      %v5891 = vadd.f32 %v4749, %v5890
      %5892 = vmatprep.mubr.bf16.mxu0 %v4573
      %5893 = vmatmul.mubr.bf16.gmra.mxu0 %v4572
      %v5894 = vpop.f32.mrf.mxu0
      %v5895 = vadd.f32 %v4745, %v5894
      %v5896 = vpop.f32.mrf.mxu0
      %v5897 = vadd.f32 %v4749, %v5896
      %v5898 = vpop.f32.mrf.mxu0
      %v5899 = vadd.f32 %v4745, %v5898
      %v5900 = vpop.f32.mrf.mxu0
      %v5901 = vadd.f32 %v4749, %v5900
      %5902 = vmatprep.mubr.bf16.mxu0 %v4577
      %5903 = vmatmul.mubr.bf16.gmra.mxu0 %v4576
      %v5904 = vpop.f32.mrf.mxu0
      %v5905 = vadd.f32 %v4745, %v5904
      %v5906 = vpop.f32.mrf.mxu0
      %v5907 = vadd.f32 %v4749, %v5906
      %v5908 = vpop.f32.mrf.mxu0
      %v5909 = vadd.f32 %v4745, %v5908
      %v5910 = vpop.f32.mrf.mxu0
      %v5911 = vadd.f32 %v4749, %v5910
      %5912 = vmatprep.mubr.bf16.mxu0 %v4581
      %5913 = vmatmul.mubr.bf16.gmra.mxu0 %v4580
      %v5914 = vpop.f32.mrf.mxu0
      %v5915 = vadd.f32 %v4745, %v5914
      %v5916 = vpop.f32.mrf.mxu0
      %v5917 = vadd.f32 %v4749, %v5916
      %v5918 = vpop.f32.mrf.mxu0
      %v5919 = vadd.f32 %v4745, %v5918
      %v5920 = vpop.f32.mrf.mxu0
      %v5921 = vadd.f32 %v4749, %v5920
      %5922 = vmatprep.mubr.bf16.mxu0 %v4585
      %5923 = vmatmul.mubr.bf16.gmra.mxu0 %v4584
      %v5924 = vpop.f32.mrf.mxu0
      %v5925 = vadd.f32 %v4745, %v5924
      %v5926 = vpop.f32.mrf.mxu0
      %v5927 = vadd.f32 %v4749, %v5926
      %v5928 = vpop.f32.mrf.mxu0
      %v5929 = vadd.f32 %v4745, %v5928
      %v5930 = vpop.f32.mrf.mxu0
      %v5931 = vadd.f32 %v4749, %v5930
      %5932 = vmatprep.mubr.bf16.mxu0 %v4589
      %5933 = vmatmul.mubr.bf16.gmra.mxu0 %v4588
      %v5934 = vpop.f32.mrf.mxu0
      %v5935 = vadd.f32 %v4745, %v5934
      %v5936 = vpop.f32.mrf.mxu0
      %v5937 = vadd.f32 %v4749, %v5936
      %v5938 = vpop.f32.mrf.mxu0
      %v5939 = vadd.f32 %v4745, %v5938
      %v5940 = vpop.f32.mrf.mxu0
      %v5941 = vadd.f32 %v4749, %v5940
      %5942 = vmatprep.mubr.bf16.mxu0 %v4593
      %5943 = vmatmul.mubr.bf16.gmra.mxu0 %v4592
      %v5944 = vpop.f32.mrf.mxu0
      %v5945 = vadd.f32 %v4745, %v5944
      %v5946 = vpop.f32.mrf.mxu0
      %v5947 = vadd.f32 %v4749, %v5946
      %v5948 = vpop.f32.mrf.mxu0
      %v5949 = vadd.f32 %v4745, %v5948
      %v5950 = vpop.f32.mrf.mxu0
      %v5951 = vadd.f32 %v4749, %v5950
      %5952 = vmatprep.mubr.bf16.mxu0 %v4597
      %5953 = vmatmul.mubr.bf16.gmra.mxu0 %v4596
      %v5954 = vpop.f32.mrf.mxu0
      %v5955 = vadd.f32 %v4745, %v5954
      %v5956 = vpop.f32.mrf.mxu0
      %v5957 = vadd.f32 %v4749, %v5956
      %v5958 = vpop.f32.mrf.mxu0
      %v5959 = vadd.f32 %v4745, %v5958
      %v5960 = vpop.f32.mrf.mxu0
      %v5961 = vadd.f32 %v4749, %v5960
      %5962 = vmatprep.mubr.bf16.mxu0 %v4601
      %5963 = vmatmul.mubr.bf16.gmra.mxu0 %v4600
      %v5964 = vpop.f32.mrf.mxu0
      %v5965 = vadd.f32 %v4745, %v5964
      %v5966 = vpop.f32.mrf.mxu0
      %v5967 = vadd.f32 %v4749, %v5966
      %v5968 = vpop.f32.mrf.mxu0
      %v5969 = vadd.f32 %v4745, %v5968
      %v5970 = vpop.f32.mrf.mxu0
      %v5971 = vadd.f32 %v4749, %v5970
      %5972 = vdwg.mxu0
      %5973 = vmatprep.subr.bf16.mxu0 %v5233
      %5974 = vmatpush1.bf16.msra.mxu0 %v5232
      %5975 = vmatprep.subr.bf16.mxu0 %v5229
      %5976 = vmatpush1.bf16.msra.mxu0 %v5228
      %5977 = vmatprep.subr.bf16.mxu0 %v5225
      %5978 = vmatpush1.bf16.msra.mxu0 %v5224
      %5979 = vmatprep.subr.bf16.mxu0 %v5221
      %5980 = vmatpush1.bf16.msra.mxu0 %v5220
      %5981 = vmatprep.subr.bf16.mxu0 %v5217
      %5982 = vmatpush1.bf16.msra.mxu0 %v5216
      %5983 = vmatprep.subr.bf16.mxu0 %v5213
      %5984 = vmatpush1.bf16.msra.mxu0 %v5212
      %5985 = vmatprep.subr.bf16.mxu0 %v5209
      %5986 = vmatpush1.bf16.msra.mxu0 %v5208
      %5987 = vmatprep.subr.bf16.mxu0 %v5205
      %5988 = vmatpush1.bf16.msra.mxu0 %v5204
      %5989 = vmatprep.subr.bf16.mxu0 %v5265
      %5990 = vmatpush2.bf16.msra.mxu0 %v5264
      %5991 = vmatprep.subr.bf16.mxu0 %v5261
      %5992 = vmatpush2.bf16.msra.mxu0 %v5260
      %5993 = vmatprep.subr.bf16.mxu0 %v5257
      %5994 = vmatpush2.bf16.msra.mxu0 %v5256
      %5995 = vmatprep.subr.bf16.mxu0 %v5253
      %5996 = vmatpush2.bf16.msra.mxu0 %v5252
      %5997 = vmatprep.subr.bf16.mxu0 %v5249
      %5998 = vmatpush2.bf16.msra.mxu0 %v5248
      %5999 = vmatprep.subr.bf16.mxu0 %v5245
      %6000 = vmatpush2.bf16.msra.mxu0 %v5244
      %6001 = vmatprep.subr.bf16.mxu0 %v5241
      %6002 = vmatpush2.bf16.msra.mxu0 %v5240
      %6003 = vmatprep.subr.bf16.mxu0 %v5237
      %6004 = vmatpush2.bf16.msra.mxu0 %v5236
      %6005 = vmatprep.mubr.bf16.mxu0 %v4543
      %6006 = vmatmul.mubr.bf16.gmra.mxu0 %v4542
      %v6007 = vpop.f32.mrf.mxu0
      %v6008 = vadd.f32 %v5815, %v6007
      %v6009 = vpop.f32.mrf.mxu0
      %v6010 = vadd.f32 %v5817, %v6009
      %v6011 = vpop.f32.mrf.mxu0
      %v6012 = vadd.f32 %v5819, %v6011
      %v6013 = vpop.f32.mrf.mxu0
      %v6014 = vadd.f32 %v5821, %v6013
      %6015 = vmatprep.mubr.bf16.mxu0 %v4547
      %6016 = vmatmul.mubr.bf16.gmra.mxu0 %v4546
      %v6017 = vpop.f32.mrf.mxu0
      %v6018 = vadd.f32 %v5825, %v6017
      %v6019 = vpop.f32.mrf.mxu0
      %v6020 = vadd.f32 %v5827, %v6019
      %v6021 = vpop.f32.mrf.mxu0
      %v6022 = vadd.f32 %v5829, %v6021
      %v6023 = vpop.f32.mrf.mxu0
      %v6024 = vadd.f32 %v5831, %v6023
      %6025 = vmatprep.mubr.bf16.mxu0 %v4551
      %6026 = vmatmul.mubr.bf16.gmra.mxu0 %v4550
      %v6027 = vpop.f32.mrf.mxu0
      %v6028 = vadd.f32 %v5835, %v6027
      %v6029 = vpop.f32.mrf.mxu0
      %v6030 = vadd.f32 %v5837, %v6029
      %v6031 = vpop.f32.mrf.mxu0
      %v6032 = vadd.f32 %v5839, %v6031
      %v6033 = vpop.f32.mrf.mxu0
      %v6034 = vadd.f32 %v5841, %v6033
      %6035 = vmatprep.mubr.bf16.mxu0 %v4555
      %6036 = vmatmul.mubr.bf16.gmra.mxu0 %v4554
      %v6037 = vpop.f32.mrf.mxu0
      %v6038 = vadd.f32 %v5845, %v6037
      %v6039 = vpop.f32.mrf.mxu0
      %v6040 = vadd.f32 %v5847, %v6039
      %v6041 = vpop.f32.mrf.mxu0
      %v6042 = vadd.f32 %v5849, %v6041
      %v6043 = vpop.f32.mrf.mxu0
      %v6044 = vadd.f32 %v5851, %v6043
      %6045 = vmatprep.mubr.bf16.mxu0 %v4559
      %6046 = vmatmul.mubr.bf16.gmra.mxu0 %v4558
      %v6047 = vpop.f32.mrf.mxu0
      %v6048 = vadd.f32 %v5855, %v6047
      %v6049 = vpop.f32.mrf.mxu0
      %v6050 = vadd.f32 %v5857, %v6049
      %v6051 = vpop.f32.mrf.mxu0
      %v6052 = vadd.f32 %v5859, %v6051
      %v6053 = vpop.f32.mrf.mxu0
      %v6054 = vadd.f32 %v5861, %v6053
      %6055 = vmatprep.mubr.bf16.mxu0 %v4563
      %6056 = vmatmul.mubr.bf16.gmra.mxu0 %v4562
      %v6057 = vpop.f32.mrf.mxu0
      %v6058 = vadd.f32 %v5865, %v6057
      %v6059 = vpop.f32.mrf.mxu0
      %v6060 = vadd.f32 %v5867, %v6059
      %v6061 = vpop.f32.mrf.mxu0
      %v6062 = vadd.f32 %v5869, %v6061
      %v6063 = vpop.f32.mrf.mxu0
      %v6064 = vadd.f32 %v5871, %v6063
      %6065 = vmatprep.mubr.bf16.mxu0 %v4567
      %6066 = vmatmul.mubr.bf16.gmra.mxu0 %v4566
      %v6067 = vpop.f32.mrf.mxu0
      %v6068 = vadd.f32 %v5875, %v6067
      %v6069 = vpop.f32.mrf.mxu0
      %v6070 = vadd.f32 %v5877, %v6069
      %v6071 = vpop.f32.mrf.mxu0
      %v6072 = vadd.f32 %v5879, %v6071
      %v6073 = vpop.f32.mrf.mxu0
      %v6074 = vadd.f32 %v5881, %v6073
      %6075 = vmatprep.mubr.bf16.mxu0 %v4571
      %6076 = vmatmul.mubr.bf16.gmra.mxu0 %v4570
      %v6077 = vpop.f32.mrf.mxu0
      %v6078 = vadd.f32 %v5885, %v6077
      %v6079 = vpop.f32.mrf.mxu0
      %v6080 = vadd.f32 %v5887, %v6079
      %v6081 = vpop.f32.mrf.mxu0
      %v6082 = vadd.f32 %v5889, %v6081
      %v6083 = vpop.f32.mrf.mxu0
      %v6084 = vadd.f32 %v5891, %v6083
      %6085 = vmatprep.mubr.bf16.mxu0 %v4575
      %6086 = vmatmul.mubr.bf16.gmra.mxu0 %v4574
      %v6087 = vpop.f32.mrf.mxu0
      %v6088 = vadd.f32 %v5895, %v6087
      %v6089 = vpop.f32.mrf.mxu0
      %v6090 = vadd.f32 %v5897, %v6089
      %v6091 = vpop.f32.mrf.mxu0
      %v6092 = vadd.f32 %v5899, %v6091
      %v6093 = vpop.f32.mrf.mxu0
      %v6094 = vadd.f32 %v5901, %v6093
      %6095 = vmatprep.mubr.bf16.mxu0 %v4579
      %6096 = vmatmul.mubr.bf16.gmra.mxu0 %v4578
      %v6097 = vpop.f32.mrf.mxu0
      %v6098 = vadd.f32 %v5905, %v6097
      %v6099 = vpop.f32.mrf.mxu0
      %v6100 = vadd.f32 %v5907, %v6099
      %v6101 = vpop.f32.mrf.mxu0
      %v6102 = vadd.f32 %v5909, %v6101
      %v6103 = vpop.f32.mrf.mxu0
      %v6104 = vadd.f32 %v5911, %v6103
      %6105 = vmatprep.mubr.bf16.mxu0 %v4583
      %6106 = vmatmul.mubr.bf16.gmra.mxu0 %v4582
      %v6107 = vpop.f32.mrf.mxu0
      %v6108 = vadd.f32 %v5915, %v6107
      %v6109 = vpop.f32.mrf.mxu0
      %v6110 = vadd.f32 %v5917, %v6109
      %v6111 = vpop.f32.mrf.mxu0
      %v6112 = vadd.f32 %v5919, %v6111
      %v6113 = vpop.f32.mrf.mxu0
      %v6114 = vadd.f32 %v5921, %v6113
      %6115 = vmatprep.mubr.bf16.mxu0 %v4587
      %6116 = vmatmul.mubr.bf16.gmra.mxu0 %v4586
      %v6117 = vpop.f32.mrf.mxu0
      %v6118 = vadd.f32 %v5925, %v6117
      %v6119 = vpop.f32.mrf.mxu0
      %v6120 = vadd.f32 %v5927, %v6119
      %v6121 = vpop.f32.mrf.mxu0
      %v6122 = vadd.f32 %v5929, %v6121
      %v6123 = vpop.f32.mrf.mxu0
      %v6124 = vadd.f32 %v5931, %v6123
      %6125 = vmatprep.mubr.bf16.mxu0 %v4591
      %6126 = vmatmul.mubr.bf16.gmra.mxu0 %v4590
      %v6127 = vpop.f32.mrf.mxu0
      %v6128 = vadd.f32 %v5935, %v6127
      %v6129 = vpop.f32.mrf.mxu0
      %v6130 = vadd.f32 %v5937, %v6129
      %v6131 = vpop.f32.mrf.mxu0
      %v6132 = vadd.f32 %v5939, %v6131
      %v6133 = vpop.f32.mrf.mxu0
      %v6134 = vadd.f32 %v5941, %v6133
      %6135 = vmatprep.mubr.bf16.mxu0 %v4595
      %6136 = vmatmul.mubr.bf16.gmra.mxu0 %v4594
      %v6137 = vpop.f32.mrf.mxu0
      %v6138 = vadd.f32 %v5945, %v6137
      %v6139 = vpop.f32.mrf.mxu0
      %v6140 = vadd.f32 %v5947, %v6139
      %v6141 = vpop.f32.mrf.mxu0
      %v6142 = vadd.f32 %v5949, %v6141
      %v6143 = vpop.f32.mrf.mxu0
      %v6144 = vadd.f32 %v5951, %v6143
      %6145 = vmatprep.mubr.bf16.mxu0 %v4599
      %6146 = vmatmul.mubr.bf16.gmra.mxu0 %v4598
      %v6147 = vpop.f32.mrf.mxu0
      %v6148 = vadd.f32 %v5955, %v6147
      %v6149 = vpop.f32.mrf.mxu0
      %v6150 = vadd.f32 %v5957, %v6149
      %v6151 = vpop.f32.mrf.mxu0
      %v6152 = vadd.f32 %v5959, %v6151
      %v6153 = vpop.f32.mrf.mxu0
      %v6154 = vadd.f32 %v5961, %v6153
      %6155 = vmatprep.mubr.bf16.mxu0 %v4603
      %6156 = vmatmul.mubr.bf16.gmra.mxu0 %v4602
      %v6157 = vpop.f32.mrf.mxu0
      %v6158 = vadd.f32 %v5965, %v6157
      %v6159 = vpop.f32.mrf.mxu0
      %v6160 = vadd.f32 %v5967, %v6159
      %v6161 = vpop.f32.mrf.mxu0
      %v6162 = vadd.f32 %v5969, %v6161
      %v6163 = vpop.f32.mrf.mxu0
      %v6164 = vadd.f32 %v5971, %v6163
      %6165 = vdwg.mxu0
      %v6166 = vtanh.pop %v5622
      %v6167 = vtanh.pop %v5624
      %v6168 = vtanh.pop %v6008
      %v6169 = vtanh.pop %v6010
      %v6170 = vtanh.pop %v5626
      %v6171 = vtanh.pop %v5628
      %v6172 = vtanh.pop %v6012
      %v6173 = vtanh.pop %v6014
      %v6174 = vtanh.pop %v5632
      %v6175 = vtanh.pop %v5634
      %v6176 = vtanh.pop %v6018
      %v6177 = vtanh.pop %v6020
      %v6178 = vtanh.pop %v5636
      %v6179 = vtanh.pop %v5638
      %v6180 = vtanh.pop %v6022
      %v6181 = vtanh.pop %v6024
      %v6182 = vtanh.pop %v5642
      %v6183 = vtanh.pop %v5644
      %v6184 = vtanh.pop %v6028
      %v6185 = vtanh.pop %v6030
      %v6186 = vtanh.pop %v5646
      %v6187 = vtanh.pop %v5648
      %v6188 = vtanh.pop %v6032
      %v6189 = vtanh.pop %v6034
      %v6190 = vtanh.pop %v5652
      %v6191 = vtanh.pop %v5654
      %v6192 = vtanh.pop %v6038
      %v6193 = vtanh.pop %v6040
      %v6194 = vtanh.pop %v5656
      %v6195 = vtanh.pop %v5658
      %v6196 = vtanh.pop %v6042
      %v6197 = vtanh.pop %v6044
      %v6198 = vtanh.pop %v5662
      %v6199 = vtanh.pop %v5664
      %v6200 = vtanh.pop %v6048
      %v6201 = vtanh.pop %v6050
      %v6202 = vtanh.pop %v5666
      %v6203 = vtanh.pop %v5668
      %v6204 = vtanh.pop %v6052
      %v6205 = vtanh.pop %v6054
      %v6206 = vtanh.pop %v5672
      %v6207 = vtanh.pop %v5674
      %v6208 = vtanh.pop %v6058
      %v6209 = vtanh.pop %v6060
      %v6210 = vtanh.pop %v5676
      %v6211 = vtanh.pop %v5678
      %v6212 = vtanh.pop %v6062
      %v6213 = vtanh.pop %v6064
      %v6214 = vtanh.pop %v5682
      %v6215 = vtanh.pop %v5684
      %v6216 = vtanh.pop %v6068
      %v6217 = vtanh.pop %v6070
      %v6218 = vtanh.pop %v5686
      %v6219 = vtanh.pop %v5688
      %v6220 = vtanh.pop %v6072
      %v6221 = vtanh.pop %v6074
      %v6222 = vtanh.pop %v5692
      %v6223 = vtanh.pop %v5694
      %v6224 = vtanh.pop %v6078
      %v6225 = vtanh.pop %v6080
      %v6226 = vtanh.pop %v5696
      %v6227 = vtanh.pop %v5698
      %v6228 = vtanh.pop %v6082
      %v6229 = vtanh.pop %v6084
      %v6230 = vtanh.pop %v5702
      %v6231 = vtanh.pop %v5704
      %v6232 = vtanh.pop %v6088
      %v6233 = vtanh.pop %v6090
      %v6234 = vtanh.pop %v5706
      %v6235 = vtanh.pop %v5708
      %v6236 = vtanh.pop %v6092
      %v6237 = vtanh.pop %v6094
      %v6238 = vtanh.pop %v5712
      %v6239 = vtanh.pop %v5714
      %v6240 = vtanh.pop %v6098
      %v6241 = vtanh.pop %v6100
      %v6242 = vtanh.pop %v5716
      %v6243 = vtanh.pop %v5718
      %v6244 = vtanh.pop %v6102
      %v6245 = vtanh.pop %v6104
      %v6246 = vtanh.pop %v5722
      %v6247 = vtanh.pop %v5724
      %v6248 = vtanh.pop %v6108
      %v6249 = vtanh.pop %v6110
      %v6250 = vtanh.pop %v5726
      %v6251 = vtanh.pop %v5728
      %v6252 = vtanh.pop %v6112
      %v6253 = vtanh.pop %v6114
      %v6254 = vtanh.pop %v5732
      %v6255 = vtanh.pop %v5734
      %v6256 = vtanh.pop %v6118
      %v6257 = vtanh.pop %v6120
      %v6258 = vtanh.pop %v5736
      %v6259 = vtanh.pop %v5738
      %v6260 = vtanh.pop %v6122
      %v6261 = vtanh.pop %v6124
      %v6262 = vtanh.pop %v5742
      %v6263 = vtanh.pop %v5744
      %v6264 = vtanh.pop %v6128
      %v6265 = vtanh.pop %v6130
      %v6266 = vtanh.pop %v5746
      %v6267 = vtanh.pop %v5748
      %v6268 = vtanh.pop %v6132
      %v6269 = vtanh.pop %v6134
      %v6270 = vtanh.pop %v5752
      %v6271 = vtanh.pop %v5754
      %v6272 = vtanh.pop %v6138
      %v6273 = vtanh.pop %v6140
      %v6274 = vtanh.pop %v5756
      %v6275 = vtanh.pop %v5758
      %v6276 = vtanh.pop %v6142
      %v6277 = vtanh.pop %v6144
      %v6278 = vtanh.pop %v5762
      %v6279 = vtanh.pop %v5764
      %v6280 = vtanh.pop %v6148
      %v6281 = vtanh.pop %v6150
      %v6282 = vtanh.pop %v5766
      %v6283 = vtanh.pop %v5768
      %v6284 = vtanh.pop %v6152
      %v6285 = vtanh.pop %v6154
      %v6286 = vtanh.pop %v5772
      %v6287 = vtanh.pop %v5774
      %v6288 = vtanh.pop %v6158
      %v6289 = vtanh.pop %v6160
      %v6290 = vtanh.pop %v5776
      %v6291 = vtanh.pop %v5778
      %v6292 = vtanh.pop %v6162
      %v6293 = vtanh.pop %v6164
      %v6294 = vadd.f32 %v6166, %v6167
      %v6295 = vadd.f32 %v6294, %v6168
      %v6296 = vadd.f32 %v6295, %v6169
      %6297 = vadd.xlane.f32.xlu0 %v6296
      %v6298 = vpop.xlane.xlu0 %6297
      %v6299 = vadd.f32 %v6170, %v6171
      %v6300 = vadd.f32 %v6299, %v6172
      %v6301 = vadd.f32 %v6300, %v6173
      %6302 = vadd.xlane.f32.xlu0 %v6301
      %v6303 = vpop.xlane.xlu0 %6302
      %v6304 = vadd.f32 %v6174, %v6175
      %v6305 = vadd.f32 %v6304, %v6176
      %v6306 = vadd.f32 %v6305, %v6177
      %6307 = vadd.xlane.f32.xlu0 %v6306
      %v6308 = vpop.xlane.xlu0 %6307
      %v6309 = vadd.f32 %v6178, %v6179
      %v6310 = vadd.f32 %v6309, %v6180
      %v6311 = vadd.f32 %v6310, %v6181
      %6312 = vadd.xlane.f32.xlu0 %v6311
      %v6313 = vpop.xlane.xlu0 %6312
      %v6314 = vadd.f32 %v6182, %v6183
      %v6315 = vadd.f32 %v6314, %v6184
      %v6316 = vadd.f32 %v6315, %v6185
      %6317 = vadd.xlane.f32.xlu0 %v6316
      %v6318 = vpop.xlane.xlu0 %6317
      %v6319 = vadd.f32 %v6186, %v6187
      %v6320 = vadd.f32 %v6319, %v6188
      %v6321 = vadd.f32 %v6320, %v6189
      %6322 = vadd.xlane.f32.xlu0 %v6321
      %v6323 = vpop.xlane.xlu0 %6322
      %v6324 = vadd.f32 %v6190, %v6191
      %v6325 = vadd.f32 %v6324, %v6192
      %v6326 = vadd.f32 %v6325, %v6193
      %6327 = vadd.xlane.f32.xlu0 %v6326
      %v6328 = vpop.xlane.xlu0 %6327
      %v6329 = vadd.f32 %v6194, %v6195
      %v6330 = vadd.f32 %v6329, %v6196
      %v6331 = vadd.f32 %v6330, %v6197
      %6332 = vadd.xlane.f32.xlu0 %v6331
      %v6333 = vpop.xlane.xlu0 %6332
      %v6334 = vadd.f32 %v6198, %v6199
      %v6335 = vadd.f32 %v6334, %v6200
      %v6336 = vadd.f32 %v6335, %v6201
      %6337 = vadd.xlane.f32.xlu0 %v6336
      %v6338 = vpop.xlane.xlu0 %6337
      %v6339 = vadd.f32 %v6202, %v6203
      %v6340 = vadd.f32 %v6339, %v6204
      %v6341 = vadd.f32 %v6340, %v6205
      %6342 = vadd.xlane.f32.xlu0 %v6341
      %v6343 = vpop.xlane.xlu0 %6342
      %v6344 = vadd.f32 %v6206, %v6207
      %v6345 = vadd.f32 %v6344, %v6208
      %v6346 = vadd.f32 %v6345, %v6209
      %6347 = vadd.xlane.f32.xlu0 %v6346
      %v6348 = vpop.xlane.xlu0 %6347
      %v6349 = vadd.f32 %v6210, %v6211
      %v6350 = vadd.f32 %v6349, %v6212
      %v6351 = vadd.f32 %v6350, %v6213
      %6352 = vadd.xlane.f32.xlu0 %v6351
      %v6353 = vpop.xlane.xlu0 %6352
      %v6354 = vadd.f32 %v6214, %v6215
      %v6355 = vadd.f32 %v6354, %v6216
      %v6356 = vadd.f32 %v6355, %v6217
      %6357 = vadd.xlane.f32.xlu0 %v6356
      %v6358 = vpop.xlane.xlu0 %6357
      %v6359 = vadd.f32 %v6218, %v6219
      %v6360 = vadd.f32 %v6359, %v6220
      %v6361 = vadd.f32 %v6360, %v6221
      %6362 = vadd.xlane.f32.xlu0 %v6361
      %v6363 = vpop.xlane.xlu0 %6362
      %v6364 = vadd.f32 %v6222, %v6223
      %v6365 = vadd.f32 %v6364, %v6224
      %v6366 = vadd.f32 %v6365, %v6225
      %6367 = vadd.xlane.f32.xlu0 %v6366
      %v6368 = vpop.xlane.xlu0 %6367
      %v6369 = vadd.f32 %v6226, %v6227
      %v6370 = vadd.f32 %v6369, %v6228
      %v6371 = vadd.f32 %v6370, %v6229
      %6372 = vadd.xlane.f32.xlu0 %v6371
      %v6373 = vpop.xlane.xlu0 %6372
      %v6374 = vadd.f32 %v6230, %v6231
      %v6375 = vadd.f32 %v6374, %v6232
      %v6376 = vadd.f32 %v6375, %v6233
      %6377 = vadd.xlane.f32.xlu0 %v6376
      %v6378 = vpop.xlane.xlu0 %6377
      %v6379 = vadd.f32 %v6234, %v6235
      %v6380 = vadd.f32 %v6379, %v6236
      %v6381 = vadd.f32 %v6380, %v6237
      %6382 = vadd.xlane.f32.xlu0 %v6381
      %v6383 = vpop.xlane.xlu0 %6382
      %v6384 = vadd.f32 %v6238, %v6239
      %v6385 = vadd.f32 %v6384, %v6240
      %v6386 = vadd.f32 %v6385, %v6241
      %6387 = vadd.xlane.f32.xlu0 %v6386
      %v6388 = vpop.xlane.xlu0 %6387
      %v6389 = vadd.f32 %v6242, %v6243
      %v6390 = vadd.f32 %v6389, %v6244
      %v6391 = vadd.f32 %v6390, %v6245
      %6392 = vadd.xlane.f32.xlu0 %v6391
      %v6393 = vpop.xlane.xlu0 %6392
      %v6394 = vadd.f32 %v6246, %v6247
      %v6395 = vadd.f32 %v6394, %v6248
      %v6396 = vadd.f32 %v6395, %v6249
      %6397 = vadd.xlane.f32.xlu0 %v6396
      %v6398 = vpop.xlane.xlu0 %6397
      %v6399 = vadd.f32 %v6250, %v6251
      %v6400 = vadd.f32 %v6399, %v6252
      %v6401 = vadd.f32 %v6400, %v6253
      %6402 = vadd.xlane.f32.xlu0 %v6401
      %v6403 = vpop.xlane.xlu0 %6402
      %v6404 = vadd.f32 %v6254, %v6255
      %v6405 = vadd.f32 %v6404, %v6256
      %v6406 = vadd.f32 %v6405, %v6257
      %6407 = vadd.xlane.f32.xlu0 %v6406
      %v6408 = vpop.xlane.xlu0 %6407
      %v6409 = vadd.f32 %v6258, %v6259
      %v6410 = vadd.f32 %v6409, %v6260
      %v6411 = vadd.f32 %v6410, %v6261
      %6412 = vadd.xlane.f32.xlu0 %v6411
      %v6413 = vpop.xlane.xlu0 %6412
      %v6414 = vadd.f32 %v6262, %v6263
      %v6415 = vadd.f32 %v6414, %v6264
      %v6416 = vadd.f32 %v6415, %v6265
      %6417 = vadd.xlane.f32.xlu0 %v6416
      %v6418 = vpop.xlane.xlu0 %6417
      %v6419 = vadd.f32 %v6266, %v6267
      %v6420 = vadd.f32 %v6419, %v6268
      %v6421 = vadd.f32 %v6420, %v6269
      %6422 = vadd.xlane.f32.xlu0 %v6421
      %v6423 = vpop.xlane.xlu0 %6422
      %v6424 = vadd.f32 %v6270, %v6271
      %v6425 = vadd.f32 %v6424, %v6272
      %v6426 = vadd.f32 %v6425, %v6273
      %6427 = vadd.xlane.f32.xlu0 %v6426
      %v6428 = vpop.xlane.xlu0 %6427
      %v6429 = vadd.f32 %v6274, %v6275
      %v6430 = vadd.f32 %v6429, %v6276
      %v6431 = vadd.f32 %v6430, %v6277
      %6432 = vadd.xlane.f32.xlu0 %v6431
      %v6433 = vpop.xlane.xlu0 %6432
      %v6434 = vadd.f32 %v6278, %v6279
      %v6435 = vadd.f32 %v6434, %v6280
      %v6436 = vadd.f32 %v6435, %v6281
      %6437 = vadd.xlane.f32.xlu0 %v6436
      %v6438 = vpop.xlane.xlu0 %6437
      %v6439 = vadd.f32 %v6282, %v6283
      %v6440 = vadd.f32 %v6439, %v6284
      %v6441 = vadd.f32 %v6440, %v6285
      %6442 = vadd.xlane.f32.xlu0 %v6441
      %v6443 = vpop.xlane.xlu0 %6442
      %v6444 = vadd.f32 %v6286, %v6287
      %v6445 = vadd.f32 %v6444, %v6288
      %v6446 = vadd.f32 %v6445, %v6289
      %6447 = vadd.xlane.f32.xlu0 %v6446
      %v6448 = vpop.xlane.xlu0 %6447
      %v6449 = vadd.f32 %v6290, %v6291
      %v6450 = vadd.f32 %v6449, %v6292
      %v6451 = vadd.f32 %v6450, %v6293
      %6452 = vadd.xlane.f32.xlu0 %v6451
      %v6453 = vpop.xlane.xlu0 %6452
      %v6454 = vmul.f32 %v6166, %v6166
      %v6455 = vmul.f32 %v6167, %v6167
      %v6456 = vmul.f32 %v6168, %v6168
      %v6457 = vmul.f32 %v6169, %v6169
      %v6458 = vmul.f32 %v6170, %v6170
      %v6459 = vmul.f32 %v6171, %v6171
      %v6460 = vmul.f32 %v6172, %v6172
      %v6461 = vmul.f32 %v6173, %v6173
      %v6462 = vmul.f32 %v6174, %v6174
      %v6463 = vmul.f32 %v6175, %v6175
      %v6464 = vmul.f32 %v6176, %v6176
      %v6465 = vmul.f32 %v6177, %v6177
      %v6466 = vmul.f32 %v6178, %v6178
      %v6467 = vmul.f32 %v6179, %v6179
      %v6468 = vmul.f32 %v6180, %v6180
      %v6469 = vmul.f32 %v6181, %v6181
      %v6470 = vmul.f32 %v6182, %v6182
      %v6471 = vmul.f32 %v6183, %v6183
      %v6472 = vmul.f32 %v6184, %v6184
      %v6473 = vmul.f32 %v6185, %v6185
      %v6474 = vmul.f32 %v6186, %v6186
      %v6475 = vmul.f32 %v6187, %v6187
      %v6476 = vmul.f32 %v6188, %v6188
      %v6477 = vmul.f32 %v6189, %v6189
      %v6478 = vmul.f32 %v6190, %v6190
      %v6479 = vmul.f32 %v6191, %v6191
      %v6480 = vmul.f32 %v6192, %v6192
      %v6481 = vmul.f32 %v6193, %v6193
      %v6482 = vmul.f32 %v6194, %v6194
      %v6483 = vmul.f32 %v6195, %v6195
      %v6484 = vmul.f32 %v6196, %v6196
      %v6485 = vmul.f32 %v6197, %v6197
      %v6486 = vmul.f32 %v6198, %v6198
      %v6487 = vmul.f32 %v6199, %v6199
      %v6488 = vmul.f32 %v6200, %v6200
      %v6489 = vmul.f32 %v6201, %v6201
      %v6490 = vmul.f32 %v6202, %v6202
      %v6491 = vmul.f32 %v6203, %v6203
      %v6492 = vmul.f32 %v6204, %v6204
      %v6493 = vmul.f32 %v6205, %v6205
      %v6494 = vmul.f32 %v6206, %v6206
      %v6495 = vmul.f32 %v6207, %v6207
      %v6496 = vmul.f32 %v6208, %v6208
      %v6497 = vmul.f32 %v6209, %v6209
      %v6498 = vmul.f32 %v6210, %v6210
      %v6499 = vmul.f32 %v6211, %v6211
      %v6500 = vmul.f32 %v6212, %v6212
      %v6501 = vmul.f32 %v6213, %v6213
      %v6502 = vmul.f32 %v6214, %v6214
      %v6503 = vmul.f32 %v6215, %v6215
      %v6504 = vmul.f32 %v6216, %v6216
      %v6505 = vmul.f32 %v6217, %v6217
      %v6506 = vmul.f32 %v6218, %v6218
      %v6507 = vmul.f32 %v6219, %v6219
      %v6508 = vmul.f32 %v6220, %v6220
      %v6509 = vmul.f32 %v6221, %v6221
      %v6510 = vmul.f32 %v6222, %v6222
      %v6511 = vmul.f32 %v6223, %v6223
      %v6512 = vmul.f32 %v6224, %v6224
      %v6513 = vmul.f32 %v6225, %v6225
      %v6514 = vmul.f32 %v6226, %v6226
      %v6515 = vmul.f32 %v6227, %v6227
      %v6516 = vmul.f32 %v6228, %v6228
      %v6517 = vmul.f32 %v6229, %v6229
      %v6518 = vmul.f32 %v6230, %v6230
      %v6519 = vmul.f32 %v6231, %v6231
      %v6520 = vmul.f32 %v6232, %v6232
      %v6521 = vmul.f32 %v6233, %v6233
      %v6522 = vmul.f32 %v6234, %v6234
      %v6523 = vmul.f32 %v6235, %v6235
      %v6524 = vmul.f32 %v6236, %v6236
      %v6525 = vmul.f32 %v6237, %v6237
      %v6526 = vmul.f32 %v6238, %v6238
      %v6527 = vmul.f32 %v6239, %v6239
      %v6528 = vmul.f32 %v6240, %v6240
      %v6529 = vmul.f32 %v6241, %v6241
      %v6530 = vmul.f32 %v6242, %v6242
      %v6531 = vmul.f32 %v6243, %v6243
      %v6532 = vmul.f32 %v6244, %v6244
      %v6533 = vmul.f32 %v6245, %v6245
      %v6534 = vmul.f32 %v6246, %v6246
      %v6535 = vmul.f32 %v6247, %v6247
      %v6536 = vmul.f32 %v6248, %v6248
      %v6537 = vmul.f32 %v6249, %v6249
      %v6538 = vmul.f32 %v6250, %v6250
      %v6539 = vmul.f32 %v6251, %v6251
      %v6540 = vmul.f32 %v6252, %v6252
      %v6541 = vmul.f32 %v6253, %v6253
      %v6542 = vmul.f32 %v6254, %v6254
      %v6543 = vmul.f32 %v6255, %v6255
      %v6544 = vmul.f32 %v6256, %v6256
      %v6545 = vmul.f32 %v6257, %v6257
      %v6546 = vmul.f32 %v6258, %v6258
      %v6547 = vmul.f32 %v6259, %v6259
      %v6548 = vmul.f32 %v6260, %v6260
      %v6549 = vmul.f32 %v6261, %v6261
      %v6550 = vmul.f32 %v6262, %v6262
      %v6551 = vmul.f32 %v6263, %v6263
      %v6552 = vmul.f32 %v6264, %v6264
      %v6553 = vmul.f32 %v6265, %v6265
      %v6554 = vmul.f32 %v6266, %v6266
      %v6555 = vmul.f32 %v6267, %v6267
      %v6556 = vmul.f32 %v6268, %v6268
      %v6557 = vmul.f32 %v6269, %v6269
      %v6558 = vmul.f32 %v6270, %v6270
      %v6559 = vmul.f32 %v6271, %v6271
      %v6560 = vmul.f32 %v6272, %v6272
      %v6561 = vmul.f32 %v6273, %v6273
      %v6562 = vmul.f32 %v6274, %v6274
      %v6563 = vmul.f32 %v6275, %v6275
      %v6564 = vmul.f32 %v6276, %v6276
      %v6565 = vmul.f32 %v6277, %v6277
      %v6566 = vmul.f32 %v6278, %v6278
      %v6567 = vmul.f32 %v6279, %v6279
      %v6568 = vmul.f32 %v6280, %v6280
      %v6569 = vmul.f32 %v6281, %v6281
      %v6570 = vmul.f32 %v6282, %v6282
      %v6571 = vmul.f32 %v6283, %v6283
      %v6572 = vmul.f32 %v6284, %v6284
      %v6573 = vmul.f32 %v6285, %v6285
      %v6574 = vmul.f32 %v6286, %v6286
      %v6575 = vmul.f32 %v6287, %v6287
      %v6576 = vmul.f32 %v6288, %v6288
      %v6577 = vmul.f32 %v6289, %v6289
      %v6578 = vmul.f32 %v6290, %v6290
      %v6579 = vmul.f32 %v6291, %v6291
      %v6580 = vmul.f32 %v6292, %v6292
      %v6581 = vmul.f32 %v6293, %v6293
      %v6582 = vadd.f32 %v6454, %v6455
      %v6583 = vadd.f32 %v6582, %v6456
      %v6584 = vadd.f32 %v6583, %v6457
      %6585 = vadd.xlane.f32.xlu0 %v6584
      %v6586 = vpop.xlane.xlu0 %6585
      %v6587 = vadd.f32 %v6458, %v6459
      %v6588 = vadd.f32 %v6587, %v6460
      %v6589 = vadd.f32 %v6588, %v6461
      %6590 = vadd.xlane.f32.xlu0 %v6589
      %v6591 = vpop.xlane.xlu0 %6590
      %v6592 = vadd.f32 %v6462, %v6463
      %v6593 = vadd.f32 %v6592, %v6464
      %v6594 = vadd.f32 %v6593, %v6465
      %6595 = vadd.xlane.f32.xlu0 %v6594
      %v6596 = vpop.xlane.xlu0 %6595
      %v6597 = vadd.f32 %v6466, %v6467
      %v6598 = vadd.f32 %v6597, %v6468
      %v6599 = vadd.f32 %v6598, %v6469
      %6600 = vadd.xlane.f32.xlu0 %v6599
      %v6601 = vpop.xlane.xlu0 %6600
      %v6602 = vadd.f32 %v6470, %v6471
      %v6603 = vadd.f32 %v6602, %v6472
      %v6604 = vadd.f32 %v6603, %v6473
      %6605 = vadd.xlane.f32.xlu0 %v6604
      %v6606 = vpop.xlane.xlu0 %6605
      %v6607 = vadd.f32 %v6474, %v6475
      %v6608 = vadd.f32 %v6607, %v6476
      %v6609 = vadd.f32 %v6608, %v6477
      %6610 = vadd.xlane.f32.xlu0 %v6609
      %v6611 = vpop.xlane.xlu0 %6610
      %v6612 = vadd.f32 %v6478, %v6479
      %v6613 = vadd.f32 %v6612, %v6480
      %v6614 = vadd.f32 %v6613, %v6481
      %6615 = vadd.xlane.f32.xlu0 %v6614
      %v6616 = vpop.xlane.xlu0 %6615
      %v6617 = vadd.f32 %v6482, %v6483
      %v6618 = vadd.f32 %v6617, %v6484
      %v6619 = vadd.f32 %v6618, %v6485
      %6620 = vadd.xlane.f32.xlu0 %v6619
      %v6621 = vpop.xlane.xlu0 %6620
      %v6622 = vadd.f32 %v6486, %v6487
      %v6623 = vadd.f32 %v6622, %v6488
      %v6624 = vadd.f32 %v6623, %v6489
      %6625 = vadd.xlane.f32.xlu0 %v6624
      %v6626 = vpop.xlane.xlu0 %6625
      %v6627 = vadd.f32 %v6490, %v6491
      %v6628 = vadd.f32 %v6627, %v6492
      %v6629 = vadd.f32 %v6628, %v6493
      %6630 = vadd.xlane.f32.xlu0 %v6629
      %v6631 = vpop.xlane.xlu0 %6630
      %v6632 = vadd.f32 %v6494, %v6495
      %v6633 = vadd.f32 %v6632, %v6496
      %v6634 = vadd.f32 %v6633, %v6497
      %6635 = vadd.xlane.f32.xlu0 %v6634
      %v6636 = vpop.xlane.xlu0 %6635
      %v6637 = vadd.f32 %v6498, %v6499
      %v6638 = vadd.f32 %v6637, %v6500
      %v6639 = vadd.f32 %v6638, %v6501
      %6640 = vadd.xlane.f32.xlu0 %v6639
      %v6641 = vpop.xlane.xlu0 %6640
      %v6642 = vadd.f32 %v6502, %v6503
      %v6643 = vadd.f32 %v6642, %v6504
      %v6644 = vadd.f32 %v6643, %v6505
      %6645 = vadd.xlane.f32.xlu0 %v6644
      %v6646 = vpop.xlane.xlu0 %6645
      %v6647 = vadd.f32 %v6506, %v6507
      %v6648 = vadd.f32 %v6647, %v6508
      %v6649 = vadd.f32 %v6648, %v6509
      %6650 = vadd.xlane.f32.xlu0 %v6649
      %v6651 = vpop.xlane.xlu0 %6650
      %v6652 = vadd.f32 %v6510, %v6511
      %v6653 = vadd.f32 %v6652, %v6512
      %v6654 = vadd.f32 %v6653, %v6513
      %6655 = vadd.xlane.f32.xlu0 %v6654
      %v6656 = vpop.xlane.xlu0 %6655
      %v6657 = vadd.f32 %v6514, %v6515
      %v6658 = vadd.f32 %v6657, %v6516
      %v6659 = vadd.f32 %v6658, %v6517
      %6660 = vadd.xlane.f32.xlu0 %v6659
      %v6661 = vpop.xlane.xlu0 %6660
      %v6662 = vadd.f32 %v6518, %v6519
      %v6663 = vadd.f32 %v6662, %v6520
      %v6664 = vadd.f32 %v6663, %v6521
      %6665 = vadd.xlane.f32.xlu0 %v6664
      %v6666 = vpop.xlane.xlu0 %6665
      %v6667 = vadd.f32 %v6522, %v6523
      %v6668 = vadd.f32 %v6667, %v6524
      %v6669 = vadd.f32 %v6668, %v6525
      %6670 = vadd.xlane.f32.xlu0 %v6669
      %v6671 = vpop.xlane.xlu0 %6670
      %v6672 = vadd.f32 %v6526, %v6527
      %v6673 = vadd.f32 %v6672, %v6528
      %v6674 = vadd.f32 %v6673, %v6529
      %6675 = vadd.xlane.f32.xlu0 %v6674
      %v6676 = vpop.xlane.xlu0 %6675
      %v6677 = vadd.f32 %v6530, %v6531
      %v6678 = vadd.f32 %v6677, %v6532
      %v6679 = vadd.f32 %v6678, %v6533
      %6680 = vadd.xlane.f32.xlu0 %v6679
      %v6681 = vpop.xlane.xlu0 %6680
      %v6682 = vadd.f32 %v6534, %v6535
      %v6683 = vadd.f32 %v6682, %v6536
      %v6684 = vadd.f32 %v6683, %v6537
      %6685 = vadd.xlane.f32.xlu0 %v6684
      %v6686 = vpop.xlane.xlu0 %6685
      %v6687 = vadd.f32 %v6538, %v6539
      %v6688 = vadd.f32 %v6687, %v6540
      %v6689 = vadd.f32 %v6688, %v6541
      %6690 = vadd.xlane.f32.xlu0 %v6689
      %v6691 = vpop.xlane.xlu0 %6690
      %v6692 = vadd.f32 %v6542, %v6543
      %v6693 = vadd.f32 %v6692, %v6544
      %v6694 = vadd.f32 %v6693, %v6545
      %6695 = vadd.xlane.f32.xlu0 %v6694
      %v6696 = vpop.xlane.xlu0 %6695
      %v6697 = vadd.f32 %v6546, %v6547
      %v6698 = vadd.f32 %v6697, %v6548
      %v6699 = vadd.f32 %v6698, %v6549
      %6700 = vadd.xlane.f32.xlu0 %v6699
      %v6701 = vpop.xlane.xlu0 %6700
      %v6702 = vadd.f32 %v6550, %v6551
      %v6703 = vadd.f32 %v6702, %v6552
      %v6704 = vadd.f32 %v6703, %v6553
      %6705 = vadd.xlane.f32.xlu0 %v6704
      %v6706 = vpop.xlane.xlu0 %6705
      %v6707 = vadd.f32 %v6554, %v6555
      %v6708 = vadd.f32 %v6707, %v6556
      %v6709 = vadd.f32 %v6708, %v6557
      %6710 = vadd.xlane.f32.xlu0 %v6709
      %v6711 = vpop.xlane.xlu0 %6710
      %v6712 = vadd.f32 %v6558, %v6559
      %v6713 = vadd.f32 %v6712, %v6560
      %v6714 = vadd.f32 %v6713, %v6561
      %6715 = vadd.xlane.f32.xlu0 %v6714
      %v6716 = vpop.xlane.xlu0 %6715
      %v6717 = vadd.f32 %v6562, %v6563
      %v6718 = vadd.f32 %v6717, %v6564
      %v6719 = vadd.f32 %v6718, %v6565
      %6720 = vadd.xlane.f32.xlu0 %v6719
      %v6721 = vpop.xlane.xlu0 %6720
      %v6722 = vadd.f32 %v6566, %v6567
      %v6723 = vadd.f32 %v6722, %v6568
      %v6724 = vadd.f32 %v6723, %v6569
      %6725 = vadd.xlane.f32.xlu0 %v6724
      %v6726 = vpop.xlane.xlu0 %6725
      %v6727 = vadd.f32 %v6570, %v6571
      %v6728 = vadd.f32 %v6727, %v6572
      %v6729 = vadd.f32 %v6728, %v6573
      %6730 = vadd.xlane.f32.xlu0 %v6729
      %v6731 = vpop.xlane.xlu0 %6730
      %v6732 = vadd.f32 %v6574, %v6575
      %v6733 = vadd.f32 %v6732, %v6576
      %v6734 = vadd.f32 %v6733, %v6577
      %6735 = vadd.xlane.f32.xlu0 %v6734
      %v6736 = vpop.xlane.xlu0 %6735
      %v6737 = vadd.f32 %v6578, %v6579
      %v6738 = vadd.f32 %v6737, %v6580
      %v6739 = vadd.f32 %v6738, %v6581
      %6740 = vadd.xlane.f32.xlu0 %v6739
      %v6741 = vpop.xlane.xlu0 %6740
      %v6742 = vmul.f32 %v6298, 0.001953125
      %v6743 = vmul.f32 %v6303, 0.001953125
      %v6744 = vmul.f32 %v6308, 0.001953125
      %v6745 = vmul.f32 %v6313, 0.001953125
      %v6746 = vmul.f32 %v6318, 0.001953125
      %v6747 = vmul.f32 %v6323, 0.001953125
      %v6748 = vmul.f32 %v6328, 0.001953125
      %v6749 = vmul.f32 %v6333, 0.001953125
      %v6750 = vmul.f32 %v6338, 0.001953125
      %v6751 = vmul.f32 %v6343, 0.001953125
      %v6752 = vmul.f32 %v6348, 0.001953125
      %v6753 = vmul.f32 %v6353, 0.001953125
      %v6754 = vmul.f32 %v6358, 0.001953125
      %v6755 = vmul.f32 %v6363, 0.001953125
      %v6756 = vmul.f32 %v6368, 0.001953125
      %v6757 = vmul.f32 %v6373, 0.001953125
      %v6758 = vmul.f32 %v6378, 0.001953125
      %v6759 = vmul.f32 %v6383, 0.001953125
      %v6760 = vmul.f32 %v6388, 0.001953125
      %v6761 = vmul.f32 %v6393, 0.001953125
      %v6762 = vmul.f32 %v6398, 0.001953125
      %v6763 = vmul.f32 %v6403, 0.001953125
      %v6764 = vmul.f32 %v6408, 0.001953125
      %v6765 = vmul.f32 %v6413, 0.001953125
      %v6766 = vmul.f32 %v6418, 0.001953125
      %v6767 = vmul.f32 %v6423, 0.001953125
      %v6768 = vmul.f32 %v6428, 0.001953125
      %v6769 = vmul.f32 %v6433, 0.001953125
      %v6770 = vmul.f32 %v6438, 0.001953125
      %v6771 = vmul.f32 %v6443, 0.001953125
      %v6772 = vmul.f32 %v6448, 0.001953125
      %v6773 = vmul.f32 %v6453, 0.001953125
      %v6774 = vmul.f32 %v6586, 0.001953125
      %v6775 = vmul.f32 %v6591, 0.001953125
      %v6776 = vmul.f32 %v6596, 0.001953125
      %v6777 = vmul.f32 %v6601, 0.001953125
      %v6778 = vmul.f32 %v6606, 0.001953125
      %v6779 = vmul.f32 %v6611, 0.001953125
      %v6780 = vmul.f32 %v6616, 0.001953125
      %v6781 = vmul.f32 %v6621, 0.001953125
      %v6782 = vmul.f32 %v6626, 0.001953125
      %v6783 = vmul.f32 %v6631, 0.001953125
      %v6784 = vmul.f32 %v6636, 0.001953125
      %v6785 = vmul.f32 %v6641, 0.001953125
      %v6786 = vmul.f32 %v6646, 0.001953125
      %v6787 = vmul.f32 %v6651, 0.001953125
      %v6788 = vmul.f32 %v6656, 0.001953125
      %v6789 = vmul.f32 %v6661, 0.001953125
      %v6790 = vmul.f32 %v6666, 0.001953125
      %v6791 = vmul.f32 %v6671, 0.001953125
      %v6792 = vmul.f32 %v6676, 0.001953125
      %v6793 = vmul.f32 %v6681, 0.001953125
      %v6794 = vmul.f32 %v6686, 0.001953125
      %v6795 = vmul.f32 %v6691, 0.001953125
      %v6796 = vmul.f32 %v6696, 0.001953125
      %v6797 = vmul.f32 %v6701, 0.001953125
      %v6798 = vmul.f32 %v6706, 0.001953125
      %v6799 = vmul.f32 %v6711, 0.001953125
      %v6800 = vmul.f32 %v6716, 0.001953125
      %v6801 = vmul.f32 %v6721, 0.001953125
      %v6802 = vmul.f32 %v6726, 0.001953125
      %v6803 = vmul.f32 %v6731, 0.001953125
      %v6804 = vmul.f32 %v6736, 0.001953125
      %v6805 = vmul.f32 %v6741, 0.001953125
      %v6806 = vmul.f32 %v6742, %v6742
      %v6807 = vmul.f32 %v6743, %v6743
      %v6808 = vmul.f32 %v6744, %v6744
      %v6809 = vmul.f32 %v6745, %v6745
      %v6810 = vmul.f32 %v6746, %v6746
      %v6811 = vmul.f32 %v6747, %v6747
      %v6812 = vmul.f32 %v6748, %v6748
      %v6813 = vmul.f32 %v6749, %v6749
      %v6814 = vmul.f32 %v6750, %v6750
      %v6815 = vmul.f32 %v6751, %v6751
      %v6816 = vmul.f32 %v6752, %v6752
      %v6817 = vmul.f32 %v6753, %v6753
      %v6818 = vmul.f32 %v6754, %v6754
      %v6819 = vmul.f32 %v6755, %v6755
      %v6820 = vmul.f32 %v6756, %v6756
      %v6821 = vmul.f32 %v6757, %v6757
      %v6822 = vmul.f32 %v6758, %v6758
      %v6823 = vmul.f32 %v6759, %v6759
      %v6824 = vmul.f32 %v6760, %v6760
      %v6825 = vmul.f32 %v6761, %v6761
      %v6826 = vmul.f32 %v6762, %v6762
      %v6827 = vmul.f32 %v6763, %v6763
      %v6828 = vmul.f32 %v6764, %v6764
      %v6829 = vmul.f32 %v6765, %v6765
      %v6830 = vmul.f32 %v6766, %v6766
      %v6831 = vmul.f32 %v6767, %v6767
      %v6832 = vmul.f32 %v6768, %v6768
      %v6833 = vmul.f32 %v6769, %v6769
      %v6834 = vmul.f32 %v6770, %v6770
      %v6835 = vmul.f32 %v6771, %v6771
      %v6836 = vmul.f32 %v6772, %v6772
      %v6837 = vmul.f32 %v6773, %v6773
      %v6838 = vsub.f32 %v6774, %v6806
      %v6839 = vsub.f32 %v6775, %v6807
      %v6840 = vsub.f32 %v6776, %v6808
      %v6841 = vsub.f32 %v6777, %v6809
      %v6842 = vsub.f32 %v6778, %v6810
      %v6843 = vsub.f32 %v6779, %v6811
      %v6844 = vsub.f32 %v6780, %v6812
      %v6845 = vsub.f32 %v6781, %v6813
      %v6846 = vsub.f32 %v6782, %v6814
      %v6847 = vsub.f32 %v6783, %v6815
      %v6848 = vsub.f32 %v6784, %v6816
      %v6849 = vsub.f32 %v6785, %v6817
      %v6850 = vsub.f32 %v6786, %v6818
      %v6851 = vsub.f32 %v6787, %v6819
      %v6852 = vsub.f32 %v6788, %v6820
      %v6853 = vsub.f32 %v6789, %v6821
      %v6854 = vsub.f32 %v6790, %v6822
      %v6855 = vsub.f32 %v6791, %v6823
      %v6856 = vsub.f32 %v6792, %v6824
      %v6857 = vsub.f32 %v6793, %v6825
      %v6858 = vsub.f32 %v6794, %v6826
      %v6859 = vsub.f32 %v6795, %v6827
      %v6860 = vsub.f32 %v6796, %v6828
      %v6861 = vsub.f32 %v6797, %v6829
      %v6862 = vsub.f32 %v6798, %v6830
      %v6863 = vsub.f32 %v6799, %v6831
      %v6864 = vsub.f32 %v6800, %v6832
      %v6865 = vsub.f32 %v6801, %v6833
      %v6866 = vsub.f32 %v6802, %v6834
      %v6867 = vsub.f32 %v6803, %v6835
      %v6868 = vsub.f32 %v6804, %v6836
      %v6869 = vsub.f32 %v6805, %v6837
      %v6870 = vsub.f32 %v6166, %v6742
      %v6871 = vsub.f32 %v6167, %v6742
      %v6872 = vsub.f32 %v6168, %v6742
      %v6873 = vsub.f32 %v6169, %v6742
      %v6874 = vsub.f32 %v6170, %v6743
      %v6875 = vsub.f32 %v6171, %v6743
      %v6876 = vsub.f32 %v6172, %v6743
      %v6877 = vsub.f32 %v6173, %v6743
      %v6878 = vsub.f32 %v6174, %v6744
      %v6879 = vsub.f32 %v6175, %v6744
      %v6880 = vsub.f32 %v6176, %v6744
      %v6881 = vsub.f32 %v6177, %v6744
      %v6882 = vsub.f32 %v6178, %v6745
      %v6883 = vsub.f32 %v6179, %v6745
      %v6884 = vsub.f32 %v6180, %v6745
      %v6885 = vsub.f32 %v6181, %v6745
      %v6886 = vsub.f32 %v6182, %v6746
      %v6887 = vsub.f32 %v6183, %v6746
      %v6888 = vsub.f32 %v6184, %v6746
      %v6889 = vsub.f32 %v6185, %v6746
      %v6890 = vsub.f32 %v6186, %v6747
      %v6891 = vsub.f32 %v6187, %v6747
      %v6892 = vsub.f32 %v6188, %v6747
      %v6893 = vsub.f32 %v6189, %v6747
      %v6894 = vsub.f32 %v6190, %v6748
      %v6895 = vsub.f32 %v6191, %v6748
      %v6896 = vsub.f32 %v6192, %v6748
      %v6897 = vsub.f32 %v6193, %v6748
      %v6898 = vsub.f32 %v6194, %v6749
      %v6899 = vsub.f32 %v6195, %v6749
      %v6900 = vsub.f32 %v6196, %v6749
      %v6901 = vsub.f32 %v6197, %v6749
      %v6902 = vsub.f32 %v6198, %v6750
      %v6903 = vsub.f32 %v6199, %v6750
      %v6904 = vsub.f32 %v6200, %v6750
      %v6905 = vsub.f32 %v6201, %v6750
      %v6906 = vsub.f32 %v6202, %v6751
      %v6907 = vsub.f32 %v6203, %v6751
      %v6908 = vsub.f32 %v6204, %v6751
      %v6909 = vsub.f32 %v6205, %v6751
      %v6910 = vsub.f32 %v6206, %v6752
      %v6911 = vsub.f32 %v6207, %v6752
      %v6912 = vsub.f32 %v6208, %v6752
      %v6913 = vsub.f32 %v6209, %v6752
      %v6914 = vsub.f32 %v6210, %v6753
      %v6915 = vsub.f32 %v6211, %v6753
      %v6916 = vsub.f32 %v6212, %v6753
      %v6917 = vsub.f32 %v6213, %v6753
      %v6918 = vsub.f32 %v6214, %v6754
      %v6919 = vsub.f32 %v6215, %v6754
      %v6920 = vsub.f32 %v6216, %v6754
      %v6921 = vsub.f32 %v6217, %v6754
      %v6922 = vsub.f32 %v6218, %v6755
      %v6923 = vsub.f32 %v6219, %v6755
      %v6924 = vsub.f32 %v6220, %v6755
      %v6925 = vsub.f32 %v6221, %v6755
      %v6926 = vsub.f32 %v6222, %v6756
      %v6927 = vsub.f32 %v6223, %v6756
      %v6928 = vsub.f32 %v6224, %v6756
      %v6929 = vsub.f32 %v6225, %v6756
      %v6930 = vsub.f32 %v6226, %v6757
      %v6931 = vsub.f32 %v6227, %v6757
      %v6932 = vsub.f32 %v6228, %v6757
      %v6933 = vsub.f32 %v6229, %v6757
      %v6934 = vsub.f32 %v6230, %v6758
      %v6935 = vsub.f32 %v6231, %v6758
      %v6936 = vsub.f32 %v6232, %v6758
      %v6937 = vsub.f32 %v6233, %v6758
      %v6938 = vsub.f32 %v6234, %v6759
      %v6939 = vsub.f32 %v6235, %v6759
      %v6940 = vsub.f32 %v6236, %v6759
      %v6941 = vsub.f32 %v6237, %v6759
      %v6942 = vsub.f32 %v6238, %v6760
      %v6943 = vsub.f32 %v6239, %v6760
      %v6944 = vsub.f32 %v6240, %v6760
      %v6945 = vsub.f32 %v6241, %v6760
      %v6946 = vsub.f32 %v6242, %v6761
      %v6947 = vsub.f32 %v6243, %v6761
      %v6948 = vsub.f32 %v6244, %v6761
      %v6949 = vsub.f32 %v6245, %v6761
      %v6950 = vsub.f32 %v6246, %v6762
      %v6951 = vsub.f32 %v6247, %v6762
      %v6952 = vsub.f32 %v6248, %v6762
      %v6953 = vsub.f32 %v6249, %v6762
      %v6954 = vsub.f32 %v6250, %v6763
      %v6955 = vsub.f32 %v6251, %v6763
      %v6956 = vsub.f32 %v6252, %v6763
      %v6957 = vsub.f32 %v6253, %v6763
      %v6958 = vsub.f32 %v6254, %v6764
      %v6959 = vsub.f32 %v6255, %v6764
      %v6960 = vsub.f32 %v6256, %v6764
      %v6961 = vsub.f32 %v6257, %v6764
      %v6962 = vsub.f32 %v6258, %v6765
      %v6963 = vsub.f32 %v6259, %v6765
      %v6964 = vsub.f32 %v6260, %v6765
      %v6965 = vsub.f32 %v6261, %v6765
      %v6966 = vsub.f32 %v6262, %v6766
      %v6967 = vsub.f32 %v6263, %v6766
      %v6968 = vsub.f32 %v6264, %v6766
      %v6969 = vsub.f32 %v6265, %v6766
      %v6970 = vsub.f32 %v6266, %v6767
      %v6971 = vsub.f32 %v6267, %v6767
      %v6972 = vsub.f32 %v6268, %v6767
      %v6973 = vsub.f32 %v6269, %v6767
      %v6974 = vsub.f32 %v6270, %v6768
      %v6975 = vsub.f32 %v6271, %v6768
      %v6976 = vsub.f32 %v6272, %v6768
      %v6977 = vsub.f32 %v6273, %v6768
      %v6978 = vsub.f32 %v6274, %v6769
      %v6979 = vsub.f32 %v6275, %v6769
      %v6980 = vsub.f32 %v6276, %v6769
      %v6981 = vsub.f32 %v6277, %v6769
      %v6982 = vsub.f32 %v6278, %v6770
      %v6983 = vsub.f32 %v6279, %v6770
      %v6984 = vsub.f32 %v6280, %v6770
      %v6985 = vsub.f32 %v6281, %v6770
      %v6986 = vsub.f32 %v6282, %v6771
      %v6987 = vsub.f32 %v6283, %v6771
      %v6988 = vsub.f32 %v6284, %v6771
      %v6989 = vsub.f32 %v6285, %v6771
      %v6990 = vsub.f32 %v6286, %v6772
      %v6991 = vsub.f32 %v6287, %v6772
      %v6992 = vsub.f32 %v6288, %v6772
      %v6993 = vsub.f32 %v6289, %v6772
      %v6994 = vsub.f32 %v6290, %v6773
      %v6995 = vsub.f32 %v6291, %v6773
      %v6996 = vsub.f32 %v6292, %v6773
      %v6997 = vsub.f32 %v6293, %v6773
      %v6998 = vadd.f32 %v6838, 1e-05
      %v6999 = vadd.f32 %v6839, 1e-05
      %v7000 = vadd.f32 %v6840, 1e-05
      %v7001 = vadd.f32 %v6841, 1e-05
      %v7002 = vadd.f32 %v6842, 1e-05
      %v7003 = vadd.f32 %v6843, 1e-05
      %v7004 = vadd.f32 %v6844, 1e-05
      %v7005 = vadd.f32 %v6845, 1e-05
      %v7006 = vadd.f32 %v6846, 1e-05
      %v7007 = vadd.f32 %v6847, 1e-05
      %v7008 = vadd.f32 %v6848, 1e-05
      %v7009 = vadd.f32 %v6849, 1e-05
      %v7010 = vadd.f32 %v6850, 1e-05
      %v7011 = vadd.f32 %v6851, 1e-05
      %v7012 = vadd.f32 %v6852, 1e-05
      %v7013 = vadd.f32 %v6853, 1e-05
      %v7014 = vadd.f32 %v6854, 1e-05
      %v7015 = vadd.f32 %v6855, 1e-05
      %v7016 = vadd.f32 %v6856, 1e-05
      %v7017 = vadd.f32 %v6857, 1e-05
      %v7018 = vadd.f32 %v6858, 1e-05
      %v7019 = vadd.f32 %v6859, 1e-05
      %v7020 = vadd.f32 %v6860, 1e-05
      %v7021 = vadd.f32 %v6861, 1e-05
      %v7022 = vadd.f32 %v6862, 1e-05
      %v7023 = vadd.f32 %v6863, 1e-05
      %v7024 = vadd.f32 %v6864, 1e-05
      %v7025 = vadd.f32 %v6865, 1e-05
      %v7026 = vadd.f32 %v6866, 1e-05
      %v7027 = vadd.f32 %v6867, 1e-05
      %v7028 = vadd.f32 %v6868, 1e-05
      %v7029 = vadd.f32 %v6869, 1e-05
      %v7030 = vrsqrt.pop %v6998
      %v7031 = vrsqrt.pop %v6999
      %v7032 = vrsqrt.pop %v7000
      %v7033 = vrsqrt.pop %v7001
      %v7034 = vrsqrt.pop %v7002
      %v7035 = vrsqrt.pop %v7003
      %v7036 = vrsqrt.pop %v7004
      %v7037 = vrsqrt.pop %v7005
      %v7038 = vrsqrt.pop %v7006
      %v7039 = vrsqrt.pop %v7007
      %v7040 = vrsqrt.pop %v7008
      %v7041 = vrsqrt.pop %v7009
      %v7042 = vrsqrt.pop %v7010
      %v7043 = vrsqrt.pop %v7011
      %v7044 = vrsqrt.pop %v7012
      %v7045 = vrsqrt.pop %v7013
      %v7046 = vrsqrt.pop %v7014
      %v7047 = vrsqrt.pop %v7015
      %v7048 = vrsqrt.pop %v7016
      %v7049 = vrsqrt.pop %v7017
      %v7050 = vrsqrt.pop %v7018
      %v7051 = vrsqrt.pop %v7019
      %v7052 = vrsqrt.pop %v7020
      %v7053 = vrsqrt.pop %v7021
      %v7054 = vrsqrt.pop %v7022
      %v7055 = vrsqrt.pop %v7023
      %v7056 = vrsqrt.pop %v7024
      %v7057 = vrsqrt.pop %v7025
      %v7058 = vrsqrt.pop %v7026
      %v7059 = vrsqrt.pop %v7027
      %v7060 = vrsqrt.pop %v7028
      %v7061 = vrsqrt.pop %v7029
      %v7062 = vmul.f32 %v6870, %v7030
      %v7063 = vmul.f32 %v6871, %v7030
      %v7064 = vmul.f32 %v6872, %v7030
      %v7065 = vmul.f32 %v6873, %v7030
      %v7066 = vmul.f32 %v6874, %v7031
      %v7067 = vmul.f32 %v6875, %v7031
      %v7068 = vmul.f32 %v6876, %v7031
      %v7069 = vmul.f32 %v6877, %v7031
      %v7070 = vmul.f32 %v6878, %v7032
      %v7071 = vmul.f32 %v6879, %v7032
      %v7072 = vmul.f32 %v6880, %v7032
      %v7073 = vmul.f32 %v6881, %v7032
      %v7074 = vmul.f32 %v6882, %v7033
      %v7075 = vmul.f32 %v6883, %v7033
      %v7076 = vmul.f32 %v6884, %v7033
      %v7077 = vmul.f32 %v6885, %v7033
      %v7078 = vmul.f32 %v6886, %v7034
      %v7079 = vmul.f32 %v6887, %v7034
      %v7080 = vmul.f32 %v6888, %v7034
      %v7081 = vmul.f32 %v6889, %v7034
      %v7082 = vmul.f32 %v6890, %v7035
      %v7083 = vmul.f32 %v6891, %v7035
      %v7084 = vmul.f32 %v6892, %v7035
      %v7085 = vmul.f32 %v6893, %v7035
      %v7086 = vmul.f32 %v6894, %v7036
      %v7087 = vmul.f32 %v6895, %v7036
      %v7088 = vmul.f32 %v6896, %v7036
      %v7089 = vmul.f32 %v6897, %v7036
      %v7090 = vmul.f32 %v6898, %v7037
      %v7091 = vmul.f32 %v6899, %v7037
      %v7092 = vmul.f32 %v6900, %v7037
      %v7093 = vmul.f32 %v6901, %v7037
      %v7094 = vmul.f32 %v6902, %v7038
      %v7095 = vmul.f32 %v6903, %v7038
      %v7096 = vmul.f32 %v6904, %v7038
      %v7097 = vmul.f32 %v6905, %v7038
      %v7098 = vmul.f32 %v6906, %v7039
      %v7099 = vmul.f32 %v6907, %v7039
      %v7100 = vmul.f32 %v6908, %v7039
      %v7101 = vmul.f32 %v6909, %v7039
      %v7102 = vmul.f32 %v6910, %v7040
      %v7103 = vmul.f32 %v6911, %v7040
      %v7104 = vmul.f32 %v6912, %v7040
      %v7105 = vmul.f32 %v6913, %v7040
      %v7106 = vmul.f32 %v6914, %v7041
      %v7107 = vmul.f32 %v6915, %v7041
      %v7108 = vmul.f32 %v6916, %v7041
      %v7109 = vmul.f32 %v6917, %v7041
      %v7110 = vmul.f32 %v6918, %v7042
      %v7111 = vmul.f32 %v6919, %v7042
      %v7112 = vmul.f32 %v6920, %v7042
      %v7113 = vmul.f32 %v6921, %v7042
      %v7114 = vmul.f32 %v6922, %v7043
      %v7115 = vmul.f32 %v6923, %v7043
      %v7116 = vmul.f32 %v6924, %v7043
      %v7117 = vmul.f32 %v6925, %v7043
      %v7118 = vmul.f32 %v6926, %v7044
      %v7119 = vmul.f32 %v6927, %v7044
      %v7120 = vmul.f32 %v6928, %v7044
      %v7121 = vmul.f32 %v6929, %v7044
      %v7122 = vmul.f32 %v6930, %v7045
      %v7123 = vmul.f32 %v6931, %v7045
      %v7124 = vmul.f32 %v6932, %v7045
      %v7125 = vmul.f32 %v6933, %v7045
      %v7126 = vmul.f32 %v6934, %v7046
      %v7127 = vmul.f32 %v6935, %v7046
      %v7128 = vmul.f32 %v6936, %v7046
      %v7129 = vmul.f32 %v6937, %v7046
      %v7130 = vmul.f32 %v6938, %v7047
      %v7131 = vmul.f32 %v6939, %v7047
      %v7132 = vmul.f32 %v6940, %v7047
      %v7133 = vmul.f32 %v6941, %v7047
      %v7134 = vmul.f32 %v6942, %v7048
      %v7135 = vmul.f32 %v6943, %v7048
      %v7136 = vmul.f32 %v6944, %v7048
      %v7137 = vmul.f32 %v6945, %v7048
      %v7138 = vmul.f32 %v6946, %v7049
      %v7139 = vmul.f32 %v6947, %v7049
      %v7140 = vmul.f32 %v6948, %v7049
      %v7141 = vmul.f32 %v6949, %v7049
      %v7142 = vmul.f32 %v6950, %v7050
      %v7143 = vmul.f32 %v6951, %v7050
      %v7144 = vmul.f32 %v6952, %v7050
      %v7145 = vmul.f32 %v6953, %v7050
      %v7146 = vmul.f32 %v6954, %v7051
      %v7147 = vmul.f32 %v6955, %v7051
      %v7148 = vmul.f32 %v6956, %v7051
      %v7149 = vmul.f32 %v6957, %v7051
      %v7150 = vmul.f32 %v6958, %v7052
      %v7151 = vmul.f32 %v6959, %v7052
      %v7152 = vmul.f32 %v6960, %v7052
      %v7153 = vmul.f32 %v6961, %v7052
      %v7154 = vmul.f32 %v6962, %v7053
      %v7155 = vmul.f32 %v6963, %v7053
      %v7156 = vmul.f32 %v6964, %v7053
      %v7157 = vmul.f32 %v6965, %v7053
      %v7158 = vmul.f32 %v6966, %v7054
      %v7159 = vmul.f32 %v6967, %v7054
      %v7160 = vmul.f32 %v6968, %v7054
      %v7161 = vmul.f32 %v6969, %v7054
      %v7162 = vmul.f32 %v6970, %v7055
      %v7163 = vmul.f32 %v6971, %v7055
      %v7164 = vmul.f32 %v6972, %v7055
      %v7165 = vmul.f32 %v6973, %v7055
      %v7166 = vmul.f32 %v6974, %v7056
      %v7167 = vmul.f32 %v6975, %v7056
      %v7168 = vmul.f32 %v6976, %v7056
      %v7169 = vmul.f32 %v6977, %v7056
      %v7170 = vmul.f32 %v6978, %v7057
      %v7171 = vmul.f32 %v6979, %v7057
      %v7172 = vmul.f32 %v6980, %v7057
      %v7173 = vmul.f32 %v6981, %v7057
      %v7174 = vmul.f32 %v6982, %v7058
      %v7175 = vmul.f32 %v6983, %v7058
      %v7176 = vmul.f32 %v6984, %v7058
      %v7177 = vmul.f32 %v6985, %v7058
      %v7178 = vmul.f32 %v6986, %v7059
      %v7179 = vmul.f32 %v6987, %v7059
      %v7180 = vmul.f32 %v6988, %v7059
      %v7181 = vmul.f32 %v6989, %v7059
      %v7182 = vmul.f32 %v6990, %v7060
      %v7183 = vmul.f32 %v6991, %v7060
      %v7184 = vmul.f32 %v6992, %v7060
      %v7185 = vmul.f32 %v6993, %v7060
      %v7186 = vmul.f32 %v6994, %v7061
      %v7187 = vmul.f32 %v6995, %v7061
      %v7188 = vmul.f32 %v6996, %v7061
      %v7189 = vmul.f32 %v6997, %v7061
      %v7190 = vld [vmem:[%s7] sm:$0xf]
      %v7192 = vlaneseq
      %v7193 = vshrl.u32 %v7192, 7
      %v7194 = vsub.s32 0, %v7193
      %v7195 = vrot.slane %v7190, %v7194
      %v7196 = vlaneseq
      %v7197 = vshrl.u32 %v7196, 7
      %v7198 = vsub.s32 1, %v7197
      %v7199 = vrot.slane %v7190, %v7198
      %v7200 = vlaneseq
      %v7201 = vshrl.u32 %v7200, 7
      %v7202 = vsub.s32 2, %v7201
      %v7203 = vrot.slane %v7190, %v7202
      %v7204 = vlaneseq
      %v7205 = vshrl.u32 %v7204, 7
      %v7206 = vsub.s32 3, %v7205
      %v7207 = vrot.slane %v7190, %v7206
      %v7212 = vmul.f32 %v7062, %v7195
      %v7213 = vmul.f32 %v7063, %v7199
      %v7214 = vmul.f32 %v7064, %v7203
      %v7215 = vmul.f32 %v7065, %v7207
      %v7216 = vmul.f32 %v7066, %v7195
      %v7217 = vmul.f32 %v7067, %v7199
      %v7218 = vmul.f32 %v7068, %v7203
      %v7219 = vmul.f32 %v7069, %v7207
      %v7220 = vmul.f32 %v7070, %v7195
      %v7221 = vmul.f32 %v7071, %v7199
      %v7222 = vmul.f32 %v7072, %v7203
      %v7223 = vmul.f32 %v7073, %v7207
      %v7224 = vmul.f32 %v7074, %v7195
      %v7225 = vmul.f32 %v7075, %v7199
      %v7226 = vmul.f32 %v7076, %v7203
      %v7227 = vmul.f32 %v7077, %v7207
      %v7228 = vmul.f32 %v7078, %v7195
      %v7229 = vmul.f32 %v7079, %v7199
      %v7230 = vmul.f32 %v7080, %v7203
      %v7231 = vmul.f32 %v7081, %v7207
      %v7232 = vmul.f32 %v7082, %v7195
      %v7233 = vmul.f32 %v7083, %v7199
      %v7234 = vmul.f32 %v7084, %v7203
      %v7235 = vmul.f32 %v7085, %v7207
      %v7236 = vmul.f32 %v7086, %v7195
      %v7237 = vmul.f32 %v7087, %v7199
      %v7238 = vmul.f32 %v7088, %v7203
      %v7239 = vmul.f32 %v7089, %v7207
      %v7240 = vmul.f32 %v7090, %v7195
      %v7241 = vmul.f32 %v7091, %v7199
      %v7242 = vmul.f32 %v7092, %v7203
      %v7243 = vmul.f32 %v7093, %v7207
      %v7244 = vmul.f32 %v7094, %v7195
      %v7245 = vmul.f32 %v7095, %v7199
      %v7246 = vmul.f32 %v7096, %v7203
      %v7247 = vmul.f32 %v7097, %v7207
      %v7248 = vmul.f32 %v7098, %v7195
      %v7249 = vmul.f32 %v7099, %v7199
      %v7250 = vmul.f32 %v7100, %v7203
      %v7251 = vmul.f32 %v7101, %v7207
      %v7252 = vmul.f32 %v7102, %v7195
      %v7253 = vmul.f32 %v7103, %v7199
      %v7254 = vmul.f32 %v7104, %v7203
      %v7255 = vmul.f32 %v7105, %v7207
      %v7256 = vmul.f32 %v7106, %v7195
      %v7257 = vmul.f32 %v7107, %v7199
      %v7258 = vmul.f32 %v7108, %v7203
      %v7259 = vmul.f32 %v7109, %v7207
      %v7260 = vmul.f32 %v7110, %v7195
      %v7261 = vmul.f32 %v7111, %v7199
      %v7262 = vmul.f32 %v7112, %v7203
      %v7263 = vmul.f32 %v7113, %v7207
      %v7264 = vmul.f32 %v7114, %v7195
      %v7265 = vmul.f32 %v7115, %v7199
      %v7266 = vmul.f32 %v7116, %v7203
      %v7267 = vmul.f32 %v7117, %v7207
      %v7268 = vmul.f32 %v7118, %v7195
      %v7269 = vmul.f32 %v7119, %v7199
      %v7270 = vmul.f32 %v7120, %v7203
      %v7271 = vmul.f32 %v7121, %v7207
      %v7272 = vmul.f32 %v7122, %v7195
      %v7273 = vmul.f32 %v7123, %v7199
      %v7274 = vmul.f32 %v7124, %v7203
      %v7275 = vmul.f32 %v7125, %v7207
      %v7276 = vmul.f32 %v7126, %v7195
      %v7277 = vmul.f32 %v7127, %v7199
      %v7278 = vmul.f32 %v7128, %v7203
      %v7279 = vmul.f32 %v7129, %v7207
      %v7280 = vmul.f32 %v7130, %v7195
      %v7281 = vmul.f32 %v7131, %v7199
      %v7282 = vmul.f32 %v7132, %v7203
      %v7283 = vmul.f32 %v7133, %v7207
      %v7284 = vmul.f32 %v7134, %v7195
      %v7285 = vmul.f32 %v7135, %v7199
      %v7286 = vmul.f32 %v7136, %v7203
      %v7287 = vmul.f32 %v7137, %v7207
      %v7288 = vmul.f32 %v7138, %v7195
      %v7289 = vmul.f32 %v7139, %v7199
      %v7290 = vmul.f32 %v7140, %v7203
      %v7291 = vmul.f32 %v7141, %v7207
      %v7292 = vmul.f32 %v7142, %v7195
      %v7293 = vmul.f32 %v7143, %v7199
      %v7294 = vmul.f32 %v7144, %v7203
      %v7295 = vmul.f32 %v7145, %v7207
      %v7296 = vmul.f32 %v7146, %v7195
      %v7297 = vmul.f32 %v7147, %v7199
      %v7298 = vmul.f32 %v7148, %v7203
      %v7299 = vmul.f32 %v7149, %v7207
      %v7300 = vmul.f32 %v7150, %v7195
      %v7301 = vmul.f32 %v7151, %v7199
      %v7302 = vmul.f32 %v7152, %v7203
      %v7303 = vmul.f32 %v7153, %v7207
      %v7304 = vmul.f32 %v7154, %v7195
      %v7305 = vmul.f32 %v7155, %v7199
      %v7306 = vmul.f32 %v7156, %v7203
      %v7307 = vmul.f32 %v7157, %v7207
      %v7308 = vmul.f32 %v7158, %v7195
      %v7309 = vmul.f32 %v7159, %v7199
      %v7310 = vmul.f32 %v7160, %v7203
      %v7311 = vmul.f32 %v7161, %v7207
      %v7312 = vmul.f32 %v7162, %v7195
      %v7313 = vmul.f32 %v7163, %v7199
      %v7314 = vmul.f32 %v7164, %v7203
      %v7315 = vmul.f32 %v7165, %v7207
      %v7316 = vmul.f32 %v7166, %v7195
      %v7317 = vmul.f32 %v7167, %v7199
      %v7318 = vmul.f32 %v7168, %v7203
      %v7319 = vmul.f32 %v7169, %v7207
      %v7320 = vmul.f32 %v7170, %v7195
      %v7321 = vmul.f32 %v7171, %v7199
      %v7322 = vmul.f32 %v7172, %v7203
      %v7323 = vmul.f32 %v7173, %v7207
      %v7324 = vmul.f32 %v7174, %v7195
      %v7325 = vmul.f32 %v7175, %v7199
      %v7326 = vmul.f32 %v7176, %v7203
      %v7327 = vmul.f32 %v7177, %v7207
      %v7328 = vmul.f32 %v7178, %v7195
      %v7329 = vmul.f32 %v7179, %v7199
      %v7330 = vmul.f32 %v7180, %v7203
      %v7331 = vmul.f32 %v7181, %v7207
      %v7332 = vmul.f32 %v7182, %v7195
      %v7333 = vmul.f32 %v7183, %v7199
      %v7334 = vmul.f32 %v7184, %v7203
      %v7335 = vmul.f32 %v7185, %v7207
      %v7336 = vmul.f32 %v7186, %v7195
      %v7337 = vmul.f32 %v7187, %v7199
      %v7338 = vmul.f32 %v7188, %v7203
      %v7339 = vmul.f32 %v7189, %v7207
      %v7340 = vadd.f32 %v7212, %v7213
      %v7341 = vadd.f32 %v7340, %v7214
      %v7342 = vadd.f32 %v7341, %v7215
      %7343 = vadd.xlane.f32.xlu0 %v7342
      %v7344 = vpop.xlane.xlu0 %7343
      %v7345 = vadd.f32 %v7216, %v7217
      %v7346 = vadd.f32 %v7345, %v7218
      %v7347 = vadd.f32 %v7346, %v7219
      %7348 = vadd.xlane.f32.xlu0 %v7347
      %v7349 = vpop.xlane.xlu0 %7348
      %v7350 = vadd.f32 %v7220, %v7221
      %v7351 = vadd.f32 %v7350, %v7222
      %v7352 = vadd.f32 %v7351, %v7223
      %7353 = vadd.xlane.f32.xlu0 %v7352
      %v7354 = vpop.xlane.xlu0 %7353
      %v7355 = vadd.f32 %v7224, %v7225
      %v7356 = vadd.f32 %v7355, %v7226
      %v7357 = vadd.f32 %v7356, %v7227
      %7358 = vadd.xlane.f32.xlu0 %v7357
      %v7359 = vpop.xlane.xlu0 %7358
      %v7360 = vadd.f32 %v7228, %v7229
      %v7361 = vadd.f32 %v7360, %v7230
      %v7362 = vadd.f32 %v7361, %v7231
      %7363 = vadd.xlane.f32.xlu0 %v7362
      %v7364 = vpop.xlane.xlu0 %7363
      %v7365 = vadd.f32 %v7232, %v7233
      %v7366 = vadd.f32 %v7365, %v7234
      %v7367 = vadd.f32 %v7366, %v7235
      %7368 = vadd.xlane.f32.xlu0 %v7367
      %v7369 = vpop.xlane.xlu0 %7368
      %v7370 = vadd.f32 %v7236, %v7237
      %v7371 = vadd.f32 %v7370, %v7238
      %v7372 = vadd.f32 %v7371, %v7239
      %7373 = vadd.xlane.f32.xlu0 %v7372
      %v7374 = vpop.xlane.xlu0 %7373
      %v7375 = vadd.f32 %v7240, %v7241
      %v7376 = vadd.f32 %v7375, %v7242
      %v7377 = vadd.f32 %v7376, %v7243
      %7378 = vadd.xlane.f32.xlu0 %v7377
      %v7379 = vpop.xlane.xlu0 %7378
      %v7380 = vadd.f32 %v7244, %v7245
      %v7381 = vadd.f32 %v7380, %v7246
      %v7382 = vadd.f32 %v7381, %v7247
      %7383 = vadd.xlane.f32.xlu0 %v7382
      %v7384 = vpop.xlane.xlu0 %7383
      %v7385 = vadd.f32 %v7248, %v7249
      %v7386 = vadd.f32 %v7385, %v7250
      %v7387 = vadd.f32 %v7386, %v7251
      %7388 = vadd.xlane.f32.xlu0 %v7387
      %v7389 = vpop.xlane.xlu0 %7388
      %v7390 = vadd.f32 %v7252, %v7253
      %v7391 = vadd.f32 %v7390, %v7254
      %v7392 = vadd.f32 %v7391, %v7255
      %7393 = vadd.xlane.f32.xlu0 %v7392
      %v7394 = vpop.xlane.xlu0 %7393
      %v7395 = vadd.f32 %v7256, %v7257
      %v7396 = vadd.f32 %v7395, %v7258
      %v7397 = vadd.f32 %v7396, %v7259
      %7398 = vadd.xlane.f32.xlu0 %v7397
      %v7399 = vpop.xlane.xlu0 %7398
      %v7400 = vadd.f32 %v7260, %v7261
      %v7401 = vadd.f32 %v7400, %v7262
      %v7402 = vadd.f32 %v7401, %v7263
      %7403 = vadd.xlane.f32.xlu0 %v7402
      %v7404 = vpop.xlane.xlu0 %7403
      %v7405 = vadd.f32 %v7264, %v7265
      %v7406 = vadd.f32 %v7405, %v7266
      %v7407 = vadd.f32 %v7406, %v7267
      %7408 = vadd.xlane.f32.xlu0 %v7407
      %v7409 = vpop.xlane.xlu0 %7408
      %v7410 = vadd.f32 %v7268, %v7269
      %v7411 = vadd.f32 %v7410, %v7270
      %v7412 = vadd.f32 %v7411, %v7271
      %7413 = vadd.xlane.f32.xlu0 %v7412
      %v7414 = vpop.xlane.xlu0 %7413
      %v7415 = vadd.f32 %v7272, %v7273
      %v7416 = vadd.f32 %v7415, %v7274
      %v7417 = vadd.f32 %v7416, %v7275
      %7418 = vadd.xlane.f32.xlu0 %v7417
      %v7419 = vpop.xlane.xlu0 %7418
      %v7420 = vadd.f32 %v7276, %v7277
      %v7421 = vadd.f32 %v7420, %v7278
      %v7422 = vadd.f32 %v7421, %v7279
      %7423 = vadd.xlane.f32.xlu0 %v7422
      %v7424 = vpop.xlane.xlu0 %7423
      %v7425 = vadd.f32 %v7280, %v7281
      %v7426 = vadd.f32 %v7425, %v7282
      %v7427 = vadd.f32 %v7426, %v7283
      %7428 = vadd.xlane.f32.xlu0 %v7427
      %v7429 = vpop.xlane.xlu0 %7428
      %v7430 = vadd.f32 %v7284, %v7285
      %v7431 = vadd.f32 %v7430, %v7286
      %v7432 = vadd.f32 %v7431, %v7287
      %7433 = vadd.xlane.f32.xlu0 %v7432
      %v7434 = vpop.xlane.xlu0 %7433
      %v7435 = vadd.f32 %v7288, %v7289
      %v7436 = vadd.f32 %v7435, %v7290
      %v7437 = vadd.f32 %v7436, %v7291
      %7438 = vadd.xlane.f32.xlu0 %v7437
      %v7439 = vpop.xlane.xlu0 %7438
      %v7440 = vadd.f32 %v7292, %v7293
      %v7441 = vadd.f32 %v7440, %v7294
      %v7442 = vadd.f32 %v7441, %v7295
      %7443 = vadd.xlane.f32.xlu0 %v7442
      %v7444 = vpop.xlane.xlu0 %7443
      %v7445 = vadd.f32 %v7296, %v7297
      %v7446 = vadd.f32 %v7445, %v7298
      %v7447 = vadd.f32 %v7446, %v7299
      %7448 = vadd.xlane.f32.xlu0 %v7447
      %v7449 = vpop.xlane.xlu0 %7448
      %v7450 = vadd.f32 %v7300, %v7301
      %v7451 = vadd.f32 %v7450, %v7302
      %v7452 = vadd.f32 %v7451, %v7303
      %7453 = vadd.xlane.f32.xlu0 %v7452
      %v7454 = vpop.xlane.xlu0 %7453
      %v7455 = vadd.f32 %v7304, %v7305
      %v7456 = vadd.f32 %v7455, %v7306
      %v7457 = vadd.f32 %v7456, %v7307
      %7458 = vadd.xlane.f32.xlu0 %v7457
      %v7459 = vpop.xlane.xlu0 %7458
      %v7460 = vadd.f32 %v7308, %v7309
      %v7461 = vadd.f32 %v7460, %v7310
      %v7462 = vadd.f32 %v7461, %v7311
      %7463 = vadd.xlane.f32.xlu0 %v7462
      %v7464 = vpop.xlane.xlu0 %7463
      %v7465 = vadd.f32 %v7312, %v7313
      %v7466 = vadd.f32 %v7465, %v7314
      %v7467 = vadd.f32 %v7466, %v7315
      %7468 = vadd.xlane.f32.xlu0 %v7467
      %v7469 = vpop.xlane.xlu0 %7468
      %v7470 = vadd.f32 %v7316, %v7317
      %v7471 = vadd.f32 %v7470, %v7318
      %v7472 = vadd.f32 %v7471, %v7319
      %7473 = vadd.xlane.f32.xlu0 %v7472
      %v7474 = vpop.xlane.xlu0 %7473
      %v7475 = vadd.f32 %v7320, %v7321
      %v7476 = vadd.f32 %v7475, %v7322
      %v7477 = vadd.f32 %v7476, %v7323
      %7478 = vadd.xlane.f32.xlu0 %v7477
      %v7479 = vpop.xlane.xlu0 %7478
      %v7480 = vadd.f32 %v7324, %v7325
      %v7481 = vadd.f32 %v7480, %v7326
      %v7482 = vadd.f32 %v7481, %v7327
      %7483 = vadd.xlane.f32.xlu0 %v7482
      %v7484 = vpop.xlane.xlu0 %7483
      %v7485 = vadd.f32 %v7328, %v7329
      %v7486 = vadd.f32 %v7485, %v7330
      %v7487 = vadd.f32 %v7486, %v7331
      %7488 = vadd.xlane.f32.xlu0 %v7487
      %v7489 = vpop.xlane.xlu0 %7488
      %v7490 = vadd.f32 %v7332, %v7333
      %v7491 = vadd.f32 %v7490, %v7334
      %v7492 = vadd.f32 %v7491, %v7335
      %7493 = vadd.xlane.f32.xlu0 %v7492
      %v7494 = vpop.xlane.xlu0 %7493
      %v7495 = vadd.f32 %v7336, %v7337
      %v7496 = vadd.f32 %v7495, %v7338
      %v7497 = vadd.f32 %v7496, %v7339
      %7498 = vadd.xlane.f32.xlu0 %v7497
      %v7499 = vpop.xlane.xlu0 %7498
      %v7500 = vld [vmem:[#allocation2] sm:$0x1]
      %v7502 = vlaneseq
      %v7503 = vshrl.u32 %v7502, 7
      %v7504 = vsub.s32 0, %v7503
      %v7505 = vrot.slane %v7500, %v7504
      %v7507 = vadd.f32 %v7344, %v7505
      %v7508 = vadd.f32 %v7349, %v7505
      %v7509 = vadd.f32 %v7354, %v7505
      %v7510 = vadd.f32 %v7359, %v7505
      %v7511 = vadd.f32 %v7364, %v7505
      %v7512 = vadd.f32 %v7369, %v7505
      %v7513 = vadd.f32 %v7374, %v7505
      %v7514 = vadd.f32 %v7379, %v7505
      %v7515 = vadd.f32 %v7384, %v7505
      %v7516 = vadd.f32 %v7389, %v7505
      %v7517 = vadd.f32 %v7394, %v7505
      %v7518 = vadd.f32 %v7399, %v7505
      %v7519 = vadd.f32 %v7404, %v7505
      %v7520 = vadd.f32 %v7409, %v7505
      %v7521 = vadd.f32 %v7414, %v7505
      %v7522 = vadd.f32 %v7419, %v7505
      %v7523 = vadd.f32 %v7424, %v7505
      %v7524 = vadd.f32 %v7429, %v7505
      %v7525 = vadd.f32 %v7434, %v7505
      %v7526 = vadd.f32 %v7439, %v7505
      %v7527 = vadd.f32 %v7444, %v7505
      %v7528 = vadd.f32 %v7449, %v7505
      %v7529 = vadd.f32 %v7454, %v7505
      %v7530 = vadd.f32 %v7459, %v7505
      %v7531 = vadd.f32 %v7464, %v7505
      %v7532 = vadd.f32 %v7469, %v7505
      %v7533 = vadd.f32 %v7474, %v7505
      %v7534 = vadd.f32 %v7479, %v7505
      %v7535 = vadd.f32 %v7484, %v7505
      %v7536 = vadd.f32 %v7489, %v7505
      %v7537 = vadd.f32 %v7494, %v7505
      %v7538 = vadd.f32 %v7499, %v7505
      %v7571 = vcombine.high %v7507, %v7507
      %v7573 = vunpack.c.l.s4 1966171168
      %v7574 = vunpack.c.0.s8 %v7573
      %v7575 = vlaneseq
      %v7576 = vshrl.u32 %v7575, 7
      %v7577 = vsub.s32 %v7574, %v7576
      %v7578 = vrot.slane %v7507, %v7577
      %v7580 = vunpack.c.l.s4 1966171168
      %v7581 = vunpack.c.0.s8 %v7580
      %v7582 = vlaneseq
      %v7583 = vshrl.u32 %v7582, 7
      %v7584 = vsub.s32 %v7581, %v7583
      %v7585 = vrot.slane %v7571, %v7584
      %v7586 = vcombine.high %v7578, %v7578
      %v7587 = vcombine.high %v7585, %v7585
      %v7589 = vunpack.c.l.s4 1966171168
      %v7590 = vunpack.c.0.s8 %v7589
      %v7591 = vlaneseq
      %v7592 = vshrl.u32 %v7591, 7
      %v7593 = vsub.s32 %v7590, %v7592
      %v7594 = vrot.slane %v7578, %v7593
      %v7596 = vunpack.c.l.s4 1966171168
      %v7597 = vunpack.c.0.s8 %v7596
      %v7598 = vlaneseq
      %v7599 = vshrl.u32 %v7598, 7
      %v7600 = vsub.s32 %v7597, %v7599
      %v7601 = vrot.slane %v7585, %v7600
      %v7603 = vunpack.c.l.s4 1966171168
      %v7604 = vunpack.c.0.s8 %v7603
      %v7605 = vlaneseq
      %v7606 = vshrl.u32 %v7605, 7
      %v7607 = vsub.s32 %v7604, %v7606
      %v7608 = vrot.slane %v7586, %v7607
      %v7610 = vunpack.c.l.s4 1966171168
      %v7611 = vunpack.c.0.s8 %v7610
      %v7612 = vlaneseq
      %v7613 = vshrl.u32 %v7612, 7
      %v7614 = vsub.s32 %v7611, %v7613
      %v7615 = vrot.slane %v7587, %v7614
      %v7616 = vcombine.high %v7594, %v7594
      %v7617 = vcombine.high %v7601, %v7601
      %v7618 = vcombine.high %v7608, %v7608
      %v7619 = vcombine.high %v7615, %v7615
      %v7620 = vcombine.high %v7508, %v7508
      %v7622 = vunpack.c.l.s4 1966171168
      %v7623 = vunpack.c.0.s8 %v7622
      %v7624 = vlaneseq
      %v7625 = vshrl.u32 %v7624, 7
      %v7626 = vsub.s32 %v7623, %v7625
      %v7627 = vrot.slane %v7508, %v7626
      %v7629 = vunpack.c.l.s4 1966171168
      %v7630 = vunpack.c.0.s8 %v7629
      %v7631 = vlaneseq
      %v7632 = vshrl.u32 %v7631, 7
      %v7633 = vsub.s32 %v7630, %v7632
      %v7634 = vrot.slane %v7620, %v7633
      %v7635 = vcombine.high %v7627, %v7627
      %v7636 = vcombine.high %v7634, %v7634
      %v7638 = vunpack.c.l.s4 1966171168
      %v7639 = vunpack.c.0.s8 %v7638
      %v7640 = vlaneseq
      %v7641 = vshrl.u32 %v7640, 7
      %v7642 = vsub.s32 %v7639, %v7641
      %v7643 = vrot.slane %v7627, %v7642
      %v7645 = vunpack.c.l.s4 1966171168
      %v7646 = vunpack.c.0.s8 %v7645
      %v7647 = vlaneseq
      %v7648 = vshrl.u32 %v7647, 7
      %v7649 = vsub.s32 %v7646, %v7648
      %v7650 = vrot.slane %v7634, %v7649
      %v7652 = vunpack.c.l.s4 1966171168
      %v7653 = vunpack.c.0.s8 %v7652
      %v7654 = vlaneseq
      %v7655 = vshrl.u32 %v7654, 7
      %v7656 = vsub.s32 %v7653, %v7655
      %v7657 = vrot.slane %v7635, %v7656
      %v7659 = vunpack.c.l.s4 1966171168
      %v7660 = vunpack.c.0.s8 %v7659
      %v7661 = vlaneseq
      %v7662 = vshrl.u32 %v7661, 7
      %v7663 = vsub.s32 %v7660, %v7662
      %v7664 = vrot.slane %v7636, %v7663
      %v7665 = vcombine.high %v7643, %v7643
      %v7666 = vcombine.high %v7650, %v7650
      %v7667 = vcombine.high %v7657, %v7657
      %v7668 = vcombine.high %v7664, %v7664
      %v7669 = vcombine.high %v7509, %v7509
      %v7671 = vunpack.c.l.s4 1966171168
      %v7672 = vunpack.c.0.s8 %v7671
      %v7673 = vlaneseq
      %v7674 = vshrl.u32 %v7673, 7
      %v7675 = vsub.s32 %v7672, %v7674
      %v7676 = vrot.slane %v7509, %v7675
      %v7678 = vunpack.c.l.s4 1966171168
      %v7679 = vunpack.c.0.s8 %v7678
      %v7680 = vlaneseq
      %v7681 = vshrl.u32 %v7680, 7
      %v7682 = vsub.s32 %v7679, %v7681
      %v7683 = vrot.slane %v7669, %v7682
      %v7684 = vcombine.high %v7676, %v7676
      %v7685 = vcombine.high %v7683, %v7683
      %v7687 = vunpack.c.l.s4 1966171168
      %v7688 = vunpack.c.0.s8 %v7687
      %v7689 = vlaneseq
      %v7690 = vshrl.u32 %v7689, 7
      %v7691 = vsub.s32 %v7688, %v7690
      %v7692 = vrot.slane %v7676, %v7691
      %v7694 = vunpack.c.l.s4 1966171168
      %v7695 = vunpack.c.0.s8 %v7694
      %v7696 = vlaneseq
      %v7697 = vshrl.u32 %v7696, 7
      %v7698 = vsub.s32 %v7695, %v7697
      %v7699 = vrot.slane %v7683, %v7698
      %v7701 = vunpack.c.l.s4 1966171168
      %v7702 = vunpack.c.0.s8 %v7701
      %v7703 = vlaneseq
      %v7704 = vshrl.u32 %v7703, 7
      %v7705 = vsub.s32 %v7702, %v7704
      %v7706 = vrot.slane %v7684, %v7705
      %v7708 = vunpack.c.l.s4 1966171168
      %v7709 = vunpack.c.0.s8 %v7708
      %v7710 = vlaneseq
      %v7711 = vshrl.u32 %v7710, 7
      %v7712 = vsub.s32 %v7709, %v7711
      %v7713 = vrot.slane %v7685, %v7712
      %v7714 = vcombine.high %v7692, %v7692
      %v7715 = vcombine.high %v7699, %v7699
      %v7716 = vcombine.high %v7706, %v7706
      %v7717 = vcombine.high %v7713, %v7713
      %v7718 = vcombine.high %v7510, %v7510
      %v7720 = vunpack.c.l.s4 1966171168
      %v7721 = vunpack.c.0.s8 %v7720
      %v7722 = vlaneseq
      %v7723 = vshrl.u32 %v7722, 7
      %v7724 = vsub.s32 %v7721, %v7723
      %v7725 = vrot.slane %v7510, %v7724
      %v7727 = vunpack.c.l.s4 1966171168
      %v7728 = vunpack.c.0.s8 %v7727
      %v7729 = vlaneseq
      %v7730 = vshrl.u32 %v7729, 7
      %v7731 = vsub.s32 %v7728, %v7730
      %v7732 = vrot.slane %v7718, %v7731
      %v7733 = vcombine.high %v7725, %v7725
      %v7734 = vcombine.high %v7732, %v7732
      %v7736 = vunpack.c.l.s4 1966171168
      %v7737 = vunpack.c.0.s8 %v7736
      %v7738 = vlaneseq
      %v7739 = vshrl.u32 %v7738, 7
      %v7740 = vsub.s32 %v7737, %v7739
      %v7741 = vrot.slane %v7725, %v7740
      %v7743 = vunpack.c.l.s4 1966171168
      %v7744 = vunpack.c.0.s8 %v7743
      %v7745 = vlaneseq
      %v7746 = vshrl.u32 %v7745, 7
      %v7747 = vsub.s32 %v7744, %v7746
      %v7748 = vrot.slane %v7732, %v7747
      %v7750 = vunpack.c.l.s4 1966171168
      %v7751 = vunpack.c.0.s8 %v7750
      %v7752 = vlaneseq
      %v7753 = vshrl.u32 %v7752, 7
      %v7754 = vsub.s32 %v7751, %v7753
      %v7755 = vrot.slane %v7733, %v7754
      %v7757 = vunpack.c.l.s4 1966171168
      %v7758 = vunpack.c.0.s8 %v7757
      %v7759 = vlaneseq
      %v7760 = vshrl.u32 %v7759, 7
      %v7761 = vsub.s32 %v7758, %v7760
      %v7762 = vrot.slane %v7734, %v7761
      %v7763 = vcombine.high %v7741, %v7741
      %v7764 = vcombine.high %v7748, %v7748
      %v7765 = vcombine.high %v7755, %v7755
      %v7766 = vcombine.high %v7762, %v7762
      %v7767 = vcombine.high %v7511, %v7511
      %v7769 = vunpack.c.l.s4 1966171168
      %v7770 = vunpack.c.0.s8 %v7769
      %v7771 = vlaneseq
      %v7772 = vshrl.u32 %v7771, 7
      %v7773 = vsub.s32 %v7770, %v7772
      %v7774 = vrot.slane %v7511, %v7773
      %v7776 = vunpack.c.l.s4 1966171168
      %v7777 = vunpack.c.0.s8 %v7776
      %v7778 = vlaneseq
      %v7779 = vshrl.u32 %v7778, 7
      %v7780 = vsub.s32 %v7777, %v7779
      %v7781 = vrot.slane %v7767, %v7780
      %v7782 = vcombine.high %v7774, %v7774
      %v7783 = vcombine.high %v7781, %v7781
      %v7785 = vunpack.c.l.s4 1966171168
      %v7786 = vunpack.c.0.s8 %v7785
      %v7787 = vlaneseq
      %v7788 = vshrl.u32 %v7787, 7
      %v7789 = vsub.s32 %v7786, %v7788
      %v7790 = vrot.slane %v7774, %v7789
      %v7792 = vunpack.c.l.s4 1966171168
      %v7793 = vunpack.c.0.s8 %v7792
      %v7794 = vlaneseq
      %v7795 = vshrl.u32 %v7794, 7
      %v7796 = vsub.s32 %v7793, %v7795
      %v7797 = vrot.slane %v7781, %v7796
      %v7799 = vunpack.c.l.s4 1966171168
      %v7800 = vunpack.c.0.s8 %v7799
      %v7801 = vlaneseq
      %v7802 = vshrl.u32 %v7801, 7
      %v7803 = vsub.s32 %v7800, %v7802
      %v7804 = vrot.slane %v7782, %v7803
      %v7806 = vunpack.c.l.s4 1966171168
      %v7807 = vunpack.c.0.s8 %v7806
      %v7808 = vlaneseq
      %v7809 = vshrl.u32 %v7808, 7
      %v7810 = vsub.s32 %v7807, %v7809
      %v7811 = vrot.slane %v7783, %v7810
      %v7812 = vcombine.high %v7790, %v7790
      %v7813 = vcombine.high %v7797, %v7797
      %v7814 = vcombine.high %v7804, %v7804
      %v7815 = vcombine.high %v7811, %v7811
      %v7816 = vcombine.high %v7512, %v7512
      %v7818 = vunpack.c.l.s4 1966171168
      %v7819 = vunpack.c.0.s8 %v7818
      %v7820 = vlaneseq
      %v7821 = vshrl.u32 %v7820, 7
      %v7822 = vsub.s32 %v7819, %v7821
      %v7823 = vrot.slane %v7512, %v7822
      %v7825 = vunpack.c.l.s4 1966171168
      %v7826 = vunpack.c.0.s8 %v7825
      %v7827 = vlaneseq
      %v7828 = vshrl.u32 %v7827, 7
      %v7829 = vsub.s32 %v7826, %v7828
      %v7830 = vrot.slane %v7816, %v7829
      %v7831 = vcombine.high %v7823, %v7823
      %v7832 = vcombine.high %v7830, %v7830
      %v7834 = vunpack.c.l.s4 1966171168
      %v7835 = vunpack.c.0.s8 %v7834
      %v7836 = vlaneseq
      %v7837 = vshrl.u32 %v7836, 7
      %v7838 = vsub.s32 %v7835, %v7837
      %v7839 = vrot.slane %v7823, %v7838
      %v7841 = vunpack.c.l.s4 1966171168
      %v7842 = vunpack.c.0.s8 %v7841
      %v7843 = vlaneseq
      %v7844 = vshrl.u32 %v7843, 7
      %v7845 = vsub.s32 %v7842, %v7844
      %v7846 = vrot.slane %v7830, %v7845
      %v7848 = vunpack.c.l.s4 1966171168
      %v7849 = vunpack.c.0.s8 %v7848
      %v7850 = vlaneseq
      %v7851 = vshrl.u32 %v7850, 7
      %v7852 = vsub.s32 %v7849, %v7851
      %v7853 = vrot.slane %v7831, %v7852
      %v7855 = vunpack.c.l.s4 1966171168
      %v7856 = vunpack.c.0.s8 %v7855
      %v7857 = vlaneseq
      %v7858 = vshrl.u32 %v7857, 7
      %v7859 = vsub.s32 %v7856, %v7858
      %v7860 = vrot.slane %v7832, %v7859
      %v7861 = vcombine.high %v7839, %v7839
      %v7862 = vcombine.high %v7846, %v7846
      %v7863 = vcombine.high %v7853, %v7853
      %v7864 = vcombine.high %v7860, %v7860
      %v7865 = vcombine.high %v7513, %v7513
      %v7867 = vunpack.c.l.s4 1966171168
      %v7868 = vunpack.c.0.s8 %v7867
      %v7869 = vlaneseq
      %v7870 = vshrl.u32 %v7869, 7
      %v7871 = vsub.s32 %v7868, %v7870
      %v7872 = vrot.slane %v7513, %v7871
      %v7874 = vunpack.c.l.s4 1966171168
      %v7875 = vunpack.c.0.s8 %v7874
      %v7876 = vlaneseq
      %v7877 = vshrl.u32 %v7876, 7
      %v7878 = vsub.s32 %v7875, %v7877
      %v7879 = vrot.slane %v7865, %v7878
      %v7880 = vcombine.high %v7872, %v7872
      %v7881 = vcombine.high %v7879, %v7879
      %v7883 = vunpack.c.l.s4 1966171168
      %v7884 = vunpack.c.0.s8 %v7883
      %v7885 = vlaneseq
      %v7886 = vshrl.u32 %v7885, 7
      %v7887 = vsub.s32 %v7884, %v7886
      %v7888 = vrot.slane %v7872, %v7887
      %v7890 = vunpack.c.l.s4 1966171168
      %v7891 = vunpack.c.0.s8 %v7890
      %v7892 = vlaneseq
      %v7893 = vshrl.u32 %v7892, 7
      %v7894 = vsub.s32 %v7891, %v7893
      %v7895 = vrot.slane %v7879, %v7894
      %v7897 = vunpack.c.l.s4 1966171168
      %v7898 = vunpack.c.0.s8 %v7897
      %v7899 = vlaneseq
      %v7900 = vshrl.u32 %v7899, 7
      %v7901 = vsub.s32 %v7898, %v7900
      %v7902 = vrot.slane %v7880, %v7901
      %v7904 = vunpack.c.l.s4 1966171168
      %v7905 = vunpack.c.0.s8 %v7904
      %v7906 = vlaneseq
      %v7907 = vshrl.u32 %v7906, 7
      %v7908 = vsub.s32 %v7905, %v7907
      %v7909 = vrot.slane %v7881, %v7908
      %v7910 = vcombine.high %v7888, %v7888
      %v7911 = vcombine.high %v7895, %v7895
      %v7912 = vcombine.high %v7902, %v7902
      %v7913 = vcombine.high %v7909, %v7909
      %v7914 = vcombine.high %v7514, %v7514
      %v7916 = vunpack.c.l.s4 1966171168
      %v7917 = vunpack.c.0.s8 %v7916
      %v7918 = vlaneseq
      %v7919 = vshrl.u32 %v7918, 7
      %v7920 = vsub.s32 %v7917, %v7919
      %v7921 = vrot.slane %v7514, %v7920
      %v7923 = vunpack.c.l.s4 1966171168
      %v7924 = vunpack.c.0.s8 %v7923
      %v7925 = vlaneseq
      %v7926 = vshrl.u32 %v7925, 7
      %v7927 = vsub.s32 %v7924, %v7926
      %v7928 = vrot.slane %v7914, %v7927
      %v7929 = vcombine.high %v7921, %v7921
      %v7930 = vcombine.high %v7928, %v7928
      %v7932 = vunpack.c.l.s4 1966171168
      %v7933 = vunpack.c.0.s8 %v7932
      %v7934 = vlaneseq
      %v7935 = vshrl.u32 %v7934, 7
      %v7936 = vsub.s32 %v7933, %v7935
      %v7937 = vrot.slane %v7921, %v7936
      %v7939 = vunpack.c.l.s4 1966171168
      %v7940 = vunpack.c.0.s8 %v7939
      %v7941 = vlaneseq
      %v7942 = vshrl.u32 %v7941, 7
      %v7943 = vsub.s32 %v7940, %v7942
      %v7944 = vrot.slane %v7928, %v7943
      %v7946 = vunpack.c.l.s4 1966171168
      %v7947 = vunpack.c.0.s8 %v7946
      %v7948 = vlaneseq
      %v7949 = vshrl.u32 %v7948, 7
      %v7950 = vsub.s32 %v7947, %v7949
      %v7951 = vrot.slane %v7929, %v7950
      %v7953 = vunpack.c.l.s4 1966171168
      %v7954 = vunpack.c.0.s8 %v7953
      %v7955 = vlaneseq
      %v7956 = vshrl.u32 %v7955, 7
      %v7957 = vsub.s32 %v7954, %v7956
      %v7958 = vrot.slane %v7930, %v7957
      %v7959 = vcombine.high %v7937, %v7937
      %v7960 = vcombine.high %v7944, %v7944
      %v7961 = vcombine.high %v7951, %v7951
      %v7962 = vcombine.high %v7958, %v7958
      %v7963 = vcombine.high %v7515, %v7515
      %v7965 = vunpack.c.l.s4 1966171168
      %v7966 = vunpack.c.0.s8 %v7965
      %v7967 = vlaneseq
      %v7968 = vshrl.u32 %v7967, 7
      %v7969 = vsub.s32 %v7966, %v7968
      %v7970 = vrot.slane %v7515, %v7969
      %v7972 = vunpack.c.l.s4 1966171168
      %v7973 = vunpack.c.0.s8 %v7972
      %v7974 = vlaneseq
      %v7975 = vshrl.u32 %v7974, 7
      %v7976 = vsub.s32 %v7973, %v7975
      %v7977 = vrot.slane %v7963, %v7976
      %v7978 = vcombine.high %v7970, %v7970
      %v7979 = vcombine.high %v7977, %v7977
      %v7981 = vunpack.c.l.s4 1966171168
      %v7982 = vunpack.c.0.s8 %v7981
      %v7983 = vlaneseq
      %v7984 = vshrl.u32 %v7983, 7
      %v7985 = vsub.s32 %v7982, %v7984
      %v7986 = vrot.slane %v7970, %v7985
      %v7988 = vunpack.c.l.s4 1966171168
      %v7989 = vunpack.c.0.s8 %v7988
      %v7990 = vlaneseq
      %v7991 = vshrl.u32 %v7990, 7
      %v7992 = vsub.s32 %v7989, %v7991
      %v7993 = vrot.slane %v7977, %v7992
      %v7995 = vunpack.c.l.s4 1966171168
      %v7996 = vunpack.c.0.s8 %v7995
      %v7997 = vlaneseq
      %v7998 = vshrl.u32 %v7997, 7
      %v7999 = vsub.s32 %v7996, %v7998
      %v8000 = vrot.slane %v7978, %v7999
      %v8002 = vunpack.c.l.s4 1966171168
      %v8003 = vunpack.c.0.s8 %v8002
      %v8004 = vlaneseq
      %v8005 = vshrl.u32 %v8004, 7
      %v8006 = vsub.s32 %v8003, %v8005
      %v8007 = vrot.slane %v7979, %v8006
      %v8008 = vcombine.high %v7986, %v7986
      %v8009 = vcombine.high %v7993, %v7993
      %v8010 = vcombine.high %v8000, %v8000
      %v8011 = vcombine.high %v8007, %v8007
      %v8012 = vcombine.high %v7516, %v7516
      %v8014 = vunpack.c.l.s4 1966171168
      %v8015 = vunpack.c.0.s8 %v8014
      %v8016 = vlaneseq
      %v8017 = vshrl.u32 %v8016, 7
      %v8018 = vsub.s32 %v8015, %v8017
      %v8019 = vrot.slane %v7516, %v8018
      %v8021 = vunpack.c.l.s4 1966171168
      %v8022 = vunpack.c.0.s8 %v8021
      %v8023 = vlaneseq
      %v8024 = vshrl.u32 %v8023, 7
      %v8025 = vsub.s32 %v8022, %v8024
      %v8026 = vrot.slane %v8012, %v8025
      %v8027 = vcombine.high %v8019, %v8019
      %v8028 = vcombine.high %v8026, %v8026
      %v8030 = vunpack.c.l.s4 1966171168
      %v8031 = vunpack.c.0.s8 %v8030
      %v8032 = vlaneseq
      %v8033 = vshrl.u32 %v8032, 7
      %v8034 = vsub.s32 %v8031, %v8033
      %v8035 = vrot.slane %v8019, %v8034
      %v8037 = vunpack.c.l.s4 1966171168
      %v8038 = vunpack.c.0.s8 %v8037
      %v8039 = vlaneseq
      %v8040 = vshrl.u32 %v8039, 7
      %v8041 = vsub.s32 %v8038, %v8040
      %v8042 = vrot.slane %v8026, %v8041
      %v8044 = vunpack.c.l.s4 1966171168
      %v8045 = vunpack.c.0.s8 %v8044
      %v8046 = vlaneseq
      %v8047 = vshrl.u32 %v8046, 7
      %v8048 = vsub.s32 %v8045, %v8047
      %v8049 = vrot.slane %v8027, %v8048
      %v8051 = vunpack.c.l.s4 1966171168
      %v8052 = vunpack.c.0.s8 %v8051
      %v8053 = vlaneseq
      %v8054 = vshrl.u32 %v8053, 7
      %v8055 = vsub.s32 %v8052, %v8054
      %v8056 = vrot.slane %v8028, %v8055
      %v8057 = vcombine.high %v8035, %v8035
      %v8058 = vcombine.high %v8042, %v8042
      %v8059 = vcombine.high %v8049, %v8049
      %v8060 = vcombine.high %v8056, %v8056
      %v8061 = vcombine.high %v7517, %v7517
      %v8063 = vunpack.c.l.s4 1966171168
      %v8064 = vunpack.c.0.s8 %v8063
      %v8065 = vlaneseq
      %v8066 = vshrl.u32 %v8065, 7
      %v8067 = vsub.s32 %v8064, %v8066
      %v8068 = vrot.slane %v7517, %v8067
      %v8070 = vunpack.c.l.s4 1966171168
      %v8071 = vunpack.c.0.s8 %v8070
      %v8072 = vlaneseq
      %v8073 = vshrl.u32 %v8072, 7
      %v8074 = vsub.s32 %v8071, %v8073
      %v8075 = vrot.slane %v8061, %v8074
      %v8076 = vcombine.high %v8068, %v8068
      %v8077 = vcombine.high %v8075, %v8075
      %v8079 = vunpack.c.l.s4 1966171168
      %v8080 = vunpack.c.0.s8 %v8079
      %v8081 = vlaneseq
      %v8082 = vshrl.u32 %v8081, 7
      %v8083 = vsub.s32 %v8080, %v8082
      %v8084 = vrot.slane %v8068, %v8083
      %v8086 = vunpack.c.l.s4 1966171168
      %v8087 = vunpack.c.0.s8 %v8086
      %v8088 = vlaneseq
      %v8089 = vshrl.u32 %v8088, 7
      %v8090 = vsub.s32 %v8087, %v8089
      %v8091 = vrot.slane %v8075, %v8090
      %v8093 = vunpack.c.l.s4 1966171168
      %v8094 = vunpack.c.0.s8 %v8093
      %v8095 = vlaneseq
      %v8096 = vshrl.u32 %v8095, 7
      %v8097 = vsub.s32 %v8094, %v8096
      %v8098 = vrot.slane %v8076, %v8097
      %v8100 = vunpack.c.l.s4 1966171168
      %v8101 = vunpack.c.0.s8 %v8100
      %v8102 = vlaneseq
      %v8103 = vshrl.u32 %v8102, 7
      %v8104 = vsub.s32 %v8101, %v8103
      %v8105 = vrot.slane %v8077, %v8104
      %v8106 = vcombine.high %v8084, %v8084
      %v8107 = vcombine.high %v8091, %v8091
      %v8108 = vcombine.high %v8098, %v8098
      %v8109 = vcombine.high %v8105, %v8105
      %v8110 = vcombine.high %v7518, %v7518
      %v8112 = vunpack.c.l.s4 1966171168
      %v8113 = vunpack.c.0.s8 %v8112
      %v8114 = vlaneseq
      %v8115 = vshrl.u32 %v8114, 7
      %v8116 = vsub.s32 %v8113, %v8115
      %v8117 = vrot.slane %v7518, %v8116
      %v8119 = vunpack.c.l.s4 1966171168
      %v8120 = vunpack.c.0.s8 %v8119
      %v8121 = vlaneseq
      %v8122 = vshrl.u32 %v8121, 7
      %v8123 = vsub.s32 %v8120, %v8122
      %v8124 = vrot.slane %v8110, %v8123
      %v8125 = vcombine.high %v8117, %v8117
      %v8126 = vcombine.high %v8124, %v8124
      %v8128 = vunpack.c.l.s4 1966171168
      %v8129 = vunpack.c.0.s8 %v8128
      %v8130 = vlaneseq
      %v8131 = vshrl.u32 %v8130, 7
      %v8132 = vsub.s32 %v8129, %v8131
      %v8133 = vrot.slane %v8117, %v8132
      %v8135 = vunpack.c.l.s4 1966171168
      %v8136 = vunpack.c.0.s8 %v8135
      %v8137 = vlaneseq
      %v8138 = vshrl.u32 %v8137, 7
      %v8139 = vsub.s32 %v8136, %v8138
      %v8140 = vrot.slane %v8124, %v8139
      %v8142 = vunpack.c.l.s4 1966171168
      %v8143 = vunpack.c.0.s8 %v8142
      %v8144 = vlaneseq
      %v8145 = vshrl.u32 %v8144, 7
      %v8146 = vsub.s32 %v8143, %v8145
      %v8147 = vrot.slane %v8125, %v8146
      %v8149 = vunpack.c.l.s4 1966171168
      %v8150 = vunpack.c.0.s8 %v8149
      %v8151 = vlaneseq
      %v8152 = vshrl.u32 %v8151, 7
      %v8153 = vsub.s32 %v8150, %v8152
      %v8154 = vrot.slane %v8126, %v8153
      %v8155 = vcombine.high %v8133, %v8133
      %v8156 = vcombine.high %v8140, %v8140
      %v8157 = vcombine.high %v8147, %v8147
      %v8158 = vcombine.high %v8154, %v8154
      %v8159 = vcombine.high %v7519, %v7519
      %v8161 = vunpack.c.l.s4 1966171168
      %v8162 = vunpack.c.0.s8 %v8161
      %v8163 = vlaneseq
      %v8164 = vshrl.u32 %v8163, 7
      %v8165 = vsub.s32 %v8162, %v8164
      %v8166 = vrot.slane %v7519, %v8165
      %v8168 = vunpack.c.l.s4 1966171168
      %v8169 = vunpack.c.0.s8 %v8168
      %v8170 = vlaneseq
      %v8171 = vshrl.u32 %v8170, 7
      %v8172 = vsub.s32 %v8169, %v8171
      %v8173 = vrot.slane %v8159, %v8172
      %v8174 = vcombine.high %v8166, %v8166
      %v8175 = vcombine.high %v8173, %v8173
      %v8177 = vunpack.c.l.s4 1966171168
      %v8178 = vunpack.c.0.s8 %v8177
      %v8179 = vlaneseq
      %v8180 = vshrl.u32 %v8179, 7
      %v8181 = vsub.s32 %v8178, %v8180
      %v8182 = vrot.slane %v8166, %v8181
      %v8184 = vunpack.c.l.s4 1966171168
      %v8185 = vunpack.c.0.s8 %v8184
      %v8186 = vlaneseq
      %v8187 = vshrl.u32 %v8186, 7
      %v8188 = vsub.s32 %v8185, %v8187
      %v8189 = vrot.slane %v8173, %v8188
      %v8191 = vunpack.c.l.s4 1966171168
      %v8192 = vunpack.c.0.s8 %v8191
      %v8193 = vlaneseq
      %v8194 = vshrl.u32 %v8193, 7
      %v8195 = vsub.s32 %v8192, %v8194
      %v8196 = vrot.slane %v8174, %v8195
      %v8198 = vunpack.c.l.s4 1966171168
      %v8199 = vunpack.c.0.s8 %v8198
      %v8200 = vlaneseq
      %v8201 = vshrl.u32 %v8200, 7
      %v8202 = vsub.s32 %v8199, %v8201
      %v8203 = vrot.slane %v8175, %v8202
      %v8204 = vcombine.high %v8182, %v8182
      %v8205 = vcombine.high %v8189, %v8189
      %v8206 = vcombine.high %v8196, %v8196
      %v8207 = vcombine.high %v8203, %v8203
      %v8208 = vcombine.high %v7520, %v7520
      %v8210 = vunpack.c.l.s4 1966171168
      %v8211 = vunpack.c.0.s8 %v8210
      %v8212 = vlaneseq
      %v8213 = vshrl.u32 %v8212, 7
      %v8214 = vsub.s32 %v8211, %v8213
      %v8215 = vrot.slane %v7520, %v8214
      %v8217 = vunpack.c.l.s4 1966171168
      %v8218 = vunpack.c.0.s8 %v8217
      %v8219 = vlaneseq
      %v8220 = vshrl.u32 %v8219, 7
      %v8221 = vsub.s32 %v8218, %v8220
      %v8222 = vrot.slane %v8208, %v8221
      %v8223 = vcombine.high %v8215, %v8215
      %v8224 = vcombine.high %v8222, %v8222
      %v8226 = vunpack.c.l.s4 1966171168
      %v8227 = vunpack.c.0.s8 %v8226
      %v8228 = vlaneseq
      %v8229 = vshrl.u32 %v8228, 7
      %v8230 = vsub.s32 %v8227, %v8229
      %v8231 = vrot.slane %v8215, %v8230
      %v8233 = vunpack.c.l.s4 1966171168
      %v8234 = vunpack.c.0.s8 %v8233
      %v8235 = vlaneseq
      %v8236 = vshrl.u32 %v8235, 7
      %v8237 = vsub.s32 %v8234, %v8236
      %v8238 = vrot.slane %v8222, %v8237
      %v8240 = vunpack.c.l.s4 1966171168
      %v8241 = vunpack.c.0.s8 %v8240
      %v8242 = vlaneseq
      %v8243 = vshrl.u32 %v8242, 7
      %v8244 = vsub.s32 %v8241, %v8243
      %v8245 = vrot.slane %v8223, %v8244
      %v8247 = vunpack.c.l.s4 1966171168
      %v8248 = vunpack.c.0.s8 %v8247
      %v8249 = vlaneseq
      %v8250 = vshrl.u32 %v8249, 7
      %v8251 = vsub.s32 %v8248, %v8250
      %v8252 = vrot.slane %v8224, %v8251
      %v8253 = vcombine.high %v8231, %v8231
      %v8254 = vcombine.high %v8238, %v8238
      %v8255 = vcombine.high %v8245, %v8245
      %v8256 = vcombine.high %v8252, %v8252
      %v8257 = vcombine.high %v7521, %v7521
      %v8259 = vunpack.c.l.s4 1966171168
      %v8260 = vunpack.c.0.s8 %v8259
      %v8261 = vlaneseq
      %v8262 = vshrl.u32 %v8261, 7
      %v8263 = vsub.s32 %v8260, %v8262
      %v8264 = vrot.slane %v7521, %v8263
      %v8266 = vunpack.c.l.s4 1966171168
      %v8267 = vunpack.c.0.s8 %v8266
      %v8268 = vlaneseq
      %v8269 = vshrl.u32 %v8268, 7
      %v8270 = vsub.s32 %v8267, %v8269
      %v8271 = vrot.slane %v8257, %v8270
      %v8272 = vcombine.high %v8264, %v8264
      %v8273 = vcombine.high %v8271, %v8271
      %v8275 = vunpack.c.l.s4 1966171168
      %v8276 = vunpack.c.0.s8 %v8275
      %v8277 = vlaneseq
      %v8278 = vshrl.u32 %v8277, 7
      %v8279 = vsub.s32 %v8276, %v8278
      %v8280 = vrot.slane %v8264, %v8279
      %v8282 = vunpack.c.l.s4 1966171168
      %v8283 = vunpack.c.0.s8 %v8282
      %v8284 = vlaneseq
      %v8285 = vshrl.u32 %v8284, 7
      %v8286 = vsub.s32 %v8283, %v8285
      %v8287 = vrot.slane %v8271, %v8286
      %v8289 = vunpack.c.l.s4 1966171168
      %v8290 = vunpack.c.0.s8 %v8289
      %v8291 = vlaneseq
      %v8292 = vshrl.u32 %v8291, 7
      %v8293 = vsub.s32 %v8290, %v8292
      %v8294 = vrot.slane %v8272, %v8293
      %v8296 = vunpack.c.l.s4 1966171168
      %v8297 = vunpack.c.0.s8 %v8296
      %v8298 = vlaneseq
      %v8299 = vshrl.u32 %v8298, 7
      %v8300 = vsub.s32 %v8297, %v8299
      %v8301 = vrot.slane %v8273, %v8300
      %v8302 = vcombine.high %v8280, %v8280
      %v8303 = vcombine.high %v8287, %v8287
      %v8304 = vcombine.high %v8294, %v8294
      %v8305 = vcombine.high %v8301, %v8301
      %v8306 = vcombine.high %v7522, %v7522
      %v8308 = vunpack.c.l.s4 1966171168
      %v8309 = vunpack.c.0.s8 %v8308
      %v8310 = vlaneseq
      %v8311 = vshrl.u32 %v8310, 7
      %v8312 = vsub.s32 %v8309, %v8311
      %v8313 = vrot.slane %v7522, %v8312
      %v8315 = vunpack.c.l.s4 1966171168
      %v8316 = vunpack.c.0.s8 %v8315
      %v8317 = vlaneseq
      %v8318 = vshrl.u32 %v8317, 7
      %v8319 = vsub.s32 %v8316, %v8318
      %v8320 = vrot.slane %v8306, %v8319
      %v8321 = vcombine.high %v8313, %v8313
      %v8322 = vcombine.high %v8320, %v8320
      %v8324 = vunpack.c.l.s4 1966171168
      %v8325 = vunpack.c.0.s8 %v8324
      %v8326 = vlaneseq
      %v8327 = vshrl.u32 %v8326, 7
      %v8328 = vsub.s32 %v8325, %v8327
      %v8329 = vrot.slane %v8313, %v8328
      %v8331 = vunpack.c.l.s4 1966171168
      %v8332 = vunpack.c.0.s8 %v8331
      %v8333 = vlaneseq
      %v8334 = vshrl.u32 %v8333, 7
      %v8335 = vsub.s32 %v8332, %v8334
      %v8336 = vrot.slane %v8320, %v8335
      %v8338 = vunpack.c.l.s4 1966171168
      %v8339 = vunpack.c.0.s8 %v8338
      %v8340 = vlaneseq
      %v8341 = vshrl.u32 %v8340, 7
      %v8342 = vsub.s32 %v8339, %v8341
      %v8343 = vrot.slane %v8321, %v8342
      %v8345 = vunpack.c.l.s4 1966171168
      %v8346 = vunpack.c.0.s8 %v8345
      %v8347 = vlaneseq
      %v8348 = vshrl.u32 %v8347, 7
      %v8349 = vsub.s32 %v8346, %v8348
      %v8350 = vrot.slane %v8322, %v8349
      %v8351 = vcombine.high %v8329, %v8329
      %v8352 = vcombine.high %v8336, %v8336
      %v8353 = vcombine.high %v8343, %v8343
      %v8354 = vcombine.high %v8350, %v8350
      %v8355 = vcombine.high %v7523, %v7523
      %v8357 = vunpack.c.l.s4 1966171168
      %v8358 = vunpack.c.0.s8 %v8357
      %v8359 = vlaneseq
      %v8360 = vshrl.u32 %v8359, 7
      %v8361 = vsub.s32 %v8358, %v8360
      %v8362 = vrot.slane %v7523, %v8361
      %v8364 = vunpack.c.l.s4 1966171168
      %v8365 = vunpack.c.0.s8 %v8364
      %v8366 = vlaneseq
      %v8367 = vshrl.u32 %v8366, 7
      %v8368 = vsub.s32 %v8365, %v8367
      %v8369 = vrot.slane %v8355, %v8368
      %v8370 = vcombine.high %v8362, %v8362
      %v8371 = vcombine.high %v8369, %v8369
      %v8373 = vunpack.c.l.s4 1966171168
      %v8374 = vunpack.c.0.s8 %v8373
      %v8375 = vlaneseq
      %v8376 = vshrl.u32 %v8375, 7
      %v8377 = vsub.s32 %v8374, %v8376
      %v8378 = vrot.slane %v8362, %v8377
      %v8380 = vunpack.c.l.s4 1966171168
      %v8381 = vunpack.c.0.s8 %v8380
      %v8382 = vlaneseq
      %v8383 = vshrl.u32 %v8382, 7
      %v8384 = vsub.s32 %v8381, %v8383
      %v8385 = vrot.slane %v8369, %v8384
      %v8387 = vunpack.c.l.s4 1966171168
      %v8388 = vunpack.c.0.s8 %v8387
      %v8389 = vlaneseq
      %v8390 = vshrl.u32 %v8389, 7
      %v8391 = vsub.s32 %v8388, %v8390
      %v8392 = vrot.slane %v8370, %v8391
      %v8394 = vunpack.c.l.s4 1966171168
      %v8395 = vunpack.c.0.s8 %v8394
      %v8396 = vlaneseq
      %v8397 = vshrl.u32 %v8396, 7
      %v8398 = vsub.s32 %v8395, %v8397
      %v8399 = vrot.slane %v8371, %v8398
      %v8400 = vcombine.high %v8378, %v8378
      %v8401 = vcombine.high %v8385, %v8385
      %v8402 = vcombine.high %v8392, %v8392
      %v8403 = vcombine.high %v8399, %v8399
      %v8404 = vcombine.high %v7524, %v7524
      %v8406 = vunpack.c.l.s4 1966171168
      %v8407 = vunpack.c.0.s8 %v8406
      %v8408 = vlaneseq
      %v8409 = vshrl.u32 %v8408, 7
      %v8410 = vsub.s32 %v8407, %v8409
      %v8411 = vrot.slane %v7524, %v8410
      %v8413 = vunpack.c.l.s4 1966171168
      %v8414 = vunpack.c.0.s8 %v8413
      %v8415 = vlaneseq
      %v8416 = vshrl.u32 %v8415, 7
      %v8417 = vsub.s32 %v8414, %v8416
      %v8418 = vrot.slane %v8404, %v8417
      %v8419 = vcombine.high %v8411, %v8411
      %v8420 = vcombine.high %v8418, %v8418
      %v8422 = vunpack.c.l.s4 1966171168
      %v8423 = vunpack.c.0.s8 %v8422
      %v8424 = vlaneseq
      %v8425 = vshrl.u32 %v8424, 7
      %v8426 = vsub.s32 %v8423, %v8425
      %v8427 = vrot.slane %v8411, %v8426
      %v8429 = vunpack.c.l.s4 1966171168
      %v8430 = vunpack.c.0.s8 %v8429
      %v8431 = vlaneseq
      %v8432 = vshrl.u32 %v8431, 7
      %v8433 = vsub.s32 %v8430, %v8432
      %v8434 = vrot.slane %v8418, %v8433
      %v8436 = vunpack.c.l.s4 1966171168
      %v8437 = vunpack.c.0.s8 %v8436
      %v8438 = vlaneseq
      %v8439 = vshrl.u32 %v8438, 7
      %v8440 = vsub.s32 %v8437, %v8439
      %v8441 = vrot.slane %v8419, %v8440
      %v8443 = vunpack.c.l.s4 1966171168
      %v8444 = vunpack.c.0.s8 %v8443
      %v8445 = vlaneseq
      %v8446 = vshrl.u32 %v8445, 7
      %v8447 = vsub.s32 %v8444, %v8446
      %v8448 = vrot.slane %v8420, %v8447
      %v8449 = vcombine.high %v8427, %v8427
      %v8450 = vcombine.high %v8434, %v8434
      %v8451 = vcombine.high %v8441, %v8441
      %v8452 = vcombine.high %v8448, %v8448
      %v8453 = vcombine.high %v7525, %v7525
      %v8455 = vunpack.c.l.s4 1966171168
      %v8456 = vunpack.c.0.s8 %v8455
      %v8457 = vlaneseq
      %v8458 = vshrl.u32 %v8457, 7
      %v8459 = vsub.s32 %v8456, %v8458
      %v8460 = vrot.slane %v7525, %v8459
      %v8462 = vunpack.c.l.s4 1966171168
      %v8463 = vunpack.c.0.s8 %v8462
      %v8464 = vlaneseq
      %v8465 = vshrl.u32 %v8464, 7
      %v8466 = vsub.s32 %v8463, %v8465
      %v8467 = vrot.slane %v8453, %v8466
      %v8468 = vcombine.high %v8460, %v8460
      %v8469 = vcombine.high %v8467, %v8467
      %v8471 = vunpack.c.l.s4 1966171168
      %v8472 = vunpack.c.0.s8 %v8471
      %v8473 = vlaneseq
      %v8474 = vshrl.u32 %v8473, 7
      %v8475 = vsub.s32 %v8472, %v8474
      %v8476 = vrot.slane %v8460, %v8475
      %v8478 = vunpack.c.l.s4 1966171168
      %v8479 = vunpack.c.0.s8 %v8478
      %v8480 = vlaneseq
      %v8481 = vshrl.u32 %v8480, 7
      %v8482 = vsub.s32 %v8479, %v8481
      %v8483 = vrot.slane %v8467, %v8482
      %v8485 = vunpack.c.l.s4 1966171168
      %v8486 = vunpack.c.0.s8 %v8485
      %v8487 = vlaneseq
      %v8488 = vshrl.u32 %v8487, 7
      %v8489 = vsub.s32 %v8486, %v8488
      %v8490 = vrot.slane %v8468, %v8489
      %v8492 = vunpack.c.l.s4 1966171168
      %v8493 = vunpack.c.0.s8 %v8492
      %v8494 = vlaneseq
      %v8495 = vshrl.u32 %v8494, 7
      %v8496 = vsub.s32 %v8493, %v8495
      %v8497 = vrot.slane %v8469, %v8496
      %v8498 = vcombine.high %v8476, %v8476
      %v8499 = vcombine.high %v8483, %v8483
      %v8500 = vcombine.high %v8490, %v8490
      %v8501 = vcombine.high %v8497, %v8497
      %v8502 = vcombine.high %v7526, %v7526
      %v8504 = vunpack.c.l.s4 1966171168
      %v8505 = vunpack.c.0.s8 %v8504
      %v8506 = vlaneseq
      %v8507 = vshrl.u32 %v8506, 7
      %v8508 = vsub.s32 %v8505, %v8507
      %v8509 = vrot.slane %v7526, %v8508
      %v8511 = vunpack.c.l.s4 1966171168
      %v8512 = vunpack.c.0.s8 %v8511
      %v8513 = vlaneseq
      %v8514 = vshrl.u32 %v8513, 7
      %v8515 = vsub.s32 %v8512, %v8514
      %v8516 = vrot.slane %v8502, %v8515
      %v8517 = vcombine.high %v8509, %v8509
      %v8518 = vcombine.high %v8516, %v8516
      %v8520 = vunpack.c.l.s4 1966171168
      %v8521 = vunpack.c.0.s8 %v8520
      %v8522 = vlaneseq
      %v8523 = vshrl.u32 %v8522, 7
      %v8524 = vsub.s32 %v8521, %v8523
      %v8525 = vrot.slane %v8509, %v8524
      %v8527 = vunpack.c.l.s4 1966171168
      %v8528 = vunpack.c.0.s8 %v8527
      %v8529 = vlaneseq
      %v8530 = vshrl.u32 %v8529, 7
      %v8531 = vsub.s32 %v8528, %v8530
      %v8532 = vrot.slane %v8516, %v8531
      %v8534 = vunpack.c.l.s4 1966171168
      %v8535 = vunpack.c.0.s8 %v8534
      %v8536 = vlaneseq
      %v8537 = vshrl.u32 %v8536, 7
      %v8538 = vsub.s32 %v8535, %v8537
      %v8539 = vrot.slane %v8517, %v8538
      %v8541 = vunpack.c.l.s4 1966171168
      %v8542 = vunpack.c.0.s8 %v8541
      %v8543 = vlaneseq
      %v8544 = vshrl.u32 %v8543, 7
      %v8545 = vsub.s32 %v8542, %v8544
      %v8546 = vrot.slane %v8518, %v8545
      %v8547 = vcombine.high %v8525, %v8525
      %v8548 = vcombine.high %v8532, %v8532
      %v8549 = vcombine.high %v8539, %v8539
      %v8550 = vcombine.high %v8546, %v8546
      %v8551 = vcombine.high %v7527, %v7527
      %v8553 = vunpack.c.l.s4 1966171168
      %v8554 = vunpack.c.0.s8 %v8553
      %v8555 = vlaneseq
      %v8556 = vshrl.u32 %v8555, 7
      %v8557 = vsub.s32 %v8554, %v8556
      %v8558 = vrot.slane %v7527, %v8557
      %v8560 = vunpack.c.l.s4 1966171168
      %v8561 = vunpack.c.0.s8 %v8560
      %v8562 = vlaneseq
      %v8563 = vshrl.u32 %v8562, 7
      %v8564 = vsub.s32 %v8561, %v8563
      %v8565 = vrot.slane %v8551, %v8564
      %v8566 = vcombine.high %v8558, %v8558
      %v8567 = vcombine.high %v8565, %v8565
      %v8569 = vunpack.c.l.s4 1966171168
      %v8570 = vunpack.c.0.s8 %v8569
      %v8571 = vlaneseq
      %v8572 = vshrl.u32 %v8571, 7
      %v8573 = vsub.s32 %v8570, %v8572
      %v8574 = vrot.slane %v8558, %v8573
      %v8576 = vunpack.c.l.s4 1966171168
      %v8577 = vunpack.c.0.s8 %v8576
      %v8578 = vlaneseq
      %v8579 = vshrl.u32 %v8578, 7
      %v8580 = vsub.s32 %v8577, %v8579
      %v8581 = vrot.slane %v8565, %v8580
      %v8583 = vunpack.c.l.s4 1966171168
      %v8584 = vunpack.c.0.s8 %v8583
      %v8585 = vlaneseq
      %v8586 = vshrl.u32 %v8585, 7
      %v8587 = vsub.s32 %v8584, %v8586
      %v8588 = vrot.slane %v8566, %v8587
      %v8590 = vunpack.c.l.s4 1966171168
      %v8591 = vunpack.c.0.s8 %v8590
      %v8592 = vlaneseq
      %v8593 = vshrl.u32 %v8592, 7
      %v8594 = vsub.s32 %v8591, %v8593
      %v8595 = vrot.slane %v8567, %v8594
      %v8596 = vcombine.high %v8574, %v8574
      %v8597 = vcombine.high %v8581, %v8581
      %v8598 = vcombine.high %v8588, %v8588
      %v8599 = vcombine.high %v8595, %v8595
      %v8600 = vcombine.high %v7528, %v7528
      %v8602 = vunpack.c.l.s4 1966171168
      %v8603 = vunpack.c.0.s8 %v8602
      %v8604 = vlaneseq
      %v8605 = vshrl.u32 %v8604, 7
      %v8606 = vsub.s32 %v8603, %v8605
      %v8607 = vrot.slane %v7528, %v8606
      %v8609 = vunpack.c.l.s4 1966171168
      %v8610 = vunpack.c.0.s8 %v8609
      %v8611 = vlaneseq
      %v8612 = vshrl.u32 %v8611, 7
      %v8613 = vsub.s32 %v8610, %v8612
      %v8614 = vrot.slane %v8600, %v8613
      %v8615 = vcombine.high %v8607, %v8607
      %v8616 = vcombine.high %v8614, %v8614
      %v8618 = vunpack.c.l.s4 1966171168
      %v8619 = vunpack.c.0.s8 %v8618
      %v8620 = vlaneseq
      %v8621 = vshrl.u32 %v8620, 7
      %v8622 = vsub.s32 %v8619, %v8621
      %v8623 = vrot.slane %v8607, %v8622
      %v8625 = vunpack.c.l.s4 1966171168
      %v8626 = vunpack.c.0.s8 %v8625
      %v8627 = vlaneseq
      %v8628 = vshrl.u32 %v8627, 7
      %v8629 = vsub.s32 %v8626, %v8628
      %v8630 = vrot.slane %v8614, %v8629
      %v8632 = vunpack.c.l.s4 1966171168
      %v8633 = vunpack.c.0.s8 %v8632
      %v8634 = vlaneseq
      %v8635 = vshrl.u32 %v8634, 7
      %v8636 = vsub.s32 %v8633, %v8635
      %v8637 = vrot.slane %v8615, %v8636
      %v8639 = vunpack.c.l.s4 1966171168
      %v8640 = vunpack.c.0.s8 %v8639
      %v8641 = vlaneseq
      %v8642 = vshrl.u32 %v8641, 7
      %v8643 = vsub.s32 %v8640, %v8642
      %v8644 = vrot.slane %v8616, %v8643
      %v8645 = vcombine.high %v8623, %v8623
      %v8646 = vcombine.high %v8630, %v8630
      %v8647 = vcombine.high %v8637, %v8637
      %v8648 = vcombine.high %v8644, %v8644
      %v8649 = vcombine.high %v7529, %v7529
      %v8651 = vunpack.c.l.s4 1966171168
      %v8652 = vunpack.c.0.s8 %v8651
      %v8653 = vlaneseq
      %v8654 = vshrl.u32 %v8653, 7
      %v8655 = vsub.s32 %v8652, %v8654
      %v8656 = vrot.slane %v7529, %v8655
      %v8658 = vunpack.c.l.s4 1966171168
      %v8659 = vunpack.c.0.s8 %v8658
      %v8660 = vlaneseq
      %v8661 = vshrl.u32 %v8660, 7
      %v8662 = vsub.s32 %v8659, %v8661
      %v8663 = vrot.slane %v8649, %v8662
      %v8664 = vcombine.high %v8656, %v8656
      %v8665 = vcombine.high %v8663, %v8663
      %v8667 = vunpack.c.l.s4 1966171168
      %v8668 = vunpack.c.0.s8 %v8667
      %v8669 = vlaneseq
      %v8670 = vshrl.u32 %v8669, 7
      %v8671 = vsub.s32 %v8668, %v8670
      %v8672 = vrot.slane %v8656, %v8671
      %v8674 = vunpack.c.l.s4 1966171168
      %v8675 = vunpack.c.0.s8 %v8674
      %v8676 = vlaneseq
      %v8677 = vshrl.u32 %v8676, 7
      %v8678 = vsub.s32 %v8675, %v8677
      %v8679 = vrot.slane %v8663, %v8678
      %v8681 = vunpack.c.l.s4 1966171168
      %v8682 = vunpack.c.0.s8 %v8681
      %v8683 = vlaneseq
      %v8684 = vshrl.u32 %v8683, 7
      %v8685 = vsub.s32 %v8682, %v8684
      %v8686 = vrot.slane %v8664, %v8685
      %v8688 = vunpack.c.l.s4 1966171168
      %v8689 = vunpack.c.0.s8 %v8688
      %v8690 = vlaneseq
      %v8691 = vshrl.u32 %v8690, 7
      %v8692 = vsub.s32 %v8689, %v8691
      %v8693 = vrot.slane %v8665, %v8692
      %v8694 = vcombine.high %v8672, %v8672
      %v8695 = vcombine.high %v8679, %v8679
      %v8696 = vcombine.high %v8686, %v8686
      %v8697 = vcombine.high %v8693, %v8693
      %v8698 = vcombine.high %v7530, %v7530
      %v8700 = vunpack.c.l.s4 1966171168
      %v8701 = vunpack.c.0.s8 %v8700
      %v8702 = vlaneseq
      %v8703 = vshrl.u32 %v8702, 7
      %v8704 = vsub.s32 %v8701, %v8703
      %v8705 = vrot.slane %v7530, %v8704
      %v8707 = vunpack.c.l.s4 1966171168
      %v8708 = vunpack.c.0.s8 %v8707
      %v8709 = vlaneseq
      %v8710 = vshrl.u32 %v8709, 7
      %v8711 = vsub.s32 %v8708, %v8710
      %v8712 = vrot.slane %v8698, %v8711
      %v8713 = vcombine.high %v8705, %v8705
      %v8714 = vcombine.high %v8712, %v8712
      %v8716 = vunpack.c.l.s4 1966171168
      %v8717 = vunpack.c.0.s8 %v8716
      %v8718 = vlaneseq
      %v8719 = vshrl.u32 %v8718, 7
      %v8720 = vsub.s32 %v8717, %v8719
      %v8721 = vrot.slane %v8705, %v8720
      %v8723 = vunpack.c.l.s4 1966171168
      %v8724 = vunpack.c.0.s8 %v8723
      %v8725 = vlaneseq
      %v8726 = vshrl.u32 %v8725, 7
      %v8727 = vsub.s32 %v8724, %v8726
      %v8728 = vrot.slane %v8712, %v8727
      %v8730 = vunpack.c.l.s4 1966171168
      %v8731 = vunpack.c.0.s8 %v8730
      %v8732 = vlaneseq
      %v8733 = vshrl.u32 %v8732, 7
      %v8734 = vsub.s32 %v8731, %v8733
      %v8735 = vrot.slane %v8713, %v8734
      %v8737 = vunpack.c.l.s4 1966171168
      %v8738 = vunpack.c.0.s8 %v8737
      %v8739 = vlaneseq
      %v8740 = vshrl.u32 %v8739, 7
      %v8741 = vsub.s32 %v8738, %v8740
      %v8742 = vrot.slane %v8714, %v8741
      %v8743 = vcombine.high %v8721, %v8721
      %v8744 = vcombine.high %v8728, %v8728
      %v8745 = vcombine.high %v8735, %v8735
      %v8746 = vcombine.high %v8742, %v8742
      %v8747 = vcombine.high %v7531, %v7531
      %v8749 = vunpack.c.l.s4 1966171168
      %v8750 = vunpack.c.0.s8 %v8749
      %v8751 = vlaneseq
      %v8752 = vshrl.u32 %v8751, 7
      %v8753 = vsub.s32 %v8750, %v8752
      %v8754 = vrot.slane %v7531, %v8753
      %v8756 = vunpack.c.l.s4 1966171168
      %v8757 = vunpack.c.0.s8 %v8756
      %v8758 = vlaneseq
      %v8759 = vshrl.u32 %v8758, 7
      %v8760 = vsub.s32 %v8757, %v8759
      %v8761 = vrot.slane %v8747, %v8760
      %v8762 = vcombine.high %v8754, %v8754
      %v8763 = vcombine.high %v8761, %v8761
      %v8765 = vunpack.c.l.s4 1966171168
      %v8766 = vunpack.c.0.s8 %v8765
      %v8767 = vlaneseq
      %v8768 = vshrl.u32 %v8767, 7
      %v8769 = vsub.s32 %v8766, %v8768
      %v8770 = vrot.slane %v8754, %v8769
      %v8772 = vunpack.c.l.s4 1966171168
      %v8773 = vunpack.c.0.s8 %v8772
      %v8774 = vlaneseq
      %v8775 = vshrl.u32 %v8774, 7
      %v8776 = vsub.s32 %v8773, %v8775
      %v8777 = vrot.slane %v8761, %v8776
      %v8779 = vunpack.c.l.s4 1966171168
      %v8780 = vunpack.c.0.s8 %v8779
      %v8781 = vlaneseq
      %v8782 = vshrl.u32 %v8781, 7
      %v8783 = vsub.s32 %v8780, %v8782
      %v8784 = vrot.slane %v8762, %v8783
      %v8786 = vunpack.c.l.s4 1966171168
      %v8787 = vunpack.c.0.s8 %v8786
      %v8788 = vlaneseq
      %v8789 = vshrl.u32 %v8788, 7
      %v8790 = vsub.s32 %v8787, %v8789
      %v8791 = vrot.slane %v8763, %v8790
      %v8792 = vcombine.high %v8770, %v8770
      %v8793 = vcombine.high %v8777, %v8777
      %v8794 = vcombine.high %v8784, %v8784
      %v8795 = vcombine.high %v8791, %v8791
      %v8796 = vcombine.high %v7532, %v7532
      %v8798 = vunpack.c.l.s4 1966171168
      %v8799 = vunpack.c.0.s8 %v8798
      %v8800 = vlaneseq
      %v8801 = vshrl.u32 %v8800, 7
      %v8802 = vsub.s32 %v8799, %v8801
      %v8803 = vrot.slane %v7532, %v8802
      %v8805 = vunpack.c.l.s4 1966171168
      %v8806 = vunpack.c.0.s8 %v8805
      %v8807 = vlaneseq
      %v8808 = vshrl.u32 %v8807, 7
      %v8809 = vsub.s32 %v8806, %v8808
      %v8810 = vrot.slane %v8796, %v8809
      %v8811 = vcombine.high %v8803, %v8803
      %v8812 = vcombine.high %v8810, %v8810
      %v8814 = vunpack.c.l.s4 1966171168
      %v8815 = vunpack.c.0.s8 %v8814
      %v8816 = vlaneseq
      %v8817 = vshrl.u32 %v8816, 7
      %v8818 = vsub.s32 %v8815, %v8817
      %v8819 = vrot.slane %v8803, %v8818
      %v8821 = vunpack.c.l.s4 1966171168
      %v8822 = vunpack.c.0.s8 %v8821
      %v8823 = vlaneseq
      %v8824 = vshrl.u32 %v8823, 7
      %v8825 = vsub.s32 %v8822, %v8824
      %v8826 = vrot.slane %v8810, %v8825
      %v8828 = vunpack.c.l.s4 1966171168
      %v8829 = vunpack.c.0.s8 %v8828
      %v8830 = vlaneseq
      %v8831 = vshrl.u32 %v8830, 7
      %v8832 = vsub.s32 %v8829, %v8831
      %v8833 = vrot.slane %v8811, %v8832
      %v8835 = vunpack.c.l.s4 1966171168
      %v8836 = vunpack.c.0.s8 %v8835
      %v8837 = vlaneseq
      %v8838 = vshrl.u32 %v8837, 7
      %v8839 = vsub.s32 %v8836, %v8838
      %v8840 = vrot.slane %v8812, %v8839
      %v8841 = vcombine.high %v8819, %v8819
      %v8842 = vcombine.high %v8826, %v8826
      %v8843 = vcombine.high %v8833, %v8833
      %v8844 = vcombine.high %v8840, %v8840
      %v8845 = vcombine.high %v7533, %v7533
      %v8847 = vunpack.c.l.s4 1966171168
      %v8848 = vunpack.c.0.s8 %v8847
      %v8849 = vlaneseq
      %v8850 = vshrl.u32 %v8849, 7
      %v8851 = vsub.s32 %v8848, %v8850
      %v8852 = vrot.slane %v7533, %v8851
      %v8854 = vunpack.c.l.s4 1966171168
      %v8855 = vunpack.c.0.s8 %v8854
      %v8856 = vlaneseq
      %v8857 = vshrl.u32 %v8856, 7
      %v8858 = vsub.s32 %v8855, %v8857
      %v8859 = vrot.slane %v8845, %v8858
      %v8860 = vcombine.high %v8852, %v8852
      %v8861 = vcombine.high %v8859, %v8859
      %v8863 = vunpack.c.l.s4 1966171168
      %v8864 = vunpack.c.0.s8 %v8863
      %v8865 = vlaneseq
      %v8866 = vshrl.u32 %v8865, 7
      %v8867 = vsub.s32 %v8864, %v8866
      %v8868 = vrot.slane %v8852, %v8867
      %v8870 = vunpack.c.l.s4 1966171168
      %v8871 = vunpack.c.0.s8 %v8870
      %v8872 = vlaneseq
      %v8873 = vshrl.u32 %v8872, 7
      %v8874 = vsub.s32 %v8871, %v8873
      %v8875 = vrot.slane %v8859, %v8874
      %v8877 = vunpack.c.l.s4 1966171168
      %v8878 = vunpack.c.0.s8 %v8877
      %v8879 = vlaneseq
      %v8880 = vshrl.u32 %v8879, 7
      %v8881 = vsub.s32 %v8878, %v8880
      %v8882 = vrot.slane %v8860, %v8881
      %v8884 = vunpack.c.l.s4 1966171168
      %v8885 = vunpack.c.0.s8 %v8884
      %v8886 = vlaneseq
      %v8887 = vshrl.u32 %v8886, 7
      %v8888 = vsub.s32 %v8885, %v8887
      %v8889 = vrot.slane %v8861, %v8888
      %v8890 = vcombine.high %v8868, %v8868
      %v8891 = vcombine.high %v8875, %v8875
      %v8892 = vcombine.high %v8882, %v8882
      %v8893 = vcombine.high %v8889, %v8889
      %v8894 = vcombine.high %v7534, %v7534
      %v8896 = vunpack.c.l.s4 1966171168
      %v8897 = vunpack.c.0.s8 %v8896
      %v8898 = vlaneseq
      %v8899 = vshrl.u32 %v8898, 7
      %v8900 = vsub.s32 %v8897, %v8899
      %v8901 = vrot.slane %v7534, %v8900
      %v8903 = vunpack.c.l.s4 1966171168
      %v8904 = vunpack.c.0.s8 %v8903
      %v8905 = vlaneseq
      %v8906 = vshrl.u32 %v8905, 7
      %v8907 = vsub.s32 %v8904, %v8906
      %v8908 = vrot.slane %v8894, %v8907
      %v8909 = vcombine.high %v8901, %v8901
      %v8910 = vcombine.high %v8908, %v8908
      %v8912 = vunpack.c.l.s4 1966171168
      %v8913 = vunpack.c.0.s8 %v8912
      %v8914 = vlaneseq
      %v8915 = vshrl.u32 %v8914, 7
      %v8916 = vsub.s32 %v8913, %v8915
      %v8917 = vrot.slane %v8901, %v8916
      %v8919 = vunpack.c.l.s4 1966171168
      %v8920 = vunpack.c.0.s8 %v8919
      %v8921 = vlaneseq
      %v8922 = vshrl.u32 %v8921, 7
      %v8923 = vsub.s32 %v8920, %v8922
      %v8924 = vrot.slane %v8908, %v8923
      %v8926 = vunpack.c.l.s4 1966171168
      %v8927 = vunpack.c.0.s8 %v8926
      %v8928 = vlaneseq
      %v8929 = vshrl.u32 %v8928, 7
      %v8930 = vsub.s32 %v8927, %v8929
      %v8931 = vrot.slane %v8909, %v8930
      %v8933 = vunpack.c.l.s4 1966171168
      %v8934 = vunpack.c.0.s8 %v8933
      %v8935 = vlaneseq
      %v8936 = vshrl.u32 %v8935, 7
      %v8937 = vsub.s32 %v8934, %v8936
      %v8938 = vrot.slane %v8910, %v8937
      %v8939 = vcombine.high %v8917, %v8917
      %v8940 = vcombine.high %v8924, %v8924
      %v8941 = vcombine.high %v8931, %v8931
      %v8942 = vcombine.high %v8938, %v8938
      %v8943 = vcombine.high %v7535, %v7535
      %v8945 = vunpack.c.l.s4 1966171168
      %v8946 = vunpack.c.0.s8 %v8945
      %v8947 = vlaneseq
      %v8948 = vshrl.u32 %v8947, 7
      %v8949 = vsub.s32 %v8946, %v8948
      %v8950 = vrot.slane %v7535, %v8949
      %v8952 = vunpack.c.l.s4 1966171168
      %v8953 = vunpack.c.0.s8 %v8952
      %v8954 = vlaneseq
      %v8955 = vshrl.u32 %v8954, 7
      %v8956 = vsub.s32 %v8953, %v8955
      %v8957 = vrot.slane %v8943, %v8956
      %v8958 = vcombine.high %v8950, %v8950
      %v8959 = vcombine.high %v8957, %v8957
      %v8961 = vunpack.c.l.s4 1966171168
      %v8962 = vunpack.c.0.s8 %v8961
      %v8963 = vlaneseq
      %v8964 = vshrl.u32 %v8963, 7
      %v8965 = vsub.s32 %v8962, %v8964
      %v8966 = vrot.slane %v8950, %v8965
      %v8968 = vunpack.c.l.s4 1966171168
      %v8969 = vunpack.c.0.s8 %v8968
      %v8970 = vlaneseq
      %v8971 = vshrl.u32 %v8970, 7
      %v8972 = vsub.s32 %v8969, %v8971
      %v8973 = vrot.slane %v8957, %v8972
      %v8975 = vunpack.c.l.s4 1966171168
      %v8976 = vunpack.c.0.s8 %v8975
      %v8977 = vlaneseq
      %v8978 = vshrl.u32 %v8977, 7
      %v8979 = vsub.s32 %v8976, %v8978
      %v8980 = vrot.slane %v8958, %v8979
      %v8982 = vunpack.c.l.s4 1966171168
      %v8983 = vunpack.c.0.s8 %v8982
      %v8984 = vlaneseq
      %v8985 = vshrl.u32 %v8984, 7
      %v8986 = vsub.s32 %v8983, %v8985
      %v8987 = vrot.slane %v8959, %v8986
      %v8988 = vcombine.high %v8966, %v8966
      %v8989 = vcombine.high %v8973, %v8973
      %v8990 = vcombine.high %v8980, %v8980
      %v8991 = vcombine.high %v8987, %v8987
      %v8992 = vcombine.high %v7536, %v7536
      %v8994 = vunpack.c.l.s4 1966171168
      %v8995 = vunpack.c.0.s8 %v8994
      %v8996 = vlaneseq
      %v8997 = vshrl.u32 %v8996, 7
      %v8998 = vsub.s32 %v8995, %v8997
      %v8999 = vrot.slane %v7536, %v8998
      %v9001 = vunpack.c.l.s4 1966171168
      %v9002 = vunpack.c.0.s8 %v9001
      %v9003 = vlaneseq
      %v9004 = vshrl.u32 %v9003, 7
      %v9005 = vsub.s32 %v9002, %v9004
      %v9006 = vrot.slane %v8992, %v9005
      %v9007 = vcombine.high %v8999, %v8999
      %v9008 = vcombine.high %v9006, %v9006
      %v9010 = vunpack.c.l.s4 1966171168
      %v9011 = vunpack.c.0.s8 %v9010
      %v9012 = vlaneseq
      %v9013 = vshrl.u32 %v9012, 7
      %v9014 = vsub.s32 %v9011, %v9013
      %v9015 = vrot.slane %v8999, %v9014
      %v9017 = vunpack.c.l.s4 1966171168
      %v9018 = vunpack.c.0.s8 %v9017
      %v9019 = vlaneseq
      %v9020 = vshrl.u32 %v9019, 7
      %v9021 = vsub.s32 %v9018, %v9020
      %v9022 = vrot.slane %v9006, %v9021
      %v9024 = vunpack.c.l.s4 1966171168
      %v9025 = vunpack.c.0.s8 %v9024
      %v9026 = vlaneseq
      %v9027 = vshrl.u32 %v9026, 7
      %v9028 = vsub.s32 %v9025, %v9027
      %v9029 = vrot.slane %v9007, %v9028
      %v9031 = vunpack.c.l.s4 1966171168
      %v9032 = vunpack.c.0.s8 %v9031
      %v9033 = vlaneseq
      %v9034 = vshrl.u32 %v9033, 7
      %v9035 = vsub.s32 %v9032, %v9034
      %v9036 = vrot.slane %v9008, %v9035
      %v9037 = vcombine.high %v9015, %v9015
      %v9038 = vcombine.high %v9022, %v9022
      %v9039 = vcombine.high %v9029, %v9029
      %v9040 = vcombine.high %v9036, %v9036
      %v9041 = vcombine.high %v7537, %v7537
      %v9043 = vunpack.c.l.s4 1966171168
      %v9044 = vunpack.c.0.s8 %v9043
      %v9045 = vlaneseq
      %v9046 = vshrl.u32 %v9045, 7
      %v9047 = vsub.s32 %v9044, %v9046
      %v9048 = vrot.slane %v7537, %v9047
      %v9050 = vunpack.c.l.s4 1966171168
      %v9051 = vunpack.c.0.s8 %v9050
      %v9052 = vlaneseq
      %v9053 = vshrl.u32 %v9052, 7
      %v9054 = vsub.s32 %v9051, %v9053
      %v9055 = vrot.slane %v9041, %v9054
      %v9056 = vcombine.high %v9048, %v9048
      %v9057 = vcombine.high %v9055, %v9055
      %v9059 = vunpack.c.l.s4 1966171168
      %v9060 = vunpack.c.0.s8 %v9059
      %v9061 = vlaneseq
      %v9062 = vshrl.u32 %v9061, 7
      %v9063 = vsub.s32 %v9060, %v9062
      %v9064 = vrot.slane %v9048, %v9063
      %v9066 = vunpack.c.l.s4 1966171168
      %v9067 = vunpack.c.0.s8 %v9066
      %v9068 = vlaneseq
      %v9069 = vshrl.u32 %v9068, 7
      %v9070 = vsub.s32 %v9067, %v9069
      %v9071 = vrot.slane %v9055, %v9070
      %v9073 = vunpack.c.l.s4 1966171168
      %v9074 = vunpack.c.0.s8 %v9073
      %v9075 = vlaneseq
      %v9076 = vshrl.u32 %v9075, 7
      %v9077 = vsub.s32 %v9074, %v9076
      %v9078 = vrot.slane %v9056, %v9077
      %v9080 = vunpack.c.l.s4 1966171168
      %v9081 = vunpack.c.0.s8 %v9080
      %v9082 = vlaneseq
      %v9083 = vshrl.u32 %v9082, 7
      %v9084 = vsub.s32 %v9081, %v9083
      %v9085 = vrot.slane %v9057, %v9084
      %v9086 = vcombine.high %v9064, %v9064
      %v9087 = vcombine.high %v9071, %v9071
      %v9088 = vcombine.high %v9078, %v9078
      %v9089 = vcombine.high %v9085, %v9085
      %v9090 = vcombine.high %v7538, %v7538
      %v9092 = vunpack.c.l.s4 1966171168
      %v9093 = vunpack.c.0.s8 %v9092
      %v9094 = vlaneseq
      %v9095 = vshrl.u32 %v9094, 7
      %v9096 = vsub.s32 %v9093, %v9095
      %v9097 = vrot.slane %v7538, %v9096
      %v9099 = vunpack.c.l.s4 1966171168
      %v9100 = vunpack.c.0.s8 %v9099
      %v9101 = vlaneseq
      %v9102 = vshrl.u32 %v9101, 7
      %v9103 = vsub.s32 %v9100, %v9102
      %v9104 = vrot.slane %v9090, %v9103
      %v9105 = vcombine.high %v9097, %v9097
      %v9106 = vcombine.high %v9104, %v9104
      %v9108 = vunpack.c.l.s4 1966171168
      %v9109 = vunpack.c.0.s8 %v9108
      %v9110 = vlaneseq
      %v9111 = vshrl.u32 %v9110, 7
      %v9112 = vsub.s32 %v9109, %v9111
      %v9113 = vrot.slane %v9097, %v9112
      %v9115 = vunpack.c.l.s4 1966171168
      %v9116 = vunpack.c.0.s8 %v9115
      %v9117 = vlaneseq
      %v9118 = vshrl.u32 %v9117, 7
      %v9119 = vsub.s32 %v9116, %v9118
      %v9120 = vrot.slane %v9104, %v9119
      %v9122 = vunpack.c.l.s4 1966171168
      %v9123 = vunpack.c.0.s8 %v9122
      %v9124 = vlaneseq
      %v9125 = vshrl.u32 %v9124, 7
      %v9126 = vsub.s32 %v9123, %v9125
      %v9127 = vrot.slane %v9105, %v9126
      %v9129 = vunpack.c.l.s4 1966171168
      %v9130 = vunpack.c.0.s8 %v9129
      %v9131 = vlaneseq
      %v9132 = vshrl.u32 %v9131, 7
      %v9133 = vsub.s32 %v9130, %v9132
      %v9134 = vrot.slane %v9106, %v9133
      %v9135 = vcombine.high %v9113, %v9113
      %v9136 = vcombine.high %v9120, %v9120
      %v9137 = vcombine.high %v9127, %v9127
      %v9138 = vcombine.high %v9134, %v9134
      %v9139 = vcombine.low %v7594, %v7608
      %v9140 = vcombine.low %v7616, %v7618
      %v9141 = vcombine.low %v7601, %v7615
      %v9142 = vcombine.low %v7617, %v7619
      %v9144 = vunpack.c.l.s4 1966171168
      %v9145 = vunpack.c.0.s8 %v9144
      %v9146 = vlaneseq
      %v9147 = vshrl.u32 %v9146, 7
      %v9148 = vsub.s32 %v9145, %v9147
      %v9149 = vrot.slane %v9139, %v9148
      %v9151 = vunpack.c.l.s4 1966171168
      %v9152 = vunpack.c.0.s8 %v9151
      %v9153 = vlaneseq
      %v9154 = vshrl.u32 %v9153, 7
      %v9155 = vsub.s32 %v9152, %v9154
      %v9156 = vrot.slane %v9140, %v9155
      %v9158 = vunpack.c.l.s4 1966171168
      %v9159 = vunpack.c.0.s8 %v9158
      %v9160 = vlaneseq
      %v9161 = vshrl.u32 %v9160, 7
      %v9162 = vsub.s32 %v9159, %v9161
      %v9163 = vrot.slane %v9141, %v9162
      %v9165 = vunpack.c.l.s4 1966171168
      %v9166 = vunpack.c.0.s8 %v9165
      %v9167 = vlaneseq
      %v9168 = vshrl.u32 %v9167, 7
      %v9169 = vsub.s32 %v9166, %v9168
      %v9170 = vrot.slane %v9142, %v9169
      %v9171 = vcombine.low %v9149, %v9156
      %v9172 = vcombine.low %v9163, %v9170
      %v9174 = vunpack.c.l.s4 1966171168
      %v9175 = vunpack.c.0.s8 %v9174
      %v9176 = vlaneseq
      %v9177 = vshrl.u32 %v9176, 7
      %v9178 = vsub.s32 %v9175, %v9177
      %v9179 = vrot.slane %v9171, %v9178
      %v9181 = vunpack.c.l.s4 1966171168
      %v9182 = vunpack.c.0.s8 %v9181
      %v9183 = vlaneseq
      %v9184 = vshrl.u32 %v9183, 7
      %v9185 = vsub.s32 %v9182, %v9184
      %v9186 = vrot.slane %v9172, %v9185
      %v9187 = vcombine.low %v9179, %v9186
      %v9188 = vcombine.low %v7643, %v7657
      %v9189 = vcombine.low %v7665, %v7667
      %v9190 = vcombine.low %v7650, %v7664
      %v9191 = vcombine.low %v7666, %v7668
      %v9193 = vunpack.c.l.s4 1966171168
      %v9194 = vunpack.c.0.s8 %v9193
      %v9195 = vlaneseq
      %v9196 = vshrl.u32 %v9195, 7
      %v9197 = vsub.s32 %v9194, %v9196
      %v9198 = vrot.slane %v9188, %v9197
      %v9200 = vunpack.c.l.s4 1966171168
      %v9201 = vunpack.c.0.s8 %v9200
      %v9202 = vlaneseq
      %v9203 = vshrl.u32 %v9202, 7
      %v9204 = vsub.s32 %v9201, %v9203
      %v9205 = vrot.slane %v9189, %v9204
      %v9207 = vunpack.c.l.s4 1966171168
      %v9208 = vunpack.c.0.s8 %v9207
      %v9209 = vlaneseq
      %v9210 = vshrl.u32 %v9209, 7
      %v9211 = vsub.s32 %v9208, %v9210
      %v9212 = vrot.slane %v9190, %v9211
      %v9214 = vunpack.c.l.s4 1966171168
      %v9215 = vunpack.c.0.s8 %v9214
      %v9216 = vlaneseq
      %v9217 = vshrl.u32 %v9216, 7
      %v9218 = vsub.s32 %v9215, %v9217
      %v9219 = vrot.slane %v9191, %v9218
      %v9220 = vcombine.low %v9198, %v9205
      %v9221 = vcombine.low %v9212, %v9219
      %v9223 = vunpack.c.l.s4 1966171168
      %v9224 = vunpack.c.0.s8 %v9223
      %v9225 = vlaneseq
      %v9226 = vshrl.u32 %v9225, 7
      %v9227 = vsub.s32 %v9224, %v9226
      %v9228 = vrot.slane %v9220, %v9227
      %v9230 = vunpack.c.l.s4 1966171168
      %v9231 = vunpack.c.0.s8 %v9230
      %v9232 = vlaneseq
      %v9233 = vshrl.u32 %v9232, 7
      %v9234 = vsub.s32 %v9231, %v9233
      %v9235 = vrot.slane %v9221, %v9234
      %v9236 = vcombine.low %v9228, %v9235
      %v9237 = vcombine.low %v7692, %v7706
      %v9238 = vcombine.low %v7714, %v7716
      %v9239 = vcombine.low %v7699, %v7713
      %v9240 = vcombine.low %v7715, %v7717
      %v9242 = vunpack.c.l.s4 1966171168
      %v9243 = vunpack.c.0.s8 %v9242
      %v9244 = vlaneseq
      %v9245 = vshrl.u32 %v9244, 7
      %v9246 = vsub.s32 %v9243, %v9245
      %v9247 = vrot.slane %v9237, %v9246
      %v9249 = vunpack.c.l.s4 1966171168
      %v9250 = vunpack.c.0.s8 %v9249
      %v9251 = vlaneseq
      %v9252 = vshrl.u32 %v9251, 7
      %v9253 = vsub.s32 %v9250, %v9252
      %v9254 = vrot.slane %v9238, %v9253
      %v9256 = vunpack.c.l.s4 1966171168
      %v9257 = vunpack.c.0.s8 %v9256
      %v9258 = vlaneseq
      %v9259 = vshrl.u32 %v9258, 7
      %v9260 = vsub.s32 %v9257, %v9259
      %v9261 = vrot.slane %v9239, %v9260
      %v9263 = vunpack.c.l.s4 1966171168
      %v9264 = vunpack.c.0.s8 %v9263
      %v9265 = vlaneseq
      %v9266 = vshrl.u32 %v9265, 7
      %v9267 = vsub.s32 %v9264, %v9266
      %v9268 = vrot.slane %v9240, %v9267
      %v9269 = vcombine.low %v9247, %v9254
      %v9270 = vcombine.low %v9261, %v9268
      %v9272 = vunpack.c.l.s4 1966171168
      %v9273 = vunpack.c.0.s8 %v9272
      %v9274 = vlaneseq
      %v9275 = vshrl.u32 %v9274, 7
      %v9276 = vsub.s32 %v9273, %v9275
      %v9277 = vrot.slane %v9269, %v9276
      %v9279 = vunpack.c.l.s4 1966171168
      %v9280 = vunpack.c.0.s8 %v9279
      %v9281 = vlaneseq
      %v9282 = vshrl.u32 %v9281, 7
      %v9283 = vsub.s32 %v9280, %v9282
      %v9284 = vrot.slane %v9270, %v9283
      %v9285 = vcombine.low %v9277, %v9284
      %v9286 = vcombine.low %v7741, %v7755
      %v9287 = vcombine.low %v7763, %v7765
      %v9288 = vcombine.low %v7748, %v7762
      %v9289 = vcombine.low %v7764, %v7766
      %v9291 = vunpack.c.l.s4 1966171168
      %v9292 = vunpack.c.0.s8 %v9291
      %v9293 = vlaneseq
      %v9294 = vshrl.u32 %v9293, 7
      %v9295 = vsub.s32 %v9292, %v9294
      %v9296 = vrot.slane %v9286, %v9295
      %v9298 = vunpack.c.l.s4 1966171168
      %v9299 = vunpack.c.0.s8 %v9298
      %v9300 = vlaneseq
      %v9301 = vshrl.u32 %v9300, 7
      %v9302 = vsub.s32 %v9299, %v9301
      %v9303 = vrot.slane %v9287, %v9302
      %v9305 = vunpack.c.l.s4 1966171168
      %v9306 = vunpack.c.0.s8 %v9305
      %v9307 = vlaneseq
      %v9308 = vshrl.u32 %v9307, 7
      %v9309 = vsub.s32 %v9306, %v9308
      %v9310 = vrot.slane %v9288, %v9309
      %v9312 = vunpack.c.l.s4 1966171168
      %v9313 = vunpack.c.0.s8 %v9312
      %v9314 = vlaneseq
      %v9315 = vshrl.u32 %v9314, 7
      %v9316 = vsub.s32 %v9313, %v9315
      %v9317 = vrot.slane %v9289, %v9316
      %v9318 = vcombine.low %v9296, %v9303
      %v9319 = vcombine.low %v9310, %v9317
      %v9321 = vunpack.c.l.s4 1966171168
      %v9322 = vunpack.c.0.s8 %v9321
      %v9323 = vlaneseq
      %v9324 = vshrl.u32 %v9323, 7
      %v9325 = vsub.s32 %v9322, %v9324
      %v9326 = vrot.slane %v9318, %v9325
      %v9328 = vunpack.c.l.s4 1966171168
      %v9329 = vunpack.c.0.s8 %v9328
      %v9330 = vlaneseq
      %v9331 = vshrl.u32 %v9330, 7
      %v9332 = vsub.s32 %v9329, %v9331
      %v9333 = vrot.slane %v9319, %v9332
      %v9334 = vcombine.low %v9326, %v9333
      %v9335 = vcombine.low %v7790, %v7804
      %v9336 = vcombine.low %v7812, %v7814
      %v9337 = vcombine.low %v7797, %v7811
      %v9338 = vcombine.low %v7813, %v7815
      %v9340 = vunpack.c.l.s4 1966171168
      %v9341 = vunpack.c.0.s8 %v9340
      %v9342 = vlaneseq
      %v9343 = vshrl.u32 %v9342, 7
      %v9344 = vsub.s32 %v9341, %v9343
      %v9345 = vrot.slane %v9335, %v9344
      %v9347 = vunpack.c.l.s4 1966171168
      %v9348 = vunpack.c.0.s8 %v9347
      %v9349 = vlaneseq
      %v9350 = vshrl.u32 %v9349, 7
      %v9351 = vsub.s32 %v9348, %v9350
      %v9352 = vrot.slane %v9336, %v9351
      %v9354 = vunpack.c.l.s4 1966171168
      %v9355 = vunpack.c.0.s8 %v9354
      %v9356 = vlaneseq
      %v9357 = vshrl.u32 %v9356, 7
      %v9358 = vsub.s32 %v9355, %v9357
      %v9359 = vrot.slane %v9337, %v9358
      %v9361 = vunpack.c.l.s4 1966171168
      %v9362 = vunpack.c.0.s8 %v9361
      %v9363 = vlaneseq
      %v9364 = vshrl.u32 %v9363, 7
      %v9365 = vsub.s32 %v9362, %v9364
      %v9366 = vrot.slane %v9338, %v9365
      %v9367 = vcombine.low %v9345, %v9352
      %v9368 = vcombine.low %v9359, %v9366
      %v9370 = vunpack.c.l.s4 1966171168
      %v9371 = vunpack.c.0.s8 %v9370
      %v9372 = vlaneseq
      %v9373 = vshrl.u32 %v9372, 7
      %v9374 = vsub.s32 %v9371, %v9373
      %v9375 = vrot.slane %v9367, %v9374
      %v9377 = vunpack.c.l.s4 1966171168
      %v9378 = vunpack.c.0.s8 %v9377
      %v9379 = vlaneseq
      %v9380 = vshrl.u32 %v9379, 7
      %v9381 = vsub.s32 %v9378, %v9380
      %v9382 = vrot.slane %v9368, %v9381
      %v9383 = vcombine.low %v9375, %v9382
      %v9384 = vcombine.low %v7839, %v7853
      %v9385 = vcombine.low %v7861, %v7863
      %v9386 = vcombine.low %v7846, %v7860
      %v9387 = vcombine.low %v7862, %v7864
      %v9389 = vunpack.c.l.s4 1966171168
      %v9390 = vunpack.c.0.s8 %v9389
      %v9391 = vlaneseq
      %v9392 = vshrl.u32 %v9391, 7
      %v9393 = vsub.s32 %v9390, %v9392
      %v9394 = vrot.slane %v9384, %v9393
      %v9396 = vunpack.c.l.s4 1966171168
      %v9397 = vunpack.c.0.s8 %v9396
      %v9398 = vlaneseq
      %v9399 = vshrl.u32 %v9398, 7
      %v9400 = vsub.s32 %v9397, %v9399
      %v9401 = vrot.slane %v9385, %v9400
      %v9403 = vunpack.c.l.s4 1966171168
      %v9404 = vunpack.c.0.s8 %v9403
      %v9405 = vlaneseq
      %v9406 = vshrl.u32 %v9405, 7
      %v9407 = vsub.s32 %v9404, %v9406
      %v9408 = vrot.slane %v9386, %v9407
      %v9410 = vunpack.c.l.s4 1966171168
      %v9411 = vunpack.c.0.s8 %v9410
      %v9412 = vlaneseq
      %v9413 = vshrl.u32 %v9412, 7
      %v9414 = vsub.s32 %v9411, %v9413
      %v9415 = vrot.slane %v9387, %v9414
      %v9416 = vcombine.low %v9394, %v9401
      %v9417 = vcombine.low %v9408, %v9415
      %v9419 = vunpack.c.l.s4 1966171168
      %v9420 = vunpack.c.0.s8 %v9419
      %v9421 = vlaneseq
      %v9422 = vshrl.u32 %v9421, 7
      %v9423 = vsub.s32 %v9420, %v9422
      %v9424 = vrot.slane %v9416, %v9423
      %v9426 = vunpack.c.l.s4 1966171168
      %v9427 = vunpack.c.0.s8 %v9426
      %v9428 = vlaneseq
      %v9429 = vshrl.u32 %v9428, 7
      %v9430 = vsub.s32 %v9427, %v9429
      %v9431 = vrot.slane %v9417, %v9430
      %v9432 = vcombine.low %v9424, %v9431
      %v9433 = vcombine.low %v7888, %v7902
      %v9434 = vcombine.low %v7910, %v7912
      %v9435 = vcombine.low %v7895, %v7909
      %v9436 = vcombine.low %v7911, %v7913
      %v9438 = vunpack.c.l.s4 1966171168
      %v9439 = vunpack.c.0.s8 %v9438
      %v9440 = vlaneseq
      %v9441 = vshrl.u32 %v9440, 7
      %v9442 = vsub.s32 %v9439, %v9441
      %v9443 = vrot.slane %v9433, %v9442
      %v9445 = vunpack.c.l.s4 1966171168
      %v9446 = vunpack.c.0.s8 %v9445
      %v9447 = vlaneseq
      %v9448 = vshrl.u32 %v9447, 7
      %v9449 = vsub.s32 %v9446, %v9448
      %v9450 = vrot.slane %v9434, %v9449
      %v9452 = vunpack.c.l.s4 1966171168
      %v9453 = vunpack.c.0.s8 %v9452
      %v9454 = vlaneseq
      %v9455 = vshrl.u32 %v9454, 7
      %v9456 = vsub.s32 %v9453, %v9455
      %v9457 = vrot.slane %v9435, %v9456
      %v9459 = vunpack.c.l.s4 1966171168
      %v9460 = vunpack.c.0.s8 %v9459
      %v9461 = vlaneseq
      %v9462 = vshrl.u32 %v9461, 7
      %v9463 = vsub.s32 %v9460, %v9462
      %v9464 = vrot.slane %v9436, %v9463
      %v9465 = vcombine.low %v9443, %v9450
      %v9466 = vcombine.low %v9457, %v9464
      %v9468 = vunpack.c.l.s4 1966171168
      %v9469 = vunpack.c.0.s8 %v9468
      %v9470 = vlaneseq
      %v9471 = vshrl.u32 %v9470, 7
      %v9472 = vsub.s32 %v9469, %v9471
      %v9473 = vrot.slane %v9465, %v9472
      %v9475 = vunpack.c.l.s4 1966171168
      %v9476 = vunpack.c.0.s8 %v9475
      %v9477 = vlaneseq
      %v9478 = vshrl.u32 %v9477, 7
      %v9479 = vsub.s32 %v9476, %v9478
      %v9480 = vrot.slane %v9466, %v9479
      %v9481 = vcombine.low %v9473, %v9480
      %v9482 = vcombine.low %v7937, %v7951
      %v9483 = vcombine.low %v7959, %v7961
      %v9484 = vcombine.low %v7944, %v7958
      %v9485 = vcombine.low %v7960, %v7962
      %v9487 = vunpack.c.l.s4 1966171168
      %v9488 = vunpack.c.0.s8 %v9487
      %v9489 = vlaneseq
      %v9490 = vshrl.u32 %v9489, 7
      %v9491 = vsub.s32 %v9488, %v9490
      %v9492 = vrot.slane %v9482, %v9491
      %v9494 = vunpack.c.l.s4 1966171168
      %v9495 = vunpack.c.0.s8 %v9494
      %v9496 = vlaneseq
      %v9497 = vshrl.u32 %v9496, 7
      %v9498 = vsub.s32 %v9495, %v9497
      %v9499 = vrot.slane %v9483, %v9498
      %v9501 = vunpack.c.l.s4 1966171168
      %v9502 = vunpack.c.0.s8 %v9501
      %v9503 = vlaneseq
      %v9504 = vshrl.u32 %v9503, 7
      %v9505 = vsub.s32 %v9502, %v9504
      %v9506 = vrot.slane %v9484, %v9505
      %v9508 = vunpack.c.l.s4 1966171168
      %v9509 = vunpack.c.0.s8 %v9508
      %v9510 = vlaneseq
      %v9511 = vshrl.u32 %v9510, 7
      %v9512 = vsub.s32 %v9509, %v9511
      %v9513 = vrot.slane %v9485, %v9512
      %v9514 = vcombine.low %v9492, %v9499
      %v9515 = vcombine.low %v9506, %v9513
      %v9517 = vunpack.c.l.s4 1966171168
      %v9518 = vunpack.c.0.s8 %v9517
      %v9519 = vlaneseq
      %v9520 = vshrl.u32 %v9519, 7
      %v9521 = vsub.s32 %v9518, %v9520
      %v9522 = vrot.slane %v9514, %v9521
      %v9524 = vunpack.c.l.s4 1966171168
      %v9525 = vunpack.c.0.s8 %v9524
      %v9526 = vlaneseq
      %v9527 = vshrl.u32 %v9526, 7
      %v9528 = vsub.s32 %v9525, %v9527
      %v9529 = vrot.slane %v9515, %v9528
      %v9530 = vcombine.low %v9522, %v9529
      %v9531 = vcombine.low %v7986, %v8000
      %v9532 = vcombine.low %v8008, %v8010
      %v9533 = vcombine.low %v7993, %v8007
      %v9534 = vcombine.low %v8009, %v8011
      %v9536 = vunpack.c.l.s4 1966171168
      %v9537 = vunpack.c.0.s8 %v9536
      %v9538 = vlaneseq
      %v9539 = vshrl.u32 %v9538, 7
      %v9540 = vsub.s32 %v9537, %v9539
      %v9541 = vrot.slane %v9531, %v9540
      %v9543 = vunpack.c.l.s4 1966171168
      %v9544 = vunpack.c.0.s8 %v9543
      %v9545 = vlaneseq
      %v9546 = vshrl.u32 %v9545, 7
      %v9547 = vsub.s32 %v9544, %v9546
      %v9548 = vrot.slane %v9532, %v9547
      %v9550 = vunpack.c.l.s4 1966171168
      %v9551 = vunpack.c.0.s8 %v9550
      %v9552 = vlaneseq
      %v9553 = vshrl.u32 %v9552, 7
      %v9554 = vsub.s32 %v9551, %v9553
      %v9555 = vrot.slane %v9533, %v9554
      %v9557 = vunpack.c.l.s4 1966171168
      %v9558 = vunpack.c.0.s8 %v9557
      %v9559 = vlaneseq
      %v9560 = vshrl.u32 %v9559, 7
      %v9561 = vsub.s32 %v9558, %v9560
      %v9562 = vrot.slane %v9534, %v9561
      %v9563 = vcombine.low %v9541, %v9548
      %v9564 = vcombine.low %v9555, %v9562
      %v9566 = vunpack.c.l.s4 1966171168
      %v9567 = vunpack.c.0.s8 %v9566
      %v9568 = vlaneseq
      %v9569 = vshrl.u32 %v9568, 7
      %v9570 = vsub.s32 %v9567, %v9569
      %v9571 = vrot.slane %v9563, %v9570
      %v9573 = vunpack.c.l.s4 1966171168
      %v9574 = vunpack.c.0.s8 %v9573
      %v9575 = vlaneseq
      %v9576 = vshrl.u32 %v9575, 7
      %v9577 = vsub.s32 %v9574, %v9576
      %v9578 = vrot.slane %v9564, %v9577
      %v9579 = vcombine.low %v9571, %v9578
      %v9580 = vcombine.low %v8035, %v8049
      %v9581 = vcombine.low %v8057, %v8059
      %v9582 = vcombine.low %v8042, %v8056
      %v9583 = vcombine.low %v8058, %v8060
      %v9585 = vunpack.c.l.s4 1966171168
      %v9586 = vunpack.c.0.s8 %v9585
      %v9587 = vlaneseq
      %v9588 = vshrl.u32 %v9587, 7
      %v9589 = vsub.s32 %v9586, %v9588
      %v9590 = vrot.slane %v9580, %v9589
      %v9592 = vunpack.c.l.s4 1966171168
      %v9593 = vunpack.c.0.s8 %v9592
      %v9594 = vlaneseq
      %v9595 = vshrl.u32 %v9594, 7
      %v9596 = vsub.s32 %v9593, %v9595
      %v9597 = vrot.slane %v9581, %v9596
      %v9599 = vunpack.c.l.s4 1966171168
      %v9600 = vunpack.c.0.s8 %v9599
      %v9601 = vlaneseq
      %v9602 = vshrl.u32 %v9601, 7
      %v9603 = vsub.s32 %v9600, %v9602
      %v9604 = vrot.slane %v9582, %v9603
      %v9606 = vunpack.c.l.s4 1966171168
      %v9607 = vunpack.c.0.s8 %v9606
      %v9608 = vlaneseq
      %v9609 = vshrl.u32 %v9608, 7
      %v9610 = vsub.s32 %v9607, %v9609
      %v9611 = vrot.slane %v9583, %v9610
      %v9612 = vcombine.low %v9590, %v9597
      %v9613 = vcombine.low %v9604, %v9611
      %v9615 = vunpack.c.l.s4 1966171168
      %v9616 = vunpack.c.0.s8 %v9615
      %v9617 = vlaneseq
      %v9618 = vshrl.u32 %v9617, 7
      %v9619 = vsub.s32 %v9616, %v9618
      %v9620 = vrot.slane %v9612, %v9619
      %v9622 = vunpack.c.l.s4 1966171168
      %v9623 = vunpack.c.0.s8 %v9622
      %v9624 = vlaneseq
      %v9625 = vshrl.u32 %v9624, 7
      %v9626 = vsub.s32 %v9623, %v9625
      %v9627 = vrot.slane %v9613, %v9626
      %v9628 = vcombine.low %v9620, %v9627
      %v9629 = vcombine.low %v8084, %v8098
      %v9630 = vcombine.low %v8106, %v8108
      %v9631 = vcombine.low %v8091, %v8105
      %v9632 = vcombine.low %v8107, %v8109
      %v9634 = vunpack.c.l.s4 1966171168
      %v9635 = vunpack.c.0.s8 %v9634
      %v9636 = vlaneseq
      %v9637 = vshrl.u32 %v9636, 7
      %v9638 = vsub.s32 %v9635, %v9637
      %v9639 = vrot.slane %v9629, %v9638
      %v9641 = vunpack.c.l.s4 1966171168
      %v9642 = vunpack.c.0.s8 %v9641
      %v9643 = vlaneseq
      %v9644 = vshrl.u32 %v9643, 7
      %v9645 = vsub.s32 %v9642, %v9644
      %v9646 = vrot.slane %v9630, %v9645
      %v9648 = vunpack.c.l.s4 1966171168
      %v9649 = vunpack.c.0.s8 %v9648
      %v9650 = vlaneseq
      %v9651 = vshrl.u32 %v9650, 7
      %v9652 = vsub.s32 %v9649, %v9651
      %v9653 = vrot.slane %v9631, %v9652
      %v9655 = vunpack.c.l.s4 1966171168
      %v9656 = vunpack.c.0.s8 %v9655
      %v9657 = vlaneseq
      %v9658 = vshrl.u32 %v9657, 7
      %v9659 = vsub.s32 %v9656, %v9658
      %v9660 = vrot.slane %v9632, %v9659
      %v9661 = vcombine.low %v9639, %v9646
      %v9662 = vcombine.low %v9653, %v9660
      %v9664 = vunpack.c.l.s4 1966171168
      %v9665 = vunpack.c.0.s8 %v9664
      %v9666 = vlaneseq
      %v9667 = vshrl.u32 %v9666, 7
      %v9668 = vsub.s32 %v9665, %v9667
      %v9669 = vrot.slane %v9661, %v9668
      %v9671 = vunpack.c.l.s4 1966171168
      %v9672 = vunpack.c.0.s8 %v9671
      %v9673 = vlaneseq
      %v9674 = vshrl.u32 %v9673, 7
      %v9675 = vsub.s32 %v9672, %v9674
      %v9676 = vrot.slane %v9662, %v9675
      %v9677 = vcombine.low %v9669, %v9676
      %v9678 = vcombine.low %v8133, %v8147
      %v9679 = vcombine.low %v8155, %v8157
      %v9680 = vcombine.low %v8140, %v8154
      %v9681 = vcombine.low %v8156, %v8158
      %v9683 = vunpack.c.l.s4 1966171168
      %v9684 = vunpack.c.0.s8 %v9683
      %v9685 = vlaneseq
      %v9686 = vshrl.u32 %v9685, 7
      %v9687 = vsub.s32 %v9684, %v9686
      %v9688 = vrot.slane %v9678, %v9687
      %v9690 = vunpack.c.l.s4 1966171168
      %v9691 = vunpack.c.0.s8 %v9690
      %v9692 = vlaneseq
      %v9693 = vshrl.u32 %v9692, 7
      %v9694 = vsub.s32 %v9691, %v9693
      %v9695 = vrot.slane %v9679, %v9694
      %v9697 = vunpack.c.l.s4 1966171168
      %v9698 = vunpack.c.0.s8 %v9697
      %v9699 = vlaneseq
      %v9700 = vshrl.u32 %v9699, 7
      %v9701 = vsub.s32 %v9698, %v9700
      %v9702 = vrot.slane %v9680, %v9701
      %v9704 = vunpack.c.l.s4 1966171168
      %v9705 = vunpack.c.0.s8 %v9704
      %v9706 = vlaneseq
      %v9707 = vshrl.u32 %v9706, 7
      %v9708 = vsub.s32 %v9705, %v9707
      %v9709 = vrot.slane %v9681, %v9708
      %v9710 = vcombine.low %v9688, %v9695
      %v9711 = vcombine.low %v9702, %v9709
      %v9713 = vunpack.c.l.s4 1966171168
      %v9714 = vunpack.c.0.s8 %v9713
      %v9715 = vlaneseq
      %v9716 = vshrl.u32 %v9715, 7
      %v9717 = vsub.s32 %v9714, %v9716
      %v9718 = vrot.slane %v9710, %v9717
      %v9720 = vunpack.c.l.s4 1966171168
      %v9721 = vunpack.c.0.s8 %v9720
      %v9722 = vlaneseq
      %v9723 = vshrl.u32 %v9722, 7
      %v9724 = vsub.s32 %v9721, %v9723
      %v9725 = vrot.slane %v9711, %v9724
      %v9726 = vcombine.low %v9718, %v9725
      %v9727 = vcombine.low %v8182, %v8196
      %v9728 = vcombine.low %v8204, %v8206
      %v9729 = vcombine.low %v8189, %v8203
      %v9730 = vcombine.low %v8205, %v8207
      %v9732 = vunpack.c.l.s4 1966171168
      %v9733 = vunpack.c.0.s8 %v9732
      %v9734 = vlaneseq
      %v9735 = vshrl.u32 %v9734, 7
      %v9736 = vsub.s32 %v9733, %v9735
      %v9737 = vrot.slane %v9727, %v9736
      %v9739 = vunpack.c.l.s4 1966171168
      %v9740 = vunpack.c.0.s8 %v9739
      %v9741 = vlaneseq
      %v9742 = vshrl.u32 %v9741, 7
      %v9743 = vsub.s32 %v9740, %v9742
      %v9744 = vrot.slane %v9728, %v9743
      %v9746 = vunpack.c.l.s4 1966171168
      %v9747 = vunpack.c.0.s8 %v9746
      %v9748 = vlaneseq
      %v9749 = vshrl.u32 %v9748, 7
      %v9750 = vsub.s32 %v9747, %v9749
      %v9751 = vrot.slane %v9729, %v9750
      %v9753 = vunpack.c.l.s4 1966171168
      %v9754 = vunpack.c.0.s8 %v9753
      %v9755 = vlaneseq
      %v9756 = vshrl.u32 %v9755, 7
      %v9757 = vsub.s32 %v9754, %v9756
      %v9758 = vrot.slane %v9730, %v9757
      %v9759 = vcombine.low %v9737, %v9744
      %v9760 = vcombine.low %v9751, %v9758
      %v9762 = vunpack.c.l.s4 1966171168
      %v9763 = vunpack.c.0.s8 %v9762
      %v9764 = vlaneseq
      %v9765 = vshrl.u32 %v9764, 7
      %v9766 = vsub.s32 %v9763, %v9765
      %v9767 = vrot.slane %v9759, %v9766
      %v9769 = vunpack.c.l.s4 1966171168
      %v9770 = vunpack.c.0.s8 %v9769
      %v9771 = vlaneseq
      %v9772 = vshrl.u32 %v9771, 7
      %v9773 = vsub.s32 %v9770, %v9772
      %v9774 = vrot.slane %v9760, %v9773
      %v9775 = vcombine.low %v9767, %v9774
      %v9776 = vcombine.low %v8231, %v8245
      %v9777 = vcombine.low %v8253, %v8255
      %v9778 = vcombine.low %v8238, %v8252
      %v9779 = vcombine.low %v8254, %v8256
      %v9781 = vunpack.c.l.s4 1966171168
      %v9782 = vunpack.c.0.s8 %v9781
      %v9783 = vlaneseq
      %v9784 = vshrl.u32 %v9783, 7
      %v9785 = vsub.s32 %v9782, %v9784
      %v9786 = vrot.slane %v9776, %v9785
      %v9788 = vunpack.c.l.s4 1966171168
      %v9789 = vunpack.c.0.s8 %v9788
      %v9790 = vlaneseq
      %v9791 = vshrl.u32 %v9790, 7
      %v9792 = vsub.s32 %v9789, %v9791
      %v9793 = vrot.slane %v9777, %v9792
      %v9795 = vunpack.c.l.s4 1966171168
      %v9796 = vunpack.c.0.s8 %v9795
      %v9797 = vlaneseq
      %v9798 = vshrl.u32 %v9797, 7
      %v9799 = vsub.s32 %v9796, %v9798
      %v9800 = vrot.slane %v9778, %v9799
      %v9802 = vunpack.c.l.s4 1966171168
      %v9803 = vunpack.c.0.s8 %v9802
      %v9804 = vlaneseq
      %v9805 = vshrl.u32 %v9804, 7
      %v9806 = vsub.s32 %v9803, %v9805
      %v9807 = vrot.slane %v9779, %v9806
      %v9808 = vcombine.low %v9786, %v9793
      %v9809 = vcombine.low %v9800, %v9807
      %v9811 = vunpack.c.l.s4 1966171168
      %v9812 = vunpack.c.0.s8 %v9811
      %v9813 = vlaneseq
      %v9814 = vshrl.u32 %v9813, 7
      %v9815 = vsub.s32 %v9812, %v9814
      %v9816 = vrot.slane %v9808, %v9815
      %v9818 = vunpack.c.l.s4 1966171168
      %v9819 = vunpack.c.0.s8 %v9818
      %v9820 = vlaneseq
      %v9821 = vshrl.u32 %v9820, 7
      %v9822 = vsub.s32 %v9819, %v9821
      %v9823 = vrot.slane %v9809, %v9822
      %v9824 = vcombine.low %v9816, %v9823
      %v9825 = vcombine.low %v8280, %v8294
      %v9826 = vcombine.low %v8302, %v8304
      %v9827 = vcombine.low %v8287, %v8301
      %v9828 = vcombine.low %v8303, %v8305
      %v9830 = vunpack.c.l.s4 1966171168
      %v9831 = vunpack.c.0.s8 %v9830
      %v9832 = vlaneseq
      %v9833 = vshrl.u32 %v9832, 7
      %v9834 = vsub.s32 %v9831, %v9833
      %v9835 = vrot.slane %v9825, %v9834
      %v9837 = vunpack.c.l.s4 1966171168
      %v9838 = vunpack.c.0.s8 %v9837
      %v9839 = vlaneseq
      %v9840 = vshrl.u32 %v9839, 7
      %v9841 = vsub.s32 %v9838, %v9840
      %v9842 = vrot.slane %v9826, %v9841
      %v9844 = vunpack.c.l.s4 1966171168
      %v9845 = vunpack.c.0.s8 %v9844
      %v9846 = vlaneseq
      %v9847 = vshrl.u32 %v9846, 7
      %v9848 = vsub.s32 %v9845, %v9847
      %v9849 = vrot.slane %v9827, %v9848
      %v9851 = vunpack.c.l.s4 1966171168
      %v9852 = vunpack.c.0.s8 %v9851
      %v9853 = vlaneseq
      %v9854 = vshrl.u32 %v9853, 7
      %v9855 = vsub.s32 %v9852, %v9854
      %v9856 = vrot.slane %v9828, %v9855
      %v9857 = vcombine.low %v9835, %v9842
      %v9858 = vcombine.low %v9849, %v9856
      %v9860 = vunpack.c.l.s4 1966171168
      %v9861 = vunpack.c.0.s8 %v9860
      %v9862 = vlaneseq
      %v9863 = vshrl.u32 %v9862, 7
      %v9864 = vsub.s32 %v9861, %v9863
      %v9865 = vrot.slane %v9857, %v9864
      %v9867 = vunpack.c.l.s4 1966171168
      %v9868 = vunpack.c.0.s8 %v9867
      %v9869 = vlaneseq
      %v9870 = vshrl.u32 %v9869, 7
      %v9871 = vsub.s32 %v9868, %v9870
      %v9872 = vrot.slane %v9858, %v9871
      %v9873 = vcombine.low %v9865, %v9872
      %v9874 = vcombine.low %v8329, %v8343
      %v9875 = vcombine.low %v8351, %v8353
      %v9876 = vcombine.low %v8336, %v8350
      %v9877 = vcombine.low %v8352, %v8354
      %v9879 = vunpack.c.l.s4 1966171168
      %v9880 = vunpack.c.0.s8 %v9879
      %v9881 = vlaneseq
      %v9882 = vshrl.u32 %v9881, 7
      %v9883 = vsub.s32 %v9880, %v9882
      %v9884 = vrot.slane %v9874, %v9883
      %v9886 = vunpack.c.l.s4 1966171168
      %v9887 = vunpack.c.0.s8 %v9886
      %v9888 = vlaneseq
      %v9889 = vshrl.u32 %v9888, 7
      %v9890 = vsub.s32 %v9887, %v9889
      %v9891 = vrot.slane %v9875, %v9890
      %v9893 = vunpack.c.l.s4 1966171168
      %v9894 = vunpack.c.0.s8 %v9893
      %v9895 = vlaneseq
      %v9896 = vshrl.u32 %v9895, 7
      %v9897 = vsub.s32 %v9894, %v9896
      %v9898 = vrot.slane %v9876, %v9897
      %v9900 = vunpack.c.l.s4 1966171168
      %v9901 = vunpack.c.0.s8 %v9900
      %v9902 = vlaneseq
      %v9903 = vshrl.u32 %v9902, 7
      %v9904 = vsub.s32 %v9901, %v9903
      %v9905 = vrot.slane %v9877, %v9904
      %v9906 = vcombine.low %v9884, %v9891
      %v9907 = vcombine.low %v9898, %v9905
      %v9909 = vunpack.c.l.s4 1966171168
      %v9910 = vunpack.c.0.s8 %v9909
      %v9911 = vlaneseq
      %v9912 = vshrl.u32 %v9911, 7
      %v9913 = vsub.s32 %v9910, %v9912
      %v9914 = vrot.slane %v9906, %v9913
      %v9916 = vunpack.c.l.s4 1966171168
      %v9917 = vunpack.c.0.s8 %v9916
      %v9918 = vlaneseq
      %v9919 = vshrl.u32 %v9918, 7
      %v9920 = vsub.s32 %v9917, %v9919
      %v9921 = vrot.slane %v9907, %v9920
      %v9922 = vcombine.low %v9914, %v9921
      %v9923 = vcombine.low %v8378, %v8392
      %v9924 = vcombine.low %v8400, %v8402
      %v9925 = vcombine.low %v8385, %v8399
      %v9926 = vcombine.low %v8401, %v8403
      %v9928 = vunpack.c.l.s4 1966171168
      %v9929 = vunpack.c.0.s8 %v9928
      %v9930 = vlaneseq
      %v9931 = vshrl.u32 %v9930, 7
      %v9932 = vsub.s32 %v9929, %v9931
      %v9933 = vrot.slane %v9923, %v9932
      %v9935 = vunpack.c.l.s4 1966171168
      %v9936 = vunpack.c.0.s8 %v9935
      %v9937 = vlaneseq
      %v9938 = vshrl.u32 %v9937, 7
      %v9939 = vsub.s32 %v9936, %v9938
      %v9940 = vrot.slane %v9924, %v9939
      %v9942 = vunpack.c.l.s4 1966171168
      %v9943 = vunpack.c.0.s8 %v9942
      %v9944 = vlaneseq
      %v9945 = vshrl.u32 %v9944, 7
      %v9946 = vsub.s32 %v9943, %v9945
      %v9947 = vrot.slane %v9925, %v9946
      %v9949 = vunpack.c.l.s4 1966171168
      %v9950 = vunpack.c.0.s8 %v9949
      %v9951 = vlaneseq
      %v9952 = vshrl.u32 %v9951, 7
      %v9953 = vsub.s32 %v9950, %v9952
      %v9954 = vrot.slane %v9926, %v9953
      %v9955 = vcombine.low %v9933, %v9940
      %v9956 = vcombine.low %v9947, %v9954
      %v9958 = vunpack.c.l.s4 1966171168
      %v9959 = vunpack.c.0.s8 %v9958
      %v9960 = vlaneseq
      %v9961 = vshrl.u32 %v9960, 7
      %v9962 = vsub.s32 %v9959, %v9961
      %v9963 = vrot.slane %v9955, %v9962
      %v9965 = vunpack.c.l.s4 1966171168
      %v9966 = vunpack.c.0.s8 %v9965
      %v9967 = vlaneseq
      %v9968 = vshrl.u32 %v9967, 7
      %v9969 = vsub.s32 %v9966, %v9968
      %v9970 = vrot.slane %v9956, %v9969
      %v9971 = vcombine.low %v9963, %v9970
      %v9972 = vcombine.low %v8427, %v8441
      %v9973 = vcombine.low %v8449, %v8451
      %v9974 = vcombine.low %v8434, %v8448
      %v9975 = vcombine.low %v8450, %v8452
      %v9977 = vunpack.c.l.s4 1966171168
      %v9978 = vunpack.c.0.s8 %v9977
      %v9979 = vlaneseq
      %v9980 = vshrl.u32 %v9979, 7
      %v9981 = vsub.s32 %v9978, %v9980
      %v9982 = vrot.slane %v9972, %v9981
      %v9984 = vunpack.c.l.s4 1966171168
      %v9985 = vunpack.c.0.s8 %v9984
      %v9986 = vlaneseq
      %v9987 = vshrl.u32 %v9986, 7
      %v9988 = vsub.s32 %v9985, %v9987
      %v9989 = vrot.slane %v9973, %v9988
      %v9991 = vunpack.c.l.s4 1966171168
      %v9992 = vunpack.c.0.s8 %v9991
      %v9993 = vlaneseq
      %v9994 = vshrl.u32 %v9993, 7
      %v9995 = vsub.s32 %v9992, %v9994
      %v9996 = vrot.slane %v9974, %v9995
      %v9998 = vunpack.c.l.s4 1966171168
      %v9999 = vunpack.c.0.s8 %v9998
      %v10000 = vlaneseq
      %v10001 = vshrl.u32 %v10000, 7
      %v10002 = vsub.s32 %v9999, %v10001
      %v10003 = vrot.slane %v9975, %v10002
      %v10004 = vcombine.low %v9982, %v9989
      %v10005 = vcombine.low %v9996, %v10003
      %v10007 = vunpack.c.l.s4 1966171168
      %v10008 = vunpack.c.0.s8 %v10007
      %v10009 = vlaneseq
      %v10010 = vshrl.u32 %v10009, 7
      %v10011 = vsub.s32 %v10008, %v10010
      %v10012 = vrot.slane %v10004, %v10011
      %v10014 = vunpack.c.l.s4 1966171168
      %v10015 = vunpack.c.0.s8 %v10014
      %v10016 = vlaneseq
      %v10017 = vshrl.u32 %v10016, 7
      %v10018 = vsub.s32 %v10015, %v10017
      %v10019 = vrot.slane %v10005, %v10018
      %v10020 = vcombine.low %v10012, %v10019
      %v10021 = vcombine.low %v8476, %v8490
      %v10022 = vcombine.low %v8498, %v8500
      %v10023 = vcombine.low %v8483, %v8497
      %v10024 = vcombine.low %v8499, %v8501
      %v10026 = vunpack.c.l.s4 1966171168
      %v10027 = vunpack.c.0.s8 %v10026
      %v10028 = vlaneseq
      %v10029 = vshrl.u32 %v10028, 7
      %v10030 = vsub.s32 %v10027, %v10029
      %v10031 = vrot.slane %v10021, %v10030
      %v10033 = vunpack.c.l.s4 1966171168
      %v10034 = vunpack.c.0.s8 %v10033
      %v10035 = vlaneseq
      %v10036 = vshrl.u32 %v10035, 7
      %v10037 = vsub.s32 %v10034, %v10036
      %v10038 = vrot.slane %v10022, %v10037
      %v10040 = vunpack.c.l.s4 1966171168
      %v10041 = vunpack.c.0.s8 %v10040
      %v10042 = vlaneseq
      %v10043 = vshrl.u32 %v10042, 7
      %v10044 = vsub.s32 %v10041, %v10043
      %v10045 = vrot.slane %v10023, %v10044
      %v10047 = vunpack.c.l.s4 1966171168
      %v10048 = vunpack.c.0.s8 %v10047
      %v10049 = vlaneseq
      %v10050 = vshrl.u32 %v10049, 7
      %v10051 = vsub.s32 %v10048, %v10050
      %v10052 = vrot.slane %v10024, %v10051
      %v10053 = vcombine.low %v10031, %v10038
      %v10054 = vcombine.low %v10045, %v10052
      %v10056 = vunpack.c.l.s4 1966171168
      %v10057 = vunpack.c.0.s8 %v10056
      %v10058 = vlaneseq
      %v10059 = vshrl.u32 %v10058, 7
      %v10060 = vsub.s32 %v10057, %v10059
      %v10061 = vrot.slane %v10053, %v10060
      %v10063 = vunpack.c.l.s4 1966171168
      %v10064 = vunpack.c.0.s8 %v10063
      %v10065 = vlaneseq
      %v10066 = vshrl.u32 %v10065, 7
      %v10067 = vsub.s32 %v10064, %v10066
      %v10068 = vrot.slane %v10054, %v10067
      %v10069 = vcombine.low %v10061, %v10068
      %v10070 = vcombine.low %v8525, %v8539
      %v10071 = vcombine.low %v8547, %v8549
      %v10072 = vcombine.low %v8532, %v8546
      %v10073 = vcombine.low %v8548, %v8550
      %v10075 = vunpack.c.l.s4 1966171168
      %v10076 = vunpack.c.0.s8 %v10075
      %v10077 = vlaneseq
      %v10078 = vshrl.u32 %v10077, 7
      %v10079 = vsub.s32 %v10076, %v10078
      %v10080 = vrot.slane %v10070, %v10079
      %v10082 = vunpack.c.l.s4 1966171168
      %v10083 = vunpack.c.0.s8 %v10082
      %v10084 = vlaneseq
      %v10085 = vshrl.u32 %v10084, 7
      %v10086 = vsub.s32 %v10083, %v10085
      %v10087 = vrot.slane %v10071, %v10086
      %v10089 = vunpack.c.l.s4 1966171168
      %v10090 = vunpack.c.0.s8 %v10089
      %v10091 = vlaneseq
      %v10092 = vshrl.u32 %v10091, 7
      %v10093 = vsub.s32 %v10090, %v10092
      %v10094 = vrot.slane %v10072, %v10093
      %v10096 = vunpack.c.l.s4 1966171168
      %v10097 = vunpack.c.0.s8 %v10096
      %v10098 = vlaneseq
      %v10099 = vshrl.u32 %v10098, 7
      %v10100 = vsub.s32 %v10097, %v10099
      %v10101 = vrot.slane %v10073, %v10100
      %v10102 = vcombine.low %v10080, %v10087
      %v10103 = vcombine.low %v10094, %v10101
      %v10105 = vunpack.c.l.s4 1966171168
      %v10106 = vunpack.c.0.s8 %v10105
      %v10107 = vlaneseq
      %v10108 = vshrl.u32 %v10107, 7
      %v10109 = vsub.s32 %v10106, %v10108
      %v10110 = vrot.slane %v10102, %v10109
      %v10112 = vunpack.c.l.s4 1966171168
      %v10113 = vunpack.c.0.s8 %v10112
      %v10114 = vlaneseq
      %v10115 = vshrl.u32 %v10114, 7
      %v10116 = vsub.s32 %v10113, %v10115
      %v10117 = vrot.slane %v10103, %v10116
      %v10118 = vcombine.low %v10110, %v10117
      %v10119 = vcombine.low %v8574, %v8588
      %v10120 = vcombine.low %v8596, %v8598
      %v10121 = vcombine.low %v8581, %v8595
      %v10122 = vcombine.low %v8597, %v8599
      %v10124 = vunpack.c.l.s4 1966171168
      %v10125 = vunpack.c.0.s8 %v10124
      %v10126 = vlaneseq
      %v10127 = vshrl.u32 %v10126, 7
      %v10128 = vsub.s32 %v10125, %v10127
      %v10129 = vrot.slane %v10119, %v10128
      %v10131 = vunpack.c.l.s4 1966171168
      %v10132 = vunpack.c.0.s8 %v10131
      %v10133 = vlaneseq
      %v10134 = vshrl.u32 %v10133, 7
      %v10135 = vsub.s32 %v10132, %v10134
      %v10136 = vrot.slane %v10120, %v10135
      %v10138 = vunpack.c.l.s4 1966171168
      %v10139 = vunpack.c.0.s8 %v10138
      %v10140 = vlaneseq
      %v10141 = vshrl.u32 %v10140, 7
      %v10142 = vsub.s32 %v10139, %v10141
      %v10143 = vrot.slane %v10121, %v10142
      %v10145 = vunpack.c.l.s4 1966171168
      %v10146 = vunpack.c.0.s8 %v10145
      %v10147 = vlaneseq
      %v10148 = vshrl.u32 %v10147, 7
      %v10149 = vsub.s32 %v10146, %v10148
      %v10150 = vrot.slane %v10122, %v10149
      %v10151 = vcombine.low %v10129, %v10136
      %v10152 = vcombine.low %v10143, %v10150
      %v10154 = vunpack.c.l.s4 1966171168
      %v10155 = vunpack.c.0.s8 %v10154
      %v10156 = vlaneseq
      %v10157 = vshrl.u32 %v10156, 7
      %v10158 = vsub.s32 %v10155, %v10157
      %v10159 = vrot.slane %v10151, %v10158
      %v10161 = vunpack.c.l.s4 1966171168
      %v10162 = vunpack.c.0.s8 %v10161
      %v10163 = vlaneseq
      %v10164 = vshrl.u32 %v10163, 7
      %v10165 = vsub.s32 %v10162, %v10164
      %v10166 = vrot.slane %v10152, %v10165
      %v10167 = vcombine.low %v10159, %v10166
      %v10168 = vcombine.low %v8623, %v8637
      %v10169 = vcombine.low %v8645, %v8647
      %v10170 = vcombine.low %v8630, %v8644
      %v10171 = vcombine.low %v8646, %v8648
      %v10173 = vunpack.c.l.s4 1966171168
      %v10174 = vunpack.c.0.s8 %v10173
      %v10175 = vlaneseq
      %v10176 = vshrl.u32 %v10175, 7
      %v10177 = vsub.s32 %v10174, %v10176
      %v10178 = vrot.slane %v10168, %v10177
      %v10180 = vunpack.c.l.s4 1966171168
      %v10181 = vunpack.c.0.s8 %v10180
      %v10182 = vlaneseq
      %v10183 = vshrl.u32 %v10182, 7
      %v10184 = vsub.s32 %v10181, %v10183
      %v10185 = vrot.slane %v10169, %v10184
      %v10187 = vunpack.c.l.s4 1966171168
      %v10188 = vunpack.c.0.s8 %v10187
      %v10189 = vlaneseq
      %v10190 = vshrl.u32 %v10189, 7
      %v10191 = vsub.s32 %v10188, %v10190
      %v10192 = vrot.slane %v10170, %v10191
      %v10194 = vunpack.c.l.s4 1966171168
      %v10195 = vunpack.c.0.s8 %v10194
      %v10196 = vlaneseq
      %v10197 = vshrl.u32 %v10196, 7
      %v10198 = vsub.s32 %v10195, %v10197
      %v10199 = vrot.slane %v10171, %v10198
      %v10200 = vcombine.low %v10178, %v10185
      %v10201 = vcombine.low %v10192, %v10199
      %v10203 = vunpack.c.l.s4 1966171168
      %v10204 = vunpack.c.0.s8 %v10203
      %v10205 = vlaneseq
      %v10206 = vshrl.u32 %v10205, 7
      %v10207 = vsub.s32 %v10204, %v10206
      %v10208 = vrot.slane %v10200, %v10207
      %v10210 = vunpack.c.l.s4 1966171168
      %v10211 = vunpack.c.0.s8 %v10210
      %v10212 = vlaneseq
      %v10213 = vshrl.u32 %v10212, 7
      %v10214 = vsub.s32 %v10211, %v10213
      %v10215 = vrot.slane %v10201, %v10214
      %v10216 = vcombine.low %v10208, %v10215
      %v10217 = vcombine.low %v8672, %v8686
      %v10218 = vcombine.low %v8694, %v8696
      %v10219 = vcombine.low %v8679, %v8693
      %v10220 = vcombine.low %v8695, %v8697
      %v10222 = vunpack.c.l.s4 1966171168
      %v10223 = vunpack.c.0.s8 %v10222
      %v10224 = vlaneseq
      %v10225 = vshrl.u32 %v10224, 7
      %v10226 = vsub.s32 %v10223, %v10225
      %v10227 = vrot.slane %v10217, %v10226
      %v10229 = vunpack.c.l.s4 1966171168
      %v10230 = vunpack.c.0.s8 %v10229
      %v10231 = vlaneseq
      %v10232 = vshrl.u32 %v10231, 7
      %v10233 = vsub.s32 %v10230, %v10232
      %v10234 = vrot.slane %v10218, %v10233
      %v10236 = vunpack.c.l.s4 1966171168
      %v10237 = vunpack.c.0.s8 %v10236
      %v10238 = vlaneseq
      %v10239 = vshrl.u32 %v10238, 7
      %v10240 = vsub.s32 %v10237, %v10239
      %v10241 = vrot.slane %v10219, %v10240
      %v10243 = vunpack.c.l.s4 1966171168
      %v10244 = vunpack.c.0.s8 %v10243
      %v10245 = vlaneseq
      %v10246 = vshrl.u32 %v10245, 7
      %v10247 = vsub.s32 %v10244, %v10246
      %v10248 = vrot.slane %v10220, %v10247
      %v10249 = vcombine.low %v10227, %v10234
      %v10250 = vcombine.low %v10241, %v10248
      %v10252 = vunpack.c.l.s4 1966171168
      %v10253 = vunpack.c.0.s8 %v10252
      %v10254 = vlaneseq
      %v10255 = vshrl.u32 %v10254, 7
      %v10256 = vsub.s32 %v10253, %v10255
      %v10257 = vrot.slane %v10249, %v10256
      %v10259 = vunpack.c.l.s4 1966171168
      %v10260 = vunpack.c.0.s8 %v10259
      %v10261 = vlaneseq
      %v10262 = vshrl.u32 %v10261, 7
      %v10263 = vsub.s32 %v10260, %v10262
      %v10264 = vrot.slane %v10250, %v10263
      %v10265 = vcombine.low %v10257, %v10264
      %v10266 = vcombine.low %v8721, %v8735
      %v10267 = vcombine.low %v8743, %v8745
      %v10268 = vcombine.low %v8728, %v8742
      %v10269 = vcombine.low %v8744, %v8746
      %v10271 = vunpack.c.l.s4 1966171168
      %v10272 = vunpack.c.0.s8 %v10271
      %v10273 = vlaneseq
      %v10274 = vshrl.u32 %v10273, 7
      %v10275 = vsub.s32 %v10272, %v10274
      %v10276 = vrot.slane %v10266, %v10275
      %v10278 = vunpack.c.l.s4 1966171168
      %v10279 = vunpack.c.0.s8 %v10278
      %v10280 = vlaneseq
      %v10281 = vshrl.u32 %v10280, 7
      %v10282 = vsub.s32 %v10279, %v10281
      %v10283 = vrot.slane %v10267, %v10282
      %v10285 = vunpack.c.l.s4 1966171168
      %v10286 = vunpack.c.0.s8 %v10285
      %v10287 = vlaneseq
      %v10288 = vshrl.u32 %v10287, 7
      %v10289 = vsub.s32 %v10286, %v10288
      %v10290 = vrot.slane %v10268, %v10289
      %v10292 = vunpack.c.l.s4 1966171168
      %v10293 = vunpack.c.0.s8 %v10292
      %v10294 = vlaneseq
      %v10295 = vshrl.u32 %v10294, 7
      %v10296 = vsub.s32 %v10293, %v10295
      %v10297 = vrot.slane %v10269, %v10296
      %v10298 = vcombine.low %v10276, %v10283
      %v10299 = vcombine.low %v10290, %v10297
      %v10301 = vunpack.c.l.s4 1966171168
      %v10302 = vunpack.c.0.s8 %v10301
      %v10303 = vlaneseq
      %v10304 = vshrl.u32 %v10303, 7
      %v10305 = vsub.s32 %v10302, %v10304
      %v10306 = vrot.slane %v10298, %v10305
      %v10308 = vunpack.c.l.s4 1966171168
      %v10309 = vunpack.c.0.s8 %v10308
      %v10310 = vlaneseq
      %v10311 = vshrl.u32 %v10310, 7
      %v10312 = vsub.s32 %v10309, %v10311
      %v10313 = vrot.slane %v10299, %v10312
      %v10314 = vcombine.low %v10306, %v10313
      %v10315 = vcombine.low %v8770, %v8784
      %v10316 = vcombine.low %v8792, %v8794
      %v10317 = vcombine.low %v8777, %v8791
      %v10318 = vcombine.low %v8793, %v8795
      %v10320 = vunpack.c.l.s4 1966171168
      %v10321 = vunpack.c.0.s8 %v10320
      %v10322 = vlaneseq
      %v10323 = vshrl.u32 %v10322, 7
      %v10324 = vsub.s32 %v10321, %v10323
      %v10325 = vrot.slane %v10315, %v10324
      %v10327 = vunpack.c.l.s4 1966171168
      %v10328 = vunpack.c.0.s8 %v10327
      %v10329 = vlaneseq
      %v10330 = vshrl.u32 %v10329, 7
      %v10331 = vsub.s32 %v10328, %v10330
      %v10332 = vrot.slane %v10316, %v10331
      %v10334 = vunpack.c.l.s4 1966171168
      %v10335 = vunpack.c.0.s8 %v10334
      %v10336 = vlaneseq
      %v10337 = vshrl.u32 %v10336, 7
      %v10338 = vsub.s32 %v10335, %v10337
      %v10339 = vrot.slane %v10317, %v10338
      %v10341 = vunpack.c.l.s4 1966171168
      %v10342 = vunpack.c.0.s8 %v10341
      %v10343 = vlaneseq
      %v10344 = vshrl.u32 %v10343, 7
      %v10345 = vsub.s32 %v10342, %v10344
      %v10346 = vrot.slane %v10318, %v10345
      %v10347 = vcombine.low %v10325, %v10332
      %v10348 = vcombine.low %v10339, %v10346
      %v10350 = vunpack.c.l.s4 1966171168
      %v10351 = vunpack.c.0.s8 %v10350
      %v10352 = vlaneseq
      %v10353 = vshrl.u32 %v10352, 7
      %v10354 = vsub.s32 %v10351, %v10353
      %v10355 = vrot.slane %v10347, %v10354
      %v10357 = vunpack.c.l.s4 1966171168
      %v10358 = vunpack.c.0.s8 %v10357
      %v10359 = vlaneseq
      %v10360 = vshrl.u32 %v10359, 7
      %v10361 = vsub.s32 %v10358, %v10360
      %v10362 = vrot.slane %v10348, %v10361
      %v10363 = vcombine.low %v10355, %v10362
      %v10364 = vcombine.low %v8819, %v8833
      %v10365 = vcombine.low %v8841, %v8843
      %v10366 = vcombine.low %v8826, %v8840
      %v10367 = vcombine.low %v8842, %v8844
      %v10369 = vunpack.c.l.s4 1966171168
      %v10370 = vunpack.c.0.s8 %v10369
      %v10371 = vlaneseq
      %v10372 = vshrl.u32 %v10371, 7
      %v10373 = vsub.s32 %v10370, %v10372
      %v10374 = vrot.slane %v10364, %v10373
      %v10376 = vunpack.c.l.s4 1966171168
      %v10377 = vunpack.c.0.s8 %v10376
      %v10378 = vlaneseq
      %v10379 = vshrl.u32 %v10378, 7
      %v10380 = vsub.s32 %v10377, %v10379
      %v10381 = vrot.slane %v10365, %v10380
      %v10383 = vunpack.c.l.s4 1966171168
      %v10384 = vunpack.c.0.s8 %v10383
      %v10385 = vlaneseq
      %v10386 = vshrl.u32 %v10385, 7
      %v10387 = vsub.s32 %v10384, %v10386
      %v10388 = vrot.slane %v10366, %v10387
      %v10390 = vunpack.c.l.s4 1966171168
      %v10391 = vunpack.c.0.s8 %v10390
      %v10392 = vlaneseq
      %v10393 = vshrl.u32 %v10392, 7
      %v10394 = vsub.s32 %v10391, %v10393
      %v10395 = vrot.slane %v10367, %v10394
      %v10396 = vcombine.low %v10374, %v10381
      %v10397 = vcombine.low %v10388, %v10395
      %v10399 = vunpack.c.l.s4 1966171168
      %v10400 = vunpack.c.0.s8 %v10399
      %v10401 = vlaneseq
      %v10402 = vshrl.u32 %v10401, 7
      %v10403 = vsub.s32 %v10400, %v10402
      %v10404 = vrot.slane %v10396, %v10403
      %v10406 = vunpack.c.l.s4 1966171168
      %v10407 = vunpack.c.0.s8 %v10406
      %v10408 = vlaneseq
      %v10409 = vshrl.u32 %v10408, 7
      %v10410 = vsub.s32 %v10407, %v10409
      %v10411 = vrot.slane %v10397, %v10410
      %v10412 = vcombine.low %v10404, %v10411
      %v10413 = vcombine.low %v8868, %v8882
      %v10414 = vcombine.low %v8890, %v8892
      %v10415 = vcombine.low %v8875, %v8889
      %v10416 = vcombine.low %v8891, %v8893
      %v10418 = vunpack.c.l.s4 1966171168
      %v10419 = vunpack.c.0.s8 %v10418
      %v10420 = vlaneseq
      %v10421 = vshrl.u32 %v10420, 7
      %v10422 = vsub.s32 %v10419, %v10421
      %v10423 = vrot.slane %v10413, %v10422
      %v10425 = vunpack.c.l.s4 1966171168
      %v10426 = vunpack.c.0.s8 %v10425
      %v10427 = vlaneseq
      %v10428 = vshrl.u32 %v10427, 7
      %v10429 = vsub.s32 %v10426, %v10428
      %v10430 = vrot.slane %v10414, %v10429
      %v10432 = vunpack.c.l.s4 1966171168
      %v10433 = vunpack.c.0.s8 %v10432
      %v10434 = vlaneseq
      %v10435 = vshrl.u32 %v10434, 7
      %v10436 = vsub.s32 %v10433, %v10435
      %v10437 = vrot.slane %v10415, %v10436
      %v10439 = vunpack.c.l.s4 1966171168
      %v10440 = vunpack.c.0.s8 %v10439
      %v10441 = vlaneseq
      %v10442 = vshrl.u32 %v10441, 7
      %v10443 = vsub.s32 %v10440, %v10442
      %v10444 = vrot.slane %v10416, %v10443
      %v10445 = vcombine.low %v10423, %v10430
      %v10446 = vcombine.low %v10437, %v10444
      %v10448 = vunpack.c.l.s4 1966171168
      %v10449 = vunpack.c.0.s8 %v10448
      %v10450 = vlaneseq
      %v10451 = vshrl.u32 %v10450, 7
      %v10452 = vsub.s32 %v10449, %v10451
      %v10453 = vrot.slane %v10445, %v10452
      %v10455 = vunpack.c.l.s4 1966171168
      %v10456 = vunpack.c.0.s8 %v10455
      %v10457 = vlaneseq
      %v10458 = vshrl.u32 %v10457, 7
      %v10459 = vsub.s32 %v10456, %v10458
      %v10460 = vrot.slane %v10446, %v10459
      %v10461 = vcombine.low %v10453, %v10460
      %v10462 = vcombine.low %v8917, %v8931
      %v10463 = vcombine.low %v8939, %v8941
      %v10464 = vcombine.low %v8924, %v8938
      %v10465 = vcombine.low %v8940, %v8942
      %v10467 = vunpack.c.l.s4 1966171168
      %v10468 = vunpack.c.0.s8 %v10467
      %v10469 = vlaneseq
      %v10470 = vshrl.u32 %v10469, 7
      %v10471 = vsub.s32 %v10468, %v10470
      %v10472 = vrot.slane %v10462, %v10471
      %v10474 = vunpack.c.l.s4 1966171168
      %v10475 = vunpack.c.0.s8 %v10474
      %v10476 = vlaneseq
      %v10477 = vshrl.u32 %v10476, 7
      %v10478 = vsub.s32 %v10475, %v10477
      %v10479 = vrot.slane %v10463, %v10478
      %v10481 = vunpack.c.l.s4 1966171168
      %v10482 = vunpack.c.0.s8 %v10481
      %v10483 = vlaneseq
      %v10484 = vshrl.u32 %v10483, 7
      %v10485 = vsub.s32 %v10482, %v10484
      %v10486 = vrot.slane %v10464, %v10485
      %v10488 = vunpack.c.l.s4 1966171168
      %v10489 = vunpack.c.0.s8 %v10488
      %v10490 = vlaneseq
      %v10491 = vshrl.u32 %v10490, 7
      %v10492 = vsub.s32 %v10489, %v10491
      %v10493 = vrot.slane %v10465, %v10492
      %v10494 = vcombine.low %v10472, %v10479
      %v10495 = vcombine.low %v10486, %v10493
      %v10497 = vunpack.c.l.s4 1966171168
      %v10498 = vunpack.c.0.s8 %v10497
      %v10499 = vlaneseq
      %v10500 = vshrl.u32 %v10499, 7
      %v10501 = vsub.s32 %v10498, %v10500
      %v10502 = vrot.slane %v10494, %v10501
      %v10504 = vunpack.c.l.s4 1966171168
      %v10505 = vunpack.c.0.s8 %v10504
      %v10506 = vlaneseq
      %v10507 = vshrl.u32 %v10506, 7
      %v10508 = vsub.s32 %v10505, %v10507
      %v10509 = vrot.slane %v10495, %v10508
      %v10510 = vcombine.low %v10502, %v10509
      %v10511 = vcombine.low %v8966, %v8980
      %v10512 = vcombine.low %v8988, %v8990
      %v10513 = vcombine.low %v8973, %v8987
      %v10514 = vcombine.low %v8989, %v8991
      %v10516 = vunpack.c.l.s4 1966171168
      %v10517 = vunpack.c.0.s8 %v10516
      %v10518 = vlaneseq
      %v10519 = vshrl.u32 %v10518, 7
      %v10520 = vsub.s32 %v10517, %v10519
      %v10521 = vrot.slane %v10511, %v10520
      %v10523 = vunpack.c.l.s4 1966171168
      %v10524 = vunpack.c.0.s8 %v10523
      %v10525 = vlaneseq
      %v10526 = vshrl.u32 %v10525, 7
      %v10527 = vsub.s32 %v10524, %v10526
      %v10528 = vrot.slane %v10512, %v10527
      %v10530 = vunpack.c.l.s4 1966171168
      %v10531 = vunpack.c.0.s8 %v10530
      %v10532 = vlaneseq
      %v10533 = vshrl.u32 %v10532, 7
      %v10534 = vsub.s32 %v10531, %v10533
      %v10535 = vrot.slane %v10513, %v10534
      %v10537 = vunpack.c.l.s4 1966171168
      %v10538 = vunpack.c.0.s8 %v10537
      %v10539 = vlaneseq
      %v10540 = vshrl.u32 %v10539, 7
      %v10541 = vsub.s32 %v10538, %v10540
      %v10542 = vrot.slane %v10514, %v10541
      %v10543 = vcombine.low %v10521, %v10528
      %v10544 = vcombine.low %v10535, %v10542
      %v10546 = vunpack.c.l.s4 1966171168
      %v10547 = vunpack.c.0.s8 %v10546
      %v10548 = vlaneseq
      %v10549 = vshrl.u32 %v10548, 7
      %v10550 = vsub.s32 %v10547, %v10549
      %v10551 = vrot.slane %v10543, %v10550
      %v10553 = vunpack.c.l.s4 1966171168
      %v10554 = vunpack.c.0.s8 %v10553
      %v10555 = vlaneseq
      %v10556 = vshrl.u32 %v10555, 7
      %v10557 = vsub.s32 %v10554, %v10556
      %v10558 = vrot.slane %v10544, %v10557
      %v10559 = vcombine.low %v10551, %v10558
      %v10560 = vcombine.low %v9015, %v9029
      %v10561 = vcombine.low %v9037, %v9039
      %v10562 = vcombine.low %v9022, %v9036
      %v10563 = vcombine.low %v9038, %v9040
      %v10565 = vunpack.c.l.s4 1966171168
      %v10566 = vunpack.c.0.s8 %v10565
      %v10567 = vlaneseq
      %v10568 = vshrl.u32 %v10567, 7
      %v10569 = vsub.s32 %v10566, %v10568
      %v10570 = vrot.slane %v10560, %v10569
      %v10572 = vunpack.c.l.s4 1966171168
      %v10573 = vunpack.c.0.s8 %v10572
      %v10574 = vlaneseq
      %v10575 = vshrl.u32 %v10574, 7
      %v10576 = vsub.s32 %v10573, %v10575
      %v10577 = vrot.slane %v10561, %v10576
      %v10579 = vunpack.c.l.s4 1966171168
      %v10580 = vunpack.c.0.s8 %v10579
      %v10581 = vlaneseq
      %v10582 = vshrl.u32 %v10581, 7
      %v10583 = vsub.s32 %v10580, %v10582
      %v10584 = vrot.slane %v10562, %v10583
      %v10586 = vunpack.c.l.s4 1966171168
      %v10587 = vunpack.c.0.s8 %v10586
      %v10588 = vlaneseq
      %v10589 = vshrl.u32 %v10588, 7
      %v10590 = vsub.s32 %v10587, %v10589
      %v10591 = vrot.slane %v10563, %v10590
      %v10592 = vcombine.low %v10570, %v10577
      %v10593 = vcombine.low %v10584, %v10591
      %v10595 = vunpack.c.l.s4 1966171168
      %v10596 = vunpack.c.0.s8 %v10595
      %v10597 = vlaneseq
      %v10598 = vshrl.u32 %v10597, 7
      %v10599 = vsub.s32 %v10596, %v10598
      %v10600 = vrot.slane %v10592, %v10599
      %v10602 = vunpack.c.l.s4 1966171168
      %v10603 = vunpack.c.0.s8 %v10602
      %v10604 = vlaneseq
      %v10605 = vshrl.u32 %v10604, 7
      %v10606 = vsub.s32 %v10603, %v10605
      %v10607 = vrot.slane %v10593, %v10606
      %v10608 = vcombine.low %v10600, %v10607
      %v10609 = vcombine.low %v9064, %v9078
      %v10610 = vcombine.low %v9086, %v9088
      %v10611 = vcombine.low %v9071, %v9085
      %v10612 = vcombine.low %v9087, %v9089
      %v10614 = vunpack.c.l.s4 1966171168
      %v10615 = vunpack.c.0.s8 %v10614
      %v10616 = vlaneseq
      %v10617 = vshrl.u32 %v10616, 7
      %v10618 = vsub.s32 %v10615, %v10617
      %v10619 = vrot.slane %v10609, %v10618
      %v10621 = vunpack.c.l.s4 1966171168
      %v10622 = vunpack.c.0.s8 %v10621
      %v10623 = vlaneseq
      %v10624 = vshrl.u32 %v10623, 7
      %v10625 = vsub.s32 %v10622, %v10624
      %v10626 = vrot.slane %v10610, %v10625
      %v10628 = vunpack.c.l.s4 1966171168
      %v10629 = vunpack.c.0.s8 %v10628
      %v10630 = vlaneseq
      %v10631 = vshrl.u32 %v10630, 7
      %v10632 = vsub.s32 %v10629, %v10631
      %v10633 = vrot.slane %v10611, %v10632
      %v10635 = vunpack.c.l.s4 1966171168
      %v10636 = vunpack.c.0.s8 %v10635
      %v10637 = vlaneseq
      %v10638 = vshrl.u32 %v10637, 7
      %v10639 = vsub.s32 %v10636, %v10638
      %v10640 = vrot.slane %v10612, %v10639
      %v10641 = vcombine.low %v10619, %v10626
      %v10642 = vcombine.low %v10633, %v10640
      %v10644 = vunpack.c.l.s4 1966171168
      %v10645 = vunpack.c.0.s8 %v10644
      %v10646 = vlaneseq
      %v10647 = vshrl.u32 %v10646, 7
      %v10648 = vsub.s32 %v10645, %v10647
      %v10649 = vrot.slane %v10641, %v10648
      %v10651 = vunpack.c.l.s4 1966171168
      %v10652 = vunpack.c.0.s8 %v10651
      %v10653 = vlaneseq
      %v10654 = vshrl.u32 %v10653, 7
      %v10655 = vsub.s32 %v10652, %v10654
      %v10656 = vrot.slane %v10642, %v10655
      %v10657 = vcombine.low %v10649, %v10656
      %v10658 = vcombine.low %v9113, %v9127
      %v10659 = vcombine.low %v9135, %v9137
      %v10660 = vcombine.low %v9120, %v9134
      %v10661 = vcombine.low %v9136, %v9138
      %v10663 = vunpack.c.l.s4 1966171168
      %v10664 = vunpack.c.0.s8 %v10663
      %v10665 = vlaneseq
      %v10666 = vshrl.u32 %v10665, 7
      %v10667 = vsub.s32 %v10664, %v10666
      %v10668 = vrot.slane %v10658, %v10667
      %v10670 = vunpack.c.l.s4 1966171168
      %v10671 = vunpack.c.0.s8 %v10670
      %v10672 = vlaneseq
      %v10673 = vshrl.u32 %v10672, 7
      %v10674 = vsub.s32 %v10671, %v10673
      %v10675 = vrot.slane %v10659, %v10674
      %v10677 = vunpack.c.l.s4 1966171168
      %v10678 = vunpack.c.0.s8 %v10677
      %v10679 = vlaneseq
      %v10680 = vshrl.u32 %v10679, 7
      %v10681 = vsub.s32 %v10678, %v10680
      %v10682 = vrot.slane %v10660, %v10681
      %v10684 = vunpack.c.l.s4 1966171168
      %v10685 = vunpack.c.0.s8 %v10684
      %v10686 = vlaneseq
      %v10687 = vshrl.u32 %v10686, 7
      %v10688 = vsub.s32 %v10685, %v10687
      %v10689 = vrot.slane %v10661, %v10688
      %v10690 = vcombine.low %v10668, %v10675
      %v10691 = vcombine.low %v10682, %v10689
      %v10693 = vunpack.c.l.s4 1966171168
      %v10694 = vunpack.c.0.s8 %v10693
      %v10695 = vlaneseq
      %v10696 = vshrl.u32 %v10695, 7
      %v10697 = vsub.s32 %v10694, %v10696
      %v10698 = vrot.slane %v10690, %v10697
      %v10700 = vunpack.c.l.s4 1966171168
      %v10701 = vunpack.c.0.s8 %v10700
      %v10702 = vlaneseq
      %v10703 = vshrl.u32 %v10702, 7
      %v10704 = vsub.s32 %v10701, %v10703
      %v10705 = vrot.slane %v10691, %v10704
      %v10706 = vcombine.low %v10698, %v10705
      %10707 = vset.pattern.permute.xlu0 0
      %10708 = vperm.xlu0 %10707, %v9187
      %v10709 = vpop.permute.xlu0 %10708
      %10710 = vset.pattern.permute.xlu0 0
      %10711 = vperm.xlu0 %10710, %v9236
      %v10712 = vpop.permute.xlu0 %10711
      %10713 = vset.pattern.permute.xlu0 0
      %10714 = vperm.xlu0 %10713, %v9285
      %v10715 = vpop.permute.xlu0 %10714
      %10716 = vset.pattern.permute.xlu0 0
      %10717 = vperm.xlu0 %10716, %v9334
      %v10718 = vpop.permute.xlu0 %10717
      %10719 = vset.pattern.permute.xlu0 0
      %10720 = vperm.xlu0 %10719, %v9383
      %v10721 = vpop.permute.xlu0 %10720
      %10722 = vset.pattern.permute.xlu0 0
      %10723 = vperm.xlu0 %10722, %v9432
      %v10724 = vpop.permute.xlu0 %10723
      %10725 = vset.pattern.permute.xlu0 0
      %10726 = vperm.xlu0 %10725, %v9481
      %v10727 = vpop.permute.xlu0 %10726
      %10728 = vset.pattern.permute.xlu0 0
      %10729 = vperm.xlu0 %10728, %v9530
      %v10730 = vpop.permute.xlu0 %10729
      %10731 = vset.pattern.permute.xlu0 0
      %10732 = vperm.xlu0 %10731, %v9579
      %v10733 = vpop.permute.xlu0 %10732
      %10734 = vset.pattern.permute.xlu0 0
      %10735 = vperm.xlu0 %10734, %v9628
      %v10736 = vpop.permute.xlu0 %10735
      %10737 = vset.pattern.permute.xlu0 0
      %10738 = vperm.xlu0 %10737, %v9677
      %v10739 = vpop.permute.xlu0 %10738
      %10740 = vset.pattern.permute.xlu0 0
      %10741 = vperm.xlu0 %10740, %v9726
      %v10742 = vpop.permute.xlu0 %10741
      %10743 = vset.pattern.permute.xlu0 0
      %10744 = vperm.xlu0 %10743, %v9775
      %v10745 = vpop.permute.xlu0 %10744
      %10746 = vset.pattern.permute.xlu0 0
      %10747 = vperm.xlu0 %10746, %v9824
      %v10748 = vpop.permute.xlu0 %10747
      %10749 = vset.pattern.permute.xlu0 0
      %10750 = vperm.xlu0 %10749, %v9873
      %v10751 = vpop.permute.xlu0 %10750
      %10752 = vset.pattern.permute.xlu0 0
      %10753 = vperm.xlu0 %10752, %v9922
      %v10754 = vpop.permute.xlu0 %10753
      %10755 = vset.pattern.permute.xlu0 0
      %10756 = vperm.xlu0 %10755, %v9971
      %v10757 = vpop.permute.xlu0 %10756
      %10758 = vset.pattern.permute.xlu0 0
      %10759 = vperm.xlu0 %10758, %v10020
      %v10760 = vpop.permute.xlu0 %10759
      %10761 = vset.pattern.permute.xlu0 0
      %10762 = vperm.xlu0 %10761, %v10069
      %v10763 = vpop.permute.xlu0 %10762
      %10764 = vset.pattern.permute.xlu0 0
      %10765 = vperm.xlu0 %10764, %v10118
      %v10766 = vpop.permute.xlu0 %10765
      %10767 = vset.pattern.permute.xlu0 0
      %10768 = vperm.xlu0 %10767, %v10167
      %v10769 = vpop.permute.xlu0 %10768
      %10770 = vset.pattern.permute.xlu0 0
      %10771 = vperm.xlu0 %10770, %v10216
      %v10772 = vpop.permute.xlu0 %10771
      %10773 = vset.pattern.permute.xlu0 0
      %10774 = vperm.xlu0 %10773, %v10265
      %v10775 = vpop.permute.xlu0 %10774
      %10776 = vset.pattern.permute.xlu0 0
      %10777 = vperm.xlu0 %10776, %v10314
      %v10778 = vpop.permute.xlu0 %10777
      %10779 = vset.pattern.permute.xlu0 0
      %10780 = vperm.xlu0 %10779, %v10363
      %v10781 = vpop.permute.xlu0 %10780
      %10782 = vset.pattern.permute.xlu0 0
      %10783 = vperm.xlu0 %10782, %v10412
      %v10784 = vpop.permute.xlu0 %10783
      %10785 = vset.pattern.permute.xlu0 0
      %10786 = vperm.xlu0 %10785, %v10461
      %v10787 = vpop.permute.xlu0 %10786
      %10788 = vset.pattern.permute.xlu0 0
      %10789 = vperm.xlu0 %10788, %v10510
      %v10790 = vpop.permute.xlu0 %10789
      %10791 = vset.pattern.permute.xlu0 0
      %10792 = vperm.xlu0 %10791, %v10559
      %v10793 = vpop.permute.xlu0 %10792
      %10794 = vset.pattern.permute.xlu0 0
      %10795 = vperm.xlu0 %10794, %v10608
      %v10796 = vpop.permute.xlu0 %10795
      %10797 = vset.pattern.permute.xlu0 0
      %10798 = vperm.xlu0 %10797, %v10657
      %v10799 = vpop.permute.xlu0 %10798
      %10800 = vset.pattern.permute.xlu0 0
      %10801 = vperm.xlu0 %10800, %v10706
      %v10802 = vpop.permute.xlu0 %10801
      %v10803 = vlaneseq
      %v10804 = vand.u32 %v10803, 127
      %v10805 = vlaneseq
      %v10806 = vshrl.u32 %v10805, 7
      %v10807 = vsub.s32 %v10804, %v10806
      %v10808 = vrot.slane %v10709, %v10807
      %v10809 = vadd.s32 %v10804, 4294967288
      %v10810 = vlaneseq
      %v10811 = vshrl.u32 %v10810, 7
      %v10812 = vsub.s32 %v10809, %v10811
      %v10813 = vrot.slane %v10712, %v10812
      %vm10814 = vcmask 130112
      %v10815 = vsel %vm10814, %v10813, %v10808
      %v10816 = vadd.s32 %v10804, 4294967280
      %v10817 = vlaneseq
      %v10818 = vshrl.u32 %v10817, 7
      %v10819 = vsub.s32 %v10816, %v10818
      %v10820 = vrot.slane %v10715, %v10819
      %vm10821 = vcmask 195712
      %v10822 = vsel %vm10821, %v10820, %v10815
      %v10823 = vadd.s32 %v10804, 4294967272
      %v10824 = vlaneseq
      %v10825 = vshrl.u32 %v10824, 7
      %v10826 = vsub.s32 %v10823, %v10825
      %v10827 = vrot.slane %v10718, %v10826
      %vm10828 = vcmask 261312
      %v10829 = vsel %vm10828, %v10827, %v10822
      %v10830 = vadd.s32 %v10804, 4294967264
      %v10831 = vlaneseq
      %v10832 = vshrl.u32 %v10831, 7
      %v10833 = vsub.s32 %v10830, %v10832
      %v10834 = vrot.slane %v10721, %v10833
      %vm10835 = vcmask 326912
      %v10836 = vsel %vm10835, %v10834, %v10829
      %v10837 = vadd.s32 %v10804, 4294967256
      %v10838 = vlaneseq
      %v10839 = vshrl.u32 %v10838, 7
      %v10840 = vsub.s32 %v10837, %v10839
      %v10841 = vrot.slane %v10724, %v10840
      %vm10842 = vcmask 392512
      %v10843 = vsel %vm10842, %v10841, %v10836
      %v10844 = vadd.s32 %v10804, 4294967248
      %v10845 = vlaneseq
      %v10846 = vshrl.u32 %v10845, 7
      %v10847 = vsub.s32 %v10844, %v10846
      %v10848 = vrot.slane %v10727, %v10847
      %vm10849 = vcmask 458112
      %v10850 = vsel %vm10849, %v10848, %v10843
      %v10851 = vadd.s32 %v10804, 4294967240
      %v10852 = vlaneseq
      %v10853 = vshrl.u32 %v10852, 7
      %v10854 = vsub.s32 %v10851, %v10853
      %v10855 = vrot.slane %v10730, %v10854
      %vm10856 = vcmask 523712
      %v10857 = vsel %vm10856, %v10855, %v10850
      %v10858 = vadd.s32 %v10804, 4294967232
      %v10859 = vlaneseq
      %v10860 = vshrl.u32 %v10859, 7
      %v10861 = vsub.s32 %v10858, %v10860
      %v10862 = vrot.slane %v10733, %v10861
      %vm10863 = vcmask 589312
      %v10864 = vsel %vm10863, %v10862, %v10857
      %v10865 = vadd.s32 %v10804, 4294967224
      %v10866 = vlaneseq
      %v10867 = vshrl.u32 %v10866, 7
      %v10868 = vsub.s32 %v10865, %v10867
      %v10869 = vrot.slane %v10736, %v10868
      %vm10870 = vcmask 654912
      %v10871 = vsel %vm10870, %v10869, %v10864
      %v10872 = vadd.s32 %v10804, 4294967216
      %v10873 = vlaneseq
      %v10874 = vshrl.u32 %v10873, 7
      %v10875 = vsub.s32 %v10872, %v10874
      %v10876 = vrot.slane %v10739, %v10875
      %vm10877 = vcmask 720512
      %v10878 = vsel %vm10877, %v10876, %v10871
      %v10879 = vadd.s32 %v10804, 4294967208
      %v10880 = vlaneseq
      %v10881 = vshrl.u32 %v10880, 7
      %v10882 = vsub.s32 %v10879, %v10881
      %v10883 = vrot.slane %v10742, %v10882
      %vm10884 = vcmask 786112
      %v10885 = vsel %vm10884, %v10883, %v10878
      %v10886 = vadd.s32 %v10804, 4294967200
      %v10887 = vlaneseq
      %v10888 = vshrl.u32 %v10887, 7
      %v10889 = vsub.s32 %v10886, %v10888
      %v10890 = vrot.slane %v10745, %v10889
      %vm10891 = vcmask 851712
      %v10892 = vsel %vm10891, %v10890, %v10885
      %v10893 = vadd.s32 %v10804, 4294967192
      %v10894 = vlaneseq
      %v10895 = vshrl.u32 %v10894, 7
      %v10896 = vsub.s32 %v10893, %v10895
      %v10897 = vrot.slane %v10748, %v10896
      %vm10898 = vcmask 917312
      %v10899 = vsel %vm10898, %v10897, %v10892
      %v10900 = vadd.s32 %v10804, 4294967184
      %v10901 = vlaneseq
      %v10902 = vshrl.u32 %v10901, 7
      %v10903 = vsub.s32 %v10900, %v10902
      %v10904 = vrot.slane %v10751, %v10903
      %vm10905 = vcmask 982912
      %v10906 = vsel %vm10905, %v10904, %v10899
      %v10907 = vadd.s32 %v10804, 4294967176
      %v10908 = vlaneseq
      %v10909 = vshrl.u32 %v10908, 7
      %v10910 = vsub.s32 %v10907, %v10909
      %v10911 = vrot.slane %v10754, %v10910
      %vm10912 = vcmask 1048512
      %v10913 = vsel %vm10912, %v10911, %v10906
      %v10914 = vlaneseq
      %v10915 = vshrl.u32 %v10914, 7
      %v10916 = vsub.s32 %v10804, %v10915
      %v10917 = vrot.slane %v10757, %v10916
      %v10918 = vlaneseq
      %v10919 = vshrl.u32 %v10918, 7
      %v10920 = vsub.s32 %v10809, %v10919
      %v10921 = vrot.slane %v10760, %v10920
      %v10922 = vsel %vm10814, %v10921, %v10917
      %v10923 = vlaneseq
      %v10924 = vshrl.u32 %v10923, 7
      %v10925 = vsub.s32 %v10816, %v10924
      %v10926 = vrot.slane %v10763, %v10925
      %v10927 = vsel %vm10821, %v10926, %v10922
      %v10928 = vlaneseq
      %v10929 = vshrl.u32 %v10928, 7
      %v10930 = vsub.s32 %v10823, %v10929
      %v10931 = vrot.slane %v10766, %v10930
      %v10932 = vsel %vm10828, %v10931, %v10927
      %v10933 = vlaneseq
      %v10934 = vshrl.u32 %v10933, 7
      %v10935 = vsub.s32 %v10830, %v10934
      %v10936 = vrot.slane %v10769, %v10935
      %v10937 = vsel %vm10835, %v10936, %v10932
      %v10938 = vlaneseq
      %v10939 = vshrl.u32 %v10938, 7
      %v10940 = vsub.s32 %v10837, %v10939
      %v10941 = vrot.slane %v10772, %v10940
      %v10942 = vsel %vm10842, %v10941, %v10937
      %v10943 = vlaneseq
      %v10944 = vshrl.u32 %v10943, 7
      %v10945 = vsub.s32 %v10844, %v10944
      %v10946 = vrot.slane %v10775, %v10945
      %v10947 = vsel %vm10849, %v10946, %v10942
      %v10948 = vlaneseq
      %v10949 = vshrl.u32 %v10948, 7
      %v10950 = vsub.s32 %v10851, %v10949
      %v10951 = vrot.slane %v10778, %v10950
      %v10952 = vsel %vm10856, %v10951, %v10947
      %v10953 = vlaneseq
      %v10954 = vshrl.u32 %v10953, 7
      %v10955 = vsub.s32 %v10858, %v10954
      %v10956 = vrot.slane %v10781, %v10955
      %v10957 = vsel %vm10863, %v10956, %v10952
      %v10958 = vlaneseq
      %v10959 = vshrl.u32 %v10958, 7
      %v10960 = vsub.s32 %v10865, %v10959
      %v10961 = vrot.slane %v10784, %v10960
      %v10962 = vsel %vm10870, %v10961, %v10957
      %v10963 = vlaneseq
      %v10964 = vshrl.u32 %v10963, 7
      %v10965 = vsub.s32 %v10872, %v10964
      %v10966 = vrot.slane %v10787, %v10965
      %v10967 = vsel %vm10877, %v10966, %v10962
      %v10968 = vlaneseq
      %v10969 = vshrl.u32 %v10968, 7
      %v10970 = vsub.s32 %v10879, %v10969
      %v10971 = vrot.slane %v10790, %v10970
      %v10972 = vsel %vm10884, %v10971, %v10967
      %v10973 = vlaneseq
      %v10974 = vshrl.u32 %v10973, 7
      %v10975 = vsub.s32 %v10886, %v10974
      %v10976 = vrot.slane %v10793, %v10975
      %v10977 = vsel %vm10891, %v10976, %v10972
      %v10978 = vlaneseq
      %v10979 = vshrl.u32 %v10978, 7
      %v10980 = vsub.s32 %v10893, %v10979
      %v10981 = vrot.slane %v10796, %v10980
      %v10982 = vsel %vm10898, %v10981, %v10977
      %v10983 = vlaneseq
      %v10984 = vshrl.u32 %v10983, 7
      %v10985 = vsub.s32 %v10900, %v10984
      %v10986 = vrot.slane %v10799, %v10985
      %v10987 = vsel %vm10905, %v10986, %v10982
      %v10988 = vlaneseq
      %v10989 = vshrl.u32 %v10988, 7
      %v10990 = vsub.s32 %v10907, %v10989
      %v10991 = vrot.slane %v10802, %v10990
      %v10992 = vsel %vm10912, %v10991, %v10987
      %v10993 = vcombine.low %v10913, %v10992
      %v10995 = vunpack.c.l.s4 1966171168
      %v10996 = vunpack.c.0.s8 %v10995
      %v10997 = vlaneseq
      %v10998 = vshrl.u32 %v10997, 7
      %v10999 = vsub.s32 %v10996, %v10998
      %v11000 = vrot.slane %v10993, %v10999
      %v11002 = vunpack.c.l.s4 1966171168
      %v11003 = vunpack.c.0.s8 %v11002
      %v11004 = vlaneseq
      %v11005 = vshrl.u32 %v11004, 7
      %v11006 = vsub.s32 %v11003, %v11005
      %v11007 = vrot.slane %v11000, %v11006
      %v11009 = vlaneseq
      %vm11010 = vcmp.ge.s32.totalorder %v11009, 0
      %vm11011 = vcmp.lt.s32.totalorder %v11009, 256
      %vm11012 = vmand %vm11010, %vm11011
      %11013 = vst.msk [vmem:[%s334] sm:$0x3] %vm11012, %v11007
      %p11014 = scmp.lt.s32.totalorder %s22, 1
      %s11015 = scalar_select %p11014, %s22, 1
      %s11016 = smul.addr %s11015, 2
      %s11017 = scalar_lea.vmem %s9, %s11016
      // Predicated region
      $region57: #{exatrkx_filter_forward.1} parent=55 // pred_check
        %p11018 = pneg %p234
      $region58: #{exatrkx_filter_forward.1} parent=55 // pred_check_branch
        %11020 = sbr.rel (%p11018) target = $region60
      $region59: #{exatrkx_filter_forward.1} parent=55 // pred_region
        _
      $region60: #{exatrkx_filter_forward.1} parent=55 // pred_fallthru
        _
    $region56: #{exatrkx_filter_forward.1} parent=5 // pred_fallthru
      _
    %p11021 = scmp.le.s32.totalorder 2, %s17
    // Predicated region
    $region61: #{exatrkx_filter_forward.1} parent=5 // pred_check
      %p11022 = pneg %p11021
    $region62: #{exatrkx_filter_forward.1} parent=5 // pred_check_branch
      %11024 = sbr.rel (%p11022) target = $region64
    $region63: #{exatrkx_filter_forward.1} parent=5 // pred_region
      %s11025 = ssub.s32 %s17, 2
      // Predicated region
      $region65: #{exatrkx_filter_forward.1} parent=63 // pred_check
        %p11026 = pneg %p240
      $region66: #{exatrkx_filter_forward.1} parent=63 // pred_check_branch
        %11028 = sbr.rel (%p11026) target = $region68
      $region67: #{exatrkx_filter_forward.1} parent=63 // pred_region
        %p11029 = scmp.lt.s32.totalorder %s23, 1
        %s11030 = scalar_select %p11029, %s23, 1
        %s11031 = smul.addr %s11030, 2
        %s11032 = scalar_lea.vmem %s9, %s11031
      $region68: #{exatrkx_filter_forward.1} parent=63 // pred_fallthru
        _
    $region64: #{exatrkx_filter_forward.1} parent=5 // pred_fallthru
      _
  $region6: #{exatrkx_filter_forward.1} parent=0 // loop_footer
    %s21 = sadd.s32 1, %s17
  $region7: #{exatrkx_filter_forward.1} parent=0 // loop_footer_branch
    %16 = sbr.rel target = $region3
  $region8: #{exatrkx_filter_forward.1} parent=0 // loop_exit
    _

</llo_original>
